<compile_context>
chip_gen: v6e
topology: v6e:2x2x1
jax: 0.10.0
libtpu: 0.0.40
codegen_flags: <defaults>
</compile_context>

<pallas_src>
import jax
import jax.numpy as jnp
import numpy as np
from jax import lax
from jax.experimental import pallas as pl
from jax.experimental.pallas import tpu as pltpu

INPUT_DIM = 16
HIDDEN_DIMS = (64, 96, 128)
OUTPUT_DIM = 128
B = 2
T = 8

NB = len(HIDDEN_DIMS)   # 3 branches
HP = 128                # per-branch hidden width, padded to a full lane tile
NG = 4                  # gates: i, f, g, o (PyTorch order)
GWB = NG * HP           # 512: per-branch column width (gate-major)
WTOT = NB * GWB         # 1536: total projected width


def xlstm_branch_kernel(x_ref, wih_ref, whh_ref, b_ref, fcw_ref, fcb_ref,
                        out_ref):
    TB = x_ref.shape[0]          # T * Bp  (static)
    Bp = out_ref.shape[0]        # padded batch (multiple of 8, static)
    T_ = TB // Bp                # static python int

    # Hoisted input projection for ALL timesteps, biases folded in.
    # (T*Bp, D) @ (D, 1536) -> (T*Bp, 1536); Bp multiple of 8 keeps every
    # per-timestep row slice sublane-aligned.
    xw = (jnp.dot(x_ref[...], wih_ref[...],
                  preferred_element_type=jnp.float32) + b_ref[...])

    hs = [jnp.zeros((Bp, HP), jnp.float32) for _ in range(NB)]
    cs = [jnp.zeros((Bp, HP), jnp.float32) for _ in range(NB)]

    # Fully unrolled time loop; per branch: one (Bp,128)@(128,512) MXU dot.
    # Column offsets (branch*512 + gate*128) are all lane-aligned.
    for t in range(T_):
        xw_t = xw[t * Bp:(t + 1) * Bp, :]
        for bi in range(NB):
            pre = xw_t[:, bi * GWB:(bi + 1) * GWB] + jnp.dot(
                hs[bi], whh_ref[bi], preferred_element_type=jnp.float32)
            i = jax.nn.sigmoid(pre[:, 0 * HP:1 * HP])
            f = jax.nn.sigmoid(pre[:, 1 * HP:2 * HP])
            g = jnp.tanh(pre[:, 2 * HP:3 * HP])
            o = jax.nn.sigmoid(pre[:, 3 * HP:4 * HP])
            cs[bi] = f * cs[bi] + i * g
            hs[bi] = o * jnp.tanh(cs[bi])

    # Final fc: accumulate three (Bp,128)@(128,128) blocks (padded rows = 0).
    acc = jnp.dot(hs[0], fcw_ref[0], preferred_element_type=jnp.float32)
    for bi in range(1, NB):
        acc = acc + jnp.dot(hs[bi], fcw_ref[bi],
                            preferred_element_type=jnp.float32)
    out_ref[...] = (acc + fcb_ref[...]).astype(out_ref.dtype)


def make_params(key):
    """Deterministic synthetic params, PyTorch-shaped (W_ih: (4H,D), etc.)."""
    params = {}
    keys = jax.random.split(key, 14)
    idx = 0
    for li, H in enumerate(HIDDEN_DIMS, start=1):
        bound = 1.0 / np.sqrt(H)
        params[f"W_ih{li}"] = jax.random.uniform(
            keys[idx], (4 * H, INPUT_DIM), jnp.float32, -bound, bound); idx += 1
        params[f"W_hh{li}"] = jax.random.uniform(
            keys[idx], (4 * H, H), jnp.float32, -bound, bound); idx += 1
        params[f"b_ih{li}"] = jax.random.uniform(
            keys[idx], (4 * H,), jnp.float32, -bound, bound); idx += 1
        params[f"b_hh{li}"] = jax.random.uniform(
            keys[idx], (4 * H,), jnp.float32, -bound, bound); idx += 1
    fan_in = sum(HIDDEN_DIMS)
    bound = 1.0 / np.sqrt(fan_in)
    params["fc_w"] = jax.random.uniform(
        keys[12], (OUTPUT_DIM, fan_in), jnp.float32, -bound, bound)
    params["fc_b"] = jax.random.uniform(
        keys[13], (OUTPUT_DIM,), jnp.float32, -bound, bound)
    return params


def pack_params(params):
    """One-time (init-time) numpy packing into per-branch, gate-major,
    128-padded slabs.  Column layout for wih/bias: branch-major, then gate,
    each gate slot padded to 128 lanes:
        cols [b*512 + g*128 : b*512 + g*128 + H_b]  <-  (branch b, gate g).
    whh is (3, 128, 512): rows = branch-b hidden (padded to 128), cols as above
    within the branch.  fcw is (3, 128, 128) with padded rows exactly zero."""
    D = INPUT_DIM
    wih_all = np.zeros((D, WTOT), np.float32)
    whh_all = np.zeros((NB, HP, GWB), np.float32)
    b_all = np.zeros((1, WTOT), np.float32)
    for bi, H in enumerate(HIDDEN_DIMS):
        W_ih = np.asarray(params[f"W_ih{bi + 1}"])            # (4H, D)
        W_hh = np.asarray(params[f"W_hh{bi + 1}"])            # (4H, H)
        bsum = np.asarray(params[f"b_ih{bi + 1}"]
                          + params[f"b_hh{bi + 1}"])          # (4H,)
        W_ih_g = W_ih.reshape(NG, H, D)
        W_hh_g = W_hh.reshape(NG, H, H)
        b_g = bsum.reshape(NG, H)
        for g in range(NG):
            c0 = bi * GWB + g * HP
            wih_all[:, c0:c0 + H] = W_ih_g[g].T
            whh_all[bi, :H, g * HP:g * HP + H] = W_hh_g[g].T
            b_all[0, c0:c0 + H] = b_g[g]

    fc_wT = np.asarray(params["fc_w"]).T                      # (sum(H), 128)
    fcw_pad = np.zeros((NB, HP, OUTPUT_DIM), np.float32)
    off = 0
    for bi, H in enumerate(HIDDEN_DIMS):
        fcw_pad[bi, :H, :] = fc_wT[off:off + H, :]
        off += H
    fcb = np.asarray(params["fc_b"]).reshape(1, OUTPUT_DIM)

    return (jnp.asarray(wih_all), jnp.asarray(whh_all), jnp.asarray(b_all),
            jnp.asarray(fcw_pad), jnp.asarray(fcb))


def _cost_estimate(batch_p, seq):
    flops = (2 * seq * batch_p * INPUT_DIM * WTOT            # input projection
             + 2 * seq * NB * batch_p * HP * GWB             # recurrence
             + 2 * NB * batch_p * HP * OUTPUT_DIM)           # fc
    transcendentals = seq * NB * 5 * batch_p * HP            # 3 sigm + 2 tanh
    bytes_accessed = 4 * (seq * batch_p * INPUT_DIM + INPUT_DIM * WTOT
                          + NB * HP * GWB + WTOT
                          + NB * HP * OUTPUT_DIM + OUTPUT_DIM
                          + batch_p * OUTPUT_DIM)
    return pl.CostEstimate(flops=flops, transcendentals=transcendentals,
                           bytes_accessed=bytes_accessed)


@jax.jit
def xlstm_branch_forward(x, packed):
    """x: (B, T, INPUT_DIM), batch-first like PyTorch.  `packed` is the output
    of pack_params() computed once at init (no per-call host work)."""
    wih, whh, bias, fcw, fcb = packed
    batch, seq, dim = x.shape
    Bp = max(8, -(-batch // 8) * 8)          # pad batch to a sublane multiple

    # time-major, batch padded with zero rows, flattened to (T*Bp, D):
    # row t*Bp + b = x[b, t]  (padded rows are discarded at the end).
    xt = jnp.transpose(x, (1, 0, 2)).astype(jnp.float32)       # (T, B, D)
    xt = jnp.pad(xt, ((0, 0), (0, Bp - batch), (0, 0)))
    x2d = xt.reshape(seq * Bp, dim)

    out = pl.pallas_call(
        xlstm_branch_kernel,
        out_shape=jax.ShapeDtypeStruct((Bp, OUTPUT_DIM), jnp.float32),
        in_specs=[pl.BlockSpec(memory_space=pltpu.MemorySpace.VMEM)] * 6,
        out_specs=pl.BlockSpec(memory_space=pltpu.MemorySpace.VMEM),
        cost_estimate=_cost_estimate(Bp, seq),
    )(x2d, wih, whh, bias, fcw, fcb)
    return out[:batch]


# ---------------- pure-JAX reference (PyTorch LSTM semantics) ----------------
def _lstm_last_hidden_ref(x, W_ih, W_hh, b_ih, b_hh):
    H = W_hh.shape[1]
    batch = x.shape[0]
    h = jnp.zeros((batch, H), jnp.float32)
    c = jnp.zeros((batch, H), jnp.float32)

    def step(carry, x_t):
        h, c = carry
        g = x_t @ W_ih.T + b_ih + h @ W_hh.T + b_hh
        i, f, gg, o = jnp.split(g, 4, axis=-1)
        c = jax.nn.sigmoid(f) * c + jax.nn.sigmoid(i) * jnp.tanh(gg)
        h = jax.nn.sigmoid(o) * jnp.tanh(c)
        return (h, c), None

    (h, c), _ = lax.scan(step, (h, c), jnp.swapaxes(x, 0, 1))
    return h


def xlstm_branch_reference(x, params):
    hs = []
    for li in range(1, 4):
        hs.append(_lstm_last_hidden_ref(
            x, params[f"W_ih{li}"], params[f"W_hh{li}"],
            params[f"b_ih{li}"], params[f"b_hh{li}"]))
    feat = jnp.concatenate(hs, axis=-1)
    return feat @ params["fc_w"].T + params["fc_b"]


if __name__ == "__main__":
    key = jax.random.PRNGKey(0)
    kx, kp = jax.random.split(key)
    x = jax.random.normal(kx, (B, T, INPUT_DIM), jnp.float32)
    params = make_params(kp)

    # Packing happens once, outside the forward path.
    packed = pack_params(params)

    out = xlstm_branch_forward(x, packed)
    out = jax.block_until_ready(out)

    ref = jax.block_until_ready(xlstm_branch_reference(x, params))
    np.testing.assert_allclose(np.asarray(out), np.asarray(ref),
                               rtol=1e-4, atol=1e-4)
    print("KERNEL_OK")
</pallas_src>

<mosaic_0001>
module attributes {stable_mosaic.version = 11 : i64} {
  func.func @xlstm_branch_kernel(%arg0: memref<64x16xf32, #tpu.memory_space<vmem>>, %arg1: memref<16x1536xf32, #tpu.memory_space<vmem>>, %arg2: memref<3x128x512xf32, #tpu.memory_space<vmem>>, %arg3: memref<1x1536xf32, #tpu.memory_space<vmem>>, %arg4: memref<3x128x128xf32, #tpu.memory_space<vmem>>, %arg5: memref<1x128xf32, #tpu.memory_space<vmem>>, %arg6: memref<8x128xf32, #tpu.memory_space<vmem>>) attributes {dimension_semantics = [], scalar_prefetch = 0 : i64, scratch_operands = 0 : i64, tpu.core_type = #tpu.core_type<tc>} {
    %c0 = arith.constant 0 : index
    %c0_0 = arith.constant 0 : index
    %0 = vector.load %arg0[%c0, %c0_0] : memref<64x16xf32, #tpu.memory_space<vmem>>, vector<64x16xf32>
    %c0_1 = arith.constant 0 : index
    %c0_2 = arith.constant 0 : index
    %1 = vector.load %arg1[%c0_1, %c0_2] : memref<16x1536xf32, #tpu.memory_space<vmem>>, vector<16x1536xf32>
    %cst = arith.constant dense<0.000000e+00> : vector<64x1536xf32>
    %2 = tpu.matmul %0, %1, %cst {dimension_numbers = #tpu.dot_dimension_numbers<[1], [0], [0], [1], [0, 0, 1, 1], [], []>} : vector<64x16xf32>, vector<16x1536xf32>, vector<64x1536xf32> -> vector<64x1536xf32>
    %c0_3 = arith.constant 0 : index
    %c0_4 = arith.constant 0 : index
    %3 = vector.load %arg3[%c0_3, %c0_4] : memref<1x1536xf32, #tpu.memory_space<vmem>>, vector<1x1536xf32>
    %4 = vector.broadcast %3 : vector<1x1536xf32> to vector<64x1536xf32>
    %5 = arith.addf %2, %4 : vector<64x1536xf32>
    %cst_5 = arith.constant 0.000000e+00 : f32
    %6 = vector.broadcast %cst_5 : f32 to vector<8x128xf32>
    %cst_6 = arith.constant 0.000000e+00 : f32
    %7 = vector.broadcast %cst_6 : f32 to vector<8x128xf32>
    %cst_7 = arith.constant 0.000000e+00 : f32
    %8 = vector.broadcast %cst_7 : f32 to vector<8x128xf32>
    %cst_8 = arith.constant 0.000000e+00 : f32
    %9 = vector.broadcast %cst_8 : f32 to vector<8x128xf32>
    %cst_9 = arith.constant 0.000000e+00 : f32
    %10 = vector.broadcast %cst_9 : f32 to vector<8x128xf32>
    %cst_10 = arith.constant 0.000000e+00 : f32
    %11 = vector.broadcast %cst_10 : f32 to vector<8x128xf32>
    %12 = vector.extract_strided_slice %5 {offsets = [0, 0], sizes = [8, 1536], strides = [1, 1]} : vector<64x1536xf32> to vector<8x1536xf32>
    %13 = vector.extract_strided_slice %12 {offsets = [0, 0], sizes = [8, 512], strides = [1, 1]} : vector<8x1536xf32> to vector<8x512xf32>
    %c0_11 = arith.constant 0 : index
    %c0_12 = arith.constant 0 : index
    %c0_13 = arith.constant 0 : index
    %14 = vector.load %arg2[%c0_11, %c0_12, %c0_13] : memref<3x128x512xf32, #tpu.memory_space<vmem>>, vector<1x128x512xf32>
    %15 = vector.shape_cast %14 : vector<1x128x512xf32> to vector<128x512xf32>
    %cst_14 = arith.constant dense<0.000000e+00> : vector<8x512xf32>
    %16 = tpu.matmul %6, %15, %cst_14 {dimension_numbers = #tpu.dot_dimension_numbers<[1], [0], [0], [1], [0, 0, 1, 1], [], []>} : vector<8x128xf32>, vector<128x512xf32>, vector<8x512xf32> -> vector<8x512xf32>
    %17 = arith.addf %13, %16 : vector<8x512xf32>
    %18 = vector.extract_strided_slice %17 {offsets = [0, 0], sizes = [8, 128], strides = [1, 1]} : vector<8x512xf32> to vector<8x128xf32>
    %19 = arith.negf %18 : vector<8x128xf32>
    %20 = math.exp %19 : vector<8x128xf32>
    %cst_15 = arith.constant 1.000000e+00 : f32
    %21 = vector.broadcast %cst_15 : f32 to vector<8x128xf32>
    %22 = arith.addf %21, %20 : vector<8x128xf32>
    %23 = arith.divf %21, %22 : vector<8x128xf32>
    %24 = vector.extract_strided_slice %17 {offsets = [0, 128], sizes = [8, 128], strides = [1, 1]} : vector<8x512xf32> to vector<8x128xf32>
    %25 = arith.negf %24 : vector<8x128xf32>
    %26 = math.exp %25 : vector<8x128xf32>
    %cst_16 = arith.constant 1.000000e+00 : f32
    %27 = vector.broadcast %cst_16 : f32 to vector<8x128xf32>
    %28 = arith.addf %27, %26 : vector<8x128xf32>
    %29 = arith.divf %27, %28 : vector<8x128xf32>
    %30 = vector.extract_strided_slice %17 {offsets = [0, 256], sizes = [8, 128], strides = [1, 1]} : vector<8x512xf32> to vector<8x128xf32>
    %31 = math.tanh %30 : vector<8x128xf32>
    %32 = vector.extract_strided_slice %17 {offsets = [0, 384], sizes = [8, 128], strides = [1, 1]} : vector<8x512xf32> to vector<8x128xf32>
    %33 = arith.negf %32 : vector<8x128xf32>
    %34 = math.exp %33 : vector<8x128xf32>
    %cst_17 = arith.constant 1.000000e+00 : f32
    %35 = vector.broadcast %cst_17 : f32 to vector<8x128xf32>
    %36 = arith.addf %35, %34 : vector<8x128xf32>
    %37 = arith.divf %35, %36 : vector<8x128xf32>
    %38 = arith.mulf %29, %9 : vector<8x128xf32>
    %39 = arith.mulf %23, %31 : vector<8x128xf32>
    %40 = arith.addf %38, %39 : vector<8x128xf32>
    %41 = math.tanh %40 : vector<8x128xf32>
    %42 = arith.mulf %37, %41 : vector<8x128xf32>
    %43 = vector.extract_strided_slice %12 {offsets = [0, 512], sizes = [8, 512], strides = [1, 1]} : vector<8x1536xf32> to vector<8x512xf32>
    %c1 = arith.constant 1 : index
    %c0_18 = arith.constant 0 : index
    %c0_19 = arith.constant 0 : index
    %44 = vector.load %arg2[%c1, %c0_18, %c0_19] : memref<3x128x512xf32, #tpu.memory_space<vmem>>, vector<1x128x512xf32>
    %45 = vector.shape_cast %44 : vector<1x128x512xf32> to vector<128x512xf32>
    %cst_20 = arith.constant dense<0.000000e+00> : vector<8x512xf32>
    %46 = tpu.matmul %7, %45, %cst_20 {dimension_numbers = #tpu.dot_dimension_numbers<[1], [0], [0], [1], [0, 0, 1, 1], [], []>} : vector<8x128xf32>, vector<128x512xf32>, vector<8x512xf32> -> vector<8x512xf32>
    %47 = arith.addf %43, %46 : vector<8x512xf32>
    %48 = vector.extract_strided_slice %47 {offsets = [0, 0], sizes = [8, 128], strides = [1, 1]} : vector<8x512xf32> to vector<8x128xf32>
    %49 = arith.negf %48 : vector<8x128xf32>
    %50 = math.exp %49 : vector<8x128xf32>
    %cst_21 = arith.constant 1.000000e+00 : f32
    %51 = vector.broadcast %cst_21 : f32 to vector<8x128xf32>
    %52 = arith.addf %51, %50 : vector<8x128xf32>
    %53 = arith.divf %51, %52 : vector<8x128xf32>
    %54 = vector.extract_strided_slice %47 {offsets = [0, 128], sizes = [8, 128], strides = [1, 1]} : vector<8x512xf32> to vector<8x128xf32>
    %55 = arith.negf %54 : vector<8x128xf32>
    %56 = math.exp %55 : vector<8x128xf32>
    %cst_22 = arith.constant 1.000000e+00 : f32
    %57 = vector.broadcast %cst_22 : f32 to vector<8x128xf32>
    %58 = arith.addf %57, %56 : vector<8x128xf32>
    %59 = arith.divf %57, %58 : vector<8x128xf32>
    %60 = vector.extract_strided_slice %47 {offsets = [0, 256], sizes = [8, 128], strides = [1, 1]} : vector<8x512xf32> to vector<8x128xf32>
    %61 = math.tanh %60 : vector<8x128xf32>
    %62 = vector.extract_strided_slice %47 {offsets = [0, 384], sizes = [8, 128], strides = [1, 1]} : vector<8x512xf32> to vector<8x128xf32>
    %63 = arith.negf %62 : vector<8x128xf32>
    %64 = math.exp %63 : vector<8x128xf32>
    %cst_23 = arith.constant 1.000000e+00 : f32
    %65 = vector.broadcast %cst_23 : f32 to vector<8x128xf32>
    %66 = arith.addf %65, %64 : vector<8x128xf32>
    %67 = arith.divf %65, %66 : vector<8x128xf32>
    %68 = arith.mulf %59, %10 : vector<8x128xf32>
    %69 = arith.mulf %53, %61 : vector<8x128xf32>
    %70 = arith.addf %68, %69 : vector<8x128xf32>
    %71 = math.tanh %70 : vector<8x128xf32>
    %72 = arith.mulf %67, %71 : vector<8x128xf32>
    %73 = vector.extract_strided_slice %12 {offsets = [0, 1024], sizes = [8, 512], strides = [1, 1]} : vector<8x1536xf32> to vector<8x512xf32>
    %c2 = arith.constant 2 : index
    %c0_24 = arith.constant 0 : index
    %c0_25 = arith.constant 0 : index
    %74 = vector.load %arg2[%c2, %c0_24, %c0_25] : memref<3x128x512xf32, #tpu.memory_space<vmem>>, vector<1x128x512xf32>
    %75 = vector.shape_cast %74 : vector<1x128x512xf32> to vector<128x512xf32>
    %cst_26 = arith.constant dense<0.000000e+00> : vector<8x512xf32>
    %76 = tpu.matmul %8, %75, %cst_26 {dimension_numbers = #tpu.dot_dimension_numbers<[1], [0], [0], [1], [0, 0, 1, 1], [], []>} : vector<8x128xf32>, vector<128x512xf32>, vector<8x512xf32> -> vector<8x512xf32>
    %77 = arith.addf %73, %76 : vector<8x512xf32>
    %78 = vector.extract_strided_slice %77 {offsets = [0, 0], sizes = [8, 128], strides = [1, 1]} : vector<8x512xf32> to vector<8x128xf32>
    %79 = arith.negf %78 : vector<8x128xf32>
    %80 = math.exp %79 : vector<8x128xf32>
    %cst_27 = arith.constant 1.000000e+00 : f32
    %81 = vector.broadcast %cst_27 : f32 to vector<8x128xf32>
    %82 = arith.addf %81, %80 : vector<8x128xf32>
    %83 = arith.divf %81, %82 : vector<8x128xf32>
    %84 = vector.extract_strided_slice %77 {offsets = [0, 128], sizes = [8, 128], strides = [1, 1]} : vector<8x512xf32> to vector<8x128xf32>
    %85 = arith.negf %84 : vector<8x128xf32>
    %86 = math.exp %85 : vector<8x128xf32>
    %cst_28 = arith.constant 1.000000e+00 : f32
    %87 = vector.broadcast %cst_28 : f32 to vector<8x128xf32>
    %88 = arith.addf %87, %86 : vector<8x128xf32>
    %89 = arith.divf %87, %88 : vector<8x128xf32>
    %90 = vector.extract_strided_slice %77 {offsets = [0, 256], sizes = [8, 128], strides = [1, 1]} : vector<8x512xf32> to vector<8x128xf32>
    %91 = math.tanh %90 : vector<8x128xf32>
    %92 = vector.extract_strided_slice %77 {offsets = [0, 384], sizes = [8, 128], strides = [1, 1]} : vector<8x512xf32> to vector<8x128xf32>
    %93 = arith.negf %92 : vector<8x128xf32>
    %94 = math.exp %93 : vector<8x128xf32>
    %cst_29 = arith.constant 1.000000e+00 : f32
    %95 = vector.broadcast %cst_29 : f32 to vector<8x128xf32>
    %96 = arith.addf %95, %94 : vector<8x128xf32>
    %97 = arith.divf %95, %96 : vector<8x128xf32>
    %98 = arith.mulf %89, %11 : vector<8x128xf32>
    %99 = arith.mulf %83, %91 : vector<8x128xf32>
    %100 = arith.addf %98, %99 : vector<8x128xf32>
    %101 = math.tanh %100 : vector<8x128xf32>
    %102 = arith.mulf %97, %101 : vector<8x128xf32>
    %103 = vector.extract_strided_slice %5 {offsets = [8, 0], sizes = [8, 1536], strides = [1, 1]} : vector<64x1536xf32> to vector<8x1536xf32>
    %104 = vector.extract_strided_slice %103 {offsets = [0, 0], sizes = [8, 512], strides = [1, 1]} : vector<8x1536xf32> to vector<8x512xf32>
    %c0_30 = arith.constant 0 : index
    %c0_31 = arith.constant 0 : index
    %c0_32 = arith.constant 0 : index
    %105 = vector.load %arg2[%c0_30, %c0_31, %c0_32] : memref<3x128x512xf32, #tpu.memory_space<vmem>>, vector<1x128x512xf32>
    %106 = vector.shape_cast %105 : vector<1x128x512xf32> to vector<128x512xf32>
    %cst_33 = arith.constant dense<0.000000e+00> : vector<8x512xf32>
    %107 = tpu.matmul %42, %106, %cst_33 {dimension_numbers = #tpu.dot_dimension_numbers<[1], [0], [0], [1], [0, 0, 1, 1], [], []>} : vector<8x128xf32>, vector<128x512xf32>, vector<8x512xf32> -> vector<8x512xf32>
    %108 = arith.addf %104, %107 : vector<8x512xf32>
    %109 = vector.extract_strided_slice %108 {offsets = [0, 0], sizes = [8, 128], strides = [1, 1]} : vector<8x512xf32> to vector<8x128xf32>
    %110 = arith.negf %109 : vector<8x128xf32>
    %111 = math.exp %110 : vector<8x128xf32>
    %cst_34 = arith.constant 1.000000e+00 : f32
    %112 = vector.broadcast %cst_34 : f32 to vector<8x128xf32>
    %113 = arith.addf %112, %111 : vector<8x128xf32>
    %114 = arith.divf %112, %113 : vector<8x128xf32>
    %115 = vector.extract_strided_slice %108 {offsets = [0, 128], sizes = [8, 128], strides = [1, 1]} : vector<8x512xf32> to vector<8x128xf32>
    %116 = arith.negf %115 : vector<8x128xf32>
    %117 = math.exp %116 : vector<8x128xf32>
    %cst_35 = arith.constant 1.000000e+00 : f32
    %118 = vector.broadcast %cst_35 : f32 to vector<8x128xf32>
    %119 = arith.addf %118, %117 : vector<8x128xf32>
    %120 = arith.divf %118, %119 : vector<8x128xf32>
    %121 = vector.extract_strided_slice %108 {offsets = [0, 256], sizes = [8, 128], strides = [1, 1]} : vector<8x512xf32> to vector<8x128xf32>
    %122 = math.tanh %121 : vector<8x128xf32>
    %123 = vector.extract_strided_slice %108 {offsets = [0, 384], sizes = [8, 128], strides = [1, 1]} : vector<8x512xf32> to vector<8x128xf32>
    %124 = arith.negf %123 : vector<8x128xf32>
    %125 = math.exp %124 : vector<8x128xf32>
    %cst_36 = arith.constant 1.000000e+00 : f32
    %126 = vector.broadcast %cst_36 : f32 to vector<8x128xf32>
    %127 = arith.addf %126, %125 : vector<8x128xf32>
    %128 = arith.divf %126, %127 : vector<8x128xf32>
    %129 = arith.mulf %120, %40 : vector<8x128xf32>
    %130 = arith.mulf %114, %122 : vector<8x128xf32>
    %131 = arith.addf %129, %130 : vector<8x128xf32>
    %132 = math.tanh %131 : vector<8x128xf32>
    %133 = arith.mulf %128, %132 : vector<8x128xf32>
    %134 = vector.extract_strided_slice %103 {offsets = [0, 512], sizes = [8, 512], strides = [1, 1]} : vector<8x1536xf32> to vector<8x512xf32>
    %c1_37 = arith.constant 1 : index
    %c0_38 = arith.constant 0 : index
    %c0_39 = arith.constant 0 : index
    %135 = vector.load %arg2[%c1_37, %c0_38, %c0_39] : memref<3x128x512xf32, #tpu.memory_space<vmem>>, vector<1x128x512xf32>
    %136 = vector.shape_cast %135 : vector<1x128x512xf32> to vector<128x512xf32>
    %cst_40 = arith.constant dense<0.000000e+00> : vector<8x512xf32>
    %137 = tpu.matmul %72, %136, %cst_40 {dimension_numbers = #tpu.dot_dimension_numbers<[1], [0], [0], [1], [0, 0, 1, 1], [], []>} : vector<8x128xf32>, vector<128x512xf32>, vector<8x512xf32> -> vector<8x512xf32>
    %138 = arith.addf %134, %137 : vector<8x512xf32>
    %139 = vector.extract_strided_slice %138 {offsets = [0, 0], sizes = [8, 128], strides = [1, 1]} : vector<8x512xf32> to vector<8x128xf32>
    %140 = arith.negf %139 : vector<8x128xf32>
    %141 = math.exp %140 : vector<8x128xf32>
    %cst_41 = arith.constant 1.000000e+00 : f32
    %142 = vector.broadcast %cst_41 : f32 to vector<8x128xf32>
    %143 = arith.addf %142, %141 : vector<8x128xf32>
    %144 = arith.divf %142, %143 : vector<8x128xf32>
    %145 = vector.extract_strided_slice %138 {offsets = [0, 128], sizes = [8, 128], strides = [1, 1]} : vector<8x512xf32> to vector<8x128xf32>
    %146 = arith.negf %145 : vector<8x128xf32>
    %147 = math.exp %146 : vector<8x128xf32>
    %cst_42 = arith.constant 1.000000e+00 : f32
    %148 = vector.broadcast %cst_42 : f32 to vector<8x128xf32>
    %149 = arith.addf %148, %147 : vector<8x128xf32>
    %150 = arith.divf %148, %149 : vector<8x128xf32>
    %151 = vector.extract_strided_slice %138 {offsets = [0, 256], sizes = [8, 128], strides = [1, 1]} : vector<8x512xf32> to vector<8x128xf32>
    %152 = math.tanh %151 : vector<8x128xf32>
    %153 = vector.extract_strided_slice %138 {offsets = [0, 384], sizes = [8, 128], strides = [1, 1]} : vector<8x512xf32> to vector<8x128xf32>
    %154 = arith.negf %153 : vector<8x128xf32>
    %155 = math.exp %154 : vector<8x128xf32>
    %cst_43 = arith.constant 1.000000e+00 : f32
    %156 = vector.broadcast %cst_43 : f32 to vector<8x128xf32>
    %157 = arith.addf %156, %155 : vector<8x128xf32>
    %158 = arith.divf %156, %157 : vector<8x128xf32>
    %159 = arith.mulf %150, %70 : vector<8x128xf32>
    %160 = arith.mulf %144, %152 : vector<8x128xf32>
    %161 = arith.addf %159, %160 : vector<8x128xf32>
    %162 = math.tanh %161 : vector<8x128xf32>
    %163 = arith.mulf %158, %162 : vector<8x128xf32>
    %164 = vector.extract_strided_slice %103 {offsets = [0, 1024], sizes = [8, 512], strides = [1, 1]} : vector<8x1536xf32> to vector<8x512xf32>
    %c2_44 = arith.constant 2 : index
    %c0_45 = arith.constant 0 : index
    %c0_46 = arith.constant 0 : index
    %165 = vector.load %arg2[%c2_44, %c0_45, %c0_46] : memref<3x128x512xf32, #tpu.memory_space<vmem>>, vector<1x128x512xf32>
    %166 = vector.shape_cast %165 : vector<1x128x512xf32> to vector<128x512xf32>
    %cst_47 = arith.constant dense<0.000000e+00> : vector<8x512xf32>
    %167 = tpu.matmul %102, %166, %cst_47 {dimension_numbers = #tpu.dot_dimension_numbers<[1], [0], [0], [1], [0, 0, 1, 1], [], []>} : vector<8x128xf32>, vector<128x512xf32>, vector<8x512xf32> -> vector<8x512xf32>
    %168 = arith.addf %164, %167 : vector<8x512xf32>
    %169 = vector.extract_strided_slice %168 {offsets = [0, 0], sizes = [8, 128], strides = [1, 1]} : vector<8x512xf32> to vector<8x128xf32>
    %170 = arith.negf %169 : vector<8x128xf32>
    %171 = math.exp %170 : vector<8x128xf32>
    %cst_48 = arith.constant 1.000000e+00 : f32
    %172 = vector.broadcast %cst_48 : f32 to vector<8x128xf32>
    %173 = arith.addf %172, %171 : vector<8x128xf32>
    %174 = arith.divf %172, %173 : vector<8x128xf32>
    %175 = vector.extract_strided_slice %168 {offsets = [0, 128], sizes = [8, 128], strides = [1, 1]} : vector<8x512xf32> to vector<8x128xf32>
    %176 = arith.negf %175 : vector<8x128xf32>
    %177 = math.exp %176 : vector<8x128xf32>
    %cst_49 = arith.constant 1.000000e+00 : f32
    %178 = vector.broadcast %cst_49 : f32 to vector<8x128xf32>
    %179 = arith.addf %178, %177 : vector<8x128xf32>
    %180 = arith.divf %178, %179 : vector<8x128xf32>
    %181 = vector.extract_strided_slice %168 {offsets = [0, 256], sizes = [8, 128], strides = [1, 1]} : vector<8x512xf32> to vector<8x128xf32>
    %182 = math.tanh %181 : vector<8x128xf32>
    %183 = vector.extract_strided_slice %168 {offsets = [0, 384], sizes = [8, 128], strides = [1, 1]} : vector<8x512xf32> to vector<8x128xf32>
    %184 = arith.negf %183 : vector<8x128xf32>
    %185 = math.exp %184 : vector<8x128xf32>
    %cst_50 = arith.constant 1.000000e+00 : f32
    %186 = vector.broadcast %cst_50 : f32 to vector<8x128xf32>
    %187 = arith.addf %186, %185 : vector<8x128xf32>
    %188 = arith.divf %186, %187 : vector<8x128xf32>
    %189 = arith.mulf %180, %100 : vector<8x128xf32>
    %190 = arith.mulf %174, %182 : vector<8x128xf32>
    %191 = arith.addf %189, %190 : vector<8x128xf32>
    %192 = math.tanh %191 : vector<8x128xf32>
    %193 = arith.mulf %188, %192 : vector<8x128xf32>
    %194 = vector.extract_strided_slice %5 {offsets = [16, 0], sizes = [8, 1536], strides = [1, 1]} : vector<64x1536xf32> to vector<8x1536xf32>
    %195 = vector.extract_strided_slice %194 {offsets = [0, 0], sizes = [8, 512], strides = [1, 1]} : vector<8x1536xf32> to vector<8x512xf32>
    %c0_51 = arith.constant 0 : index
    %c0_52 = arith.constant 0 : index
    %c0_53 = arith.constant 0 : index
    %196 = vector.load %arg2[%c0_51, %c0_52, %c0_53] : memref<3x128x512xf32, #tpu.memory_space<vmem>>, vector<1x128x512xf32>
    %197 = vector.shape_cast %196 : vector<1x128x512xf32> to vector<128x512xf32>
    %cst_54 = arith.constant dense<0.000000e+00> : vector<8x512xf32>
    %198 = tpu.matmul %133, %197, %cst_54 {dimension_numbers = #tpu.dot_dimension_numbers<[1], [0], [0], [1], [0, 0, 1, 1], [], []>} : vector<8x128xf32>, vector<128x512xf32>, vector<8x512xf32> -> vector<8x512xf32>
    %199 = arith.addf %195, %198 : vector<8x512xf32>
    %200 = vector.extract_strided_slice %199 {offsets = [0, 0], sizes = [8, 128], strides = [1, 1]} : vector<8x512xf32> to vector<8x128xf32>
    %201 = arith.negf %200 : vector<8x128xf32>
    %202 = math.exp %201 : vector<8x128xf32>
    %cst_55 = arith.constant 1.000000e+00 : f32
    %203 = vector.broadcast %cst_55 : f32 to vector<8x128xf32>
    %204 = arith.addf %203, %202 : vector<8x128xf32>
    %205 = arith.divf %203, %204 : vector<8x128xf32>
    %206 = vector.extract_strided_slice %199 {offsets = [0, 128], sizes = [8, 128], strides = [1, 1]} : vector<8x512xf32> to vector<8x128xf32>
    %207 = arith.negf %206 : vector<8x128xf32>
    %208 = math.exp %207 : vector<8x128xf32>
    %cst_56 = arith.constant 1.000000e+00 : f32
    %209 = vector.broadcast %cst_56 : f32 to vector<8x128xf32>
    %210 = arith.addf %209, %208 : vector<8x128xf32>
    %211 = arith.divf %209, %210 : vector<8x128xf32>
    %212 = vector.extract_strided_slice %199 {offsets = [0, 256], sizes = [8, 128], strides = [1, 1]} : vector<8x512xf32> to vector<8x128xf32>
    %213 = math.tanh %212 : vector<8x128xf32>
    %214 = vector.extract_strided_slice %199 {offsets = [0, 384], sizes = [8, 128], strides = [1, 1]} : vector<8x512xf32> to vector<8x128xf32>
    %215 = arith.negf %214 : vector<8x128xf32>
    %216 = math.exp %215 : vector<8x128xf32>
    %cst_57 = arith.constant 1.000000e+00 : f32
    %217 = vector.broadcast %cst_57 : f32 to vector<8x128xf32>
    %218 = arith.addf %217, %216 : vector<8x128xf32>
    %219 = arith.divf %217, %218 : vector<8x128xf32>
    %220 = arith.mulf %211, %131 : vector<8x128xf32>
    %221 = arith.mulf %205, %213 : vector<8x128xf32>
    %222 = arith.addf %220, %221 : vector<8x128xf32>
    %223 = math.tanh %222 : vector<8x128xf32>
    %224 = arith.mulf %219, %223 : vector<8x128xf32>
    %225 = vector.extract_strided_slice %194 {offsets = [0, 512], sizes = [8, 512], strides = [1, 1]} : vector<8x1536xf32> to vector<8x512xf32>
    %c1_58 = arith.constant 1 : index
    %c0_59 = arith.constant 0 : index
    %c0_60 = arith.constant 0 : index
    %226 = vector.load %arg2[%c1_58, %c0_59, %c0_60] : memref<3x128x512xf32, #tpu.memory_space<vmem>>, vector<1x128x512xf32>
    %227 = vector.shape_cast %226 : vector<1x128x512xf32> to vector<128x512xf32>
    %cst_61 = arith.constant dense<0.000000e+00> : vector<8x512xf32>
    %228 = tpu.matmul %163, %227, %cst_61 {dimension_numbers = #tpu.dot_dimension_numbers<[1], [0], [0], [1], [0, 0, 1, 1], [], []>} : vector<8x128xf32>, vector<128x512xf32>, vector<8x512xf32> -> vector<8x512xf32>
    %229 = arith.addf %225, %228 : vector<8x512xf32>
    %230 = vector.extract_strided_slice %229 {offsets = [0, 0], sizes = [8, 128], strides = [1, 1]} : vector<8x512xf32> to vector<8x128xf32>
    %231 = arith.negf %230 : vector<8x128xf32>
    %232 = math.exp %231 : vector<8x128xf32>
    %cst_62 = arith.constant 1.000000e+00 : f32
    %233 = vector.broadcast %cst_62 : f32 to vector<8x128xf32>
    %234 = arith.addf %233, %232 : vector<8x128xf32>
    %235 = arith.divf %233, %234 : vector<8x128xf32>
    %236 = vector.extract_strided_slice %229 {offsets = [0, 128], sizes = [8, 128], strides = [1, 1]} : vector<8x512xf32> to vector<8x128xf32>
    %237 = arith.negf %236 : vector<8x128xf32>
    %238 = math.exp %237 : vector<8x128xf32>
    %cst_63 = arith.constant 1.000000e+00 : f32
    %239 = vector.broadcast %cst_63 : f32 to vector<8x128xf32>
    %240 = arith.addf %239, %238 : vector<8x128xf32>
    %241 = arith.divf %239, %240 : vector<8x128xf32>
    %242 = vector.extract_strided_slice %229 {offsets = [0, 256], sizes = [8, 128], strides = [1, 1]} : vector<8x512xf32> to vector<8x128xf32>
    %243 = math.tanh %242 : vector<8x128xf32>
    %244 = vector.extract_strided_slice %229 {offsets = [0, 384], sizes = [8, 128], strides = [1, 1]} : vector<8x512xf32> to vector<8x128xf32>
    %245 = arith.negf %244 : vector<8x128xf32>
    %246 = math.exp %245 : vector<8x128xf32>
    %cst_64 = arith.constant 1.000000e+00 : f32
    %247 = vector.broadcast %cst_64 : f32 to vector<8x128xf32>
    %248 = arith.addf %247, %246 : vector<8x128xf32>
    %249 = arith.divf %247, %248 : vector<8x128xf32>
    %250 = arith.mulf %241, %161 : vector<8x128xf32>
    %251 = arith.mulf %235, %243 : vector<8x128xf32>
    %252 = arith.addf %250, %251 : vector<8x128xf32>
    %253 = math.tanh %252 : vector<8x128xf32>
    %254 = arith.mulf %249, %253 : vector<8x128xf32>
    %255 = vector.extract_strided_slice %194 {offsets = [0, 1024], sizes = [8, 512], strides = [1, 1]} : vector<8x1536xf32> to vector<8x512xf32>
    %c2_65 = arith.constant 2 : index
    %c0_66 = arith.constant 0 : index
    %c0_67 = arith.constant 0 : index
    %256 = vector.load %arg2[%c2_65, %c0_66, %c0_67] : memref<3x128x512xf32, #tpu.memory_space<vmem>>, vector<1x128x512xf32>
    %257 = vector.shape_cast %256 : vector<1x128x512xf32> to vector<128x512xf32>
    %cst_68 = arith.constant dense<0.000000e+00> : vector<8x512xf32>
    %258 = tpu.matmul %193, %257, %cst_68 {dimension_numbers = #tpu.dot_dimension_numbers<[1], [0], [0], [1], [0, 0, 1, 1], [], []>} : vector<8x128xf32>, vector<128x512xf32>, vector<8x512xf32> -> vector<8x512xf32>
    %259 = arith.addf %255, %258 : vector<8x512xf32>
    %260 = vector.extract_strided_slice %259 {offsets = [0, 0], sizes = [8, 128], strides = [1, 1]} : vector<8x512xf32> to vector<8x128xf32>
    %261 = arith.negf %260 : vector<8x128xf32>
    %262 = math.exp %261 : vector<8x128xf32>
    %cst_69 = arith.constant 1.000000e+00 : f32
    %263 = vector.broadcast %cst_69 : f32 to vector<8x128xf32>
    %264 = arith.addf %263, %262 : vector<8x128xf32>
    %265 = arith.divf %263, %264 : vector<8x128xf32>
    %266 = vector.extract_strided_slice %259 {offsets = [0, 128], sizes = [8, 128], strides = [1, 1]} : vector<8x512xf32> to vector<8x128xf32>
    %267 = arith.negf %266 : vector<8x128xf32>
    %268 = math.exp %267 : vector<8x128xf32>
    %cst_70 = arith.constant 1.000000e+00 : f32
    %269 = vector.broadcast %cst_70 : f32 to vector<8x128xf32>
    %270 = arith.addf %269, %268 : vector<8x128xf32>
    %271 = arith.divf %269, %270 : vector<8x128xf32>
    %272 = vector.extract_strided_slice %259 {offsets = [0, 256], sizes = [8, 128], strides = [1, 1]} : vector<8x512xf32> to vector<8x128xf32>
    %273 = math.tanh %272 : vector<8x128xf32>
    %274 = vector.extract_strided_slice %259 {offsets = [0, 384], sizes = [8, 128], strides = [1, 1]} : vector<8x512xf32> to vector<8x128xf32>
    %275 = arith.negf %274 : vector<8x128xf32>
    %276 = math.exp %275 : vector<8x128xf32>
    %cst_71 = arith.constant 1.000000e+00 : f32
    %277 = vector.broadcast %cst_71 : f32 to vector<8x128xf32>
    %278 = arith.addf %277, %276 : vector<8x128xf32>
    %279 = arith.divf %277, %278 : vector<8x128xf32>
    %280 = arith.mulf %271, %191 : vector<8x128xf32>
    %281 = arith.mulf %265, %273 : vector<8x128xf32>
    %282 = arith.addf %280, %281 : vector<8x128xf32>
    %283 = math.tanh %282 : vector<8x128xf32>
    %284 = arith.mulf %279, %283 : vector<8x128xf32>
    %285 = vector.extract_strided_slice %5 {offsets = [24, 0], sizes = [8, 1536], strides = [1, 1]} : vector<64x1536xf32> to vector<8x1536xf32>
    %286 = vector.extract_strided_slice %285 {offsets = [0, 0], sizes = [8, 512], strides = [1, 1]} : vector<8x1536xf32> to vector<8x512xf32>
    %c0_72 = arith.constant 0 : index
    %c0_73 = arith.constant 0 : index
    %c0_74 = arith.constant 0 : index
    %287 = vector.load %arg2[%c0_72, %c0_73, %c0_74] : memref<3x128x512xf32, #tpu.memory_space<vmem>>, vector<1x128x512xf32>
    %288 = vector.shape_cast %287 : vector<1x128x512xf32> to vector<128x512xf32>
    %cst_75 = arith.constant dense<0.000000e+00> : vector<8x512xf32>
    %289 = tpu.matmul %224, %288, %cst_75 {dimension_numbers = #tpu.dot_dimension_numbers<[1], [0], [0], [1], [0, 0, 1, 1], [], []>} : vector<8x128xf32>, vector<128x512xf32>, vector<8x512xf32> -> vector<8x512xf32>
    %290 = arith.addf %286, %289 : vector<8x512xf32>
    %291 = vector.extract_strided_slice %290 {offsets = [0, 0], sizes = [8, 128], strides = [1, 1]} : vector<8x512xf32> to vector<8x128xf32>
    %292 = arith.negf %291 : vector<8x128xf32>
    %293 = math.exp %292 : vector<8x128xf32>
    %cst_76 = arith.constant 1.000000e+00 : f32
    %294 = vector.broadcast %cst_76 : f32 to vector<8x128xf32>
    %295 = arith.addf %294, %293 : vector<8x128xf32>
    %296 = arith.divf %294, %295 : vector<8x128xf32>
    %297 = vector.extract_strided_slice %290 {offsets = [0, 128], sizes = [8, 128], strides = [1, 1]} : vector<8x512xf32> to vector<8x128xf32>
    %298 = arith.negf %297 : vector<8x128xf32>
    %299 = math.exp %298 : vector<8x128xf32>
    %cst_77 = arith.constant 1.000000e+00 : f32
    %300 = vector.broadcast %cst_77 : f32 to vector<8x128xf32>
    %301 = arith.addf %300, %299 : vector<8x128xf32>
    %302 = arith.divf %300, %301 : vector<8x128xf32>
    %303 = vector.extract_strided_slice %290 {offsets = [0, 256], sizes = [8, 128], strides = [1, 1]} : vector<8x512xf32> to vector<8x128xf32>
    %304 = math.tanh %303 : vector<8x128xf32>
    %305 = vector.extract_strided_slice %290 {offsets = [0, 384], sizes = [8, 128], strides = [1, 1]} : vector<8x512xf32> to vector<8x128xf32>
    %306 = arith.negf %305 : vector<8x128xf32>
    %307 = math.exp %306 : vector<8x128xf32>
    %cst_78 = arith.constant 1.000000e+00 : f32
    %308 = vector.broadcast %cst_78 : f32 to vector<8x128xf32>
    %309 = arith.addf %308, %307 : vector<8x128xf32>
    %310 = arith.divf %308, %309 : vector<8x128xf32>
    %311 = arith.mulf %302, %222 : vector<8x128xf32>
    %312 = arith.mulf %296, %304 : vector<8x128xf32>
    %313 = arith.addf %311, %312 : vector<8x128xf32>
    %314 = math.tanh %313 : vector<8x128xf32>
    %315 = arith.mulf %310, %314 : vector<8x128xf32>
    %316 = vector.extract_strided_slice %285 {offsets = [0, 512], sizes = [8, 512], strides = [1, 1]} : vector<8x1536xf32> to vector<8x512xf32>
    %c1_79 = arith.constant 1 : index
    %c0_80 = arith.constant 0 : index
    %c0_81 = arith.constant 0 : index
    %317 = vector.load %arg2[%c1_79, %c0_80, %c0_81] : memref<3x128x512xf32, #tpu.memory_space<vmem>>, vector<1x128x512xf32>
    %318 = vector.shape_cast %317 : vector<1x128x512xf32> to vector<128x512xf32>
    %cst_82 = arith.constant dense<0.000000e+00> : vector<8x512xf32>
    %319 = tpu.matmul %254, %318, %cst_82 {dimension_numbers = #tpu.dot_dimension_numbers<[1], [0], [0], [1], [0, 0, 1, 1], [], []>} : vector<8x128xf32>, vector<128x512xf32>, vector<8x512xf32> -> vector<8x512xf32>
    %320 = arith.addf %316, %319 : vector<8x512xf32>
    %321 = vector.extract_strided_slice %320 {offsets = [0, 0], sizes = [8, 128], strides = [1, 1]} : vector<8x512xf32> to vector<8x128xf32>
    %322 = arith.negf %321 : vector<8x128xf32>
    %323 = math.exp %322 : vector<8x128xf32>
    %cst_83 = arith.constant 1.000000e+00 : f32
    %324 = vector.broadcast %cst_83 : f32 to vector<8x128xf32>
    %325 = arith.addf %324, %323 : vector<8x128xf32>
    %326 = arith.divf %324, %325 : vector<8x128xf32>
    %327 = vector.extract_strided_slice %320 {offsets = [0, 128], sizes = [8, 128], strides = [1, 1]} : vector<8x512xf32> to vector<8x128xf32>
    %328 = arith.negf %327 : vector<8x128xf32>
    %329 = math.exp %328 : vector<8x128xf32>
    %cst_84 = arith.constant 1.000000e+00 : f32
    %330 = vector.broadcast %cst_84 : f32 to vector<8x128xf32>
    %331 = arith.addf %330, %329 : vector<8x128xf32>
    %332 = arith.divf %330, %331 : vector<8x128xf32>
    %333 = vector.extract_strided_slice %320 {offsets = [0, 256], sizes = [8, 128], strides = [1, 1]} : vector<8x512xf32> to vector<8x128xf32>
    %334 = math.tanh %333 : vector<8x128xf32>
    %335 = vector.extract_strided_slice %320 {offsets = [0, 384], sizes = [8, 128], strides = [1, 1]} : vector<8x512xf32> to vector<8x128xf32>
    %336 = arith.negf %335 : vector<8x128xf32>
    %337 = math.exp %336 : vector<8x128xf32>
    %cst_85 = arith.constant 1.000000e+00 : f32
    %338 = vector.broadcast %cst_85 : f32 to vector<8x128xf32>
    %339 = arith.addf %338, %337 : vector<8x128xf32>
    %340 = arith.divf %338, %339 : vector<8x128xf32>
    %341 = arith.mulf %332, %252 : vector<8x128xf32>
    %342 = arith.mulf %326, %334 : vector<8x128xf32>
    %343 = arith.addf %341, %342 : vector<8x128xf32>
    %344 = math.tanh %343 : vector<8x128xf32>
    %345 = arith.mulf %340, %344 : vector<8x128xf32>
    %346 = vector.extract_strided_slice %285 {offsets = [0, 1024], sizes = [8, 512], strides = [1, 1]} : vector<8x1536xf32> to vector<8x512xf32>
    %c2_86 = arith.constant 2 : index
    %c0_87 = arith.constant 0 : index
    %c0_88 = arith.constant 0 : index
    %347 = vector.load %arg2[%c2_86, %c0_87, %c0_88] : memref<3x128x512xf32, #tpu.memory_space<vmem>>, vector<1x128x512xf32>
    %348 = vector.shape_cast %347 : vector<1x128x512xf32> to vector<128x512xf32>
    %cst_89 = arith.constant dense<0.000000e+00> : vector<8x512xf32>
    %349 = tpu.matmul %284, %348, %cst_89 {dimension_numbers = #tpu.dot_dimension_numbers<[1], [0], [0], [1], [0, 0, 1, 1], [], []>} : vector<8x128xf32>, vector<128x512xf32>, vector<8x512xf32> -> vector<8x512xf32>
    %350 = arith.addf %346, %349 : vector<8x512xf32>
    %351 = vector.extract_strided_slice %350 {offsets = [0, 0], sizes = [8, 128], strides = [1, 1]} : vector<8x512xf32> to vector<8x128xf32>
    %352 = arith.negf %351 : vector<8x128xf32>
    %353 = math.exp %352 : vector<8x128xf32>
    %cst_90 = arith.constant 1.000000e+00 : f32
    %354 = vector.broadcast %cst_90 : f32 to vector<8x128xf32>
    %355 = arith.addf %354, %353 : vector<8x128xf32>
    %356 = arith.divf %354, %355 : vector<8x128xf32>
    %357 = vector.extract_strided_slice %350 {offsets = [0, 128], sizes = [8, 128], strides = [1, 1]} : vector<8x512xf32> to vector<8x128xf32>
    %358 = arith.negf %357 : vector<8x128xf32>
    %359 = math.exp %358 : vector<8x128xf32>
    %cst_91 = arith.constant 1.000000e+00 : f32
    %360 = vector.broadcast %cst_91 : f32 to vector<8x128xf32>
    %361 = arith.addf %360, %359 : vector<8x128xf32>
    %362 = arith.divf %360, %361 : vector<8x128xf32>
    %363 = vector.extract_strided_slice %350 {offsets = [0, 256], sizes = [8, 128], strides = [1, 1]} : vector<8x512xf32> to vector<8x128xf32>
    %364 = math.tanh %363 : vector<8x128xf32>
    %365 = vector.extract_strided_slice %350 {offsets = [0, 384], sizes = [8, 128], strides = [1, 1]} : vector<8x512xf32> to vector<8x128xf32>
    %366 = arith.negf %365 : vector<8x128xf32>
    %367 = math.exp %366 : vector<8x128xf32>
    %cst_92 = arith.constant 1.000000e+00 : f32
    %368 = vector.broadcast %cst_92 : f32 to vector<8x128xf32>
    %369 = arith.addf %368, %367 : vector<8x128xf32>
    %370 = arith.divf %368, %369 : vector<8x128xf32>
    %371 = arith.mulf %362, %282 : vector<8x128xf32>
    %372 = arith.mulf %356, %364 : vector<8x128xf32>
    %373 = arith.addf %371, %372 : vector<8x128xf32>
    %374 = math.tanh %373 : vector<8x128xf32>
    %375 = arith.mulf %370, %374 : vector<8x128xf32>
    %376 = vector.extract_strided_slice %5 {offsets = [32, 0], sizes = [8, 1536], strides = [1, 1]} : vector<64x1536xf32> to vector<8x1536xf32>
    %377 = vector.extract_strided_slice %376 {offsets = [0, 0], sizes = [8, 512], strides = [1, 1]} : vector<8x1536xf32> to vector<8x512xf32>
    %c0_93 = arith.constant 0 : index
    %c0_94 = arith.constant 0 : index
    %c0_95 = arith.constant 0 : index
    %378 = vector.load %arg2[%c0_93, %c0_94, %c0_95] : memref<3x128x512xf32, #tpu.memory_space<vmem>>, vector<1x128x512xf32>
    %379 = vector.shape_cast %378 : vector<1x128x512xf32> to vector<128x512xf32>
    %cst_96 = arith.constant dense<0.000000e+00> : vector<8x512xf32>
    %380 = tpu.matmul %315, %379, %cst_96 {dimension_numbers = #tpu.dot_dimension_numbers<[1], [0], [0], [1], [0, 0, 1, 1], [], []>} : vector<8x128xf32>, vector<128x512xf32>, vector<8x512xf32> -> vector<8x512xf32>
    %381 = arith.addf %377, %380 : vector<8x512xf32>
    %382 = vector.extract_strided_slice %381 {offsets = [0, 0], sizes = [8, 128], strides = [1, 1]} : vector<8x512xf32> to vector<8x128xf32>
    %383 = arith.negf %382 : vector<8x128xf32>
    %384 = math.exp %383 : vector<8x128xf32>
    %cst_97 = arith.constant 1.000000e+00 : f32
    %385 = vector.broadcast %cst_97 : f32 to vector<8x128xf32>
    %386 = arith.addf %385, %384 : vector<8x128xf32>
    %387 = arith.divf %385, %386 : vector<8x128xf32>
    %388 = vector.extract_strided_slice %381 {offsets = [0, 128], sizes = [8, 128], strides = [1, 1]} : vector<8x512xf32> to vector<8x128xf32>
    %389 = arith.negf %388 : vector<8x128xf32>
    %390 = math.exp %389 : vector<8x128xf32>
    %cst_98 = arith.constant 1.000000e+00 : f32
    %391 = vector.broadcast %cst_98 : f32 to vector<8x128xf32>
    %392 = arith.addf %391, %390 : vector<8x128xf32>
    %393 = arith.divf %391, %392 : vector<8x128xf32>
    %394 = vector.extract_strided_slice %381 {offsets = [0, 256], sizes = [8, 128], strides = [1, 1]} : vector<8x512xf32> to vector<8x128xf32>
    %395 = math.tanh %394 : vector<8x128xf32>
    %396 = vector.extract_strided_slice %381 {offsets = [0, 384], sizes = [8, 128], strides = [1, 1]} : vector<8x512xf32> to vector<8x128xf32>
    %397 = arith.negf %396 : vector<8x128xf32>
    %398 = math.exp %397 : vector<8x128xf32>
    %cst_99 = arith.constant 1.000000e+00 : f32
    %399 = vector.broadcast %cst_99 : f32 to vector<8x128xf32>
    %400 = arith.addf %399, %398 : vector<8x128xf32>
    %401 = arith.divf %399, %400 : vector<8x128xf32>
    %402 = arith.mulf %393, %313 : vector<8x128xf32>
    %403 = arith.mulf %387, %395 : vector<8x128xf32>
    %404 = arith.addf %402, %403 : vector<8x128xf32>
    %405 = math.tanh %404 : vector<8x128xf32>
    %406 = arith.mulf %401, %405 : vector<8x128xf32>
    %407 = vector.extract_strided_slice %376 {offsets = [0, 512], sizes = [8, 512], strides = [1, 1]} : vector<8x1536xf32> to vector<8x512xf32>
    %c1_100 = arith.constant 1 : index
    %c0_101 = arith.constant 0 : index
    %c0_102 = arith.constant 0 : index
    %408 = vector.load %arg2[%c1_100, %c0_101, %c0_102] : memref<3x128x512xf32, #tpu.memory_space<vmem>>, vector<1x128x512xf32>
    %409 = vector.shape_cast %408 : vector<1x128x512xf32> to vector<128x512xf32>
    %cst_103 = arith.constant dense<0.000000e+00> : vector<8x512xf32>
    %410 = tpu.matmul %345, %409, %cst_103 {dimension_numbers = #tpu.dot_dimension_numbers<[1], [0], [0], [1], [0, 0, 1, 1], [], []>} : vector<8x128xf32>, vector<128x512xf32>, vector<8x512xf32> -> vector<8x512xf32>
    %411 = arith.addf %407, %410 : vector<8x512xf32>
    %412 = vector.extract_strided_slice %411 {offsets = [0, 0], sizes = [8, 128], strides = [1, 1]} : vector<8x512xf32> to vector<8x128xf32>
    %413 = arith.negf %412 : vector<8x128xf32>
    %414 = math.exp %413 : vector<8x128xf32>
    %cst_104 = arith.constant 1.000000e+00 : f32
    %415 = vector.broadcast %cst_104 : f32 to vector<8x128xf32>
    %416 = arith.addf %415, %414 : vector<8x128xf32>
    %417 = arith.divf %415, %416 : vector<8x128xf32>
    %418 = vector.extract_strided_slice %411 {offsets = [0, 128], sizes = [8, 128], strides = [1, 1]} : vector<8x512xf32> to vector<8x128xf32>
    %419 = arith.negf %418 : vector<8x128xf32>
    %420 = math.exp %419 : vector<8x128xf32>
    %cst_105 = arith.constant 1.000000e+00 : f32
    %421 = vector.broadcast %cst_105 : f32 to vector<8x128xf32>
    %422 = arith.addf %421, %420 : vector<8x128xf32>
    %423 = arith.divf %421, %422 : vector<8x128xf32>
    %424 = vector.extract_strided_slice %411 {offsets = [0, 256], sizes = [8, 128], strides = [1, 1]} : vector<8x512xf32> to vector<8x128xf32>
    %425 = math.tanh %424 : vector<8x128xf32>
    %426 = vector.extract_strided_slice %411 {offsets = [0, 384], sizes = [8, 128], strides = [1, 1]} : vector<8x512xf32> to vector<8x128xf32>
    %427 = arith.negf %426 : vector<8x128xf32>
    %428 = math.exp %427 : vector<8x128xf32>
    %cst_106 = arith.constant 1.000000e+00 : f32
    %429 = vector.broadcast %cst_106 : f32 to vector<8x128xf32>
    %430 = arith.addf %429, %428 : vector<8x128xf32>
    %431 = arith.divf %429, %430 : vector<8x128xf32>
    %432 = arith.mulf %423, %343 : vector<8x128xf32>
    %433 = arith.mulf %417, %425 : vector<8x128xf32>
    %434 = arith.addf %432, %433 : vector<8x128xf32>
    %435 = math.tanh %434 : vector<8x128xf32>
    %436 = arith.mulf %431, %435 : vector<8x128xf32>
    %437 = vector.extract_strided_slice %376 {offsets = [0, 1024], sizes = [8, 512], strides = [1, 1]} : vector<8x1536xf32> to vector<8x512xf32>
    %c2_107 = arith.constant 2 : index
    %c0_108 = arith.constant 0 : index
    %c0_109 = arith.constant 0 : index
    %438 = vector.load %arg2[%c2_107, %c0_108, %c0_109] : memref<3x128x512xf32, #tpu.memory_space<vmem>>, vector<1x128x512xf32>
    %439 = vector.shape_cast %438 : vector<1x128x512xf32> to vector<128x512xf32>
    %cst_110 = arith.constant dense<0.000000e+00> : vector<8x512xf32>
    %440 = tpu.matmul %375, %439, %cst_110 {dimension_numbers = #tpu.dot_dimension_numbers<[1], [0], [0], [1], [0, 0, 1, 1], [], []>} : vector<8x128xf32>, vector<128x512xf32>, vector<8x512xf32> -> vector<8x512xf32>
    %441 = arith.addf %437, %440 : vector<8x512xf32>
    %442 = vector.extract_strided_slice %441 {offsets = [0, 0], sizes = [8, 128], strides = [1, 1]} : vector<8x512xf32> to vector<8x128xf32>
    %443 = arith.negf %442 : vector<8x128xf32>
    %444 = math.exp %443 : vector<8x128xf32>
    %cst_111 = arith.constant 1.000000e+00 : f32
    %445 = vector.broadcast %cst_111 : f32 to vector<8x128xf32>
    %446 = arith.addf %445, %444 : vector<8x128xf32>
    %447 = arith.divf %445, %446 : vector<8x128xf32>
    %448 = vector.extract_strided_slice %441 {offsets = [0, 128], sizes = [8, 128], strides = [1, 1]} : vector<8x512xf32> to vector<8x128xf32>
    %449 = arith.negf %448 : vector<8x128xf32>
    %450 = math.exp %449 : vector<8x128xf32>
    %cst_112 = arith.constant 1.000000e+00 : f32
    %451 = vector.broadcast %cst_112 : f32 to vector<8x128xf32>
    %452 = arith.addf %451, %450 : vector<8x128xf32>
    %453 = arith.divf %451, %452 : vector<8x128xf32>
    %454 = vector.extract_strided_slice %441 {offsets = [0, 256], sizes = [8, 128], strides = [1, 1]} : vector<8x512xf32> to vector<8x128xf32>
    %455 = math.tanh %454 : vector<8x128xf32>
    %456 = vector.extract_strided_slice %441 {offsets = [0, 384], sizes = [8, 128], strides = [1, 1]} : vector<8x512xf32> to vector<8x128xf32>
    %457 = arith.negf %456 : vector<8x128xf32>
    %458 = math.exp %457 : vector<8x128xf32>
    %cst_113 = arith.constant 1.000000e+00 : f32
    %459 = vector.broadcast %cst_113 : f32 to vector<8x128xf32>
    %460 = arith.addf %459, %458 : vector<8x128xf32>
    %461 = arith.divf %459, %460 : vector<8x128xf32>
    %462 = arith.mulf %453, %373 : vector<8x128xf32>
    %463 = arith.mulf %447, %455 : vector<8x128xf32>
    %464 = arith.addf %462, %463 : vector<8x128xf32>
    %465 = math.tanh %464 : vector<8x128xf32>
    %466 = arith.mulf %461, %465 : vector<8x128xf32>
    %467 = vector.extract_strided_slice %5 {offsets = [40, 0], sizes = [8, 1536], strides = [1, 1]} : vector<64x1536xf32> to vector<8x1536xf32>
    %468 = vector.extract_strided_slice %467 {offsets = [0, 0], sizes = [8, 512], strides = [1, 1]} : vector<8x1536xf32> to vector<8x512xf32>
    %c0_114 = arith.constant 0 : index
    %c0_115 = arith.constant 0 : index
    %c0_116 = arith.constant 0 : index
    %469 = vector.load %arg2[%c0_114, %c0_115, %c0_116] : memref<3x128x512xf32, #tpu.memory_space<vmem>>, vector<1x128x512xf32>
    %470 = vector.shape_cast %469 : vector<1x128x512xf32> to vector<128x512xf32>
    %cst_117 = arith.constant dense<0.000000e+00> : vector<8x512xf32>
    %471 = tpu.matmul %406, %470, %cst_117 {dimension_numbers = #tpu.dot_dimension_numbers<[1], [0], [0], [1], [0, 0, 1, 1], [], []>} : vector<8x128xf32>, vector<128x512xf32>, vector<8x512xf32> -> vector<8x512xf32>
    %472 = arith.addf %468, %471 : vector<8x512xf32>
    %473 = vector.extract_strided_slice %472 {offsets = [0, 0], sizes = [8, 128], strides = [1, 1]} : vector<8x512xf32> to vector<8x128xf32>
    %474 = arith.negf %473 : vector<8x128xf32>
    %475 = math.exp %474 : vector<8x128xf32>
    %cst_118 = arith.constant 1.000000e+00 : f32
    %476 = vector.broadcast %cst_118 : f32 to vector<8x128xf32>
    %477 = arith.addf %476, %475 : vector<8x128xf32>
    %478 = arith.divf %476, %477 : vector<8x128xf32>
    %479 = vector.extract_strided_slice %472 {offsets = [0, 128], sizes = [8, 128], strides = [1, 1]} : vector<8x512xf32> to vector<8x128xf32>
    %480 = arith.negf %479 : vector<8x128xf32>
    %481 = math.exp %480 : vector<8x128xf32>
    %cst_119 = arith.constant 1.000000e+00 : f32
    %482 = vector.broadcast %cst_119 : f32 to vector<8x128xf32>
    %483 = arith.addf %482, %481 : vector<8x128xf32>
    %484 = arith.divf %482, %483 : vector<8x128xf32>
    %485 = vector.extract_strided_slice %472 {offsets = [0, 256], sizes = [8, 128], strides = [1, 1]} : vector<8x512xf32> to vector<8x128xf32>
    %486 = math.tanh %485 : vector<8x128xf32>
    %487 = vector.extract_strided_slice %472 {offsets = [0, 384], sizes = [8, 128], strides = [1, 1]} : vector<8x512xf32> to vector<8x128xf32>
    %488 = arith.negf %487 : vector<8x128xf32>
    %489 = math.exp %488 : vector<8x128xf32>
    %cst_120 = arith.constant 1.000000e+00 : f32
    %490 = vector.broadcast %cst_120 : f32 to vector<8x128xf32>
    %491 = arith.addf %490, %489 : vector<8x128xf32>
    %492 = arith.divf %490, %491 : vector<8x128xf32>
    %493 = arith.mulf %484, %404 : vector<8x128xf32>
    %494 = arith.mulf %478, %486 : vector<8x128xf32>
    %495 = arith.addf %493, %494 : vector<8x128xf32>
    %496 = math.tanh %495 : vector<8x128xf32>
    %497 = arith.mulf %492, %496 : vector<8x128xf32>
    %498 = vector.extract_strided_slice %467 {offsets = [0, 512], sizes = [8, 512], strides = [1, 1]} : vector<8x1536xf32> to vector<8x512xf32>
    %c1_121 = arith.constant 1 : index
    %c0_122 = arith.constant 0 : index
    %c0_123 = arith.constant 0 : index
    %499 = vector.load %arg2[%c1_121, %c0_122, %c0_123] : memref<3x128x512xf32, #tpu.memory_space<vmem>>, vector<1x128x512xf32>
    %500 = vector.shape_cast %499 : vector<1x128x512xf32> to vector<128x512xf32>
    %cst_124 = arith.constant dense<0.000000e+00> : vector<8x512xf32>
    %501 = tpu.matmul %436, %500, %cst_124 {dimension_numbers = #tpu.dot_dimension_numbers<[1], [0], [0], [1], [0, 0, 1, 1], [], []>} : vector<8x128xf32>, vector<128x512xf32>, vector<8x512xf32> -> vector<8x512xf32>
    %502 = arith.addf %498, %501 : vector<8x512xf32>
    %503 = vector.extract_strided_slice %502 {offsets = [0, 0], sizes = [8, 128], strides = [1, 1]} : vector<8x512xf32> to vector<8x128xf32>
    %504 = arith.negf %503 : vector<8x128xf32>
    %505 = math.exp %504 : vector<8x128xf32>
    %cst_125 = arith.constant 1.000000e+00 : f32
    %506 = vector.broadcast %cst_125 : f32 to vector<8x128xf32>
    %507 = arith.addf %506, %505 : vector<8x128xf32>
    %508 = arith.divf %506, %507 : vector<8x128xf32>
    %509 = vector.extract_strided_slice %502 {offsets = [0, 128], sizes = [8, 128], strides = [1, 1]} : vector<8x512xf32> to vector<8x128xf32>
    %510 = arith.negf %509 : vector<8x128xf32>
    %511 = math.exp %510 : vector<8x128xf32>
    %cst_126 = arith.constant 1.000000e+00 : f32
    %512 = vector.broadcast %cst_126 : f32 to vector<8x128xf32>
    %513 = arith.addf %512, %511 : vector<8x128xf32>
    %514 = arith.divf %512, %513 : vector<8x128xf32>
    %515 = vector.extract_strided_slice %502 {offsets = [0, 256], sizes = [8, 128], strides = [1, 1]} : vector<8x512xf32> to vector<8x128xf32>
    %516 = math.tanh %515 : vector<8x128xf32>
    %517 = vector.extract_strided_slice %502 {offsets = [0, 384], sizes = [8, 128], strides = [1, 1]} : vector<8x512xf32> to vector<8x128xf32>
    %518 = arith.negf %517 : vector<8x128xf32>
    %519 = math.exp %518 : vector<8x128xf32>
    %cst_127 = arith.constant 1.000000e+00 : f32
    %520 = vector.broadcast %cst_127 : f32 to vector<8x128xf32>
    %521 = arith.addf %520, %519 : vector<8x128xf32>
    %522 = arith.divf %520, %521 : vector<8x128xf32>
    %523 = arith.mulf %514, %434 : vector<8x128xf32>
    %524 = arith.mulf %508, %516 : vector<8x128xf32>
    %525 = arith.addf %523, %524 : vector<8x128xf32>
    %526 = math.tanh %525 : vector<8x128xf32>
    %527 = arith.mulf %522, %526 : vector<8x128xf32>
    %528 = vector.extract_strided_slice %467 {offsets = [0, 1024], sizes = [8, 512], strides = [1, 1]} : vector<8x1536xf32> to vector<8x512xf32>
    %c2_128 = arith.constant 2 : index
    %c0_129 = arith.constant 0 : index
    %c0_130 = arith.constant 0 : index
    %529 = vector.load %arg2[%c2_128, %c0_129, %c0_130] : memref<3x128x512xf32, #tpu.memory_space<vmem>>, vector<1x128x512xf32>
    %530 = vector.shape_cast %529 : vector<1x128x512xf32> to vector<128x512xf32>
    %cst_131 = arith.constant dense<0.000000e+00> : vector<8x512xf32>
    %531 = tpu.matmul %466, %530, %cst_131 {dimension_numbers = #tpu.dot_dimension_numbers<[1], [0], [0], [1], [0, 0, 1, 1], [], []>} : vector<8x128xf32>, vector<128x512xf32>, vector<8x512xf32> -> vector<8x512xf32>
    %532 = arith.addf %528, %531 : vector<8x512xf32>
    %533 = vector.extract_strided_slice %532 {offsets = [0, 0], sizes = [8, 128], strides = [1, 1]} : vector<8x512xf32> to vector<8x128xf32>
    %534 = arith.negf %533 : vector<8x128xf32>
    %535 = math.exp %534 : vector<8x128xf32>
    %cst_132 = arith.constant 1.000000e+00 : f32
    %536 = vector.broadcast %cst_132 : f32 to vector<8x128xf32>
    %537 = arith.addf %536, %535 : vector<8x128xf32>
    %538 = arith.divf %536, %537 : vector<8x128xf32>
    %539 = vector.extract_strided_slice %532 {offsets = [0, 128], sizes = [8, 128], strides = [1, 1]} : vector<8x512xf32> to vector<8x128xf32>
    %540 = arith.negf %539 : vector<8x128xf32>
    %541 = math.exp %540 : vector<8x128xf32>
    %cst_133 = arith.constant 1.000000e+00 : f32
    %542 = vector.broadcast %cst_133 : f32 to vector<8x128xf32>
    %543 = arith.addf %542, %541 : vector<8x128xf32>
    %544 = arith.divf %542, %543 : vector<8x128xf32>
    %545 = vector.extract_strided_slice %532 {offsets = [0, 256], sizes = [8, 128], strides = [1, 1]} : vector<8x512xf32> to vector<8x128xf32>
    %546 = math.tanh %545 : vector<8x128xf32>
    %547 = vector.extract_strided_slice %532 {offsets = [0, 384], sizes = [8, 128], strides = [1, 1]} : vector<8x512xf32> to vector<8x128xf32>
    %548 = arith.negf %547 : vector<8x128xf32>
    %549 = math.exp %548 : vector<8x128xf32>
    %cst_134 = arith.constant 1.000000e+00 : f32
    %550 = vector.broadcast %cst_134 : f32 to vector<8x128xf32>
    %551 = arith.addf %550, %549 : vector<8x128xf32>
    %552 = arith.divf %550, %551 : vector<8x128xf32>
    %553 = arith.mulf %544, %464 : vector<8x128xf32>
    %554 = arith.mulf %538, %546 : vector<8x128xf32>
    %555 = arith.addf %553, %554 : vector<8x128xf32>
    %556 = math.tanh %555 : vector<8x128xf32>
    %557 = arith.mulf %552, %556 : vector<8x128xf32>
    %558 = vector.extract_strided_slice %5 {offsets = [48, 0], sizes = [8, 1536], strides = [1, 1]} : vector<64x1536xf32> to vector<8x1536xf32>
    %559 = vector.extract_strided_slice %558 {offsets = [0, 0], sizes = [8, 512], strides = [1, 1]} : vector<8x1536xf32> to vector<8x512xf32>
    %c0_135 = arith.constant 0 : index
    %c0_136 = arith.constant 0 : index
    %c0_137 = arith.constant 0 : index
    %560 = vector.load %arg2[%c0_135, %c0_136, %c0_137] : memref<3x128x512xf32, #tpu.memory_space<vmem>>, vector<1x128x512xf32>
    %561 = vector.shape_cast %560 : vector<1x128x512xf32> to vector<128x512xf32>
    %cst_138 = arith.constant dense<0.000000e+00> : vector<8x512xf32>
    %562 = tpu.matmul %497, %561, %cst_138 {dimension_numbers = #tpu.dot_dimension_numbers<[1], [0], [0], [1], [0, 0, 1, 1], [], []>} : vector<8x128xf32>, vector<128x512xf32>, vector<8x512xf32> -> vector<8x512xf32>
    %563 = arith.addf %559, %562 : vector<8x512xf32>
    %564 = vector.extract_strided_slice %563 {offsets = [0, 0], sizes = [8, 128], strides = [1, 1]} : vector<8x512xf32> to vector<8x128xf32>
    %565 = arith.negf %564 : vector<8x128xf32>
    %566 = math.exp %565 : vector<8x128xf32>
    %cst_139 = arith.constant 1.000000e+00 : f32
    %567 = vector.broadcast %cst_139 : f32 to vector<8x128xf32>
    %568 = arith.addf %567, %566 : vector<8x128xf32>
    %569 = arith.divf %567, %568 : vector<8x128xf32>
    %570 = vector.extract_strided_slice %563 {offsets = [0, 128], sizes = [8, 128], strides = [1, 1]} : vector<8x512xf32> to vector<8x128xf32>
    %571 = arith.negf %570 : vector<8x128xf32>
    %572 = math.exp %571 : vector<8x128xf32>
    %cst_140 = arith.constant 1.000000e+00 : f32
    %573 = vector.broadcast %cst_140 : f32 to vector<8x128xf32>
    %574 = arith.addf %573, %572 : vector<8x128xf32>
    %575 = arith.divf %573, %574 : vector<8x128xf32>
    %576 = vector.extract_strided_slice %563 {offsets = [0, 256], sizes = [8, 128], strides = [1, 1]} : vector<8x512xf32> to vector<8x128xf32>
    %577 = math.tanh %576 : vector<8x128xf32>
    %578 = vector.extract_strided_slice %563 {offsets = [0, 384], sizes = [8, 128], strides = [1, 1]} : vector<8x512xf32> to vector<8x128xf32>
    %579 = arith.negf %578 : vector<8x128xf32>
    %580 = math.exp %579 : vector<8x128xf32>
    %cst_141 = arith.constant 1.000000e+00 : f32
    %581 = vector.broadcast %cst_141 : f32 to vector<8x128xf32>
    %582 = arith.addf %581, %580 : vector<8x128xf32>
    %583 = arith.divf %581, %582 : vector<8x128xf32>
    %584 = arith.mulf %575, %495 : vector<8x128xf32>
    %585 = arith.mulf %569, %577 : vector<8x128xf32>
    %586 = arith.addf %584, %585 : vector<8x128xf32>
    %587 = math.tanh %586 : vector<8x128xf32>
    %588 = arith.mulf %583, %587 : vector<8x128xf32>
    %589 = vector.extract_strided_slice %558 {offsets = [0, 512], sizes = [8, 512], strides = [1, 1]} : vector<8x1536xf32> to vector<8x512xf32>
    %c1_142 = arith.constant 1 : index
    %c0_143 = arith.constant 0 : index
    %c0_144 = arith.constant 0 : index
    %590 = vector.load %arg2[%c1_142, %c0_143, %c0_144] : memref<3x128x512xf32, #tpu.memory_space<vmem>>, vector<1x128x512xf32>
    %591 = vector.shape_cast %590 : vector<1x128x512xf32> to vector<128x512xf32>
    %cst_145 = arith.constant dense<0.000000e+00> : vector<8x512xf32>
    %592 = tpu.matmul %527, %591, %cst_145 {dimension_numbers = #tpu.dot_dimension_numbers<[1], [0], [0], [1], [0, 0, 1, 1], [], []>} : vector<8x128xf32>, vector<128x512xf32>, vector<8x512xf32> -> vector<8x512xf32>
    %593 = arith.addf %589, %592 : vector<8x512xf32>
    %594 = vector.extract_strided_slice %593 {offsets = [0, 0], sizes = [8, 128], strides = [1, 1]} : vector<8x512xf32> to vector<8x128xf32>
    %595 = arith.negf %594 : vector<8x128xf32>
    %596 = math.exp %595 : vector<8x128xf32>
    %cst_146 = arith.constant 1.000000e+00 : f32
    %597 = vector.broadcast %cst_146 : f32 to vector<8x128xf32>
    %598 = arith.addf %597, %596 : vector<8x128xf32>
    %599 = arith.divf %597, %598 : vector<8x128xf32>
    %600 = vector.extract_strided_slice %593 {offsets = [0, 128], sizes = [8, 128], strides = [1, 1]} : vector<8x512xf32> to vector<8x128xf32>
    %601 = arith.negf %600 : vector<8x128xf32>
    %602 = math.exp %601 : vector<8x128xf32>
    %cst_147 = arith.constant 1.000000e+00 : f32
    %603 = vector.broadcast %cst_147 : f32 to vector<8x128xf32>
    %604 = arith.addf %603, %602 : vector<8x128xf32>
    %605 = arith.divf %603, %604 : vector<8x128xf32>
    %606 = vector.extract_strided_slice %593 {offsets = [0, 256], sizes = [8, 128], strides = [1, 1]} : vector<8x512xf32> to vector<8x128xf32>
    %607 = math.tanh %606 : vector<8x128xf32>
    %608 = vector.extract_strided_slice %593 {offsets = [0, 384], sizes = [8, 128], strides = [1, 1]} : vector<8x512xf32> to vector<8x128xf32>
    %609 = arith.negf %608 : vector<8x128xf32>
    %610 = math.exp %609 : vector<8x128xf32>
    %cst_148 = arith.constant 1.000000e+00 : f32
    %611 = vector.broadcast %cst_148 : f32 to vector<8x128xf32>
    %612 = arith.addf %611, %610 : vector<8x128xf32>
    %613 = arith.divf %611, %612 : vector<8x128xf32>
    %614 = arith.mulf %605, %525 : vector<8x128xf32>
    %615 = arith.mulf %599, %607 : vector<8x128xf32>
    %616 = arith.addf %614, %615 : vector<8x128xf32>
    %617 = math.tanh %616 : vector<8x128xf32>
    %618 = arith.mulf %613, %617 : vector<8x128xf32>
    %619 = vector.extract_strided_slice %558 {offsets = [0, 1024], sizes = [8, 512], strides = [1, 1]} : vector<8x1536xf32> to vector<8x512xf32>
    %c2_149 = arith.constant 2 : index
    %c0_150 = arith.constant 0 : index
    %c0_151 = arith.constant 0 : index
    %620 = vector.load %arg2[%c2_149, %c0_150, %c0_151] : memref<3x128x512xf32, #tpu.memory_space<vmem>>, vector<1x128x512xf32>
    %621 = vector.shape_cast %620 : vector<1x128x512xf32> to vector<128x512xf32>
    %cst_152 = arith.constant dense<0.000000e+00> : vector<8x512xf32>
    %622 = tpu.matmul %557, %621, %cst_152 {dimension_numbers = #tpu.dot_dimension_numbers<[1], [0], [0], [1], [0, 0, 1, 1], [], []>} : vector<8x128xf32>, vector<128x512xf32>, vector<8x512xf32> -> vector<8x512xf32>
    %623 = arith.addf %619, %622 : vector<8x512xf32>
    %624 = vector.extract_strided_slice %623 {offsets = [0, 0], sizes = [8, 128], strides = [1, 1]} : vector<8x512xf32> to vector<8x128xf32>
    %625 = arith.negf %624 : vector<8x128xf32>
    %626 = math.exp %625 : vector<8x128xf32>
    %cst_153 = arith.constant 1.000000e+00 : f32
    %627 = vector.broadcast %cst_153 : f32 to vector<8x128xf32>
    %628 = arith.addf %627, %626 : vector<8x128xf32>
    %629 = arith.divf %627, %628 : vector<8x128xf32>
    %630 = vector.extract_strided_slice %623 {offsets = [0, 128], sizes = [8, 128], strides = [1, 1]} : vector<8x512xf32> to vector<8x128xf32>
    %631 = arith.negf %630 : vector<8x128xf32>
    %632 = math.exp %631 : vector<8x128xf32>
    %cst_154 = arith.constant 1.000000e+00 : f32
    %633 = vector.broadcast %cst_154 : f32 to vector<8x128xf32>
    %634 = arith.addf %633, %632 : vector<8x128xf32>
    %635 = arith.divf %633, %634 : vector<8x128xf32>
    %636 = vector.extract_strided_slice %623 {offsets = [0, 256], sizes = [8, 128], strides = [1, 1]} : vector<8x512xf32> to vector<8x128xf32>
    %637 = math.tanh %636 : vector<8x128xf32>
    %638 = vector.extract_strided_slice %623 {offsets = [0, 384], sizes = [8, 128], strides = [1, 1]} : vector<8x512xf32> to vector<8x128xf32>
    %639 = arith.negf %638 : vector<8x128xf32>
    %640 = math.exp %639 : vector<8x128xf32>
    %cst_155 = arith.constant 1.000000e+00 : f32
    %641 = vector.broadcast %cst_155 : f32 to vector<8x128xf32>
    %642 = arith.addf %641, %640 : vector<8x128xf32>
    %643 = arith.divf %641, %642 : vector<8x128xf32>
    %644 = arith.mulf %635, %555 : vector<8x128xf32>
    %645 = arith.mulf %629, %637 : vector<8x128xf32>
    %646 = arith.addf %644, %645 : vector<8x128xf32>
    %647 = math.tanh %646 : vector<8x128xf32>
    %648 = arith.mulf %643, %647 : vector<8x128xf32>
    %649 = vector.extract_strided_slice %5 {offsets = [56, 0], sizes = [8, 1536], strides = [1, 1]} : vector<64x1536xf32> to vector<8x1536xf32>
    %650 = vector.extract_strided_slice %649 {offsets = [0, 0], sizes = [8, 512], strides = [1, 1]} : vector<8x1536xf32> to vector<8x512xf32>
    %c0_156 = arith.constant 0 : index
    %c0_157 = arith.constant 0 : index
    %c0_158 = arith.constant 0 : index
    %651 = vector.load %arg2[%c0_156, %c0_157, %c0_158] : memref<3x128x512xf32, #tpu.memory_space<vmem>>, vector<1x128x512xf32>
    %652 = vector.shape_cast %651 : vector<1x128x512xf32> to vector<128x512xf32>
    %cst_159 = arith.constant dense<0.000000e+00> : vector<8x512xf32>
    %653 = tpu.matmul %588, %652, %cst_159 {dimension_numbers = #tpu.dot_dimension_numbers<[1], [0], [0], [1], [0, 0, 1, 1], [], []>} : vector<8x128xf32>, vector<128x512xf32>, vector<8x512xf32> -> vector<8x512xf32>
    %654 = arith.addf %650, %653 : vector<8x512xf32>
    %655 = vector.extract_strided_slice %654 {offsets = [0, 0], sizes = [8, 128], strides = [1, 1]} : vector<8x512xf32> to vector<8x128xf32>
    %656 = arith.negf %655 : vector<8x128xf32>
    %657 = math.exp %656 : vector<8x128xf32>
    %cst_160 = arith.constant 1.000000e+00 : f32
    %658 = vector.broadcast %cst_160 : f32 to vector<8x128xf32>
    %659 = arith.addf %658, %657 : vector<8x128xf32>
    %660 = arith.divf %658, %659 : vector<8x128xf32>
    %661 = vector.extract_strided_slice %654 {offsets = [0, 128], sizes = [8, 128], strides = [1, 1]} : vector<8x512xf32> to vector<8x128xf32>
    %662 = arith.negf %661 : vector<8x128xf32>
    %663 = math.exp %662 : vector<8x128xf32>
    %cst_161 = arith.constant 1.000000e+00 : f32
    %664 = vector.broadcast %cst_161 : f32 to vector<8x128xf32>
    %665 = arith.addf %664, %663 : vector<8x128xf32>
    %666 = arith.divf %664, %665 : vector<8x128xf32>
    %667 = vector.extract_strided_slice %654 {offsets = [0, 256], sizes = [8, 128], strides = [1, 1]} : vector<8x512xf32> to vector<8x128xf32>
    %668 = math.tanh %667 : vector<8x128xf32>
    %669 = vector.extract_strided_slice %654 {offsets = [0, 384], sizes = [8, 128], strides = [1, 1]} : vector<8x512xf32> to vector<8x128xf32>
    %670 = arith.negf %669 : vector<8x128xf32>
    %671 = math.exp %670 : vector<8x128xf32>
    %cst_162 = arith.constant 1.000000e+00 : f32
    %672 = vector.broadcast %cst_162 : f32 to vector<8x128xf32>
    %673 = arith.addf %672, %671 : vector<8x128xf32>
    %674 = arith.divf %672, %673 : vector<8x128xf32>
    %675 = arith.mulf %666, %586 : vector<8x128xf32>
    %676 = arith.mulf %660, %668 : vector<8x128xf32>
    %677 = arith.addf %675, %676 : vector<8x128xf32>
    %678 = math.tanh %677 : vector<8x128xf32>
    %679 = arith.mulf %674, %678 : vector<8x128xf32>
    %680 = vector.extract_strided_slice %649 {offsets = [0, 512], sizes = [8, 512], strides = [1, 1]} : vector<8x1536xf32> to vector<8x512xf32>
    %c1_163 = arith.constant 1 : index
    %c0_164 = arith.constant 0 : index
    %c0_165 = arith.constant 0 : index
    %681 = vector.load %arg2[%c1_163, %c0_164, %c0_165] : memref<3x128x512xf32, #tpu.memory_space<vmem>>, vector<1x128x512xf32>
    %682 = vector.shape_cast %681 : vector<1x128x512xf32> to vector<128x512xf32>
    %cst_166 = arith.constant dense<0.000000e+00> : vector<8x512xf32>
    %683 = tpu.matmul %618, %682, %cst_166 {dimension_numbers = #tpu.dot_dimension_numbers<[1], [0], [0], [1], [0, 0, 1, 1], [], []>} : vector<8x128xf32>, vector<128x512xf32>, vector<8x512xf32> -> vector<8x512xf32>
    %684 = arith.addf %680, %683 : vector<8x512xf32>
    %685 = vector.extract_strided_slice %684 {offsets = [0, 0], sizes = [8, 128], strides = [1, 1]} : vector<8x512xf32> to vector<8x128xf32>
    %686 = arith.negf %685 : vector<8x128xf32>
    %687 = math.exp %686 : vector<8x128xf32>
    %cst_167 = arith.constant 1.000000e+00 : f32
    %688 = vector.broadcast %cst_167 : f32 to vector<8x128xf32>
    %689 = arith.addf %688, %687 : vector<8x128xf32>
    %690 = arith.divf %688, %689 : vector<8x128xf32>
    %691 = vector.extract_strided_slice %684 {offsets = [0, 128], sizes = [8, 128], strides = [1, 1]} : vector<8x512xf32> to vector<8x128xf32>
    %692 = arith.negf %691 : vector<8x128xf32>
    %693 = math.exp %692 : vector<8x128xf32>
    %cst_168 = arith.constant 1.000000e+00 : f32
    %694 = vector.broadcast %cst_168 : f32 to vector<8x128xf32>
    %695 = arith.addf %694, %693 : vector<8x128xf32>
    %696 = arith.divf %694, %695 : vector<8x128xf32>
    %697 = vector.extract_strided_slice %684 {offsets = [0, 256], sizes = [8, 128], strides = [1, 1]} : vector<8x512xf32> to vector<8x128xf32>
    %698 = math.tanh %697 : vector<8x128xf32>
    %699 = vector.extract_strided_slice %684 {offsets = [0, 384], sizes = [8, 128], strides = [1, 1]} : vector<8x512xf32> to vector<8x128xf32>
    %700 = arith.negf %699 : vector<8x128xf32>
    %701 = math.exp %700 : vector<8x128xf32>
    %cst_169 = arith.constant 1.000000e+00 : f32
    %702 = vector.broadcast %cst_169 : f32 to vector<8x128xf32>
    %703 = arith.addf %702, %701 : vector<8x128xf32>
    %704 = arith.divf %702, %703 : vector<8x128xf32>
    %705 = arith.mulf %696, %616 : vector<8x128xf32>
    %706 = arith.mulf %690, %698 : vector<8x128xf32>
    %707 = arith.addf %705, %706 : vector<8x128xf32>
    %708 = math.tanh %707 : vector<8x128xf32>
    %709 = arith.mulf %704, %708 : vector<8x128xf32>
    %710 = vector.extract_strided_slice %649 {offsets = [0, 1024], sizes = [8, 512], strides = [1, 1]} : vector<8x1536xf32> to vector<8x512xf32>
    %c2_170 = arith.constant 2 : index
    %c0_171 = arith.constant 0 : index
    %c0_172 = arith.constant 0 : index
    %711 = vector.load %arg2[%c2_170, %c0_171, %c0_172] : memref<3x128x512xf32, #tpu.memory_space<vmem>>, vector<1x128x512xf32>
    %712 = vector.shape_cast %711 : vector<1x128x512xf32> to vector<128x512xf32>
    %cst_173 = arith.constant dense<0.000000e+00> : vector<8x512xf32>
    %713 = tpu.matmul %648, %712, %cst_173 {dimension_numbers = #tpu.dot_dimension_numbers<[1], [0], [0], [1], [0, 0, 1, 1], [], []>} : vector<8x128xf32>, vector<128x512xf32>, vector<8x512xf32> -> vector<8x512xf32>
    %714 = arith.addf %710, %713 : vector<8x512xf32>
    %715 = vector.extract_strided_slice %714 {offsets = [0, 0], sizes = [8, 128], strides = [1, 1]} : vector<8x512xf32> to vector<8x128xf32>
    %716 = arith.negf %715 : vector<8x128xf32>
    %717 = math.exp %716 : vector<8x128xf32>
    %cst_174 = arith.constant 1.000000e+00 : f32
    %718 = vector.broadcast %cst_174 : f32 to vector<8x128xf32>
    %719 = arith.addf %718, %717 : vector<8x128xf32>
    %720 = arith.divf %718, %719 : vector<8x128xf32>
    %721 = vector.extract_strided_slice %714 {offsets = [0, 128], sizes = [8, 128], strides = [1, 1]} : vector<8x512xf32> to vector<8x128xf32>
    %722 = arith.negf %721 : vector<8x128xf32>
    %723 = math.exp %722 : vector<8x128xf32>
    %cst_175 = arith.constant 1.000000e+00 : f32
    %724 = vector.broadcast %cst_175 : f32 to vector<8x128xf32>
    %725 = arith.addf %724, %723 : vector<8x128xf32>
    %726 = arith.divf %724, %725 : vector<8x128xf32>
    %727 = vector.extract_strided_slice %714 {offsets = [0, 256], sizes = [8, 128], strides = [1, 1]} : vector<8x512xf32> to vector<8x128xf32>
    %728 = math.tanh %727 : vector<8x128xf32>
    %729 = vector.extract_strided_slice %714 {offsets = [0, 384], sizes = [8, 128], strides = [1, 1]} : vector<8x512xf32> to vector<8x128xf32>
    %730 = arith.negf %729 : vector<8x128xf32>
    %731 = math.exp %730 : vector<8x128xf32>
    %cst_176 = arith.constant 1.000000e+00 : f32
    %732 = vector.broadcast %cst_176 : f32 to vector<8x128xf32>
    %733 = arith.addf %732, %731 : vector<8x128xf32>
    %734 = arith.divf %732, %733 : vector<8x128xf32>
    %735 = arith.mulf %726, %646 : vector<8x128xf32>
    %736 = arith.mulf %720, %728 : vector<8x128xf32>
    %737 = arith.addf %735, %736 : vector<8x128xf32>
    %738 = math.tanh %737 : vector<8x128xf32>
    %739 = arith.mulf %734, %738 : vector<8x128xf32>
    %c0_177 = arith.constant 0 : index
    %c0_178 = arith.constant 0 : index
    %c0_179 = arith.constant 0 : index
    %740 = vector.load %arg4[%c0_177, %c0_178, %c0_179] : memref<3x128x128xf32, #tpu.memory_space<vmem>>, vector<1x128x128xf32>
    %741 = vector.shape_cast %740 : vector<1x128x128xf32> to vector<128x128xf32>
    %cst_180 = arith.constant dense<0.000000e+00> : vector<8x128xf32>
    %742 = tpu.matmul %679, %741, %cst_180 {dimension_numbers = #tpu.dot_dimension_numbers<[1], [0], [0], [1], [0, 0, 1, 1], [], []>} : vector<8x128xf32>, vector<128x128xf32>, vector<8x128xf32> -> vector<8x128xf32>
    %c1_181 = arith.constant 1 : index
    %c0_182 = arith.constant 0 : index
    %c0_183 = arith.constant 0 : index
    %743 = vector.load %arg4[%c1_181, %c0_182, %c0_183] : memref<3x128x128xf32, #tpu.memory_space<vmem>>, vector<1x128x128xf32>
    %744 = vector.shape_cast %743 : vector<1x128x128xf32> to vector<128x128xf32>
    %cst_184 = arith.constant dense<0.000000e+00> : vector<8x128xf32>
    %745 = tpu.matmul %709, %744, %cst_184 {dimension_numbers = #tpu.dot_dimension_numbers<[1], [0], [0], [1], [0, 0, 1, 1], [], []>} : vector<8x128xf32>, vector<128x128xf32>, vector<8x128xf32> -> vector<8x128xf32>
    %746 = arith.addf %742, %745 : vector<8x128xf32>
    %c2_185 = arith.constant 2 : index
    %c0_186 = arith.constant 0 : index
    %c0_187 = arith.constant 0 : index
    %747 = vector.load %arg4[%c2_185, %c0_186, %c0_187] : memref<3x128x128xf32, #tpu.memory_space<vmem>>, vector<1x128x128xf32>
    %748 = vector.shape_cast %747 : vector<1x128x128xf32> to vector<128x128xf32>
    %cst_188 = arith.constant dense<0.000000e+00> : vector<8x128xf32>
    %749 = tpu.matmul %739, %748, %cst_188 {dimension_numbers = #tpu.dot_dimension_numbers<[1], [0], [0], [1], [0, 0, 1, 1], [], []>} : vector<8x128xf32>, vector<128x128xf32>, vector<8x128xf32> -> vector<8x128xf32>
    %750 = arith.addf %746, %749 : vector<8x128xf32>
    %c0_189 = arith.constant 0 : index
    %c0_190 = arith.constant 0 : index
    %751 = vector.load %arg5[%c0_189, %c0_190] : memref<1x128xf32, #tpu.memory_space<vmem>>, vector<1x128xf32>
    %752 = vector.broadcast %751 : vector<1x128xf32> to vector<8x128xf32>
    %753 = arith.addf %750, %752 : vector<8x128xf32>
    %c0_191 = arith.constant 0 : index
    %c0_192 = arith.constant 0 : index
    %754 = vector.load %arg6[%c0_191, %c0_192] : memref<8x128xf32, #tpu.memory_space<vmem>>, vector<8x128xf32>
    tpu.vector_store %arg6[%c0_191, %c0_192], %753 {strides = array<i32>} : memref<8x128xf32, #tpu.memory_space<vmem>>, vector<8x128xf32>,
    return
  }
}

</mosaic_0001>

<llo_original>
// kernel: xlstm_branch_forward.1
$region0: #{xlstm_branch_forward.1}
  #allocation0 [shape = 'u32[]', space=smem, size = 0x4, offset = 0x4, fixed_abs, tag = 'smem constant byte address 0x4 - core index']
  #allocation1 [shape = 'u32[144,128]{1,0:T(1,128)}', space=vmem, size = 0x12000, scoped, tag = 'internal scratch']
  %s0 = inlined_call_operand.vmem [shape: f32[64,16], index: 0, kind: input, shape index: {}]
  %s1 = inlined_call_operand.hbm [shape: f32[16,1536], index: 1, kind: input, shape index: {}]
  %s2 = inlined_call_operand.hbm [shape: f32[3,128,512], index: 2, kind: input, shape index: {}]
  %s3 = inlined_call_operand.vmem [shape: f32[1,1536], index: 3, kind: input, shape index: {}]
  %s4 = inlined_call_operand.hbm [shape: f32[3,128,128], index: 4, kind: input, shape index: {}]
  %s5 = inlined_call_operand.vmem [shape: f32[1,128], index: 5, kind: input, shape index: {}]
  %s6 = inlined_call_operand.vmem [shape: f32[8,128], index: 6, kind: output, shape index: {}]
  %s7 = sld [smem:[#allocation0]]
  $region46: #{xlstm_branch_forward.1} parent=0
    _
  %s9 = ssub.s32 1, %s7
  %s10 = scalar_select 0, %s9, %s7
  $region1: #{xlstm_branch_forward.1} parent=0
    #allocation2 [shape = 'u8[98304]{0}', space=vmem, size = 0x18000, scoped, tag = 'input window, operand 1, single buffered']
    #allocation3 [shape = 's32[1]{0}', space=sflag, size = 0x4, scoped, tag = 'scoped memory for xlstm_branch_forward.1']
    #allocation4 [shape = 'u8[786432]{0}', space=vmem, size = 0xc0000, scoped, tag = 'input window, operand 2, single buffered']
    #allocation5 [shape = 's32[1]{0}', space=sflag, size = 0x4, scoped, tag = 'scoped memory for xlstm_branch_forward.1']
    #allocation6 [shape = 'u8[196608]{0}', space=vmem, size = 0x30000, scoped, tag = 'input window, operand 4, single buffered']
    %11 = vsyncpa [#allocation3], 0
    %12 = vsyncpa [#allocation5], 0
    // Predicated region
    $region2: #{xlstm_branch_forward.1} parent=1 // pred_check
      _
    $region3: #{xlstm_branch_forward.1} parent=1 // pred_check_branch
      %14 = sbr.rel (0) target = $region5
    $region4: #{xlstm_branch_forward.1} parent=1 // pred_region
      _
    $region5: #{xlstm_branch_forward.1} parent=1 // pred_fallthru
      _
    // Predicated region
    $region6: #{xlstm_branch_forward.1} parent=1 // pred_check
      _
    $region7: #{xlstm_branch_forward.1} parent=1 // pred_check_branch
      %16 = sbr.rel (0) target = $region9
    $region8: #{xlstm_branch_forward.1} parent=1 // pred_region
      %s18 = ssub.s32 3072, 3072
      %19 = vsyncadd [#allocation3], %s18
      %s20 = sshll.u32 [#allocation2], 4
      %s21 = int_to_ptr.vmem [resolvable:$true] %s20
      %26 = dma.hbm_to_vmem [thread:$0]  %s1, 3072, %s21, [#allocation3], 1536, 1536, 96
    $region9: #{xlstm_branch_forward.1} parent=1 // pred_fallthru
      _
    // Predicated region
    $region10: #{xlstm_branch_forward.1} parent=1 // pred_check
      _
    $region11: #{xlstm_branch_forward.1} parent=1 // pred_check_branch
      %28 = sbr.rel (0) target = $region13
    $region12: #{xlstm_branch_forward.1} parent=1 // pred_region
      %s30 = ssub.s32 24576, 24576
      %31 = vsyncadd [#allocation5], %s30
      %s32 = sshll.u32 [#allocation4], 4
      %s33 = int_to_ptr.vmem [resolvable:$true] %s32
      %38 = dma.hbm_to_vmem [thread:$0]  %s2, 24576, %s33, [#allocation5], 512, 512, 32
    $region13: #{xlstm_branch_forward.1} parent=1 // pred_fallthru
      _
    // Predicated region
    $region14: #{xlstm_branch_forward.1} parent=1 // pred_check
      _
    $region15: #{xlstm_branch_forward.1} parent=1 // pred_check_branch
      %40 = sbr.rel (0) target = $region17
    $region16: #{xlstm_branch_forward.1} parent=1 // pred_region
      _
    $region17: #{xlstm_branch_forward.1} parent=1 // pred_fallthru
      _
    // Predicated region
    $region18: #{xlstm_branch_forward.1} parent=1 // pred_check
      _
    $region19: #{xlstm_branch_forward.1} parent=1 // pred_check_branch
      %42 = sbr.rel (0) target = $region21
    $region20: #{xlstm_branch_forward.1} parent=1 // pred_region
      %s44 = ssub.s32 6144, 6144
      %45 = vsyncadd [#allocation5], %s44
      %s46 = sshll.u32 [#allocation6], 4
      %s47 = int_to_ptr.vmem [resolvable:$true] %s46
      %52 = dma.hbm_to_vmem [thread:$0]  %s4, 6144, %s47, [#allocation5], 128, 128, 8
    $region21: #{xlstm_branch_forward.1} parent=1 // pred_fallthru
      _
    // Predicated region
    $region22: #{xlstm_branch_forward.1} parent=1 // pred_check
      _
    $region23: #{xlstm_branch_forward.1} parent=1 // pred_check_branch
      %54 = sbr.rel (0) target = $region25
    $region24: #{xlstm_branch_forward.1} parent=1 // pred_region
      _
    $region25: #{xlstm_branch_forward.1} parent=1 // pred_fallthru
      _
    // Predicated region
    $region26: #{xlstm_branch_forward.1} parent=1 // pred_check
      _
    $region27: #{xlstm_branch_forward.1} parent=1 // pred_check_branch
      %56 = sbr.rel (0) target = $region29
    $region28: #{xlstm_branch_forward.1} parent=1 // pred_region
      %57 = dma.done [#allocation3], 3072
    $region29: #{xlstm_branch_forward.1} parent=1 // pred_fallthru
      _
    // Predicated region
    $region30: #{xlstm_branch_forward.1} parent=1 // pred_check
      _
    $region31: #{xlstm_branch_forward.1} parent=1 // pred_check_branch
      %59 = sbr.rel (0) target = $region33
    $region32: #{xlstm_branch_forward.1} parent=1 // pred_region
      %60 = dma.done [#allocation5], 24576
    $region33: #{xlstm_branch_forward.1} parent=1 // pred_fallthru
      _
    // Predicated region
    $region34: #{xlstm_branch_forward.1} parent=1 // pred_check
      _
    $region35: #{xlstm_branch_forward.1} parent=1 // pred_check_branch
      %62 = sbr.rel (0) target = $region37
    $region36: #{xlstm_branch_forward.1} parent=1 // pred_region
      %63 = dma.done [#allocation5], 6144
    $region37: #{xlstm_branch_forward.1} parent=1 // pred_fallthru
      _
    %v64 = vld [vmem:[%s0] sm:$0xff]
    %v65 = vld [vmem:[%s0 + $0x8] sm:$0xff]
    %v66 = vld [vmem:[%s0 + $0x10] sm:$0xff]
    %v67 = vld [vmem:[%s0 + $0x18] sm:$0xff]
    %v68 = vld [vmem:[%s0 + $0x20] sm:$0xff]
    %v69 = vld [vmem:[%s0 + $0x28] sm:$0xff]
    %v70 = vld [vmem:[%s0 + $0x30] sm:$0xff]
    %v71 = vld [vmem:[%s0 + $0x38] sm:$0xff]
    %v72 = vld [vmem:[#allocation2] sm:$0xff]
    %v73 = vld [vmem:[#allocation2 + $0x8] sm:$0xff]
    %v74 = vld [vmem:[#allocation2 + $0x10] sm:$0xff]
    %v75 = vld [vmem:[#allocation2 + $0x18] sm:$0xff]
    %v76 = vld [vmem:[#allocation2 + $0x20] sm:$0xff]
    %v77 = vld [vmem:[#allocation2 + $0x28] sm:$0xff]
    %v78 = vld [vmem:[#allocation2 + $0x30] sm:$0xff]
    %v79 = vld [vmem:[#allocation2 + $0x38] sm:$0xff]
    %v80 = vld [vmem:[#allocation2 + $0x40] sm:$0xff]
    %v81 = vld [vmem:[#allocation2 + $0x48] sm:$0xff]
    %v82 = vld [vmem:[#allocation2 + $0x50] sm:$0xff]
    %v83 = vld [vmem:[#allocation2 + $0x58] sm:$0xff]
    %v84 = vld [vmem:[#allocation2 + $0x60] sm:$0xff]
    %v85 = vld [vmem:[#allocation2 + $0x68] sm:$0xff]
    %v86 = vld [vmem:[#allocation2 + $0x70] sm:$0xff]
    %v87 = vld [vmem:[#allocation2 + $0x78] sm:$0xff]
    %v88 = vld [vmem:[#allocation2 + $0x80] sm:$0xff]
    %v89 = vld [vmem:[#allocation2 + $0x88] sm:$0xff]
    %v90 = vld [vmem:[#allocation2 + $0x90] sm:$0xff]
    %v91 = vld [vmem:[#allocation2 + $0x98] sm:$0xff]
    %v92 = vld [vmem:[#allocation2 + $0xa0] sm:$0xff]
    %v93 = vld [vmem:[#allocation2 + $0xa8] sm:$0xff]
    %v94 = vld [vmem:[#allocation2 + $0xb0] sm:$0xff]
    %v95 = vld [vmem:[#allocation2 + $0xb8] sm:$0xff]
    %v96 = vld [vmem:[%s3] sm:$0xff]
    %v97 = vld [vmem:[%s3 + $0x8] sm:$0xf]
    %v100 = vlaneseq
    %v101 = vshrl.u32 %v100, 7
    %v102 = vsub.s32 0, %v101
    %v103 = vrot.slane %v96, %v102
    %v104 = vlaneseq
    %v105 = vshrl.u32 %v104, 7
    %v106 = vsub.s32 1, %v105
    %v107 = vrot.slane %v96, %v106
    %v108 = vlaneseq
    %v109 = vshrl.u32 %v108, 7
    %v110 = vsub.s32 2, %v109
    %v111 = vrot.slane %v96, %v110
    %v112 = vlaneseq
    %v113 = vshrl.u32 %v112, 7
    %v114 = vsub.s32 3, %v113
    %v115 = vrot.slane %v96, %v114
    %v116 = vlaneseq
    %v117 = vshrl.u32 %v116, 7
    %v118 = vsub.s32 4, %v117
    %v119 = vrot.slane %v96, %v118
    %v120 = vlaneseq
    %v121 = vshrl.u32 %v120, 7
    %v122 = vsub.s32 5, %v121
    %v123 = vrot.slane %v96, %v122
    %v124 = vlaneseq
    %v125 = vshrl.u32 %v124, 7
    %v126 = vsub.s32 6, %v125
    %v127 = vrot.slane %v96, %v126
    %v128 = vlaneseq
    %v129 = vshrl.u32 %v128, 7
    %v130 = vsub.s32 7, %v129
    %v131 = vrot.slane %v96, %v130
    %v132 = vlaneseq
    %v133 = vshrl.u32 %v132, 7
    %v134 = vsub.s32 0, %v133
    %v135 = vrot.slane %v97, %v134
    %v136 = vlaneseq
    %v137 = vshrl.u32 %v136, 7
    %v138 = vsub.s32 1, %v137
    %v139 = vrot.slane %v97, %v138
    %v140 = vlaneseq
    %v141 = vshrl.u32 %v140, 7
    %v142 = vsub.s32 2, %v141
    %v143 = vrot.slane %v97, %v142
    %v144 = vlaneseq
    %v145 = vshrl.u32 %v144, 7
    %v146 = vsub.s32 3, %v145
    %v147 = vrot.slane %v97, %v146
    %vm160 = vcmask 130048
    %v162 = vsel %vm160, %v64, 0
    %v165 = vsel %vm160, %v65, 0
    %v168 = vsel %vm160, %v66, 0
    %v171 = vsel %vm160, %v67, 0
    %v174 = vsel %vm160, %v68, 0
    %v177 = vsel %vm160, %v69, 0
    %v180 = vsel %vm160, %v70, 0
    %v183 = vsel %vm160, %v71, 0
    %185 = vmatprep.subr.mxu0 0.0
    %186 = vmatpush1.msra.mxu0 0.0
    %187 = vmatprep.subr.mxu0 0.0
    %188 = vmatpush1.msra.mxu0 0.0
    %189 = vmatprep.subr.mxu0 0.0
    %190 = vmatpush1.msra.mxu0 0.0
    %191 = vmatprep.subr.mxu0 0.0
    %192 = vmatpush1.msra.mxu0 0.0
    %193 = vmatprep.subr.mxu0 0.0
    %194 = vmatpush1.msra.mxu0 0.0
    %195 = vmatprep.subr.mxu0 0.0
    %196 = vmatpush1.msra.mxu0 0.0
    %197 = vmatprep.subr.mxu0 0.0
    %198 = vmatpush1.msra.mxu0 0.0
    %199 = vmatprep.subr.mxu0 0.0
    %200 = vmatpush1.msra.mxu0 0.0
    %201 = vmatprep.subr.mxu0 0.0
    %202 = vmatpush1.msra.mxu0 0.0
    %203 = vmatprep.subr.mxu0 0.0
    %204 = vmatpush1.msra.mxu0 0.0
    %205 = vmatprep.subr.mxu0 0.0
    %206 = vmatpush1.msra.mxu0 0.0
    %207 = vmatprep.subr.mxu0 0.0
    %208 = vmatpush1.msra.mxu0 0.0
    %209 = vmatprep.subr.mxu0 0.0
    %210 = vmatpush1.msra.mxu0 0.0
    %211 = vmatprep.subr.mxu0 0.0
    %212 = vmatpush1.msra.mxu0 0.0
    %213 = vmatprep.subr.mxu0 %v85
    %214 = vmatpush1.msra.mxu0 %v84
    %215 = vmatprep.subr.mxu0 %v73
    %216 = vmatpush1.msra.mxu0 %v72
    %217 = vmatprep.subr.mxu0 0.0
    %218 = vmatpush2.msra.mxu0 0.0
    %219 = vmatprep.subr.mxu0 0.0
    %220 = vmatpush2.msra.mxu0 0.0
    %221 = vmatprep.subr.mxu0 0.0
    %222 = vmatpush2.msra.mxu0 0.0
    %223 = vmatprep.subr.mxu0 0.0
    %224 = vmatpush2.msra.mxu0 0.0
    %225 = vmatprep.subr.mxu0 0.0
    %226 = vmatpush2.msra.mxu0 0.0
    %227 = vmatprep.subr.mxu0 0.0
    %228 = vmatpush2.msra.mxu0 0.0
    %229 = vmatprep.subr.mxu0 0.0
    %230 = vmatpush2.msra.mxu0 0.0
    %231 = vmatprep.subr.mxu0 0.0
    %232 = vmatpush2.msra.mxu0 0.0
    %233 = vmatprep.subr.mxu0 0.0
    %234 = vmatpush2.msra.mxu0 0.0
    %235 = vmatprep.subr.mxu0 0.0
    %236 = vmatpush2.msra.mxu0 0.0
    %237 = vmatprep.subr.mxu0 0.0
    %238 = vmatpush2.msra.mxu0 0.0
    %239 = vmatprep.subr.mxu0 0.0
    %240 = vmatpush2.msra.mxu0 0.0
    %241 = vmatprep.subr.mxu0 0.0
    %242 = vmatpush2.msra.mxu0 0.0
    %243 = vmatprep.subr.mxu0 0.0
    %244 = vmatpush2.msra.mxu0 0.0
    %245 = vmatprep.subr.mxu0 0.0
    %246 = vmatpush2.msra.mxu0 0.0
    %247 = vmatprep.subr.mxu0 0.0
    %248 = vmatpush2.msra.mxu0 0.0
    %249 = vmatprep.mubr.f32.mxu0 0.0
    %250 = vmatmul.mubr.f32.gmra.mxu0 %v162
    %v251 = vpop.f32.mrf.mxu0
    %v252 = vadd.f32 %v103, %v251
    %v253 = vpop.f32.mrf.mxu0
    %v254 = vadd.f32 %v107, %v253
    %255 = vmatprep.mubr.f32.mxu0 0.0
    %256 = vmatmul.mubr.f32.gmra.mxu0 %v165
    %v257 = vpop.f32.mrf.mxu0
    %v258 = vadd.f32 %v103, %v257
    %v259 = vpop.f32.mrf.mxu0
    %v260 = vadd.f32 %v107, %v259
    %261 = vmatprep.mubr.f32.mxu0 0.0
    %262 = vmatmul.mubr.f32.gmra.mxu0 %v168
    %v263 = vpop.f32.mrf.mxu0
    %v264 = vadd.f32 %v103, %v263
    %v265 = vpop.f32.mrf.mxu0
    %v266 = vadd.f32 %v107, %v265
    %267 = vmatprep.mubr.f32.mxu0 0.0
    %268 = vmatmul.mubr.f32.gmra.mxu0 %v171
    %v269 = vpop.f32.mrf.mxu0
    %v270 = vadd.f32 %v103, %v269
    %v271 = vpop.f32.mrf.mxu0
    %v272 = vadd.f32 %v107, %v271
    %273 = vmatprep.mubr.f32.mxu0 0.0
    %274 = vmatmul.mubr.f32.gmra.mxu0 %v174
    %v275 = vpop.f32.mrf.mxu0
    %v276 = vadd.f32 %v103, %v275
    %v277 = vpop.f32.mrf.mxu0
    %v278 = vadd.f32 %v107, %v277
    %279 = vmatprep.mubr.f32.mxu0 0.0
    %280 = vmatmul.mubr.f32.gmra.mxu0 %v177
    %v281 = vpop.f32.mrf.mxu0
    %v282 = vadd.f32 %v103, %v281
    %v283 = vpop.f32.mrf.mxu0
    %v284 = vadd.f32 %v107, %v283
    %285 = vmatprep.mubr.f32.mxu0 0.0
    %286 = vmatmul.mubr.f32.gmra.mxu0 %v180
    %v287 = vpop.f32.mrf.mxu0
    %v288 = vadd.f32 %v103, %v287
    %v289 = vpop.f32.mrf.mxu0
    %v290 = vadd.f32 %v107, %v289
    %291 = vmatprep.mubr.f32.mxu0 0.0
    %292 = vmatmul.mubr.f32.gmra.mxu0 %v183
    %v293 = vpop.f32.mrf.mxu0
    %v294 = vadd.f32 %v103, %v293
    %v295 = vpop.f32.mrf.mxu0
    %v296 = vadd.f32 %v107, %v295
    %297 = vdwg.mxu0
    %298 = vmatprep.subr.mxu0 0.0
    %299 = vmatpush1.msra.mxu0 0.0
    %300 = vmatprep.subr.mxu0 0.0
    %301 = vmatpush1.msra.mxu0 0.0
    %302 = vmatprep.subr.mxu0 0.0
    %303 = vmatpush1.msra.mxu0 0.0
    %304 = vmatprep.subr.mxu0 0.0
    %305 = vmatpush1.msra.mxu0 0.0
    %306 = vmatprep.subr.mxu0 0.0
    %307 = vmatpush1.msra.mxu0 0.0
    %308 = vmatprep.subr.mxu0 0.0
    %309 = vmatpush1.msra.mxu0 0.0
    %310 = vmatprep.subr.mxu0 0.0
    %311 = vmatpush1.msra.mxu0 0.0
    %312 = vmatprep.subr.mxu0 0.0
    %313 = vmatpush1.msra.mxu0 0.0
    %314 = vmatprep.subr.mxu0 0.0
    %315 = vmatpush1.msra.mxu0 0.0
    %316 = vmatprep.subr.mxu0 0.0
    %317 = vmatpush1.msra.mxu0 0.0
    %318 = vmatprep.subr.mxu0 0.0
    %319 = vmatpush1.msra.mxu0 0.0
    %320 = vmatprep.subr.mxu0 0.0
    %321 = vmatpush1.msra.mxu0 0.0
    %322 = vmatprep.subr.mxu0 0.0
    %323 = vmatpush1.msra.mxu0 0.0
    %324 = vmatprep.subr.mxu0 0.0
    %325 = vmatpush1.msra.mxu0 0.0
    %326 = vmatprep.subr.mxu0 %v87
    %327 = vmatpush1.msra.mxu0 %v86
    %328 = vmatprep.subr.mxu0 %v75
    %329 = vmatpush1.msra.mxu0 %v74
    %330 = vmatprep.subr.mxu0 0.0
    %331 = vmatpush2.msra.mxu0 0.0
    %332 = vmatprep.subr.mxu0 0.0
    %333 = vmatpush2.msra.mxu0 0.0
    %334 = vmatprep.subr.mxu0 0.0
    %335 = vmatpush2.msra.mxu0 0.0
    %336 = vmatprep.subr.mxu0 0.0
    %337 = vmatpush2.msra.mxu0 0.0
    %338 = vmatprep.subr.mxu0 0.0
    %339 = vmatpush2.msra.mxu0 0.0
    %340 = vmatprep.subr.mxu0 0.0
    %341 = vmatpush2.msra.mxu0 0.0
    %342 = vmatprep.subr.mxu0 0.0
    %343 = vmatpush2.msra.mxu0 0.0
    %344 = vmatprep.subr.mxu0 0.0
    %345 = vmatpush2.msra.mxu0 0.0
    %346 = vmatprep.subr.mxu0 0.0
    %347 = vmatpush2.msra.mxu0 0.0
    %348 = vmatprep.subr.mxu0 0.0
    %349 = vmatpush2.msra.mxu0 0.0
    %350 = vmatprep.subr.mxu0 0.0
    %351 = vmatpush2.msra.mxu0 0.0
    %352 = vmatprep.subr.mxu0 0.0
    %353 = vmatpush2.msra.mxu0 0.0
    %354 = vmatprep.subr.mxu0 0.0
    %355 = vmatpush2.msra.mxu0 0.0
    %356 = vmatprep.subr.mxu0 0.0
    %357 = vmatpush2.msra.mxu0 0.0
    %358 = vmatprep.subr.mxu0 0.0
    %359 = vmatpush2.msra.mxu0 0.0
    %360 = vmatprep.subr.mxu0 0.0
    %361 = vmatpush2.msra.mxu0 0.0
    %362 = vmatprep.mubr.f32.mxu0 0.0
    %363 = vmatmul.mubr.f32.gmra.mxu0 %v162
    %v364 = vpop.f32.mrf.mxu0
    %v365 = vadd.f32 %v111, %v364
    %v366 = vpop.f32.mrf.mxu0
    %v367 = vadd.f32 %v115, %v366
    %368 = vmatprep.mubr.f32.mxu0 0.0
    %369 = vmatmul.mubr.f32.gmra.mxu0 %v165
    %v370 = vpop.f32.mrf.mxu0
    %v371 = vadd.f32 %v111, %v370
    %v372 = vpop.f32.mrf.mxu0
    %v373 = vadd.f32 %v115, %v372
    %374 = vmatprep.mubr.f32.mxu0 0.0
    %375 = vmatmul.mubr.f32.gmra.mxu0 %v168
    %v376 = vpop.f32.mrf.mxu0
    %v377 = vadd.f32 %v111, %v376
    %v378 = vpop.f32.mrf.mxu0
    %v379 = vadd.f32 %v115, %v378
    %380 = vmatprep.mubr.f32.mxu0 0.0
    %381 = vmatmul.mubr.f32.gmra.mxu0 %v171
    %v382 = vpop.f32.mrf.mxu0
    %v383 = vadd.f32 %v111, %v382
    %v384 = vpop.f32.mrf.mxu0
    %v385 = vadd.f32 %v115, %v384
    %386 = vmatprep.mubr.f32.mxu0 0.0
    %387 = vmatmul.mubr.f32.gmra.mxu0 %v174
    %v388 = vpop.f32.mrf.mxu0
    %v389 = vadd.f32 %v111, %v388
    %v390 = vpop.f32.mrf.mxu0
    %v391 = vadd.f32 %v115, %v390
    %392 = vmatprep.mubr.f32.mxu0 0.0
    %393 = vmatmul.mubr.f32.gmra.mxu0 %v177
    %v394 = vpop.f32.mrf.mxu0
    %v395 = vadd.f32 %v111, %v394
    %v396 = vpop.f32.mrf.mxu0
    %v397 = vadd.f32 %v115, %v396
    %398 = vmatprep.mubr.f32.mxu0 0.0
    %399 = vmatmul.mubr.f32.gmra.mxu0 %v180
    %v400 = vpop.f32.mrf.mxu0
    %v401 = vadd.f32 %v111, %v400
    %v402 = vpop.f32.mrf.mxu0
    %v403 = vadd.f32 %v115, %v402
    %404 = vmatprep.mubr.f32.mxu0 0.0
    %405 = vmatmul.mubr.f32.gmra.mxu0 %v183
    %v406 = vpop.f32.mrf.mxu0
    %v407 = vadd.f32 %v111, %v406
    %v408 = vpop.f32.mrf.mxu0
    %v409 = vadd.f32 %v115, %v408
    %410 = vdwg.mxu0
    %411 = vmatprep.subr.mxu0 0.0
    %412 = vmatpush1.msra.mxu0 0.0
    %413 = vmatprep.subr.mxu0 0.0
    %414 = vmatpush1.msra.mxu0 0.0
    %415 = vmatprep.subr.mxu0 0.0
    %416 = vmatpush1.msra.mxu0 0.0
    %417 = vmatprep.subr.mxu0 0.0
    %418 = vmatpush1.msra.mxu0 0.0
    %419 = vmatprep.subr.mxu0 0.0
    %420 = vmatpush1.msra.mxu0 0.0
    %421 = vmatprep.subr.mxu0 0.0
    %422 = vmatpush1.msra.mxu0 0.0
    %423 = vmatprep.subr.mxu0 0.0
    %424 = vmatpush1.msra.mxu0 0.0
    %425 = vmatprep.subr.mxu0 0.0
    %426 = vmatpush1.msra.mxu0 0.0
    %427 = vmatprep.subr.mxu0 0.0
    %428 = vmatpush1.msra.mxu0 0.0
    %429 = vmatprep.subr.mxu0 0.0
    %430 = vmatpush1.msra.mxu0 0.0
    %431 = vmatprep.subr.mxu0 0.0
    %432 = vmatpush1.msra.mxu0 0.0
    %433 = vmatprep.subr.mxu0 0.0
    %434 = vmatpush1.msra.mxu0 0.0
    %435 = vmatprep.subr.mxu0 0.0
    %436 = vmatpush1.msra.mxu0 0.0
    %437 = vmatprep.subr.mxu0 0.0
    %438 = vmatpush1.msra.mxu0 0.0
    %439 = vmatprep.subr.mxu0 %v89
    %440 = vmatpush1.msra.mxu0 %v88
    %441 = vmatprep.subr.mxu0 %v77
    %442 = vmatpush1.msra.mxu0 %v76
    %443 = vmatprep.subr.mxu0 0.0
    %444 = vmatpush2.msra.mxu0 0.0
    %445 = vmatprep.subr.mxu0 0.0
    %446 = vmatpush2.msra.mxu0 0.0
    %447 = vmatprep.subr.mxu0 0.0
    %448 = vmatpush2.msra.mxu0 0.0
    %449 = vmatprep.subr.mxu0 0.0
    %450 = vmatpush2.msra.mxu0 0.0
    %451 = vmatprep.subr.mxu0 0.0
    %452 = vmatpush2.msra.mxu0 0.0
    %453 = vmatprep.subr.mxu0 0.0
    %454 = vmatpush2.msra.mxu0 0.0
    %455 = vmatprep.subr.mxu0 0.0
    %456 = vmatpush2.msra.mxu0 0.0
    %457 = vmatprep.subr.mxu0 0.0
    %458 = vmatpush2.msra.mxu0 0.0
    %459 = vmatprep.subr.mxu0 0.0
    %460 = vmatpush2.msra.mxu0 0.0
    %461 = vmatprep.subr.mxu0 0.0
    %462 = vmatpush2.msra.mxu0 0.0
    %463 = vmatprep.subr.mxu0 0.0
    %464 = vmatpush2.msra.mxu0 0.0
    %465 = vmatprep.subr.mxu0 0.0
    %466 = vmatpush2.msra.mxu0 0.0
    %467 = vmatprep.subr.mxu0 0.0
    %468 = vmatpush2.msra.mxu0 0.0
    %469 = vmatprep.subr.mxu0 0.0
    %470 = vmatpush2.msra.mxu0 0.0
    %471 = vmatprep.subr.mxu0 0.0
    %472 = vmatpush2.msra.mxu0 0.0
    %473 = vmatprep.subr.mxu0 0.0
    %474 = vmatpush2.msra.mxu0 0.0
    %475 = vmatprep.mubr.f32.mxu0 0.0
    %476 = vmatmul.mubr.f32.gmra.mxu0 %v162
    %v477 = vpop.f32.mrf.mxu0
    %v478 = vadd.f32 %v119, %v477
    %v479 = vpop.f32.mrf.mxu0
    %v480 = vadd.f32 %v123, %v479
    %481 = vmatprep.mubr.f32.mxu0 0.0
    %482 = vmatmul.mubr.f32.gmra.mxu0 %v165
    %v483 = vpop.f32.mrf.mxu0
    %v484 = vadd.f32 %v119, %v483
    %v485 = vpop.f32.mrf.mxu0
    %v486 = vadd.f32 %v123, %v485
    %487 = vmatprep.mubr.f32.mxu0 0.0
    %488 = vmatmul.mubr.f32.gmra.mxu0 %v168
    %v489 = vpop.f32.mrf.mxu0
    %v490 = vadd.f32 %v119, %v489
    %v491 = vpop.f32.mrf.mxu0
    %v492 = vadd.f32 %v123, %v491
    %493 = vmatprep.mubr.f32.mxu0 0.0
    %494 = vmatmul.mubr.f32.gmra.mxu0 %v171
    %v495 = vpop.f32.mrf.mxu0
    %v496 = vadd.f32 %v119, %v495
    %v497 = vpop.f32.mrf.mxu0
    %v498 = vadd.f32 %v123, %v497
    %499 = vmatprep.mubr.f32.mxu0 0.0
    %500 = vmatmul.mubr.f32.gmra.mxu0 %v174
    %v501 = vpop.f32.mrf.mxu0
    %v502 = vadd.f32 %v119, %v501
    %v503 = vpop.f32.mrf.mxu0
    %v504 = vadd.f32 %v123, %v503
    %505 = vmatprep.mubr.f32.mxu0 0.0
    %506 = vmatmul.mubr.f32.gmra.mxu0 %v177
    %v507 = vpop.f32.mrf.mxu0
    %v508 = vadd.f32 %v119, %v507
    %v509 = vpop.f32.mrf.mxu0
    %v510 = vadd.f32 %v123, %v509
    %511 = vmatprep.mubr.f32.mxu0 0.0
    %512 = vmatmul.mubr.f32.gmra.mxu0 %v180
    %v513 = vpop.f32.mrf.mxu0
    %v514 = vadd.f32 %v119, %v513
    %v515 = vpop.f32.mrf.mxu0
    %v516 = vadd.f32 %v123, %v515
    %517 = vmatprep.mubr.f32.mxu0 0.0
    %518 = vmatmul.mubr.f32.gmra.mxu0 %v183
    %v519 = vpop.f32.mrf.mxu0
    %v520 = vadd.f32 %v119, %v519
    %v521 = vpop.f32.mrf.mxu0
    %v522 = vadd.f32 %v123, %v521
    %523 = vdwg.mxu0
    %524 = vmatprep.subr.mxu0 0.0
    %525 = vmatpush1.msra.mxu0 0.0
    %526 = vmatprep.subr.mxu0 0.0
    %527 = vmatpush1.msra.mxu0 0.0
    %528 = vmatprep.subr.mxu0 0.0
    %529 = vmatpush1.msra.mxu0 0.0
    %530 = vmatprep.subr.mxu0 0.0
    %531 = vmatpush1.msra.mxu0 0.0
    %532 = vmatprep.subr.mxu0 0.0
    %533 = vmatpush1.msra.mxu0 0.0
    %534 = vmatprep.subr.mxu0 0.0
    %535 = vmatpush1.msra.mxu0 0.0
    %536 = vmatprep.subr.mxu0 0.0
    %537 = vmatpush1.msra.mxu0 0.0
    %538 = vmatprep.subr.mxu0 0.0
    %539 = vmatpush1.msra.mxu0 0.0
    %540 = vmatprep.subr.mxu0 0.0
    %541 = vmatpush1.msra.mxu0 0.0
    %542 = vmatprep.subr.mxu0 0.0
    %543 = vmatpush1.msra.mxu0 0.0
    %544 = vmatprep.subr.mxu0 0.0
    %545 = vmatpush1.msra.mxu0 0.0
    %546 = vmatprep.subr.mxu0 0.0
    %547 = vmatpush1.msra.mxu0 0.0
    %548 = vmatprep.subr.mxu0 0.0
    %549 = vmatpush1.msra.mxu0 0.0
    %550 = vmatprep.subr.mxu0 0.0
    %551 = vmatpush1.msra.mxu0 0.0
    %552 = vmatprep.subr.mxu0 %v91
    %553 = vmatpush1.msra.mxu0 %v90
    %554 = vmatprep.subr.mxu0 %v79
    %555 = vmatpush1.msra.mxu0 %v78
    %556 = vmatprep.subr.mxu0 0.0
    %557 = vmatpush2.msra.mxu0 0.0
    %558 = vmatprep.subr.mxu0 0.0
    %559 = vmatpush2.msra.mxu0 0.0
    %560 = vmatprep.subr.mxu0 0.0
    %561 = vmatpush2.msra.mxu0 0.0
    %562 = vmatprep.subr.mxu0 0.0
    %563 = vmatpush2.msra.mxu0 0.0
    %564 = vmatprep.subr.mxu0 0.0
    %565 = vmatpush2.msra.mxu0 0.0
    %566 = vmatprep.subr.mxu0 0.0
    %567 = vmatpush2.msra.mxu0 0.0
    %568 = vmatprep.subr.mxu0 0.0
    %569 = vmatpush2.msra.mxu0 0.0
    %570 = vmatprep.subr.mxu0 0.0
    %571 = vmatpush2.msra.mxu0 0.0
    %572 = vmatprep.subr.mxu0 0.0
    %573 = vmatpush2.msra.mxu0 0.0
    %574 = vmatprep.subr.mxu0 0.0
    %575 = vmatpush2.msra.mxu0 0.0
    %576 = vmatprep.subr.mxu0 0.0
    %577 = vmatpush2.msra.mxu0 0.0
    %578 = vmatprep.subr.mxu0 0.0
    %579 = vmatpush2.msra.mxu0 0.0
    %580 = vmatprep.subr.mxu0 0.0
    %581 = vmatpush2.msra.mxu0 0.0
    %582 = vmatprep.subr.mxu0 0.0
    %583 = vmatpush2.msra.mxu0 0.0
    %584 = vmatprep.subr.mxu0 0.0
    %585 = vmatpush2.msra.mxu0 0.0
    %586 = vmatprep.subr.mxu0 0.0
    %587 = vmatpush2.msra.mxu0 0.0
    %588 = vmatprep.mubr.f32.mxu0 0.0
    %589 = vmatmul.mubr.f32.gmra.mxu0 %v162
    %v590 = vpop.f32.mrf.mxu0
    %v591 = vadd.f32 %v127, %v590
    %v592 = vpop.f32.mrf.mxu0
    %v593 = vadd.f32 %v131, %v592
    %594 = vmatprep.mubr.f32.mxu0 0.0
    %595 = vmatmul.mubr.f32.gmra.mxu0 %v165
    %v596 = vpop.f32.mrf.mxu0
    %v597 = vadd.f32 %v127, %v596
    %v598 = vpop.f32.mrf.mxu0
    %v599 = vadd.f32 %v131, %v598
    %600 = vmatprep.mubr.f32.mxu0 0.0
    %601 = vmatmul.mubr.f32.gmra.mxu0 %v168
    %v602 = vpop.f32.mrf.mxu0
    %v603 = vadd.f32 %v127, %v602
    %v604 = vpop.f32.mrf.mxu0
    %v605 = vadd.f32 %v131, %v604
    %606 = vmatprep.mubr.f32.mxu0 0.0
    %607 = vmatmul.mubr.f32.gmra.mxu0 %v171
    %v608 = vpop.f32.mrf.mxu0
    %v609 = vadd.f32 %v127, %v608
    %v610 = vpop.f32.mrf.mxu0
    %v611 = vadd.f32 %v131, %v610
    %612 = vmatprep.mubr.f32.mxu0 0.0
    %613 = vmatmul.mubr.f32.gmra.mxu0 %v174
    %v614 = vpop.f32.mrf.mxu0
    %v615 = vadd.f32 %v127, %v614
    %v616 = vpop.f32.mrf.mxu0
    %v617 = vadd.f32 %v131, %v616
    %618 = vmatprep.mubr.f32.mxu0 0.0
    %619 = vmatmul.mubr.f32.gmra.mxu0 %v177
    %v620 = vpop.f32.mrf.mxu0
    %v621 = vadd.f32 %v127, %v620
    %v622 = vpop.f32.mrf.mxu0
    %v623 = vadd.f32 %v131, %v622
    %624 = vmatprep.mubr.f32.mxu0 0.0
    %625 = vmatmul.mubr.f32.gmra.mxu0 %v180
    %v626 = vpop.f32.mrf.mxu0
    %v627 = vadd.f32 %v127, %v626
    %v628 = vpop.f32.mrf.mxu0
    %v629 = vadd.f32 %v131, %v628
    %630 = vmatprep.mubr.f32.mxu0 0.0
    %631 = vmatmul.mubr.f32.gmra.mxu0 %v183
    %v632 = vpop.f32.mrf.mxu0
    %v633 = vadd.f32 %v127, %v632
    %v634 = vpop.f32.mrf.mxu0
    %v635 = vadd.f32 %v131, %v634
    %636 = vdwg.mxu0
    %637 = vmatprep.subr.mxu0 0.0
    %638 = vmatpush1.msra.mxu0 0.0
    %639 = vmatprep.subr.mxu0 0.0
    %640 = vmatpush1.msra.mxu0 0.0
    %641 = vmatprep.subr.mxu0 0.0
    %642 = vmatpush1.msra.mxu0 0.0
    %643 = vmatprep.subr.mxu0 0.0
    %644 = vmatpush1.msra.mxu0 0.0
    %645 = vmatprep.subr.mxu0 0.0
    %646 = vmatpush1.msra.mxu0 0.0
    %647 = vmatprep.subr.mxu0 0.0
    %648 = vmatpush1.msra.mxu0 0.0
    %649 = vmatprep.subr.mxu0 0.0
    %650 = vmatpush1.msra.mxu0 0.0
    %651 = vmatprep.subr.mxu0 0.0
    %652 = vmatpush1.msra.mxu0 0.0
    %653 = vmatprep.subr.mxu0 0.0
    %654 = vmatpush1.msra.mxu0 0.0
    %655 = vmatprep.subr.mxu0 0.0
    %656 = vmatpush1.msra.mxu0 0.0
    %657 = vmatprep.subr.mxu0 0.0
    %658 = vmatpush1.msra.mxu0 0.0
    %659 = vmatprep.subr.mxu0 0.0
    %660 = vmatpush1.msra.mxu0 0.0
    %661 = vmatprep.subr.mxu0 0.0
    %662 = vmatpush1.msra.mxu0 0.0
    %663 = vmatprep.subr.mxu0 0.0
    %664 = vmatpush1.msra.mxu0 0.0
    %665 = vmatprep.subr.mxu0 %v93
    %666 = vmatpush1.msra.mxu0 %v92
    %667 = vmatprep.subr.mxu0 %v81
    %668 = vmatpush1.msra.mxu0 %v80
    %669 = vmatprep.subr.mxu0 0.0
    %670 = vmatpush2.msra.mxu0 0.0
    %671 = vmatprep.subr.mxu0 0.0
    %672 = vmatpush2.msra.mxu0 0.0
    %673 = vmatprep.subr.mxu0 0.0
    %674 = vmatpush2.msra.mxu0 0.0
    %675 = vmatprep.subr.mxu0 0.0
    %676 = vmatpush2.msra.mxu0 0.0
    %677 = vmatprep.subr.mxu0 0.0
    %678 = vmatpush2.msra.mxu0 0.0
    %679 = vmatprep.subr.mxu0 0.0
    %680 = vmatpush2.msra.mxu0 0.0
    %681 = vmatprep.subr.mxu0 0.0
    %682 = vmatpush2.msra.mxu0 0.0
    %683 = vmatprep.subr.mxu0 0.0
    %684 = vmatpush2.msra.mxu0 0.0
    %685 = vmatprep.subr.mxu0 0.0
    %686 = vmatpush2.msra.mxu0 0.0
    %687 = vmatprep.subr.mxu0 0.0
    %688 = vmatpush2.msra.mxu0 0.0
    %689 = vmatprep.subr.mxu0 0.0
    %690 = vmatpush2.msra.mxu0 0.0
    %691 = vmatprep.subr.mxu0 0.0
    %692 = vmatpush2.msra.mxu0 0.0
    %693 = vmatprep.subr.mxu0 0.0
    %694 = vmatpush2.msra.mxu0 0.0
    %695 = vmatprep.subr.mxu0 0.0
    %696 = vmatpush2.msra.mxu0 0.0
    %697 = vmatprep.subr.mxu0 0.0
    %698 = vmatpush2.msra.mxu0 0.0
    %699 = vmatprep.subr.mxu0 0.0
    %700 = vmatpush2.msra.mxu0 0.0
    %701 = vmatprep.mubr.f32.mxu0 0.0
    %702 = vmatmul.mubr.f32.gmra.mxu0 %v162
    %v703 = vpop.f32.mrf.mxu0
    %v704 = vadd.f32 %v135, %v703
    %v705 = vpop.f32.mrf.mxu0
    %v706 = vadd.f32 %v139, %v705
    %707 = vmatprep.mubr.f32.mxu0 0.0
    %708 = vmatmul.mubr.f32.gmra.mxu0 %v165
    %v709 = vpop.f32.mrf.mxu0
    %v710 = vadd.f32 %v135, %v709
    %v711 = vpop.f32.mrf.mxu0
    %v712 = vadd.f32 %v139, %v711
    %713 = vmatprep.mubr.f32.mxu0 0.0
    %714 = vmatmul.mubr.f32.gmra.mxu0 %v168
    %v715 = vpop.f32.mrf.mxu0
    %v716 = vadd.f32 %v135, %v715
    %v717 = vpop.f32.mrf.mxu0
    %v718 = vadd.f32 %v139, %v717
    %719 = vmatprep.mubr.f32.mxu0 0.0
    %720 = vmatmul.mubr.f32.gmra.mxu0 %v171
    %v721 = vpop.f32.mrf.mxu0
    %v722 = vadd.f32 %v135, %v721
    %v723 = vpop.f32.mrf.mxu0
    %v724 = vadd.f32 %v139, %v723
    %725 = vmatprep.mubr.f32.mxu0 0.0
    %726 = vmatmul.mubr.f32.gmra.mxu0 %v174
    %v727 = vpop.f32.mrf.mxu0
    %v728 = vadd.f32 %v135, %v727
    %v729 = vpop.f32.mrf.mxu0
    %v730 = vadd.f32 %v139, %v729
    %731 = vmatprep.mubr.f32.mxu0 0.0
    %732 = vmatmul.mubr.f32.gmra.mxu0 %v177
    %v733 = vpop.f32.mrf.mxu0
    %v734 = vadd.f32 %v135, %v733
    %v735 = vpop.f32.mrf.mxu0
    %v736 = vadd.f32 %v139, %v735
    %737 = vmatprep.mubr.f32.mxu0 0.0
    %738 = vmatmul.mubr.f32.gmra.mxu0 %v180
    %v739 = vpop.f32.mrf.mxu0
    %v740 = vadd.f32 %v135, %v739
    %v741 = vpop.f32.mrf.mxu0
    %v742 = vadd.f32 %v139, %v741
    %743 = vmatprep.mubr.f32.mxu0 0.0
    %744 = vmatmul.mubr.f32.gmra.mxu0 %v183
    %v745 = vpop.f32.mrf.mxu0
    %v746 = vadd.f32 %v135, %v745
    %v747 = vpop.f32.mrf.mxu0
    %v748 = vadd.f32 %v139, %v747
    %749 = vdwg.mxu0
    %750 = vmatprep.subr.mxu0 0.0
    %751 = vmatpush1.msra.mxu0 0.0
    %752 = vmatprep.subr.mxu0 0.0
    %753 = vmatpush1.msra.mxu0 0.0
    %754 = vmatprep.subr.mxu0 0.0
    %755 = vmatpush1.msra.mxu0 0.0
    %756 = vmatprep.subr.mxu0 0.0
    %757 = vmatpush1.msra.mxu0 0.0
    %758 = vmatprep.subr.mxu0 0.0
    %759 = vmatpush1.msra.mxu0 0.0
    %760 = vmatprep.subr.mxu0 0.0
    %761 = vmatpush1.msra.mxu0 0.0
    %762 = vmatprep.subr.mxu0 0.0
    %763 = vmatpush1.msra.mxu0 0.0
    %764 = vmatprep.subr.mxu0 0.0
    %765 = vmatpush1.msra.mxu0 0.0
    %766 = vmatprep.subr.mxu0 0.0
    %767 = vmatpush1.msra.mxu0 0.0
    %768 = vmatprep.subr.mxu0 0.0
    %769 = vmatpush1.msra.mxu0 0.0
    %770 = vmatprep.subr.mxu0 0.0
    %771 = vmatpush1.msra.mxu0 0.0
    %772 = vmatprep.subr.mxu0 0.0
    %773 = vmatpush1.msra.mxu0 0.0
    %774 = vmatprep.subr.mxu0 0.0
    %775 = vmatpush1.msra.mxu0 0.0
    %776 = vmatprep.subr.mxu0 0.0
    %777 = vmatpush1.msra.mxu0 0.0
    %778 = vmatprep.subr.mxu0 %v95
    %779 = vmatpush1.msra.mxu0 %v94
    %780 = vmatprep.subr.mxu0 %v83
    %781 = vmatpush1.msra.mxu0 %v82
    %782 = vmatprep.subr.mxu0 0.0
    %783 = vmatpush2.msra.mxu0 0.0
    %784 = vmatprep.subr.mxu0 0.0
    %785 = vmatpush2.msra.mxu0 0.0
    %786 = vmatprep.subr.mxu0 0.0
    %787 = vmatpush2.msra.mxu0 0.0
    %788 = vmatprep.subr.mxu0 0.0
    %789 = vmatpush2.msra.mxu0 0.0
    %790 = vmatprep.subr.mxu0 0.0
    %791 = vmatpush2.msra.mxu0 0.0
    %792 = vmatprep.subr.mxu0 0.0
    %793 = vmatpush2.msra.mxu0 0.0
    %794 = vmatprep.subr.mxu0 0.0
    %795 = vmatpush2.msra.mxu0 0.0
    %796 = vmatprep.subr.mxu0 0.0
    %797 = vmatpush2.msra.mxu0 0.0
    %798 = vmatprep.subr.mxu0 0.0
    %799 = vmatpush2.msra.mxu0 0.0
    %800 = vmatprep.subr.mxu0 0.0
    %801 = vmatpush2.msra.mxu0 0.0
    %802 = vmatprep.subr.mxu0 0.0
    %803 = vmatpush2.msra.mxu0 0.0
    %804 = vmatprep.subr.mxu0 0.0
    %805 = vmatpush2.msra.mxu0 0.0
    %806 = vmatprep.subr.mxu0 0.0
    %807 = vmatpush2.msra.mxu0 0.0
    %808 = vmatprep.subr.mxu0 0.0
    %809 = vmatpush2.msra.mxu0 0.0
    %810 = vmatprep.subr.mxu0 0.0
    %811 = vmatpush2.msra.mxu0 0.0
    %812 = vmatprep.subr.mxu0 0.0
    %813 = vmatpush2.msra.mxu0 0.0
    %814 = vmatprep.mubr.f32.mxu0 0.0
    %815 = vmatmul.mubr.f32.gmra.mxu0 %v162
    %v816 = vpop.f32.mrf.mxu0
    %v817 = vadd.f32 %v143, %v816
    %v818 = vpop.f32.mrf.mxu0
    %v819 = vadd.f32 %v147, %v818
    %820 = vmatprep.mubr.f32.mxu0 0.0
    %821 = vmatmul.mubr.f32.gmra.mxu0 %v165
    %v822 = vpop.f32.mrf.mxu0
    %v823 = vadd.f32 %v143, %v822
    %v824 = vpop.f32.mrf.mxu0
    %v825 = vadd.f32 %v147, %v824
    %826 = vmatprep.mubr.f32.mxu0 0.0
    %827 = vmatmul.mubr.f32.gmra.mxu0 %v168
    %v828 = vpop.f32.mrf.mxu0
    %v829 = vadd.f32 %v143, %v828
    %v830 = vpop.f32.mrf.mxu0
    %v831 = vadd.f32 %v147, %v830
    %832 = vmatprep.mubr.f32.mxu0 0.0
    %833 = vmatmul.mubr.f32.gmra.mxu0 %v171
    %v834 = vpop.f32.mrf.mxu0
    %v835 = vadd.f32 %v143, %v834
    %v836 = vpop.f32.mrf.mxu0
    %v837 = vadd.f32 %v147, %v836
    %838 = vmatprep.mubr.f32.mxu0 0.0
    %839 = vmatmul.mubr.f32.gmra.mxu0 %v174
    %v840 = vpop.f32.mrf.mxu0
    %v841 = vadd.f32 %v143, %v840
    %v842 = vpop.f32.mrf.mxu0
    %v843 = vadd.f32 %v147, %v842
    %844 = vmatprep.mubr.f32.mxu0 0.0
    %845 = vmatmul.mubr.f32.gmra.mxu0 %v177
    %v846 = vpop.f32.mrf.mxu0
    %v847 = vadd.f32 %v143, %v846
    %v848 = vpop.f32.mrf.mxu0
    %v849 = vadd.f32 %v147, %v848
    %850 = vmatprep.mubr.f32.mxu0 0.0
    %851 = vmatmul.mubr.f32.gmra.mxu0 %v180
    %v852 = vpop.f32.mrf.mxu0
    %v853 = vadd.f32 %v143, %v852
    %v854 = vpop.f32.mrf.mxu0
    %v855 = vadd.f32 %v147, %v854
    %856 = vmatprep.mubr.f32.mxu0 0.0
    %857 = vmatmul.mubr.f32.gmra.mxu0 %v183
    %v858 = vpop.f32.mrf.mxu0
    %v859 = vadd.f32 %v143, %v858
    %v860 = vpop.f32.mrf.mxu0
    %v861 = vadd.f32 %v147, %v860
    %862 = vdwg.mxu0
    %v863 = vld [vmem:[#allocation4] sm:$0xff]
    %v864 = vld [vmem:[#allocation4 + $0x8] sm:$0xff]
    %v865 = vld [vmem:[#allocation4 + $0x10] sm:$0xff]
    %v866 = vld [vmem:[#allocation4 + $0x18] sm:$0xff]
    %v867 = vld [vmem:[#allocation4 + $0x20] sm:$0xff]
    %v868 = vld [vmem:[#allocation4 + $0x28] sm:$0xff]
    %v869 = vld [vmem:[#allocation4 + $0x30] sm:$0xff]
    %v870 = vld [vmem:[#allocation4 + $0x38] sm:$0xff]
    %v871 = vld [vmem:[#allocation4 + $0x40] sm:$0xff]
    %v872 = vld [vmem:[#allocation4 + $0x48] sm:$0xff]
    %v873 = vld [vmem:[#allocation4 + $0x50] sm:$0xff]
    %v874 = vld [vmem:[#allocation4 + $0x58] sm:$0xff]
    %v875 = vld [vmem:[#allocation4 + $0x60] sm:$0xff]
    %v876 = vld [vmem:[#allocation4 + $0x68] sm:$0xff]
    %v877 = vld [vmem:[#allocation4 + $0x70] sm:$0xff]
    %v878 = vld [vmem:[#allocation4 + $0x78] sm:$0xff]
    %v879 = vld [vmem:[#allocation4 + $0x80] sm:$0xff]
    %v880 = vld [vmem:[#allocation4 + $0x88] sm:$0xff]
    %v881 = vld [vmem:[#allocation4 + $0x90] sm:$0xff]
    %v882 = vld [vmem:[#allocation4 + $0x98] sm:$0xff]
    %v883 = vld [vmem:[#allocation4 + $0xa0] sm:$0xff]
    %v884 = vld [vmem:[#allocation4 + $0xa8] sm:$0xff]
    %v885 = vld [vmem:[#allocation4 + $0xb0] sm:$0xff]
    %v886 = vld [vmem:[#allocation4 + $0xb8] sm:$0xff]
    %v887 = vld [vmem:[#allocation4 + $0xc0] sm:$0xff]
    %v888 = vld [vmem:[#allocation4 + $0xc8] sm:$0xff]
    %v889 = vld [vmem:[#allocation4 + $0xd0] sm:$0xff]
    %v890 = vld [vmem:[#allocation4 + $0xd8] sm:$0xff]
    %v891 = vld [vmem:[#allocation4 + $0xe0] sm:$0xff]
    %v892 = vld [vmem:[#allocation4 + $0xe8] sm:$0xff]
    %v893 = vld [vmem:[#allocation4 + $0xf0] sm:$0xff]
    %v894 = vld [vmem:[#allocation4 + $0xf8] sm:$0xff]
    %v895 = vld [vmem:[#allocation4 + $0x100] sm:$0xff]
    %v896 = vld [vmem:[#allocation4 + $0x108] sm:$0xff]
    %v897 = vld [vmem:[#allocation4 + $0x110] sm:$0xff]
    %v898 = vld [vmem:[#allocation4 + $0x118] sm:$0xff]
    %v899 = vld [vmem:[#allocation4 + $0x120] sm:$0xff]
    %v900 = vld [vmem:[#allocation4 + $0x128] sm:$0xff]
    %v901 = vld [vmem:[#allocation4 + $0x130] sm:$0xff]
    %v902 = vld [vmem:[#allocation4 + $0x138] sm:$0xff]
    %v903 = vld [vmem:[#allocation4 + $0x140] sm:$0xff]
    %v904 = vld [vmem:[#allocation4 + $0x148] sm:$0xff]
    %v905 = vld [vmem:[#allocation4 + $0x150] sm:$0xff]
    %v906 = vld [vmem:[#allocation4 + $0x158] sm:$0xff]
    %v907 = vld [vmem:[#allocation4 + $0x160] sm:$0xff]
    %v908 = vld [vmem:[#allocation4 + $0x168] sm:$0xff]
    %v909 = vld [vmem:[#allocation4 + $0x170] sm:$0xff]
    %v910 = vld [vmem:[#allocation4 + $0x178] sm:$0xff]
    %v911 = vld [vmem:[#allocation4 + $0x180] sm:$0xff]
    %v912 = vld [vmem:[#allocation4 + $0x188] sm:$0xff]
    %v913 = vld [vmem:[#allocation4 + $0x190] sm:$0xff]
    %v914 = vld [vmem:[#allocation4 + $0x198] sm:$0xff]
    %v915 = vld [vmem:[#allocation4 + $0x1a0] sm:$0xff]
    %v916 = vld [vmem:[#allocation4 + $0x1a8] sm:$0xff]
    %v917 = vld [vmem:[#allocation4 + $0x1b0] sm:$0xff]
    %v918 = vld [vmem:[#allocation4 + $0x1b8] sm:$0xff]
    %v919 = vld [vmem:[#allocation4 + $0x1c0] sm:$0xff]
    %v920 = vld [vmem:[#allocation4 + $0x1c8] sm:$0xff]
    %v921 = vld [vmem:[#allocation4 + $0x1d0] sm:$0xff]
    %v922 = vld [vmem:[#allocation4 + $0x1d8] sm:$0xff]
    %v923 = vld [vmem:[#allocation4 + $0x1e0] sm:$0xff]
    %v924 = vld [vmem:[#allocation4 + $0x1e8] sm:$0xff]
    %v925 = vld [vmem:[#allocation4 + $0x1f0] sm:$0xff]
    %v926 = vld [vmem:[#allocation4 + $0x1f8] sm:$0xff]
    %927 = vmatprep.subr.mxu0 %v924
    %928 = vmatpush1.msra.mxu0 %v923
    %929 = vmatprep.subr.mxu0 %v920
    %930 = vmatpush1.msra.mxu0 %v919
    %931 = vmatprep.subr.mxu0 %v916
    %932 = vmatpush1.msra.mxu0 %v915
    %933 = vmatprep.subr.mxu0 %v912
    %934 = vmatpush1.msra.mxu0 %v911
    %935 = vmatprep.subr.mxu0 %v908
    %936 = vmatpush1.msra.mxu0 %v907
    %937 = vmatprep.subr.mxu0 %v904
    %938 = vmatpush1.msra.mxu0 %v903
    %939 = vmatprep.subr.mxu0 %v900
    %940 = vmatpush1.msra.mxu0 %v899
    %941 = vmatprep.subr.mxu0 %v896
    %942 = vmatpush1.msra.mxu0 %v895
    %943 = vmatprep.subr.mxu0 %v892
    %944 = vmatpush1.msra.mxu0 %v891
    %945 = vmatprep.subr.mxu0 %v888
    %946 = vmatpush1.msra.mxu0 %v887
    %947 = vmatprep.subr.mxu0 %v884
    %948 = vmatpush1.msra.mxu0 %v883
    %949 = vmatprep.subr.mxu0 %v880
    %950 = vmatpush1.msra.mxu0 %v879
    %951 = vmatprep.subr.mxu0 %v876
    %952 = vmatpush1.msra.mxu0 %v875
    %953 = vmatprep.subr.mxu0 %v872
    %954 = vmatpush1.msra.mxu0 %v871
    %955 = vmatprep.subr.mxu0 %v868
    %956 = vmatpush1.msra.mxu0 %v867
    %957 = vmatprep.subr.mxu0 %v864
    %958 = vmatpush1.msra.mxu0 %v863
    %959 = vmatprep.subr.mxu0 0.0
    %960 = vmatpush2.msra.mxu0 0.0
    %961 = vmatprep.subr.mxu0 0.0
    %962 = vmatpush2.msra.mxu0 0.0
    %963 = vmatprep.subr.mxu0 0.0
    %964 = vmatpush2.msra.mxu0 0.0
    %965 = vmatprep.subr.mxu0 0.0
    %966 = vmatpush2.msra.mxu0 0.0
    %967 = vmatprep.subr.mxu0 0.0
    %968 = vmatpush2.msra.mxu0 0.0
    %969 = vmatprep.subr.mxu0 0.0
    %970 = vmatpush2.msra.mxu0 0.0
    %971 = vmatprep.subr.mxu0 0.0
    %972 = vmatpush2.msra.mxu0 0.0
    %973 = vmatprep.subr.mxu0 0.0
    %974 = vmatpush2.msra.mxu0 0.0
    %975 = vmatprep.subr.mxu0 0.0
    %976 = vmatpush2.msra.mxu0 0.0
    %977 = vmatprep.subr.mxu0 0.0
    %978 = vmatpush2.msra.mxu0 0.0
    %979 = vmatprep.subr.mxu0 0.0
    %980 = vmatpush2.msra.mxu0 0.0
    %981 = vmatprep.subr.mxu0 0.0
    %982 = vmatpush2.msra.mxu0 0.0
    %983 = vmatprep.subr.mxu0 0.0
    %984 = vmatpush2.msra.mxu0 0.0
    %985 = vmatprep.subr.mxu0 0.0
    %986 = vmatpush2.msra.mxu0 0.0
    %987 = vmatprep.subr.mxu0 0.0
    %988 = vmatpush2.msra.mxu0 0.0
    %989 = vmatprep.subr.mxu0 0.0
    %990 = vmatpush2.msra.mxu0 0.0
    %991 = vmatprep.mubr.f32.mxu0 0.0
    %992 = vmatmul.mubr.f32.gmra.mxu0 0.0
    %v993 = vpop.f32.mrf.mxu0
    %v994 = vadd.f32 0.0, %v993
    %v995 = vpop.f32.mrf.mxu0
    %v996 = vadd.f32 0.0, %v995
    %997 = vdwg.mxu0
    %998 = vmatprep.subr.mxu0 %v926
    %999 = vmatpush1.msra.mxu0 %v925
    %1000 = vmatprep.subr.mxu0 %v922
    %1001 = vmatpush1.msra.mxu0 %v921
    %1002 = vmatprep.subr.mxu0 %v918
    %1003 = vmatpush1.msra.mxu0 %v917
    %1004 = vmatprep.subr.mxu0 %v914
    %1005 = vmatpush1.msra.mxu0 %v913
    %1006 = vmatprep.subr.mxu0 %v910
    %1007 = vmatpush1.msra.mxu0 %v909
    %1008 = vmatprep.subr.mxu0 %v906
    %1009 = vmatpush1.msra.mxu0 %v905
    %1010 = vmatprep.subr.mxu0 %v902
    %1011 = vmatpush1.msra.mxu0 %v901
    %1012 = vmatprep.subr.mxu0 %v898
    %1013 = vmatpush1.msra.mxu0 %v897
    %1014 = vmatprep.subr.mxu0 %v894
    %1015 = vmatpush1.msra.mxu0 %v893
    %1016 = vmatprep.subr.mxu0 %v890
    %1017 = vmatpush1.msra.mxu0 %v889
    %1018 = vmatprep.subr.mxu0 %v886
    %1019 = vmatpush1.msra.mxu0 %v885
    %1020 = vmatprep.subr.mxu0 %v882
    %1021 = vmatpush1.msra.mxu0 %v881
    %1022 = vmatprep.subr.mxu0 %v878
    %1023 = vmatpush1.msra.mxu0 %v877
    %1024 = vmatprep.subr.mxu0 %v874
    %1025 = vmatpush1.msra.mxu0 %v873
    %1026 = vmatprep.subr.mxu0 %v870
    %1027 = vmatpush1.msra.mxu0 %v869
    %1028 = vmatprep.subr.mxu0 %v866
    %1029 = vmatpush1.msra.mxu0 %v865
    %1030 = vmatprep.subr.mxu0 0.0
    %1031 = vmatpush2.msra.mxu0 0.0
    %1032 = vmatprep.subr.mxu0 0.0
    %1033 = vmatpush2.msra.mxu0 0.0
    %1034 = vmatprep.subr.mxu0 0.0
    %1035 = vmatpush2.msra.mxu0 0.0
    %1036 = vmatprep.subr.mxu0 0.0
    %1037 = vmatpush2.msra.mxu0 0.0
    %1038 = vmatprep.subr.mxu0 0.0
    %1039 = vmatpush2.msra.mxu0 0.0
    %1040 = vmatprep.subr.mxu0 0.0
    %1041 = vmatpush2.msra.mxu0 0.0
    %1042 = vmatprep.subr.mxu0 0.0
    %1043 = vmatpush2.msra.mxu0 0.0
    %1044 = vmatprep.subr.mxu0 0.0
    %1045 = vmatpush2.msra.mxu0 0.0
    %1046 = vmatprep.subr.mxu0 0.0
    %1047 = vmatpush2.msra.mxu0 0.0
    %1048 = vmatprep.subr.mxu0 0.0
    %1049 = vmatpush2.msra.mxu0 0.0
    %1050 = vmatprep.subr.mxu0 0.0
    %1051 = vmatpush2.msra.mxu0 0.0
    %1052 = vmatprep.subr.mxu0 0.0
    %1053 = vmatpush2.msra.mxu0 0.0
    %1054 = vmatprep.subr.mxu0 0.0
    %1055 = vmatpush2.msra.mxu0 0.0
    %1056 = vmatprep.subr.mxu0 0.0
    %1057 = vmatpush2.msra.mxu0 0.0
    %1058 = vmatprep.subr.mxu0 0.0
    %1059 = vmatpush2.msra.mxu0 0.0
    %1060 = vmatprep.subr.mxu0 0.0
    %1061 = vmatpush2.msra.mxu0 0.0
    %1062 = vmatprep.mubr.f32.mxu0 0.0
    %1063 = vmatmul.mubr.f32.gmra.mxu0 0.0
    %v1064 = vpop.f32.mrf.mxu0
    %v1065 = vadd.f32 0.0, %v1064
    %v1066 = vpop.f32.mrf.mxu0
    %v1067 = vadd.f32 0.0, %v1066
    %1068 = vdwg.mxu0
    %v1069 = vadd.f32 %v252, %v994
    %v1070 = vadd.f32 %v254, %v996
    %v1071 = vadd.f32 %v365, %v1065
    %v1072 = vadd.f32 %v367, %v1067
    %v1073 = vxor.u32 %v1069, 2147483648
    %v1074 = vmul.f32 %v1073, 1.442695
    %v1075 = vpow.pop %v1074
    %v1076 = vadd.f32 %v1075, 1.0
    %v1077 = vrcp.pop %v1076
    %v1078 = vmul.f32 1.0, %v1077
    %v1079 = vxor.u32 %v1070, 2147483648
    %v1080 = vmul.f32 %v1079, 1.442695
    %v1081 = vpow.pop %v1080
    %v1082 = vadd.f32 %v1081, 1.0
    %v1083 = vrcp.pop %v1082
    %v1084 = vmul.f32 1.0, %v1083
    %v1085 = vtanh.pop %v1071
    %v1086 = vxor.u32 %v1072, 2147483648
    %v1087 = vmul.f32 %v1086, 1.442695
    %v1088 = vpow.pop %v1087
    %v1089 = vadd.f32 %v1088, 1.0
    %v1090 = vrcp.pop %v1089
    %v1091 = vmul.f32 1.0, %v1090
    %v1092 = vmul.f32 %v1084, 0.0
    %v1093 = vmul.f32 %v1078, %v1085
    %v1094 = vadd.f32 %v1092, %v1093
    %v1095 = vtanh.pop %v1094
    %v1096 = vmul.f32 %v1091, %v1095
    %s1097 = scalar_lea.vmem [#allocation4], 512
    %v1098 = vld [vmem:[%s1097] sm:$0xff]
    %v1099 = vld [vmem:[%s1097 + $0x8] sm:$0xff]
    %v1100 = vld [vmem:[%s1097 + $0x10] sm:$0xff]
    %v1101 = vld [vmem:[%s1097 + $0x18] sm:$0xff]
    %v1102 = vld [vmem:[%s1097 + $0x20] sm:$0xff]
    %v1103 = vld [vmem:[%s1097 + $0x28] sm:$0xff]
    %v1104 = vld [vmem:[%s1097 + $0x30] sm:$0xff]
    %v1105 = vld [vmem:[%s1097 + $0x38] sm:$0xff]
    %v1106 = vld [vmem:[%s1097 + $0x40] sm:$0xff]
    %v1107 = vld [vmem:[%s1097 + $0x48] sm:$0xff]
    %v1108 = vld [vmem:[%s1097 + $0x50] sm:$0xff]
    %v1109 = vld [vmem:[%s1097 + $0x58] sm:$0xff]
    %v1110 = vld [vmem:[%s1097 + $0x60] sm:$0xff]
    %v1111 = vld [vmem:[%s1097 + $0x68] sm:$0xff]
    %v1112 = vld [vmem:[%s1097 + $0x70] sm:$0xff]
    %v1113 = vld [vmem:[%s1097 + $0x78] sm:$0xff]
    %v1114 = vld [vmem:[%s1097 + $0x80] sm:$0xff]
    %v1115 = vld [vmem:[%s1097 + $0x88] sm:$0xff]
    %v1116 = vld [vmem:[%s1097 + $0x90] sm:$0xff]
    %v1117 = vld [vmem:[%s1097 + $0x98] sm:$0xff]
    %v1118 = vld [vmem:[%s1097 + $0xa0] sm:$0xff]
    %v1119 = vld [vmem:[%s1097 + $0xa8] sm:$0xff]
    %v1120 = vld [vmem:[%s1097 + $0xb0] sm:$0xff]
    %v1121 = vld [vmem:[%s1097 + $0xb8] sm:$0xff]
    %v1122 = vld [vmem:[%s1097 + $0xc0] sm:$0xff]
    %v1123 = vld [vmem:[%s1097 + $0xc8] sm:$0xff]
    %v1124 = vld [vmem:[%s1097 + $0xd0] sm:$0xff]
    %v1125 = vld [vmem:[%s1097 + $0xd8] sm:$0xff]
    %v1126 = vld [vmem:[%s1097 + $0xe0] sm:$0xff]
    %v1127 = vld [vmem:[%s1097 + $0xe8] sm:$0xff]
    %v1128 = vld [vmem:[%s1097 + $0xf0] sm:$0xff]
    %v1129 = vld [vmem:[%s1097 + $0xf8] sm:$0xff]
    %v1130 = vld [vmem:[%s1097 + $0x100] sm:$0xff]
    %v1131 = vld [vmem:[%s1097 + $0x108] sm:$0xff]
    %v1132 = vld [vmem:[%s1097 + $0x110] sm:$0xff]
    %v1133 = vld [vmem:[%s1097 + $0x118] sm:$0xff]
    %v1134 = vld [vmem:[%s1097 + $0x120] sm:$0xff]
    %v1135 = vld [vmem:[%s1097 + $0x128] sm:$0xff]
    %v1136 = vld [vmem:[%s1097 + $0x130] sm:$0xff]
    %v1137 = vld [vmem:[%s1097 + $0x138] sm:$0xff]
    %v1138 = vld [vmem:[%s1097 + $0x140] sm:$0xff]
    %v1139 = vld [vmem:[%s1097 + $0x148] sm:$0xff]
    %v1140 = vld [vmem:[%s1097 + $0x150] sm:$0xff]
    %v1141 = vld [vmem:[%s1097 + $0x158] sm:$0xff]
    %v1142 = vld [vmem:[%s1097 + $0x160] sm:$0xff]
    %v1143 = vld [vmem:[%s1097 + $0x168] sm:$0xff]
    %v1144 = vld [vmem:[%s1097 + $0x170] sm:$0xff]
    %v1145 = vld [vmem:[%s1097 + $0x178] sm:$0xff]
    %v1146 = vld [vmem:[%s1097 + $0x180] sm:$0xff]
    %v1147 = vld [vmem:[%s1097 + $0x188] sm:$0xff]
    %v1148 = vld [vmem:[%s1097 + $0x190] sm:$0xff]
    %v1149 = vld [vmem:[%s1097 + $0x198] sm:$0xff]
    %v1150 = vld [vmem:[%s1097 + $0x1a0] sm:$0xff]
    %v1151 = vld [vmem:[%s1097 + $0x1a8] sm:$0xff]
    %v1152 = vld [vmem:[%s1097 + $0x1b0] sm:$0xff]
    %v1153 = vld [vmem:[%s1097 + $0x1b8] sm:$0xff]
    %v1154 = vld [vmem:[%s1097 + $0x1c0] sm:$0xff]
    %v1155 = vld [vmem:[%s1097 + $0x1c8] sm:$0xff]
    %v1156 = vld [vmem:[%s1097 + $0x1d0] sm:$0xff]
    %v1157 = vld [vmem:[%s1097 + $0x1d8] sm:$0xff]
    %v1158 = vld [vmem:[%s1097 + $0x1e0] sm:$0xff]
    %v1159 = vld [vmem:[%s1097 + $0x1e8] sm:$0xff]
    %v1160 = vld [vmem:[%s1097 + $0x1f0] sm:$0xff]
    %v1161 = vld [vmem:[%s1097 + $0x1f8] sm:$0xff]
    %1162 = vmatprep.subr.mxu0 %v1159
    %1163 = vmatpush1.msra.mxu0 %v1158
    %1164 = vmatprep.subr.mxu0 %v1155
    %1165 = vmatpush1.msra.mxu0 %v1154
    %1166 = vmatprep.subr.mxu0 %v1151
    %1167 = vmatpush1.msra.mxu0 %v1150
    %1168 = vmatprep.subr.mxu0 %v1147
    %1169 = vmatpush1.msra.mxu0 %v1146
    %1170 = vmatprep.subr.mxu0 %v1143
    %1171 = vmatpush1.msra.mxu0 %v1142
    %1172 = vmatprep.subr.mxu0 %v1139
    %1173 = vmatpush1.msra.mxu0 %v1138
    %1174 = vmatprep.subr.mxu0 %v1135
    %1175 = vmatpush1.msra.mxu0 %v1134
    %1176 = vmatprep.subr.mxu0 %v1131
    %1177 = vmatpush1.msra.mxu0 %v1130
    %1178 = vmatprep.subr.mxu0 %v1127
    %1179 = vmatpush1.msra.mxu0 %v1126
    %1180 = vmatprep.subr.mxu0 %v1123
    %1181 = vmatpush1.msra.mxu0 %v1122
    %1182 = vmatprep.subr.mxu0 %v1119
    %1183 = vmatpush1.msra.mxu0 %v1118
    %1184 = vmatprep.subr.mxu0 %v1115
    %1185 = vmatpush1.msra.mxu0 %v1114
    %1186 = vmatprep.subr.mxu0 %v1111
    %1187 = vmatpush1.msra.mxu0 %v1110
    %1188 = vmatprep.subr.mxu0 %v1107
    %1189 = vmatpush1.msra.mxu0 %v1106
    %1190 = vmatprep.subr.mxu0 %v1103
    %1191 = vmatpush1.msra.mxu0 %v1102
    %1192 = vmatprep.subr.mxu0 %v1099
    %1193 = vmatpush1.msra.mxu0 %v1098
    %1194 = vmatprep.subr.mxu0 0.0
    %1195 = vmatpush2.msra.mxu0 0.0
    %1196 = vmatprep.subr.mxu0 0.0
    %1197 = vmatpush2.msra.mxu0 0.0
    %1198 = vmatprep.subr.mxu0 0.0
    %1199 = vmatpush2.msra.mxu0 0.0
    %1200 = vmatprep.subr.mxu0 0.0
    %1201 = vmatpush2.msra.mxu0 0.0
    %1202 = vmatprep.subr.mxu0 0.0
    %1203 = vmatpush2.msra.mxu0 0.0
    %1204 = vmatprep.subr.mxu0 0.0
    %1205 = vmatpush2.msra.mxu0 0.0
    %1206 = vmatprep.subr.mxu0 0.0
    %1207 = vmatpush2.msra.mxu0 0.0
    %1208 = vmatprep.subr.mxu0 0.0
    %1209 = vmatpush2.msra.mxu0 0.0
    %1210 = vmatprep.subr.mxu0 0.0
    %1211 = vmatpush2.msra.mxu0 0.0
    %1212 = vmatprep.subr.mxu0 0.0
    %1213 = vmatpush2.msra.mxu0 0.0
    %1214 = vmatprep.subr.mxu0 0.0
    %1215 = vmatpush2.msra.mxu0 0.0
    %1216 = vmatprep.subr.mxu0 0.0
    %1217 = vmatpush2.msra.mxu0 0.0
    %1218 = vmatprep.subr.mxu0 0.0
    %1219 = vmatpush2.msra.mxu0 0.0
    %1220 = vmatprep.subr.mxu0 0.0
    %1221 = vmatpush2.msra.mxu0 0.0
    %1222 = vmatprep.subr.mxu0 0.0
    %1223 = vmatpush2.msra.mxu0 0.0
    %1224 = vmatprep.subr.mxu0 0.0
    %1225 = vmatpush2.msra.mxu0 0.0
    %1226 = vmatprep.mubr.f32.mxu0 0.0
    %1227 = vmatmul.mubr.f32.gmra.mxu0 0.0
    %v1228 = vpop.f32.mrf.mxu0
    %v1229 = vadd.f32 0.0, %v1228
    %v1230 = vpop.f32.mrf.mxu0
    %v1231 = vadd.f32 0.0, %v1230
    %1232 = vdwg.mxu0
    %1233 = vmatprep.subr.mxu0 %v1161
    %1234 = vmatpush1.msra.mxu0 %v1160
    %1235 = vmatprep.subr.mxu0 %v1157
    %1236 = vmatpush1.msra.mxu0 %v1156
    %1237 = vmatprep.subr.mxu0 %v1153
    %1238 = vmatpush1.msra.mxu0 %v1152
    %1239 = vmatprep.subr.mxu0 %v1149
    %1240 = vmatpush1.msra.mxu0 %v1148
    %1241 = vmatprep.subr.mxu0 %v1145
    %1242 = vmatpush1.msra.mxu0 %v1144
    %1243 = vmatprep.subr.mxu0 %v1141
    %1244 = vmatpush1.msra.mxu0 %v1140
    %1245 = vmatprep.subr.mxu0 %v1137
    %1246 = vmatpush1.msra.mxu0 %v1136
    %1247 = vmatprep.subr.mxu0 %v1133
    %1248 = vmatpush1.msra.mxu0 %v1132
    %1249 = vmatprep.subr.mxu0 %v1129
    %1250 = vmatpush1.msra.mxu0 %v1128
    %1251 = vmatprep.subr.mxu0 %v1125
    %1252 = vmatpush1.msra.mxu0 %v1124
    %1253 = vmatprep.subr.mxu0 %v1121
    %1254 = vmatpush1.msra.mxu0 %v1120
    %1255 = vmatprep.subr.mxu0 %v1117
    %1256 = vmatpush1.msra.mxu0 %v1116
    %1257 = vmatprep.subr.mxu0 %v1113
    %1258 = vmatpush1.msra.mxu0 %v1112
    %1259 = vmatprep.subr.mxu0 %v1109
    %1260 = vmatpush1.msra.mxu0 %v1108
    %1261 = vmatprep.subr.mxu0 %v1105
    %1262 = vmatpush1.msra.mxu0 %v1104
    %1263 = vmatprep.subr.mxu0 %v1101
    %1264 = vmatpush1.msra.mxu0 %v1100
    %1265 = vmatprep.subr.mxu0 0.0
    %1266 = vmatpush2.msra.mxu0 0.0
    %1267 = vmatprep.subr.mxu0 0.0
    %1268 = vmatpush2.msra.mxu0 0.0
    %1269 = vmatprep.subr.mxu0 0.0
    %1270 = vmatpush2.msra.mxu0 0.0
    %1271 = vmatprep.subr.mxu0 0.0
    %1272 = vmatpush2.msra.mxu0 0.0
    %1273 = vmatprep.subr.mxu0 0.0
    %1274 = vmatpush2.msra.mxu0 0.0
    %1275 = vmatprep.subr.mxu0 0.0
    %1276 = vmatpush2.msra.mxu0 0.0
    %1277 = vmatprep.subr.mxu0 0.0
    %1278 = vmatpush2.msra.mxu0 0.0
    %1279 = vmatprep.subr.mxu0 0.0
    %1280 = vmatpush2.msra.mxu0 0.0
    %1281 = vmatprep.subr.mxu0 0.0
    %1282 = vmatpush2.msra.mxu0 0.0
    %1283 = vmatprep.subr.mxu0 0.0
    %1284 = vmatpush2.msra.mxu0 0.0
    %1285 = vmatprep.subr.mxu0 0.0
    %1286 = vmatpush2.msra.mxu0 0.0
    %1287 = vmatprep.subr.mxu0 0.0
    %1288 = vmatpush2.msra.mxu0 0.0
    %1289 = vmatprep.subr.mxu0 0.0
    %1290 = vmatpush2.msra.mxu0 0.0
    %1291 = vmatprep.subr.mxu0 0.0
    %1292 = vmatpush2.msra.mxu0 0.0
    %1293 = vmatprep.subr.mxu0 0.0
    %1294 = vmatpush2.msra.mxu0 0.0
    %1295 = vmatprep.subr.mxu0 0.0
    %1296 = vmatpush2.msra.mxu0 0.0
    %1297 = vmatprep.mubr.f32.mxu0 0.0
    %1298 = vmatmul.mubr.f32.gmra.mxu0 0.0
    %v1299 = vpop.f32.mrf.mxu0
    %v1300 = vadd.f32 0.0, %v1299
    %v1301 = vpop.f32.mrf.mxu0
    %v1302 = vadd.f32 0.0, %v1301
    %1303 = vdwg.mxu0
    %v1304 = vadd.f32 %v478, %v1229
    %v1305 = vadd.f32 %v480, %v1231
    %v1306 = vadd.f32 %v591, %v1300
    %v1307 = vadd.f32 %v593, %v1302
    %v1308 = vxor.u32 %v1304, 2147483648
    %v1309 = vmul.f32 %v1308, 1.442695
    %v1310 = vpow.pop %v1309
    %v1311 = vadd.f32 %v1310, 1.0
    %v1312 = vrcp.pop %v1311
    %v1313 = vmul.f32 1.0, %v1312
    %v1314 = vxor.u32 %v1305, 2147483648
    %v1315 = vmul.f32 %v1314, 1.442695
    %v1316 = vpow.pop %v1315
    %v1317 = vadd.f32 %v1316, 1.0
    %v1318 = vrcp.pop %v1317
    %v1319 = vmul.f32 1.0, %v1318
    %v1320 = vtanh.pop %v1306
    %v1321 = vxor.u32 %v1307, 2147483648
    %v1322 = vmul.f32 %v1321, 1.442695
    %v1323 = vpow.pop %v1322
    %v1324 = vadd.f32 %v1323, 1.0
    %v1325 = vrcp.pop %v1324
    %v1326 = vmul.f32 1.0, %v1325
    %v1327 = vmul.f32 %v1319, 0.0
    %v1328 = vmul.f32 %v1313, %v1320
    %v1329 = vadd.f32 %v1327, %v1328
    %v1330 = vtanh.pop %v1329
    %v1331 = vmul.f32 %v1326, %v1330
    %s1332 = scalar_lea.vmem [#allocation4], 1024
    %v1333 = vld [vmem:[%s1332] sm:$0xff]
    %v1334 = vld [vmem:[%s1332 + $0x8] sm:$0xff]
    %v1335 = vld [vmem:[%s1332 + $0x10] sm:$0xff]
    %v1336 = vld [vmem:[%s1332 + $0x18] sm:$0xff]
    %v1337 = vld [vmem:[%s1332 + $0x20] sm:$0xff]
    %v1338 = vld [vmem:[%s1332 + $0x28] sm:$0xff]
    %v1339 = vld [vmem:[%s1332 + $0x30] sm:$0xff]
    %v1340 = vld [vmem:[%s1332 + $0x38] sm:$0xff]
    %v1341 = vld [vmem:[%s1332 + $0x40] sm:$0xff]
    %v1342 = vld [vmem:[%s1332 + $0x48] sm:$0xff]
    %v1343 = vld [vmem:[%s1332 + $0x50] sm:$0xff]
    %v1344 = vld [vmem:[%s1332 + $0x58] sm:$0xff]
    %v1345 = vld [vmem:[%s1332 + $0x60] sm:$0xff]
    %v1346 = vld [vmem:[%s1332 + $0x68] sm:$0xff]
    %v1347 = vld [vmem:[%s1332 + $0x70] sm:$0xff]
    %v1348 = vld [vmem:[%s1332 + $0x78] sm:$0xff]
    %v1349 = vld [vmem:[%s1332 + $0x80] sm:$0xff]
    %v1350 = vld [vmem:[%s1332 + $0x88] sm:$0xff]
    %v1351 = vld [vmem:[%s1332 + $0x90] sm:$0xff]
    %v1352 = vld [vmem:[%s1332 + $0x98] sm:$0xff]
    %v1353 = vld [vmem:[%s1332 + $0xa0] sm:$0xff]
    %v1354 = vld [vmem:[%s1332 + $0xa8] sm:$0xff]
    %v1355 = vld [vmem:[%s1332 + $0xb0] sm:$0xff]
    %v1356 = vld [vmem:[%s1332 + $0xb8] sm:$0xff]
    %v1357 = vld [vmem:[%s1332 + $0xc0] sm:$0xff]
    %v1358 = vld [vmem:[%s1332 + $0xc8] sm:$0xff]
    %v1359 = vld [vmem:[%s1332 + $0xd0] sm:$0xff]
    %v1360 = vld [vmem:[%s1332 + $0xd8] sm:$0xff]
    %v1361 = vld [vmem:[%s1332 + $0xe0] sm:$0xff]
    %v1362 = vld [vmem:[%s1332 + $0xe8] sm:$0xff]
    %v1363 = vld [vmem:[%s1332 + $0xf0] sm:$0xff]
    %v1364 = vld [vmem:[%s1332 + $0xf8] sm:$0xff]
    %v1365 = vld [vmem:[%s1332 + $0x100] sm:$0xff]
    %v1366 = vld [vmem:[%s1332 + $0x108] sm:$0xff]
    %v1367 = vld [vmem:[%s1332 + $0x110] sm:$0xff]
    %v1368 = vld [vmem:[%s1332 + $0x118] sm:$0xff]
    %v1369 = vld [vmem:[%s1332 + $0x120] sm:$0xff]
    %v1370 = vld [vmem:[%s1332 + $0x128] sm:$0xff]
    %v1371 = vld [vmem:[%s1332 + $0x130] sm:$0xff]
    %v1372 = vld [vmem:[%s1332 + $0x138] sm:$0xff]
    %v1373 = vld [vmem:[%s1332 + $0x140] sm:$0xff]
    %v1374 = vld [vmem:[%s1332 + $0x148] sm:$0xff]
    %v1375 = vld [vmem:[%s1332 + $0x150] sm:$0xff]
    %v1376 = vld [vmem:[%s1332 + $0x158] sm:$0xff]
    %v1377 = vld [vmem:[%s1332 + $0x160] sm:$0xff]
    %v1378 = vld [vmem:[%s1332 + $0x168] sm:$0xff]
    %v1379 = vld [vmem:[%s1332 + $0x170] sm:$0xff]
    %v1380 = vld [vmem:[%s1332 + $0x178] sm:$0xff]
    %v1381 = vld [vmem:[%s1332 + $0x180] sm:$0xff]
    %v1382 = vld [vmem:[%s1332 + $0x188] sm:$0xff]
    %v1383 = vld [vmem:[%s1332 + $0x190] sm:$0xff]
    %v1384 = vld [vmem:[%s1332 + $0x198] sm:$0xff]
    %v1385 = vld [vmem:[%s1332 + $0x1a0] sm:$0xff]
    %v1386 = vld [vmem:[%s1332 + $0x1a8] sm:$0xff]
    %v1387 = vld [vmem:[%s1332 + $0x1b0] sm:$0xff]
    %v1388 = vld [vmem:[%s1332 + $0x1b8] sm:$0xff]
    %v1389 = vld [vmem:[%s1332 + $0x1c0] sm:$0xff]
    %v1390 = vld [vmem:[%s1332 + $0x1c8] sm:$0xff]
    %v1391 = vld [vmem:[%s1332 + $0x1d0] sm:$0xff]
    %v1392 = vld [vmem:[%s1332 + $0x1d8] sm:$0xff]
    %v1393 = vld [vmem:[%s1332 + $0x1e0] sm:$0xff]
    %v1394 = vld [vmem:[%s1332 + $0x1e8] sm:$0xff]
    %v1395 = vld [vmem:[%s1332 + $0x1f0] sm:$0xff]
    %v1396 = vld [vmem:[%s1332 + $0x1f8] sm:$0xff]
    %1397 = vmatprep.subr.mxu0 %v1394
    %1398 = vmatpush1.msra.mxu0 %v1393
    %1399 = vmatprep.subr.mxu0 %v1390
    %1400 = vmatpush1.msra.mxu0 %v1389
    %1401 = vmatprep.subr.mxu0 %v1386
    %1402 = vmatpush1.msra.mxu0 %v1385
    %1403 = vmatprep.subr.mxu0 %v1382
    %1404 = vmatpush1.msra.mxu0 %v1381
    %1405 = vmatprep.subr.mxu0 %v1378
    %1406 = vmatpush1.msra.mxu0 %v1377
    %1407 = vmatprep.subr.mxu0 %v1374
    %1408 = vmatpush1.msra.mxu0 %v1373
    %1409 = vmatprep.subr.mxu0 %v1370
    %1410 = vmatpush1.msra.mxu0 %v1369
    %1411 = vmatprep.subr.mxu0 %v1366
    %1412 = vmatpush1.msra.mxu0 %v1365
    %1413 = vmatprep.subr.mxu0 %v1362
    %1414 = vmatpush1.msra.mxu0 %v1361
    %1415 = vmatprep.subr.mxu0 %v1358
    %1416 = vmatpush1.msra.mxu0 %v1357
    %1417 = vmatprep.subr.mxu0 %v1354
    %1418 = vmatpush1.msra.mxu0 %v1353
    %1419 = vmatprep.subr.mxu0 %v1350
    %1420 = vmatpush1.msra.mxu0 %v1349
    %1421 = vmatprep.subr.mxu0 %v1346
    %1422 = vmatpush1.msra.mxu0 %v1345
    %1423 = vmatprep.subr.mxu0 %v1342
    %1424 = vmatpush1.msra.mxu0 %v1341
    %1425 = vmatprep.subr.mxu0 %v1338
    %1426 = vmatpush1.msra.mxu0 %v1337
    %1427 = vmatprep.subr.mxu0 %v1334
    %1428 = vmatpush1.msra.mxu0 %v1333
    %1429 = vmatprep.subr.mxu0 0.0
    %1430 = vmatpush2.msra.mxu0 0.0
    %1431 = vmatprep.subr.mxu0 0.0
    %1432 = vmatpush2.msra.mxu0 0.0
    %1433 = vmatprep.subr.mxu0 0.0
    %1434 = vmatpush2.msra.mxu0 0.0
    %1435 = vmatprep.subr.mxu0 0.0
    %1436 = vmatpush2.msra.mxu0 0.0
    %1437 = vmatprep.subr.mxu0 0.0
    %1438 = vmatpush2.msra.mxu0 0.0
    %1439 = vmatprep.subr.mxu0 0.0
    %1440 = vmatpush2.msra.mxu0 0.0
    %1441 = vmatprep.subr.mxu0 0.0
    %1442 = vmatpush2.msra.mxu0 0.0
    %1443 = vmatprep.subr.mxu0 0.0
    %1444 = vmatpush2.msra.mxu0 0.0
    %1445 = vmatprep.subr.mxu0 0.0
    %1446 = vmatpush2.msra.mxu0 0.0
    %1447 = vmatprep.subr.mxu0 0.0
    %1448 = vmatpush2.msra.mxu0 0.0
    %1449 = vmatprep.subr.mxu0 0.0
    %1450 = vmatpush2.msra.mxu0 0.0
    %1451 = vmatprep.subr.mxu0 0.0
    %1452 = vmatpush2.msra.mxu0 0.0
    %1453 = vmatprep.subr.mxu0 0.0
    %1454 = vmatpush2.msra.mxu0 0.0
    %1455 = vmatprep.subr.mxu0 0.0
    %1456 = vmatpush2.msra.mxu0 0.0
    %1457 = vmatprep.subr.mxu0 0.0
    %1458 = vmatpush2.msra.mxu0 0.0
    %1459 = vmatprep.subr.mxu0 0.0
    %1460 = vmatpush2.msra.mxu0 0.0
    %1461 = vmatprep.mubr.f32.mxu0 0.0
    %1462 = vmatmul.mubr.f32.gmra.mxu0 0.0
    %v1463 = vpop.f32.mrf.mxu0
    %v1464 = vadd.f32 0.0, %v1463
    %v1465 = vpop.f32.mrf.mxu0
    %v1466 = vadd.f32 0.0, %v1465
    %1467 = vdwg.mxu0
    %1468 = vmatprep.subr.mxu0 %v1396
    %1469 = vmatpush1.msra.mxu0 %v1395
    %1470 = vmatprep.subr.mxu0 %v1392
    %1471 = vmatpush1.msra.mxu0 %v1391
    %1472 = vmatprep.subr.mxu0 %v1388
    %1473 = vmatpush1.msra.mxu0 %v1387
    %1474 = vmatprep.subr.mxu0 %v1384
    %1475 = vmatpush1.msra.mxu0 %v1383
    %1476 = vmatprep.subr.mxu0 %v1380
    %1477 = vmatpush1.msra.mxu0 %v1379
    %1478 = vmatprep.subr.mxu0 %v1376
    %1479 = vmatpush1.msra.mxu0 %v1375
    %1480 = vmatprep.subr.mxu0 %v1372
    %1481 = vmatpush1.msra.mxu0 %v1371
    %1482 = vmatprep.subr.mxu0 %v1368
    %1483 = vmatpush1.msra.mxu0 %v1367
    %1484 = vmatprep.subr.mxu0 %v1364
    %1485 = vmatpush1.msra.mxu0 %v1363
    %1486 = vmatprep.subr.mxu0 %v1360
    %1487 = vmatpush1.msra.mxu0 %v1359
    %1488 = vmatprep.subr.mxu0 %v1356
    %1489 = vmatpush1.msra.mxu0 %v1355
    %1490 = vmatprep.subr.mxu0 %v1352
    %1491 = vmatpush1.msra.mxu0 %v1351
    %1492 = vmatprep.subr.mxu0 %v1348
    %1493 = vmatpush1.msra.mxu0 %v1347
    %1494 = vmatprep.subr.mxu0 %v1344
    %1495 = vmatpush1.msra.mxu0 %v1343
    %1496 = vmatprep.subr.mxu0 %v1340
    %1497 = vmatpush1.msra.mxu0 %v1339
    %1498 = vmatprep.subr.mxu0 %v1336
    %1499 = vmatpush1.msra.mxu0 %v1335
    %1500 = vmatprep.subr.mxu0 0.0
    %1501 = vmatpush2.msra.mxu0 0.0
    %1502 = vmatprep.subr.mxu0 0.0
    %1503 = vmatpush2.msra.mxu0 0.0
    %1504 = vmatprep.subr.mxu0 0.0
    %1505 = vmatpush2.msra.mxu0 0.0
    %1506 = vmatprep.subr.mxu0 0.0
    %1507 = vmatpush2.msra.mxu0 0.0
    %1508 = vmatprep.subr.mxu0 0.0
    %1509 = vmatpush2.msra.mxu0 0.0
    %1510 = vmatprep.subr.mxu0 0.0
    %1511 = vmatpush2.msra.mxu0 0.0
    %1512 = vmatprep.subr.mxu0 0.0
    %1513 = vmatpush2.msra.mxu0 0.0
    %1514 = vmatprep.subr.mxu0 0.0
    %1515 = vmatpush2.msra.mxu0 0.0
    %1516 = vmatprep.subr.mxu0 0.0
    %1517 = vmatpush2.msra.mxu0 0.0
    %1518 = vmatprep.subr.mxu0 0.0
    %1519 = vmatpush2.msra.mxu0 0.0
    %1520 = vmatprep.subr.mxu0 0.0
    %1521 = vmatpush2.msra.mxu0 0.0
    %1522 = vmatprep.subr.mxu0 0.0
    %1523 = vmatpush2.msra.mxu0 0.0
    %1524 = vmatprep.subr.mxu0 0.0
    %1525 = vmatpush2.msra.mxu0 0.0
    %1526 = vmatprep.subr.mxu0 0.0
    %1527 = vmatpush2.msra.mxu0 0.0
    %1528 = vmatprep.subr.mxu0 0.0
    %1529 = vmatpush2.msra.mxu0 0.0
    %1530 = vmatprep.subr.mxu0 0.0
    %1531 = vmatpush2.msra.mxu0 0.0
    %1532 = vmatprep.mubr.f32.mxu0 0.0
    %1533 = vmatmul.mubr.f32.gmra.mxu0 0.0
    %v1534 = vpop.f32.mrf.mxu0
    %v1535 = vadd.f32 0.0, %v1534
    %v1536 = vpop.f32.mrf.mxu0
    %v1537 = vadd.f32 0.0, %v1536
    %1538 = vdwg.mxu0
    %v1539 = vadd.f32 %v704, %v1464
    %v1540 = vadd.f32 %v706, %v1466
    %v1541 = vadd.f32 %v817, %v1535
    %v1542 = vadd.f32 %v819, %v1537
    %v1543 = vxor.u32 %v1539, 2147483648
    %v1544 = vmul.f32 %v1543, 1.442695
    %v1545 = vpow.pop %v1544
    %v1546 = vadd.f32 %v1545, 1.0
    %v1547 = vrcp.pop %v1546
    %v1548 = vmul.f32 1.0, %v1547
    %v1549 = vxor.u32 %v1540, 2147483648
    %v1550 = vmul.f32 %v1549, 1.442695
    %v1551 = vpow.pop %v1550
    %v1552 = vadd.f32 %v1551, 1.0
    %v1553 = vrcp.pop %v1552
    %v1554 = vmul.f32 1.0, %v1553
    %v1555 = vtanh.pop %v1541
    %v1556 = vxor.u32 %v1542, 2147483648
    %v1557 = vmul.f32 %v1556, 1.442695
    %v1558 = vpow.pop %v1557
    %v1559 = vadd.f32 %v1558, 1.0
    %v1560 = vrcp.pop %v1559
    %v1561 = vmul.f32 1.0, %v1560
    %v1562 = vmul.f32 %v1554, 0.0
    %v1563 = vmul.f32 %v1548, %v1555
    %v1564 = vadd.f32 %v1562, %v1563
    %v1565 = vtanh.pop %v1564
    %v1566 = vmul.f32 %v1561, %v1565
    %1567 = vmatprep.subr.mxu0 %v924
    %1568 = vmatpush1.msra.mxu0 %v923
    %1569 = vmatprep.subr.mxu0 %v920
    %1570 = vmatpush1.msra.mxu0 %v919
    %1571 = vmatprep.subr.mxu0 %v916
    %1572 = vmatpush1.msra.mxu0 %v915
    %1573 = vmatprep.subr.mxu0 %v912
    %1574 = vmatpush1.msra.mxu0 %v911
    %1575 = vmatprep.subr.mxu0 %v908
    %1576 = vmatpush1.msra.mxu0 %v907
    %1577 = vmatprep.subr.mxu0 %v904
    %1578 = vmatpush1.msra.mxu0 %v903
    %1579 = vmatprep.subr.mxu0 %v900
    %1580 = vmatpush1.msra.mxu0 %v899
    %1581 = vmatprep.subr.mxu0 %v896
    %1582 = vmatpush1.msra.mxu0 %v895
    %1583 = vmatprep.subr.mxu0 %v892
    %1584 = vmatpush1.msra.mxu0 %v891
    %1585 = vmatprep.subr.mxu0 %v888
    %1586 = vmatpush1.msra.mxu0 %v887
    %1587 = vmatprep.subr.mxu0 %v884
    %1588 = vmatpush1.msra.mxu0 %v883
    %1589 = vmatprep.subr.mxu0 %v880
    %1590 = vmatpush1.msra.mxu0 %v879
    %1591 = vmatprep.subr.mxu0 %v876
    %1592 = vmatpush1.msra.mxu0 %v875
    %1593 = vmatprep.subr.mxu0 %v872
    %1594 = vmatpush1.msra.mxu0 %v871
    %1595 = vmatprep.subr.mxu0 %v868
    %1596 = vmatpush1.msra.mxu0 %v867
    %1597 = vmatprep.subr.mxu0 %v864
    %1598 = vmatpush1.msra.mxu0 %v863
    %1599 = vmatprep.subr.mxu0 0.0
    %1600 = vmatpush2.msra.mxu0 0.0
    %1601 = vmatprep.subr.mxu0 0.0
    %1602 = vmatpush2.msra.mxu0 0.0
    %1603 = vmatprep.subr.mxu0 0.0
    %1604 = vmatpush2.msra.mxu0 0.0
    %1605 = vmatprep.subr.mxu0 0.0
    %1606 = vmatpush2.msra.mxu0 0.0
    %1607 = vmatprep.subr.mxu0 0.0
    %1608 = vmatpush2.msra.mxu0 0.0
    %1609 = vmatprep.subr.mxu0 0.0
    %1610 = vmatpush2.msra.mxu0 0.0
    %1611 = vmatprep.subr.mxu0 0.0
    %1612 = vmatpush2.msra.mxu0 0.0
    %1613 = vmatprep.subr.mxu0 0.0
    %1614 = vmatpush2.msra.mxu0 0.0
    %1615 = vmatprep.subr.mxu0 0.0
    %1616 = vmatpush2.msra.mxu0 0.0
    %1617 = vmatprep.subr.mxu0 0.0
    %1618 = vmatpush2.msra.mxu0 0.0
    %1619 = vmatprep.subr.mxu0 0.0
    %1620 = vmatpush2.msra.mxu0 0.0
    %1621 = vmatprep.subr.mxu0 0.0
    %1622 = vmatpush2.msra.mxu0 0.0
    %1623 = vmatprep.subr.mxu0 0.0
    %1624 = vmatpush2.msra.mxu0 0.0
    %1625 = vmatprep.subr.mxu0 0.0
    %1626 = vmatpush2.msra.mxu0 0.0
    %1627 = vmatprep.subr.mxu0 0.0
    %1628 = vmatpush2.msra.mxu0 0.0
    %1629 = vmatprep.subr.mxu0 0.0
    %1630 = vmatpush2.msra.mxu0 0.0
    %1631 = vmatprep.mubr.f32.mxu0 0.0
    %1632 = vmatmul.mubr.f32.gmra.mxu0 %v1096
    %v1633 = vpop.f32.mrf.mxu0
    %v1634 = vadd.f32 0.0, %v1633
    %v1635 = vpop.f32.mrf.mxu0
    %v1636 = vadd.f32 0.0, %v1635
    %1637 = vdwg.mxu0
    %1638 = vmatprep.subr.mxu0 %v926
    %1639 = vmatpush1.msra.mxu0 %v925
    %1640 = vmatprep.subr.mxu0 %v922
    %1641 = vmatpush1.msra.mxu0 %v921
    %1642 = vmatprep.subr.mxu0 %v918
    %1643 = vmatpush1.msra.mxu0 %v917
    %1644 = vmatprep.subr.mxu0 %v914
    %1645 = vmatpush1.msra.mxu0 %v913
    %1646 = vmatprep.subr.mxu0 %v910
    %1647 = vmatpush1.msra.mxu0 %v909
    %1648 = vmatprep.subr.mxu0 %v906
    %1649 = vmatpush1.msra.mxu0 %v905
    %1650 = vmatprep.subr.mxu0 %v902
    %1651 = vmatpush1.msra.mxu0 %v901
    %1652 = vmatprep.subr.mxu0 %v898
    %1653 = vmatpush1.msra.mxu0 %v897
    %1654 = vmatprep.subr.mxu0 %v894
    %1655 = vmatpush1.msra.mxu0 %v893
    %1656 = vmatprep.subr.mxu0 %v890
    %1657 = vmatpush1.msra.mxu0 %v889
    %1658 = vmatprep.subr.mxu0 %v886
    %1659 = vmatpush1.msra.mxu0 %v885
    %1660 = vmatprep.subr.mxu0 %v882
    %1661 = vmatpush1.msra.mxu0 %v881
    %1662 = vmatprep.subr.mxu0 %v878
    %1663 = vmatpush1.msra.mxu0 %v877
    %1664 = vmatprep.subr.mxu0 %v874
    %1665 = vmatpush1.msra.mxu0 %v873
    %1666 = vmatprep.subr.mxu0 %v870
    %1667 = vmatpush1.msra.mxu0 %v869
    %1668 = vmatprep.subr.mxu0 %v866
    %1669 = vmatpush1.msra.mxu0 %v865
    %1670 = vmatprep.subr.mxu0 0.0
    %1671 = vmatpush2.msra.mxu0 0.0
    %1672 = vmatprep.subr.mxu0 0.0
    %1673 = vmatpush2.msra.mxu0 0.0
    %1674 = vmatprep.subr.mxu0 0.0
    %1675 = vmatpush2.msra.mxu0 0.0
    %1676 = vmatprep.subr.mxu0 0.0
    %1677 = vmatpush2.msra.mxu0 0.0
    %1678 = vmatprep.subr.mxu0 0.0
    %1679 = vmatpush2.msra.mxu0 0.0
    %1680 = vmatprep.subr.mxu0 0.0
    %1681 = vmatpush2.msra.mxu0 0.0
    %1682 = vmatprep.subr.mxu0 0.0
    %1683 = vmatpush2.msra.mxu0 0.0
    %1684 = vmatprep.subr.mxu0 0.0
    %1685 = vmatpush2.msra.mxu0 0.0
    %1686 = vmatprep.subr.mxu0 0.0
    %1687 = vmatpush2.msra.mxu0 0.0
    %1688 = vmatprep.subr.mxu0 0.0
    %1689 = vmatpush2.msra.mxu0 0.0
    %1690 = vmatprep.subr.mxu0 0.0
    %1691 = vmatpush2.msra.mxu0 0.0
    %1692 = vmatprep.subr.mxu0 0.0
    %1693 = vmatpush2.msra.mxu0 0.0
    %1694 = vmatprep.subr.mxu0 0.0
    %1695 = vmatpush2.msra.mxu0 0.0
    %1696 = vmatprep.subr.mxu0 0.0
    %1697 = vmatpush2.msra.mxu0 0.0
    %1698 = vmatprep.subr.mxu0 0.0
    %1699 = vmatpush2.msra.mxu0 0.0
    %1700 = vmatprep.subr.mxu0 0.0
    %1701 = vmatpush2.msra.mxu0 0.0
    %1702 = vmatprep.mubr.f32.mxu0 0.0
    %1703 = vmatmul.mubr.f32.gmra.mxu0 %v1096
    %v1704 = vpop.f32.mrf.mxu0
    %v1705 = vadd.f32 0.0, %v1704
    %v1706 = vpop.f32.mrf.mxu0
    %v1707 = vadd.f32 0.0, %v1706
    %1708 = vdwg.mxu0
    %v1709 = vadd.f32 %v258, %v1634
    %v1710 = vadd.f32 %v260, %v1636
    %v1711 = vadd.f32 %v371, %v1705
    %v1712 = vadd.f32 %v373, %v1707
    %v1713 = vxor.u32 %v1709, 2147483648
    %v1714 = vmul.f32 %v1713, 1.442695
    %v1715 = vpow.pop %v1714
    %v1716 = vadd.f32 %v1715, 1.0
    %v1717 = vrcp.pop %v1716
    %v1718 = vmul.f32 1.0, %v1717
    %v1719 = vxor.u32 %v1710, 2147483648
    %v1720 = vmul.f32 %v1719, 1.442695
    %v1721 = vpow.pop %v1720
    %v1722 = vadd.f32 %v1721, 1.0
    %v1723 = vrcp.pop %v1722
    %v1724 = vmul.f32 1.0, %v1723
    %v1725 = vtanh.pop %v1711
    %v1726 = vxor.u32 %v1712, 2147483648
    %v1727 = vmul.f32 %v1726, 1.442695
    %v1728 = vpow.pop %v1727
    %v1729 = vadd.f32 %v1728, 1.0
    %v1730 = vrcp.pop %v1729
    %v1731 = vmul.f32 1.0, %v1730
    %v1732 = vmul.f32 %v1724, %v1094
    %v1733 = vmul.f32 %v1718, %v1725
    %v1734 = vadd.f32 %v1732, %v1733
    %v1735 = vtanh.pop %v1734
    %v1736 = vmul.f32 %v1731, %v1735
    %1737 = vmatprep.subr.mxu0 %v1159
    %1738 = vmatpush1.msra.mxu0 %v1158
    %1739 = vmatprep.subr.mxu0 %v1155
    %1740 = vmatpush1.msra.mxu0 %v1154
    %1741 = vmatprep.subr.mxu0 %v1151
    %1742 = vmatpush1.msra.mxu0 %v1150
    %1743 = vmatprep.subr.mxu0 %v1147
    %1744 = vmatpush1.msra.mxu0 %v1146
    %1745 = vmatprep.subr.mxu0 %v1143
    %1746 = vmatpush1.msra.mxu0 %v1142
    %1747 = vmatprep.subr.mxu0 %v1139
    %1748 = vmatpush1.msra.mxu0 %v1138
    %1749 = vmatprep.subr.mxu0 %v1135
    %1750 = vmatpush1.msra.mxu0 %v1134
    %1751 = vmatprep.subr.mxu0 %v1131
    %1752 = vmatpush1.msra.mxu0 %v1130
    %1753 = vmatprep.subr.mxu0 %v1127
    %1754 = vmatpush1.msra.mxu0 %v1126
    %1755 = vmatprep.subr.mxu0 %v1123
    %1756 = vmatpush1.msra.mxu0 %v1122
    %1757 = vmatprep.subr.mxu0 %v1119
    %1758 = vmatpush1.msra.mxu0 %v1118
    %1759 = vmatprep.subr.mxu0 %v1115
    %1760 = vmatpush1.msra.mxu0 %v1114
    %1761 = vmatprep.subr.mxu0 %v1111
    %1762 = vmatpush1.msra.mxu0 %v1110
    %1763 = vmatprep.subr.mxu0 %v1107
    %1764 = vmatpush1.msra.mxu0 %v1106
    %1765 = vmatprep.subr.mxu0 %v1103
    %1766 = vmatpush1.msra.mxu0 %v1102
    %1767 = vmatprep.subr.mxu0 %v1099
    %1768 = vmatpush1.msra.mxu0 %v1098
    %1769 = vmatprep.subr.mxu0 0.0
    %1770 = vmatpush2.msra.mxu0 0.0
    %1771 = vmatprep.subr.mxu0 0.0
    %1772 = vmatpush2.msra.mxu0 0.0
    %1773 = vmatprep.subr.mxu0 0.0
    %1774 = vmatpush2.msra.mxu0 0.0
    %1775 = vmatprep.subr.mxu0 0.0
    %1776 = vmatpush2.msra.mxu0 0.0
    %1777 = vmatprep.subr.mxu0 0.0
    %1778 = vmatpush2.msra.mxu0 0.0
    %1779 = vmatprep.subr.mxu0 0.0
    %1780 = vmatpush2.msra.mxu0 0.0
    %1781 = vmatprep.subr.mxu0 0.0
    %1782 = vmatpush2.msra.mxu0 0.0
    %1783 = vmatprep.subr.mxu0 0.0
    %1784 = vmatpush2.msra.mxu0 0.0
    %1785 = vmatprep.subr.mxu0 0.0
    %1786 = vmatpush2.msra.mxu0 0.0
    %1787 = vmatprep.subr.mxu0 0.0
    %1788 = vmatpush2.msra.mxu0 0.0
    %1789 = vmatprep.subr.mxu0 0.0
    %1790 = vmatpush2.msra.mxu0 0.0
    %1791 = vmatprep.subr.mxu0 0.0
    %1792 = vmatpush2.msra.mxu0 0.0
    %1793 = vmatprep.subr.mxu0 0.0
    %1794 = vmatpush2.msra.mxu0 0.0
    %1795 = vmatprep.subr.mxu0 0.0
    %1796 = vmatpush2.msra.mxu0 0.0
    %1797 = vmatprep.subr.mxu0 0.0
    %1798 = vmatpush2.msra.mxu0 0.0
    %1799 = vmatprep.subr.mxu0 0.0
    %1800 = vmatpush2.msra.mxu0 0.0
    %1801 = vmatprep.mubr.f32.mxu0 0.0
    %1802 = vmatmul.mubr.f32.gmra.mxu0 %v1331
    %v1803 = vpop.f32.mrf.mxu0
    %v1804 = vadd.f32 0.0, %v1803
    %v1805 = vpop.f32.mrf.mxu0
    %v1806 = vadd.f32 0.0, %v1805
    %1807 = vdwg.mxu0
    %1808 = vmatprep.subr.mxu0 %v1161
    %1809 = vmatpush1.msra.mxu0 %v1160
    %1810 = vmatprep.subr.mxu0 %v1157
    %1811 = vmatpush1.msra.mxu0 %v1156
    %1812 = vmatprep.subr.mxu0 %v1153
    %1813 = vmatpush1.msra.mxu0 %v1152
    %1814 = vmatprep.subr.mxu0 %v1149
    %1815 = vmatpush1.msra.mxu0 %v1148
    %1816 = vmatprep.subr.mxu0 %v1145
    %1817 = vmatpush1.msra.mxu0 %v1144
    %1818 = vmatprep.subr.mxu0 %v1141
    %1819 = vmatpush1.msra.mxu0 %v1140
    %1820 = vmatprep.subr.mxu0 %v1137
    %1821 = vmatpush1.msra.mxu0 %v1136
    %1822 = vmatprep.subr.mxu0 %v1133
    %1823 = vmatpush1.msra.mxu0 %v1132
    %1824 = vmatprep.subr.mxu0 %v1129
    %1825 = vmatpush1.msra.mxu0 %v1128
    %1826 = vmatprep.subr.mxu0 %v1125
    %1827 = vmatpush1.msra.mxu0 %v1124
    %1828 = vmatprep.subr.mxu0 %v1121
    %1829 = vmatpush1.msra.mxu0 %v1120
    %1830 = vmatprep.subr.mxu0 %v1117
    %1831 = vmatpush1.msra.mxu0 %v1116
    %1832 = vmatprep.subr.mxu0 %v1113
    %1833 = vmatpush1.msra.mxu0 %v1112
    %1834 = vmatprep.subr.mxu0 %v1109
    %1835 = vmatpush1.msra.mxu0 %v1108
    %1836 = vmatprep.subr.mxu0 %v1105
    %1837 = vmatpush1.msra.mxu0 %v1104
    %1838 = vmatprep.subr.mxu0 %v1101
    %1839 = vmatpush1.msra.mxu0 %v1100
    %1840 = vmatprep.subr.mxu0 0.0
    %1841 = vmatpush2.msra.mxu0 0.0
    %1842 = vmatprep.subr.mxu0 0.0
    %1843 = vmatpush2.msra.mxu0 0.0
    %1844 = vmatprep.subr.mxu0 0.0
    %1845 = vmatpush2.msra.mxu0 0.0
    %1846 = vmatprep.subr.mxu0 0.0
    %1847 = vmatpush2.msra.mxu0 0.0
    %1848 = vmatprep.subr.mxu0 0.0
    %1849 = vmatpush2.msra.mxu0 0.0
    %1850 = vmatprep.subr.mxu0 0.0
    %1851 = vmatpush2.msra.mxu0 0.0
    %1852 = vmatprep.subr.mxu0 0.0
    %1853 = vmatpush2.msra.mxu0 0.0
    %1854 = vmatprep.subr.mxu0 0.0
    %1855 = vmatpush2.msra.mxu0 0.0
    %1856 = vmatprep.subr.mxu0 0.0
    %1857 = vmatpush2.msra.mxu0 0.0
    %1858 = vmatprep.subr.mxu0 0.0
    %1859 = vmatpush2.msra.mxu0 0.0
    %1860 = vmatprep.subr.mxu0 0.0
    %1861 = vmatpush2.msra.mxu0 0.0
    %1862 = vmatprep.subr.mxu0 0.0
    %1863 = vmatpush2.msra.mxu0 0.0
    %1864 = vmatprep.subr.mxu0 0.0
    %1865 = vmatpush2.msra.mxu0 0.0
    %1866 = vmatprep.subr.mxu0 0.0
    %1867 = vmatpush2.msra.mxu0 0.0
    %1868 = vmatprep.subr.mxu0 0.0
    %1869 = vmatpush2.msra.mxu0 0.0
    %1870 = vmatprep.subr.mxu0 0.0
    %1871 = vmatpush2.msra.mxu0 0.0
    %1872 = vmatprep.mubr.f32.mxu0 0.0
    %1873 = vmatmul.mubr.f32.gmra.mxu0 %v1331
    %v1874 = vpop.f32.mrf.mxu0
    %v1875 = vadd.f32 0.0, %v1874
    %v1876 = vpop.f32.mrf.mxu0
    %v1877 = vadd.f32 0.0, %v1876
    %1878 = vdwg.mxu0
    %v1879 = vadd.f32 %v484, %v1804
    %v1880 = vadd.f32 %v486, %v1806
    %v1881 = vadd.f32 %v597, %v1875
    %v1882 = vadd.f32 %v599, %v1877
    %v1883 = vxor.u32 %v1879, 2147483648
    %v1884 = vmul.f32 %v1883, 1.442695
    %v1885 = vpow.pop %v1884
    %v1886 = vadd.f32 %v1885, 1.0
    %v1887 = vrcp.pop %v1886
    %v1888 = vmul.f32 1.0, %v1887
    %v1889 = vxor.u32 %v1880, 2147483648
    %v1890 = vmul.f32 %v1889, 1.442695
    %v1891 = vpow.pop %v1890
    %v1892 = vadd.f32 %v1891, 1.0
    %v1893 = vrcp.pop %v1892
    %v1894 = vmul.f32 1.0, %v1893
    %v1895 = vtanh.pop %v1881
    %v1896 = vxor.u32 %v1882, 2147483648
    %v1897 = vmul.f32 %v1896, 1.442695
    %v1898 = vpow.pop %v1897
    %v1899 = vadd.f32 %v1898, 1.0
    %v1900 = vrcp.pop %v1899
    %v1901 = vmul.f32 1.0, %v1900
    %v1902 = vmul.f32 %v1894, %v1329
    %v1903 = vmul.f32 %v1888, %v1895
    %v1904 = vadd.f32 %v1902, %v1903
    %v1905 = vtanh.pop %v1904
    %v1906 = vmul.f32 %v1901, %v1905
    %1907 = vmatprep.subr.mxu0 %v1394
    %1908 = vmatpush1.msra.mxu0 %v1393
    %1909 = vmatprep.subr.mxu0 %v1390
    %1910 = vmatpush1.msra.mxu0 %v1389
    %1911 = vmatprep.subr.mxu0 %v1386
    %1912 = vmatpush1.msra.mxu0 %v1385
    %1913 = vmatprep.subr.mxu0 %v1382
    %1914 = vmatpush1.msra.mxu0 %v1381
    %1915 = vmatprep.subr.mxu0 %v1378
    %1916 = vmatpush1.msra.mxu0 %v1377
    %1917 = vmatprep.subr.mxu0 %v1374
    %1918 = vmatpush1.msra.mxu0 %v1373
    %1919 = vmatprep.subr.mxu0 %v1370
    %1920 = vmatpush1.msra.mxu0 %v1369
    %1921 = vmatprep.subr.mxu0 %v1366
    %1922 = vmatpush1.msra.mxu0 %v1365
    %1923 = vmatprep.subr.mxu0 %v1362
    %1924 = vmatpush1.msra.mxu0 %v1361
    %1925 = vmatprep.subr.mxu0 %v1358
    %1926 = vmatpush1.msra.mxu0 %v1357
    %1927 = vmatprep.subr.mxu0 %v1354
    %1928 = vmatpush1.msra.mxu0 %v1353
    %1929 = vmatprep.subr.mxu0 %v1350
    %1930 = vmatpush1.msra.mxu0 %v1349
    %1931 = vmatprep.subr.mxu0 %v1346
    %1932 = vmatpush1.msra.mxu0 %v1345
    %1933 = vmatprep.subr.mxu0 %v1342
    %1934 = vmatpush1.msra.mxu0 %v1341
    %1935 = vmatprep.subr.mxu0 %v1338
    %1936 = vmatpush1.msra.mxu0 %v1337
    %1937 = vmatprep.subr.mxu0 %v1334
    %1938 = vmatpush1.msra.mxu0 %v1333
    %1939 = vmatprep.subr.mxu0 0.0
    %1940 = vmatpush2.msra.mxu0 0.0
    %1941 = vmatprep.subr.mxu0 0.0
    %1942 = vmatpush2.msra.mxu0 0.0
    %1943 = vmatprep.subr.mxu0 0.0
    %1944 = vmatpush2.msra.mxu0 0.0
    %1945 = vmatprep.subr.mxu0 0.0
    %1946 = vmatpush2.msra.mxu0 0.0
    %1947 = vmatprep.subr.mxu0 0.0
    %1948 = vmatpush2.msra.mxu0 0.0
    %1949 = vmatprep.subr.mxu0 0.0
    %1950 = vmatpush2.msra.mxu0 0.0
    %1951 = vmatprep.subr.mxu0 0.0
    %1952 = vmatpush2.msra.mxu0 0.0
    %1953 = vmatprep.subr.mxu0 0.0
    %1954 = vmatpush2.msra.mxu0 0.0
    %1955 = vmatprep.subr.mxu0 0.0
    %1956 = vmatpush2.msra.mxu0 0.0
    %1957 = vmatprep.subr.mxu0 0.0
    %1958 = vmatpush2.msra.mxu0 0.0
    %1959 = vmatprep.subr.mxu0 0.0
    %1960 = vmatpush2.msra.mxu0 0.0
    %1961 = vmatprep.subr.mxu0 0.0
    %1962 = vmatpush2.msra.mxu0 0.0
    %1963 = vmatprep.subr.mxu0 0.0
    %1964 = vmatpush2.msra.mxu0 0.0
    %1965 = vmatprep.subr.mxu0 0.0
    %1966 = vmatpush2.msra.mxu0 0.0
    %1967 = vmatprep.subr.mxu0 0.0
    %1968 = vmatpush2.msra.mxu0 0.0
    %1969 = vmatprep.subr.mxu0 0.0
    %1970 = vmatpush2.msra.mxu0 0.0
    %1971 = vmatprep.mubr.f32.mxu0 0.0
    %1972 = vmatmul.mubr.f32.gmra.mxu0 %v1566
    %v1973 = vpop.f32.mrf.mxu0
    %v1974 = vadd.f32 0.0, %v1973
    %v1975 = vpop.f32.mrf.mxu0
    %v1976 = vadd.f32 0.0, %v1975
    %1977 = vdwg.mxu0
    %1978 = vmatprep.subr.mxu0 %v1396
    %1979 = vmatpush1.msra.mxu0 %v1395
    %1980 = vmatprep.subr.mxu0 %v1392
    %1981 = vmatpush1.msra.mxu0 %v1391
    %1982 = vmatprep.subr.mxu0 %v1388
    %1983 = vmatpush1.msra.mxu0 %v1387
    %1984 = vmatprep.subr.mxu0 %v1384
    %1985 = vmatpush1.msra.mxu0 %v1383
    %1986 = vmatprep.subr.mxu0 %v1380
    %1987 = vmatpush1.msra.mxu0 %v1379
    %1988 = vmatprep.subr.mxu0 %v1376
    %1989 = vmatpush1.msra.mxu0 %v1375
    %1990 = vmatprep.subr.mxu0 %v1372
    %1991 = vmatpush1.msra.mxu0 %v1371
    %1992 = vmatprep.subr.mxu0 %v1368
    %1993 = vmatpush1.msra.mxu0 %v1367
    %1994 = vmatprep.subr.mxu0 %v1364
    %1995 = vmatpush1.msra.mxu0 %v1363
    %1996 = vmatprep.subr.mxu0 %v1360
    %1997 = vmatpush1.msra.mxu0 %v1359
    %1998 = vmatprep.subr.mxu0 %v1356
    %1999 = vmatpush1.msra.mxu0 %v1355
    %2000 = vmatprep.subr.mxu0 %v1352
    %2001 = vmatpush1.msra.mxu0 %v1351
    %2002 = vmatprep.subr.mxu0 %v1348
    %2003 = vmatpush1.msra.mxu0 %v1347
    %2004 = vmatprep.subr.mxu0 %v1344
    %2005 = vmatpush1.msra.mxu0 %v1343
    %2006 = vmatprep.subr.mxu0 %v1340
    %2007 = vmatpush1.msra.mxu0 %v1339
    %2008 = vmatprep.subr.mxu0 %v1336
    %2009 = vmatpush1.msra.mxu0 %v1335
    %2010 = vmatprep.subr.mxu0 0.0
    %2011 = vmatpush2.msra.mxu0 0.0
    %2012 = vmatprep.subr.mxu0 0.0
    %2013 = vmatpush2.msra.mxu0 0.0
    %2014 = vmatprep.subr.mxu0 0.0
    %2015 = vmatpush2.msra.mxu0 0.0
    %2016 = vmatprep.subr.mxu0 0.0
    %2017 = vmatpush2.msra.mxu0 0.0
    %2018 = vmatprep.subr.mxu0 0.0
    %2019 = vmatpush2.msra.mxu0 0.0
    %2020 = vmatprep.subr.mxu0 0.0
    %2021 = vmatpush2.msra.mxu0 0.0
    %2022 = vmatprep.subr.mxu0 0.0
    %2023 = vmatpush2.msra.mxu0 0.0
    %2024 = vmatprep.subr.mxu0 0.0
    %2025 = vmatpush2.msra.mxu0 0.0
    %2026 = vmatprep.subr.mxu0 0.0
    %2027 = vmatpush2.msra.mxu0 0.0
    %2028 = vmatprep.subr.mxu0 0.0
    %2029 = vmatpush2.msra.mxu0 0.0
    %2030 = vmatprep.subr.mxu0 0.0
    %2031 = vmatpush2.msra.mxu0 0.0
    %2032 = vmatprep.subr.mxu0 0.0
    %2033 = vmatpush2.msra.mxu0 0.0
    %2034 = vmatprep.subr.mxu0 0.0
    %2035 = vmatpush2.msra.mxu0 0.0
    %2036 = vmatprep.subr.mxu0 0.0
    %2037 = vmatpush2.msra.mxu0 0.0
    %2038 = vmatprep.subr.mxu0 0.0
    %2039 = vmatpush2.msra.mxu0 0.0
    %2040 = vmatprep.subr.mxu0 0.0
    %2041 = vmatpush2.msra.mxu0 0.0
    %2042 = vmatprep.mubr.f32.mxu0 0.0
    %2043 = vmatmul.mubr.f32.gmra.mxu0 %v1566
    %v2044 = vpop.f32.mrf.mxu0
    %v2045 = vadd.f32 0.0, %v2044
    %v2046 = vpop.f32.mrf.mxu0
    %v2047 = vadd.f32 0.0, %v2046
    %2048 = vdwg.mxu0
    %v2049 = vadd.f32 %v710, %v1974
    %v2050 = vadd.f32 %v712, %v1976
    %v2051 = vadd.f32 %v823, %v2045
    %v2052 = vadd.f32 %v825, %v2047
    %v2053 = vxor.u32 %v2049, 2147483648
    %v2054 = vmul.f32 %v2053, 1.442695
    %v2055 = vpow.pop %v2054
    %v2056 = vadd.f32 %v2055, 1.0
    %v2057 = vrcp.pop %v2056
    %v2058 = vmul.f32 1.0, %v2057
    %v2059 = vxor.u32 %v2050, 2147483648
    %v2060 = vmul.f32 %v2059, 1.442695
    %v2061 = vpow.pop %v2060
    %v2062 = vadd.f32 %v2061, 1.0
    %v2063 = vrcp.pop %v2062
    %v2064 = vmul.f32 1.0, %v2063
    %v2065 = vtanh.pop %v2051
    %v2066 = vxor.u32 %v2052, 2147483648
    %v2067 = vmul.f32 %v2066, 1.442695
    %v2068 = vpow.pop %v2067
    %v2069 = vadd.f32 %v2068, 1.0
    %v2070 = vrcp.pop %v2069
    %v2071 = vmul.f32 1.0, %v2070
    %v2072 = vmul.f32 %v2064, %v1564
    %v2073 = vmul.f32 %v2058, %v2065
    %v2074 = vadd.f32 %v2072, %v2073
    %v2075 = vtanh.pop %v2074
    %v2076 = vmul.f32 %v2071, %v2075
    %2077 = vmatprep.subr.mxu0 %v924
    %2078 = vmatpush1.msra.mxu0 %v923
    %2079 = vmatprep.subr.mxu0 %v920
    %2080 = vmatpush1.msra.mxu0 %v919
    %2081 = vmatprep.subr.mxu0 %v916
    %2082 = vmatpush1.msra.mxu0 %v915
    %2083 = vmatprep.subr.mxu0 %v912
    %2084 = vmatpush1.msra.mxu0 %v911
    %2085 = vmatprep.subr.mxu0 %v908
    %2086 = vmatpush1.msra.mxu0 %v907
    %2087 = vmatprep.subr.mxu0 %v904
    %2088 = vmatpush1.msra.mxu0 %v903
    %2089 = vmatprep.subr.mxu0 %v900
    %2090 = vmatpush1.msra.mxu0 %v899
    %2091 = vmatprep.subr.mxu0 %v896
    %2092 = vmatpush1.msra.mxu0 %v895
    %2093 = vmatprep.subr.mxu0 %v892
    %2094 = vmatpush1.msra.mxu0 %v891
    %2095 = vmatprep.subr.mxu0 %v888
    %2096 = vmatpush1.msra.mxu0 %v887
    %2097 = vmatprep.subr.mxu0 %v884
    %2098 = vmatpush1.msra.mxu0 %v883
    %2099 = vmatprep.subr.mxu0 %v880
    %2100 = vmatpush1.msra.mxu0 %v879
    %2101 = vmatprep.subr.mxu0 %v876
    %2102 = vmatpush1.msra.mxu0 %v875
    %2103 = vmatprep.subr.mxu0 %v872
    %2104 = vmatpush1.msra.mxu0 %v871
    %2105 = vmatprep.subr.mxu0 %v868
    %2106 = vmatpush1.msra.mxu0 %v867
    %2107 = vmatprep.subr.mxu0 %v864
    %2108 = vmatpush1.msra.mxu0 %v863
    %2109 = vmatprep.subr.mxu0 0.0
    %2110 = vmatpush2.msra.mxu0 0.0
    %2111 = vmatprep.subr.mxu0 0.0
    %2112 = vmatpush2.msra.mxu0 0.0
    %2113 = vmatprep.subr.mxu0 0.0
    %2114 = vmatpush2.msra.mxu0 0.0
    %2115 = vmatprep.subr.mxu0 0.0
    %2116 = vmatpush2.msra.mxu0 0.0
    %2117 = vmatprep.subr.mxu0 0.0
    %2118 = vmatpush2.msra.mxu0 0.0
    %2119 = vmatprep.subr.mxu0 0.0
    %2120 = vmatpush2.msra.mxu0 0.0
    %2121 = vmatprep.subr.mxu0 0.0
    %2122 = vmatpush2.msra.mxu0 0.0
    %2123 = vmatprep.subr.mxu0 0.0
    %2124 = vmatpush2.msra.mxu0 0.0
    %2125 = vmatprep.subr.mxu0 0.0
    %2126 = vmatpush2.msra.mxu0 0.0
    %2127 = vmatprep.subr.mxu0 0.0
    %2128 = vmatpush2.msra.mxu0 0.0
    %2129 = vmatprep.subr.mxu0 0.0
    %2130 = vmatpush2.msra.mxu0 0.0
    %2131 = vmatprep.subr.mxu0 0.0
    %2132 = vmatpush2.msra.mxu0 0.0
    %2133 = vmatprep.subr.mxu0 0.0
    %2134 = vmatpush2.msra.mxu0 0.0
    %2135 = vmatprep.subr.mxu0 0.0
    %2136 = vmatpush2.msra.mxu0 0.0
    %2137 = vmatprep.subr.mxu0 0.0
    %2138 = vmatpush2.msra.mxu0 0.0
    %2139 = vmatprep.subr.mxu0 0.0
    %2140 = vmatpush2.msra.mxu0 0.0
    %2141 = vmatprep.mubr.f32.mxu0 0.0
    %2142 = vmatmul.mubr.f32.gmra.mxu0 %v1736
    %v2143 = vpop.f32.mrf.mxu0
    %v2144 = vadd.f32 0.0, %v2143
    %v2145 = vpop.f32.mrf.mxu0
    %v2146 = vadd.f32 0.0, %v2145
    %2147 = vdwg.mxu0
    %2148 = vmatprep.subr.mxu0 %v926
    %2149 = vmatpush1.msra.mxu0 %v925
    %2150 = vmatprep.subr.mxu0 %v922
    %2151 = vmatpush1.msra.mxu0 %v921
    %2152 = vmatprep.subr.mxu0 %v918
    %2153 = vmatpush1.msra.mxu0 %v917
    %2154 = vmatprep.subr.mxu0 %v914
    %2155 = vmatpush1.msra.mxu0 %v913
    %2156 = vmatprep.subr.mxu0 %v910
    %2157 = vmatpush1.msra.mxu0 %v909
    %2158 = vmatprep.subr.mxu0 %v906
    %2159 = vmatpush1.msra.mxu0 %v905
    %2160 = vmatprep.subr.mxu0 %v902
    %2161 = vmatpush1.msra.mxu0 %v901
    %2162 = vmatprep.subr.mxu0 %v898
    %2163 = vmatpush1.msra.mxu0 %v897
    %2164 = vmatprep.subr.mxu0 %v894
    %2165 = vmatpush1.msra.mxu0 %v893
    %2166 = vmatprep.subr.mxu0 %v890
    %2167 = vmatpush1.msra.mxu0 %v889
    %2168 = vmatprep.subr.mxu0 %v886
    %2169 = vmatpush1.msra.mxu0 %v885
    %2170 = vmatprep.subr.mxu0 %v882
    %2171 = vmatpush1.msra.mxu0 %v881
    %2172 = vmatprep.subr.mxu0 %v878
    %2173 = vmatpush1.msra.mxu0 %v877
    %2174 = vmatprep.subr.mxu0 %v874
    %2175 = vmatpush1.msra.mxu0 %v873
    %2176 = vmatprep.subr.mxu0 %v870
    %2177 = vmatpush1.msra.mxu0 %v869
    %2178 = vmatprep.subr.mxu0 %v866
    %2179 = vmatpush1.msra.mxu0 %v865
    %2180 = vmatprep.subr.mxu0 0.0
    %2181 = vmatpush2.msra.mxu0 0.0
    %2182 = vmatprep.subr.mxu0 0.0
    %2183 = vmatpush2.msra.mxu0 0.0
    %2184 = vmatprep.subr.mxu0 0.0
    %2185 = vmatpush2.msra.mxu0 0.0
    %2186 = vmatprep.subr.mxu0 0.0
    %2187 = vmatpush2.msra.mxu0 0.0
    %2188 = vmatprep.subr.mxu0 0.0
    %2189 = vmatpush2.msra.mxu0 0.0
    %2190 = vmatprep.subr.mxu0 0.0
    %2191 = vmatpush2.msra.mxu0 0.0
    %2192 = vmatprep.subr.mxu0 0.0
    %2193 = vmatpush2.msra.mxu0 0.0
    %2194 = vmatprep.subr.mxu0 0.0
    %2195 = vmatpush2.msra.mxu0 0.0
    %2196 = vmatprep.subr.mxu0 0.0
    %2197 = vmatpush2.msra.mxu0 0.0
    %2198 = vmatprep.subr.mxu0 0.0
    %2199 = vmatpush2.msra.mxu0 0.0
    %2200 = vmatprep.subr.mxu0 0.0
    %2201 = vmatpush2.msra.mxu0 0.0
    %2202 = vmatprep.subr.mxu0 0.0
    %2203 = vmatpush2.msra.mxu0 0.0
    %2204 = vmatprep.subr.mxu0 0.0
    %2205 = vmatpush2.msra.mxu0 0.0
    %2206 = vmatprep.subr.mxu0 0.0
    %2207 = vmatpush2.msra.mxu0 0.0
    %2208 = vmatprep.subr.mxu0 0.0
    %2209 = vmatpush2.msra.mxu0 0.0
    %2210 = vmatprep.subr.mxu0 0.0
    %2211 = vmatpush2.msra.mxu0 0.0
    %2212 = vmatprep.mubr.f32.mxu0 0.0
    %2213 = vmatmul.mubr.f32.gmra.mxu0 %v1736
    %v2214 = vpop.f32.mrf.mxu0
    %v2215 = vadd.f32 0.0, %v2214
    %v2216 = vpop.f32.mrf.mxu0
    %v2217 = vadd.f32 0.0, %v2216
    %2218 = vdwg.mxu0
    %v2219 = vadd.f32 %v264, %v2144
    %v2220 = vadd.f32 %v266, %v2146
    %v2221 = vadd.f32 %v377, %v2215
    %v2222 = vadd.f32 %v379, %v2217
    %v2223 = vxor.u32 %v2219, 2147483648
    %v2224 = vmul.f32 %v2223, 1.442695
    %v2225 = vpow.pop %v2224
    %v2226 = vadd.f32 %v2225, 1.0
    %v2227 = vrcp.pop %v2226
    %v2228 = vmul.f32 1.0, %v2227
    %v2229 = vxor.u32 %v2220, 2147483648
    %v2230 = vmul.f32 %v2229, 1.442695
    %v2231 = vpow.pop %v2230
    %v2232 = vadd.f32 %v2231, 1.0
    %v2233 = vrcp.pop %v2232
    %v2234 = vmul.f32 1.0, %v2233
    %v2235 = vtanh.pop %v2221
    %v2236 = vxor.u32 %v2222, 2147483648
    %v2237 = vmul.f32 %v2236, 1.442695
    %v2238 = vpow.pop %v2237
    %v2239 = vadd.f32 %v2238, 1.0
    %v2240 = vrcp.pop %v2239
    %v2241 = vmul.f32 1.0, %v2240
    %v2242 = vmul.f32 %v2234, %v1734
    %v2243 = vmul.f32 %v2228, %v2235
    %v2244 = vadd.f32 %v2242, %v2243
    %v2245 = vtanh.pop %v2244
    %v2246 = vmul.f32 %v2241, %v2245
    %2247 = vmatprep.subr.mxu0 %v1159
    %2248 = vmatpush1.msra.mxu0 %v1158
    %2249 = vmatprep.subr.mxu0 %v1155
    %2250 = vmatpush1.msra.mxu0 %v1154
    %2251 = vmatprep.subr.mxu0 %v1151
    %2252 = vmatpush1.msra.mxu0 %v1150
    %2253 = vmatprep.subr.mxu0 %v1147
    %2254 = vmatpush1.msra.mxu0 %v1146
    %2255 = vmatprep.subr.mxu0 %v1143
    %2256 = vmatpush1.msra.mxu0 %v1142
    %2257 = vmatprep.subr.mxu0 %v1139
    %2258 = vmatpush1.msra.mxu0 %v1138
    %2259 = vmatprep.subr.mxu0 %v1135
    %2260 = vmatpush1.msra.mxu0 %v1134
    %2261 = vmatprep.subr.mxu0 %v1131
    %2262 = vmatpush1.msra.mxu0 %v1130
    %2263 = vmatprep.subr.mxu0 %v1127
    %2264 = vmatpush1.msra.mxu0 %v1126
    %2265 = vmatprep.subr.mxu0 %v1123
    %2266 = vmatpush1.msra.mxu0 %v1122
    %2267 = vmatprep.subr.mxu0 %v1119
    %2268 = vmatpush1.msra.mxu0 %v1118
    %2269 = vmatprep.subr.mxu0 %v1115
    %2270 = vmatpush1.msra.mxu0 %v1114
    %2271 = vmatprep.subr.mxu0 %v1111
    %2272 = vmatpush1.msra.mxu0 %v1110
    %2273 = vmatprep.subr.mxu0 %v1107
    %2274 = vmatpush1.msra.mxu0 %v1106
    %2275 = vmatprep.subr.mxu0 %v1103
    %2276 = vmatpush1.msra.mxu0 %v1102
    %2277 = vmatprep.subr.mxu0 %v1099
    %2278 = vmatpush1.msra.mxu0 %v1098
    %2279 = vmatprep.subr.mxu0 0.0
    %2280 = vmatpush2.msra.mxu0 0.0
    %2281 = vmatprep.subr.mxu0 0.0
    %2282 = vmatpush2.msra.mxu0 0.0
    %2283 = vmatprep.subr.mxu0 0.0
    %2284 = vmatpush2.msra.mxu0 0.0
    %2285 = vmatprep.subr.mxu0 0.0
    %2286 = vmatpush2.msra.mxu0 0.0
    %2287 = vmatprep.subr.mxu0 0.0
    %2288 = vmatpush2.msra.mxu0 0.0
    %2289 = vmatprep.subr.mxu0 0.0
    %2290 = vmatpush2.msra.mxu0 0.0
    %2291 = vmatprep.subr.mxu0 0.0
    %2292 = vmatpush2.msra.mxu0 0.0
    %2293 = vmatprep.subr.mxu0 0.0
    %2294 = vmatpush2.msra.mxu0 0.0
    %2295 = vmatprep.subr.mxu0 0.0
    %2296 = vmatpush2.msra.mxu0 0.0
    %2297 = vmatprep.subr.mxu0 0.0
    %2298 = vmatpush2.msra.mxu0 0.0
    %2299 = vmatprep.subr.mxu0 0.0
    %2300 = vmatpush2.msra.mxu0 0.0
    %2301 = vmatprep.subr.mxu0 0.0
    %2302 = vmatpush2.msra.mxu0 0.0
    %2303 = vmatprep.subr.mxu0 0.0
    %2304 = vmatpush2.msra.mxu0 0.0
    %2305 = vmatprep.subr.mxu0 0.0
    %2306 = vmatpush2.msra.mxu0 0.0
    %2307 = vmatprep.subr.mxu0 0.0
    %2308 = vmatpush2.msra.mxu0 0.0
    %2309 = vmatprep.subr.mxu0 0.0
    %2310 = vmatpush2.msra.mxu0 0.0
    %2311 = vmatprep.mubr.f32.mxu0 0.0
    %2312 = vmatmul.mubr.f32.gmra.mxu0 %v1906
    %v2313 = vpop.f32.mrf.mxu0
    %v2314 = vadd.f32 0.0, %v2313
    %v2315 = vpop.f32.mrf.mxu0
    %v2316 = vadd.f32 0.0, %v2315
    %2317 = vdwg.mxu0
    %2318 = vmatprep.subr.mxu0 %v1161
    %2319 = vmatpush1.msra.mxu0 %v1160
    %2320 = vmatprep.subr.mxu0 %v1157
    %2321 = vmatpush1.msra.mxu0 %v1156
    %2322 = vmatprep.subr.mxu0 %v1153
    %2323 = vmatpush1.msra.mxu0 %v1152
    %2324 = vmatprep.subr.mxu0 %v1149
    %2325 = vmatpush1.msra.mxu0 %v1148
    %2326 = vmatprep.subr.mxu0 %v1145
    %2327 = vmatpush1.msra.mxu0 %v1144
    %2328 = vmatprep.subr.mxu0 %v1141
    %2329 = vmatpush1.msra.mxu0 %v1140
    %2330 = vmatprep.subr.mxu0 %v1137
    %2331 = vmatpush1.msra.mxu0 %v1136
    %2332 = vmatprep.subr.mxu0 %v1133
    %2333 = vmatpush1.msra.mxu0 %v1132
    %2334 = vmatprep.subr.mxu0 %v1129
    %2335 = vmatpush1.msra.mxu0 %v1128
    %2336 = vmatprep.subr.mxu0 %v1125
    %2337 = vmatpush1.msra.mxu0 %v1124
    %2338 = vmatprep.subr.mxu0 %v1121
    %2339 = vmatpush1.msra.mxu0 %v1120
    %2340 = vmatprep.subr.mxu0 %v1117
    %2341 = vmatpush1.msra.mxu0 %v1116
    %2342 = vmatprep.subr.mxu0 %v1113
    %2343 = vmatpush1.msra.mxu0 %v1112
    %2344 = vmatprep.subr.mxu0 %v1109
    %2345 = vmatpush1.msra.mxu0 %v1108
    %2346 = vmatprep.subr.mxu0 %v1105
    %2347 = vmatpush1.msra.mxu0 %v1104
    %2348 = vmatprep.subr.mxu0 %v1101
    %2349 = vmatpush1.msra.mxu0 %v1100
    %2350 = vmatprep.subr.mxu0 0.0
    %2351 = vmatpush2.msra.mxu0 0.0
    %2352 = vmatprep.subr.mxu0 0.0
    %2353 = vmatpush2.msra.mxu0 0.0
    %2354 = vmatprep.subr.mxu0 0.0
    %2355 = vmatpush2.msra.mxu0 0.0
    %2356 = vmatprep.subr.mxu0 0.0
    %2357 = vmatpush2.msra.mxu0 0.0
    %2358 = vmatprep.subr.mxu0 0.0
    %2359 = vmatpush2.msra.mxu0 0.0
    %2360 = vmatprep.subr.mxu0 0.0
    %2361 = vmatpush2.msra.mxu0 0.0
    %2362 = vmatprep.subr.mxu0 0.0
    %2363 = vmatpush2.msra.mxu0 0.0
    %2364 = vmatprep.subr.mxu0 0.0
    %2365 = vmatpush2.msra.mxu0 0.0
    %2366 = vmatprep.subr.mxu0 0.0
    %2367 = vmatpush2.msra.mxu0 0.0
    %2368 = vmatprep.subr.mxu0 0.0
    %2369 = vmatpush2.msra.mxu0 0.0
    %2370 = vmatprep.subr.mxu0 0.0
    %2371 = vmatpush2.msra.mxu0 0.0
    %2372 = vmatprep.subr.mxu0 0.0
    %2373 = vmatpush2.msra.mxu0 0.0
    %2374 = vmatprep.subr.mxu0 0.0
    %2375 = vmatpush2.msra.mxu0 0.0
    %2376 = vmatprep.subr.mxu0 0.0
    %2377 = vmatpush2.msra.mxu0 0.0
    %2378 = vmatprep.subr.mxu0 0.0
    %2379 = vmatpush2.msra.mxu0 0.0
    %2380 = vmatprep.subr.mxu0 0.0
    %2381 = vmatpush2.msra.mxu0 0.0
    %2382 = vmatprep.mubr.f32.mxu0 0.0
    %2383 = vmatmul.mubr.f32.gmra.mxu0 %v1906
    %v2384 = vpop.f32.mrf.mxu0
    %v2385 = vadd.f32 0.0, %v2384
    %v2386 = vpop.f32.mrf.mxu0
    %v2387 = vadd.f32 0.0, %v2386
    %2388 = vdwg.mxu0
    %v2389 = vadd.f32 %v490, %v2314
    %v2390 = vadd.f32 %v492, %v2316
    %v2391 = vadd.f32 %v603, %v2385
    %v2392 = vadd.f32 %v605, %v2387
    %v2393 = vxor.u32 %v2389, 2147483648
    %v2394 = vmul.f32 %v2393, 1.442695
    %v2395 = vpow.pop %v2394
    %v2396 = vadd.f32 %v2395, 1.0
    %v2397 = vrcp.pop %v2396
    %v2398 = vmul.f32 1.0, %v2397
    %v2399 = vxor.u32 %v2390, 2147483648
    %v2400 = vmul.f32 %v2399, 1.442695
    %v2401 = vpow.pop %v2400
    %v2402 = vadd.f32 %v2401, 1.0
    %v2403 = vrcp.pop %v2402
    %v2404 = vmul.f32 1.0, %v2403
    %v2405 = vtanh.pop %v2391
    %v2406 = vxor.u32 %v2392, 2147483648
    %v2407 = vmul.f32 %v2406, 1.442695
    %v2408 = vpow.pop %v2407
    %v2409 = vadd.f32 %v2408, 1.0
    %v2410 = vrcp.pop %v2409
    %v2411 = vmul.f32 1.0, %v2410
    %v2412 = vmul.f32 %v2404, %v1904
    %v2413 = vmul.f32 %v2398, %v2405
    %v2414 = vadd.f32 %v2412, %v2413
    %v2415 = vtanh.pop %v2414
    %v2416 = vmul.f32 %v2411, %v2415
    %2417 = vmatprep.subr.mxu0 %v1394
    %2418 = vmatpush1.msra.mxu0 %v1393
    %2419 = vmatprep.subr.mxu0 %v1390
    %2420 = vmatpush1.msra.mxu0 %v1389
    %2421 = vmatprep.subr.mxu0 %v1386
    %2422 = vmatpush1.msra.mxu0 %v1385
    %2423 = vmatprep.subr.mxu0 %v1382
    %2424 = vmatpush1.msra.mxu0 %v1381
    %2425 = vmatprep.subr.mxu0 %v1378
    %2426 = vmatpush1.msra.mxu0 %v1377
    %2427 = vmatprep.subr.mxu0 %v1374
    %2428 = vmatpush1.msra.mxu0 %v1373
    %2429 = vmatprep.subr.mxu0 %v1370
    %2430 = vmatpush1.msra.mxu0 %v1369
    %2431 = vmatprep.subr.mxu0 %v1366
    %2432 = vmatpush1.msra.mxu0 %v1365
    %2433 = vmatprep.subr.mxu0 %v1362
    %2434 = vmatpush1.msra.mxu0 %v1361
    %2435 = vmatprep.subr.mxu0 %v1358
    %2436 = vmatpush1.msra.mxu0 %v1357
    %2437 = vmatprep.subr.mxu0 %v1354
    %2438 = vmatpush1.msra.mxu0 %v1353
    %2439 = vmatprep.subr.mxu0 %v1350
    %2440 = vmatpush1.msra.mxu0 %v1349
    %2441 = vmatprep.subr.mxu0 %v1346
    %2442 = vmatpush1.msra.mxu0 %v1345
    %2443 = vmatprep.subr.mxu0 %v1342
    %2444 = vmatpush1.msra.mxu0 %v1341
    %2445 = vmatprep.subr.mxu0 %v1338
    %2446 = vmatpush1.msra.mxu0 %v1337
    %2447 = vmatprep.subr.mxu0 %v1334
    %2448 = vmatpush1.msra.mxu0 %v1333
    %2449 = vmatprep.subr.mxu0 0.0
    %2450 = vmatpush2.msra.mxu0 0.0
    %2451 = vmatprep.subr.mxu0 0.0
    %2452 = vmatpush2.msra.mxu0 0.0
    %2453 = vmatprep.subr.mxu0 0.0
    %2454 = vmatpush2.msra.mxu0 0.0
    %2455 = vmatprep.subr.mxu0 0.0
    %2456 = vmatpush2.msra.mxu0 0.0
    %2457 = vmatprep.subr.mxu0 0.0
    %2458 = vmatpush2.msra.mxu0 0.0
    %2459 = vmatprep.subr.mxu0 0.0
    %2460 = vmatpush2.msra.mxu0 0.0
    %2461 = vmatprep.subr.mxu0 0.0
    %2462 = vmatpush2.msra.mxu0 0.0
    %2463 = vmatprep.subr.mxu0 0.0
    %2464 = vmatpush2.msra.mxu0 0.0
    %2465 = vmatprep.subr.mxu0 0.0
    %2466 = vmatpush2.msra.mxu0 0.0
    %2467 = vmatprep.subr.mxu0 0.0
    %2468 = vmatpush2.msra.mxu0 0.0
    %2469 = vmatprep.subr.mxu0 0.0
    %2470 = vmatpush2.msra.mxu0 0.0
    %2471 = vmatprep.subr.mxu0 0.0
    %2472 = vmatpush2.msra.mxu0 0.0
    %2473 = vmatprep.subr.mxu0 0.0
    %2474 = vmatpush2.msra.mxu0 0.0
    %2475 = vmatprep.subr.mxu0 0.0
    %2476 = vmatpush2.msra.mxu0 0.0
    %2477 = vmatprep.subr.mxu0 0.0
    %2478 = vmatpush2.msra.mxu0 0.0
    %2479 = vmatprep.subr.mxu0 0.0
    %2480 = vmatpush2.msra.mxu0 0.0
    %2481 = vmatprep.mubr.f32.mxu0 0.0
    %2482 = vmatmul.mubr.f32.gmra.mxu0 %v2076
    %v2483 = vpop.f32.mrf.mxu0
    %v2484 = vadd.f32 0.0, %v2483
    %v2485 = vpop.f32.mrf.mxu0
    %v2486 = vadd.f32 0.0, %v2485
    %2487 = vdwg.mxu0
    %2488 = vmatprep.subr.mxu0 %v1396
    %2489 = vmatpush1.msra.mxu0 %v1395
    %2490 = vmatprep.subr.mxu0 %v1392
    %2491 = vmatpush1.msra.mxu0 %v1391
    %2492 = vmatprep.subr.mxu0 %v1388
    %2493 = vmatpush1.msra.mxu0 %v1387
    %2494 = vmatprep.subr.mxu0 %v1384
    %2495 = vmatpush1.msra.mxu0 %v1383
    %2496 = vmatprep.subr.mxu0 %v1380
    %2497 = vmatpush1.msra.mxu0 %v1379
    %2498 = vmatprep.subr.mxu0 %v1376
    %2499 = vmatpush1.msra.mxu0 %v1375
    %2500 = vmatprep.subr.mxu0 %v1372
    %2501 = vmatpush1.msra.mxu0 %v1371
    %2502 = vmatprep.subr.mxu0 %v1368
    %2503 = vmatpush1.msra.mxu0 %v1367
    %2504 = vmatprep.subr.mxu0 %v1364
    %2505 = vmatpush1.msra.mxu0 %v1363
    %2506 = vmatprep.subr.mxu0 %v1360
    %2507 = vmatpush1.msra.mxu0 %v1359
    %2508 = vmatprep.subr.mxu0 %v1356
    %2509 = vmatpush1.msra.mxu0 %v1355
    %2510 = vmatprep.subr.mxu0 %v1352
    %2511 = vmatpush1.msra.mxu0 %v1351
    %2512 = vmatprep.subr.mxu0 %v1348
    %2513 = vmatpush1.msra.mxu0 %v1347
    %2514 = vmatprep.subr.mxu0 %v1344
    %2515 = vmatpush1.msra.mxu0 %v1343
    %2516 = vmatprep.subr.mxu0 %v1340
    %2517 = vmatpush1.msra.mxu0 %v1339
    %2518 = vmatprep.subr.mxu0 %v1336
    %2519 = vmatpush1.msra.mxu0 %v1335
    %2520 = vmatprep.subr.mxu0 0.0
    %2521 = vmatpush2.msra.mxu0 0.0
    %2522 = vmatprep.subr.mxu0 0.0
    %2523 = vmatpush2.msra.mxu0 0.0
    %2524 = vmatprep.subr.mxu0 0.0
    %2525 = vmatpush2.msra.mxu0 0.0
    %2526 = vmatprep.subr.mxu0 0.0
    %2527 = vmatpush2.msra.mxu0 0.0
    %2528 = vmatprep.subr.mxu0 0.0
    %2529 = vmatpush2.msra.mxu0 0.0
    %2530 = vmatprep.subr.mxu0 0.0
    %2531 = vmatpush2.msra.mxu0 0.0
    %2532 = vmatprep.subr.mxu0 0.0
    %2533 = vmatpush2.msra.mxu0 0.0
    %2534 = vmatprep.subr.mxu0 0.0
    %2535 = vmatpush2.msra.mxu0 0.0
    %2536 = vmatprep.subr.mxu0 0.0
    %2537 = vmatpush2.msra.mxu0 0.0
    %2538 = vmatprep.subr.mxu0 0.0
    %2539 = vmatpush2.msra.mxu0 0.0
    %2540 = vmatprep.subr.mxu0 0.0
    %2541 = vmatpush2.msra.mxu0 0.0
    %2542 = vmatprep.subr.mxu0 0.0
    %2543 = vmatpush2.msra.mxu0 0.0
    %2544 = vmatprep.subr.mxu0 0.0
    %2545 = vmatpush2.msra.mxu0 0.0
    %2546 = vmatprep.subr.mxu0 0.0
    %2547 = vmatpush2.msra.mxu0 0.0
    %2548 = vmatprep.subr.mxu0 0.0
    %2549 = vmatpush2.msra.mxu0 0.0
    %2550 = vmatprep.subr.mxu0 0.0
    %2551 = vmatpush2.msra.mxu0 0.0
    %2552 = vmatprep.mubr.f32.mxu0 0.0
    %2553 = vmatmul.mubr.f32.gmra.mxu0 %v2076
    %v2554 = vpop.f32.mrf.mxu0
    %v2555 = vadd.f32 0.0, %v2554
    %v2556 = vpop.f32.mrf.mxu0
    %v2557 = vadd.f32 0.0, %v2556
    %2558 = vdwg.mxu0
    %v2559 = vadd.f32 %v716, %v2484
    %v2560 = vadd.f32 %v718, %v2486
    %v2561 = vadd.f32 %v829, %v2555
    %v2562 = vadd.f32 %v831, %v2557
    %v2563 = vxor.u32 %v2559, 2147483648
    %v2564 = vmul.f32 %v2563, 1.442695
    %v2565 = vpow.pop %v2564
    %v2566 = vadd.f32 %v2565, 1.0
    %v2567 = vrcp.pop %v2566
    %v2568 = vmul.f32 1.0, %v2567
    %v2569 = vxor.u32 %v2560, 2147483648
    %v2570 = vmul.f32 %v2569, 1.442695
    %v2571 = vpow.pop %v2570
    %v2572 = vadd.f32 %v2571, 1.0
    %v2573 = vrcp.pop %v2572
    %v2574 = vmul.f32 1.0, %v2573
    %v2575 = vtanh.pop %v2561
    %v2576 = vxor.u32 %v2562, 2147483648
    %v2577 = vmul.f32 %v2576, 1.442695
    %v2578 = vpow.pop %v2577
    %v2579 = vadd.f32 %v2578, 1.0
    %v2580 = vrcp.pop %v2579
    %v2581 = vmul.f32 1.0, %v2580
    %v2582 = vmul.f32 %v2574, %v2074
    %v2583 = vmul.f32 %v2568, %v2575
    %v2584 = vadd.f32 %v2582, %v2583
    %v2585 = vtanh.pop %v2584
    %v2586 = vmul.f32 %v2581, %v2585
    %2587 = vmatprep.subr.mxu0 %v924
    %2588 = vmatpush1.msra.mxu0 %v923
    %2589 = vmatprep.subr.mxu0 %v920
    %2590 = vmatpush1.msra.mxu0 %v919
    %2591 = vmatprep.subr.mxu0 %v916
    %2592 = vmatpush1.msra.mxu0 %v915
    %2593 = vmatprep.subr.mxu0 %v912
    %2594 = vmatpush1.msra.mxu0 %v911
    %2595 = vmatprep.subr.mxu0 %v908
    %2596 = vmatpush1.msra.mxu0 %v907
    %2597 = vmatprep.subr.mxu0 %v904
    %2598 = vmatpush1.msra.mxu0 %v903
    %2599 = vmatprep.subr.mxu0 %v900
    %2600 = vmatpush1.msra.mxu0 %v899
    %2601 = vmatprep.subr.mxu0 %v896
    %2602 = vmatpush1.msra.mxu0 %v895
    %2603 = vmatprep.subr.mxu0 %v892
    %2604 = vmatpush1.msra.mxu0 %v891
    %2605 = vmatprep.subr.mxu0 %v888
    %2606 = vmatpush1.msra.mxu0 %v887
    %2607 = vmatprep.subr.mxu0 %v884
    %2608 = vmatpush1.msra.mxu0 %v883
    %2609 = vmatprep.subr.mxu0 %v880
    %2610 = vmatpush1.msra.mxu0 %v879
    %2611 = vmatprep.subr.mxu0 %v876
    %2612 = vmatpush1.msra.mxu0 %v875
    %2613 = vmatprep.subr.mxu0 %v872
    %2614 = vmatpush1.msra.mxu0 %v871
    %2615 = vmatprep.subr.mxu0 %v868
    %2616 = vmatpush1.msra.mxu0 %v867
    %2617 = vmatprep.subr.mxu0 %v864
    %2618 = vmatpush1.msra.mxu0 %v863
    %2619 = vmatprep.subr.mxu0 0.0
    %2620 = vmatpush2.msra.mxu0 0.0
    %2621 = vmatprep.subr.mxu0 0.0
    %2622 = vmatpush2.msra.mxu0 0.0
    %2623 = vmatprep.subr.mxu0 0.0
    %2624 = vmatpush2.msra.mxu0 0.0
    %2625 = vmatprep.subr.mxu0 0.0
    %2626 = vmatpush2.msra.mxu0 0.0
    %2627 = vmatprep.subr.mxu0 0.0
    %2628 = vmatpush2.msra.mxu0 0.0
    %2629 = vmatprep.subr.mxu0 0.0
    %2630 = vmatpush2.msra.mxu0 0.0
    %2631 = vmatprep.subr.mxu0 0.0
    %2632 = vmatpush2.msra.mxu0 0.0
    %2633 = vmatprep.subr.mxu0 0.0
    %2634 = vmatpush2.msra.mxu0 0.0
    %2635 = vmatprep.subr.mxu0 0.0
    %2636 = vmatpush2.msra.mxu0 0.0
    %2637 = vmatprep.subr.mxu0 0.0
    %2638 = vmatpush2.msra.mxu0 0.0
    %2639 = vmatprep.subr.mxu0 0.0
    %2640 = vmatpush2.msra.mxu0 0.0
    %2641 = vmatprep.subr.mxu0 0.0
    %2642 = vmatpush2.msra.mxu0 0.0
    %2643 = vmatprep.subr.mxu0 0.0
    %2644 = vmatpush2.msra.mxu0 0.0
    %2645 = vmatprep.subr.mxu0 0.0
    %2646 = vmatpush2.msra.mxu0 0.0
    %2647 = vmatprep.subr.mxu0 0.0
    %2648 = vmatpush2.msra.mxu0 0.0
    %2649 = vmatprep.subr.mxu0 0.0
    %2650 = vmatpush2.msra.mxu0 0.0
    %2651 = vmatprep.mubr.f32.mxu0 0.0
    %2652 = vmatmul.mubr.f32.gmra.mxu0 %v2246
    %v2653 = vpop.f32.mrf.mxu0
    %v2654 = vadd.f32 0.0, %v2653
    %v2655 = vpop.f32.mrf.mxu0
    %v2656 = vadd.f32 0.0, %v2655
    %2657 = vdwg.mxu0
    %2658 = vmatprep.subr.mxu0 %v926
    %2659 = vmatpush1.msra.mxu0 %v925
    %2660 = vmatprep.subr.mxu0 %v922
    %2661 = vmatpush1.msra.mxu0 %v921
    %2662 = vmatprep.subr.mxu0 %v918
    %2663 = vmatpush1.msra.mxu0 %v917
    %2664 = vmatprep.subr.mxu0 %v914
    %2665 = vmatpush1.msra.mxu0 %v913
    %2666 = vmatprep.subr.mxu0 %v910
    %2667 = vmatpush1.msra.mxu0 %v909
    %2668 = vmatprep.subr.mxu0 %v906
    %2669 = vmatpush1.msra.mxu0 %v905
    %2670 = vmatprep.subr.mxu0 %v902
    %2671 = vmatpush1.msra.mxu0 %v901
    %2672 = vmatprep.subr.mxu0 %v898
    %2673 = vmatpush1.msra.mxu0 %v897
    %2674 = vmatprep.subr.mxu0 %v894
    %2675 = vmatpush1.msra.mxu0 %v893
    %2676 = vmatprep.subr.mxu0 %v890
    %2677 = vmatpush1.msra.mxu0 %v889
    %2678 = vmatprep.subr.mxu0 %v886
    %2679 = vmatpush1.msra.mxu0 %v885
    %2680 = vmatprep.subr.mxu0 %v882
    %2681 = vmatpush1.msra.mxu0 %v881
    %2682 = vmatprep.subr.mxu0 %v878
    %2683 = vmatpush1.msra.mxu0 %v877
    %2684 = vmatprep.subr.mxu0 %v874
    %2685 = vmatpush1.msra.mxu0 %v873
    %2686 = vmatprep.subr.mxu0 %v870
    %2687 = vmatpush1.msra.mxu0 %v869
    %2688 = vmatprep.subr.mxu0 %v866
    %2689 = vmatpush1.msra.mxu0 %v865
    %2690 = vmatprep.subr.mxu0 0.0
    %2691 = vmatpush2.msra.mxu0 0.0
    %2692 = vmatprep.subr.mxu0 0.0
    %2693 = vmatpush2.msra.mxu0 0.0
    %2694 = vmatprep.subr.mxu0 0.0
    %2695 = vmatpush2.msra.mxu0 0.0
    %2696 = vmatprep.subr.mxu0 0.0
    %2697 = vmatpush2.msra.mxu0 0.0
    %2698 = vmatprep.subr.mxu0 0.0
    %2699 = vmatpush2.msra.mxu0 0.0
    %2700 = vmatprep.subr.mxu0 0.0
    %2701 = vmatpush2.msra.mxu0 0.0
    %2702 = vmatprep.subr.mxu0 0.0
    %2703 = vmatpush2.msra.mxu0 0.0
    %2704 = vmatprep.subr.mxu0 0.0
    %2705 = vmatpush2.msra.mxu0 0.0
    %2706 = vmatprep.subr.mxu0 0.0
    %2707 = vmatpush2.msra.mxu0 0.0
    %2708 = vmatprep.subr.mxu0 0.0
    %2709 = vmatpush2.msra.mxu0 0.0
    %2710 = vmatprep.subr.mxu0 0.0
    %2711 = vmatpush2.msra.mxu0 0.0
    %2712 = vmatprep.subr.mxu0 0.0
    %2713 = vmatpush2.msra.mxu0 0.0
    %2714 = vmatprep.subr.mxu0 0.0
    %2715 = vmatpush2.msra.mxu0 0.0
    %2716 = vmatprep.subr.mxu0 0.0
    %2717 = vmatpush2.msra.mxu0 0.0
    %2718 = vmatprep.subr.mxu0 0.0
    %2719 = vmatpush2.msra.mxu0 0.0
    %2720 = vmatprep.subr.mxu0 0.0
    %2721 = vmatpush2.msra.mxu0 0.0
    %2722 = vmatprep.mubr.f32.mxu0 0.0
    %2723 = vmatmul.mubr.f32.gmra.mxu0 %v2246
    %v2724 = vpop.f32.mrf.mxu0
    %v2725 = vadd.f32 0.0, %v2724
    %v2726 = vpop.f32.mrf.mxu0
    %v2727 = vadd.f32 0.0, %v2726
    %2728 = vdwg.mxu0
    %v2729 = vadd.f32 %v270, %v2654
    %v2730 = vadd.f32 %v272, %v2656
    %v2731 = vadd.f32 %v383, %v2725
    %v2732 = vadd.f32 %v385, %v2727
    %v2733 = vxor.u32 %v2729, 2147483648
    %v2734 = vmul.f32 %v2733, 1.442695
    %v2735 = vpow.pop %v2734
    %v2736 = vadd.f32 %v2735, 1.0
    %v2737 = vrcp.pop %v2736
    %v2738 = vmul.f32 1.0, %v2737
    %v2739 = vxor.u32 %v2730, 2147483648
    %v2740 = vmul.f32 %v2739, 1.442695
    %v2741 = vpow.pop %v2740
    %v2742 = vadd.f32 %v2741, 1.0
    %v2743 = vrcp.pop %v2742
    %v2744 = vmul.f32 1.0, %v2743
    %v2745 = vtanh.pop %v2731
    %v2746 = vxor.u32 %v2732, 2147483648
    %v2747 = vmul.f32 %v2746, 1.442695
    %v2748 = vpow.pop %v2747
    %v2749 = vadd.f32 %v2748, 1.0
    %v2750 = vrcp.pop %v2749
    %v2751 = vmul.f32 1.0, %v2750
    %v2752 = vmul.f32 %v2744, %v2244
    %v2753 = vmul.f32 %v2738, %v2745
    %v2754 = vadd.f32 %v2752, %v2753
    %v2755 = vtanh.pop %v2754
    %v2756 = vmul.f32 %v2751, %v2755
    %2757 = vmatprep.subr.mxu0 %v1159
    %2758 = vmatpush1.msra.mxu0 %v1158
    %2759 = vmatprep.subr.mxu0 %v1155
    %2760 = vmatpush1.msra.mxu0 %v1154
    %2761 = vmatprep.subr.mxu0 %v1151
    %2762 = vmatpush1.msra.mxu0 %v1150
    %2763 = vmatprep.subr.mxu0 %v1147
    %2764 = vmatpush1.msra.mxu0 %v1146
    %2765 = vmatprep.subr.mxu0 %v1143
    %2766 = vmatpush1.msra.mxu0 %v1142
    %2767 = vmatprep.subr.mxu0 %v1139
    %2768 = vmatpush1.msra.mxu0 %v1138
    %2769 = vmatprep.subr.mxu0 %v1135
    %2770 = vmatpush1.msra.mxu0 %v1134
    %2771 = vmatprep.subr.mxu0 %v1131
    %2772 = vmatpush1.msra.mxu0 %v1130
    %2773 = vmatprep.subr.mxu0 %v1127
    %2774 = vmatpush1.msra.mxu0 %v1126
    %2775 = vmatprep.subr.mxu0 %v1123
    %2776 = vmatpush1.msra.mxu0 %v1122
    %2777 = vmatprep.subr.mxu0 %v1119
    %2778 = vmatpush1.msra.mxu0 %v1118
    %2779 = vmatprep.subr.mxu0 %v1115
    %2780 = vmatpush1.msra.mxu0 %v1114
    %2781 = vmatprep.subr.mxu0 %v1111
    %2782 = vmatpush1.msra.mxu0 %v1110
    %2783 = vmatprep.subr.mxu0 %v1107
    %2784 = vmatpush1.msra.mxu0 %v1106
    %2785 = vmatprep.subr.mxu0 %v1103
    %2786 = vmatpush1.msra.mxu0 %v1102
    %2787 = vmatprep.subr.mxu0 %v1099
    %2788 = vmatpush1.msra.mxu0 %v1098
    %2789 = vmatprep.subr.mxu0 0.0
    %2790 = vmatpush2.msra.mxu0 0.0
    %2791 = vmatprep.subr.mxu0 0.0
    %2792 = vmatpush2.msra.mxu0 0.0
    %2793 = vmatprep.subr.mxu0 0.0
    %2794 = vmatpush2.msra.mxu0 0.0
    %2795 = vmatprep.subr.mxu0 0.0
    %2796 = vmatpush2.msra.mxu0 0.0
    %2797 = vmatprep.subr.mxu0 0.0
    %2798 = vmatpush2.msra.mxu0 0.0
    %2799 = vmatprep.subr.mxu0 0.0
    %2800 = vmatpush2.msra.mxu0 0.0
    %2801 = vmatprep.subr.mxu0 0.0
    %2802 = vmatpush2.msra.mxu0 0.0
    %2803 = vmatprep.subr.mxu0 0.0
    %2804 = vmatpush2.msra.mxu0 0.0
    %2805 = vmatprep.subr.mxu0 0.0
    %2806 = vmatpush2.msra.mxu0 0.0
    %2807 = vmatprep.subr.mxu0 0.0
    %2808 = vmatpush2.msra.mxu0 0.0
    %2809 = vmatprep.subr.mxu0 0.0
    %2810 = vmatpush2.msra.mxu0 0.0
    %2811 = vmatprep.subr.mxu0 0.0
    %2812 = vmatpush2.msra.mxu0 0.0
    %2813 = vmatprep.subr.mxu0 0.0
    %2814 = vmatpush2.msra.mxu0 0.0
    %2815 = vmatprep.subr.mxu0 0.0
    %2816 = vmatpush2.msra.mxu0 0.0
    %2817 = vmatprep.subr.mxu0 0.0
    %2818 = vmatpush2.msra.mxu0 0.0
    %2819 = vmatprep.subr.mxu0 0.0
    %2820 = vmatpush2.msra.mxu0 0.0
    %2821 = vmatprep.mubr.f32.mxu0 0.0
    %2822 = vmatmul.mubr.f32.gmra.mxu0 %v2416
    %v2823 = vpop.f32.mrf.mxu0
    %v2824 = vadd.f32 0.0, %v2823
    %v2825 = vpop.f32.mrf.mxu0
    %v2826 = vadd.f32 0.0, %v2825
    %2827 = vdwg.mxu0
    %2828 = vmatprep.subr.mxu0 %v1161
    %2829 = vmatpush1.msra.mxu0 %v1160
    %2830 = vmatprep.subr.mxu0 %v1157
    %2831 = vmatpush1.msra.mxu0 %v1156
    %2832 = vmatprep.subr.mxu0 %v1153
    %2833 = vmatpush1.msra.mxu0 %v1152
    %2834 = vmatprep.subr.mxu0 %v1149
    %2835 = vmatpush1.msra.mxu0 %v1148
    %2836 = vmatprep.subr.mxu0 %v1145
    %2837 = vmatpush1.msra.mxu0 %v1144
    %2838 = vmatprep.subr.mxu0 %v1141
    %2839 = vmatpush1.msra.mxu0 %v1140
    %2840 = vmatprep.subr.mxu0 %v1137
    %2841 = vmatpush1.msra.mxu0 %v1136
    %2842 = vmatprep.subr.mxu0 %v1133
    %2843 = vmatpush1.msra.mxu0 %v1132
    %2844 = vmatprep.subr.mxu0 %v1129
    %2845 = vmatpush1.msra.mxu0 %v1128
    %2846 = vmatprep.subr.mxu0 %v1125
    %2847 = vmatpush1.msra.mxu0 %v1124
    %2848 = vmatprep.subr.mxu0 %v1121
    %2849 = vmatpush1.msra.mxu0 %v1120
    %2850 = vmatprep.subr.mxu0 %v1117
    %2851 = vmatpush1.msra.mxu0 %v1116
    %2852 = vmatprep.subr.mxu0 %v1113
    %2853 = vmatpush1.msra.mxu0 %v1112
    %2854 = vmatprep.subr.mxu0 %v1109
    %2855 = vmatpush1.msra.mxu0 %v1108
    %2856 = vmatprep.subr.mxu0 %v1105
    %2857 = vmatpush1.msra.mxu0 %v1104
    %2858 = vmatprep.subr.mxu0 %v1101
    %2859 = vmatpush1.msra.mxu0 %v1100
    %2860 = vmatprep.subr.mxu0 0.0
    %2861 = vmatpush2.msra.mxu0 0.0
    %2862 = vmatprep.subr.mxu0 0.0
    %2863 = vmatpush2.msra.mxu0 0.0
    %2864 = vmatprep.subr.mxu0 0.0
    %2865 = vmatpush2.msra.mxu0 0.0
    %2866 = vmatprep.subr.mxu0 0.0
    %2867 = vmatpush2.msra.mxu0 0.0
    %2868 = vmatprep.subr.mxu0 0.0
    %2869 = vmatpush2.msra.mxu0 0.0
    %2870 = vmatprep.subr.mxu0 0.0
    %2871 = vmatpush2.msra.mxu0 0.0
    %2872 = vmatprep.subr.mxu0 0.0
    %2873 = vmatpush2.msra.mxu0 0.0
    %2874 = vmatprep.subr.mxu0 0.0
    %2875 = vmatpush2.msra.mxu0 0.0
    %2876 = vmatprep.subr.mxu0 0.0
    %2877 = vmatpush2.msra.mxu0 0.0
    %2878 = vmatprep.subr.mxu0 0.0
    %2879 = vmatpush2.msra.mxu0 0.0
    %2880 = vmatprep.subr.mxu0 0.0
    %2881 = vmatpush2.msra.mxu0 0.0
    %2882 = vmatprep.subr.mxu0 0.0
    %2883 = vmatpush2.msra.mxu0 0.0
    %2884 = vmatprep.subr.mxu0 0.0
    %2885 = vmatpush2.msra.mxu0 0.0
    %2886 = vmatprep.subr.mxu0 0.0
    %2887 = vmatpush2.msra.mxu0 0.0
    %2888 = vmatprep.subr.mxu0 0.0
    %2889 = vmatpush2.msra.mxu0 0.0
    %2890 = vmatprep.subr.mxu0 0.0
    %2891 = vmatpush2.msra.mxu0 0.0
    %2892 = vmatprep.mubr.f32.mxu0 0.0
    %2893 = vmatmul.mubr.f32.gmra.mxu0 %v2416
    %v2894 = vpop.f32.mrf.mxu0
    %v2895 = vadd.f32 0.0, %v2894
    %v2896 = vpop.f32.mrf.mxu0
    %v2897 = vadd.f32 0.0, %v2896
    %2898 = vdwg.mxu0
    %v2899 = vadd.f32 %v496, %v2824
    %v2900 = vadd.f32 %v498, %v2826
    %v2901 = vadd.f32 %v609, %v2895
    %v2902 = vadd.f32 %v611, %v2897
    %v2903 = vxor.u32 %v2899, 2147483648
    %v2904 = vmul.f32 %v2903, 1.442695
    %v2905 = vpow.pop %v2904
    %v2906 = vadd.f32 %v2905, 1.0
    %v2907 = vrcp.pop %v2906
    %v2908 = vmul.f32 1.0, %v2907
    %v2909 = vxor.u32 %v2900, 2147483648
    %v2910 = vmul.f32 %v2909, 1.442695
    %v2911 = vpow.pop %v2910
    %v2912 = vadd.f32 %v2911, 1.0
    %v2913 = vrcp.pop %v2912
    %v2914 = vmul.f32 1.0, %v2913
    %v2915 = vtanh.pop %v2901
    %v2916 = vxor.u32 %v2902, 2147483648
    %v2917 = vmul.f32 %v2916, 1.442695
    %v2918 = vpow.pop %v2917
    %v2919 = vadd.f32 %v2918, 1.0
    %v2920 = vrcp.pop %v2919
    %v2921 = vmul.f32 1.0, %v2920
    %v2922 = vmul.f32 %v2914, %v2414
    %v2923 = vmul.f32 %v2908, %v2915
    %v2924 = vadd.f32 %v2922, %v2923
    %v2925 = vtanh.pop %v2924
    %v2926 = vmul.f32 %v2921, %v2925
    %2927 = vmatprep.subr.mxu0 %v1394
    %2928 = vmatpush1.msra.mxu0 %v1393
    %2929 = vmatprep.subr.mxu0 %v1390
    %2930 = vmatpush1.msra.mxu0 %v1389
    %2931 = vmatprep.subr.mxu0 %v1386
    %2932 = vmatpush1.msra.mxu0 %v1385
    %2933 = vmatprep.subr.mxu0 %v1382
    %2934 = vmatpush1.msra.mxu0 %v1381
    %2935 = vmatprep.subr.mxu0 %v1378
    %2936 = vmatpush1.msra.mxu0 %v1377
    %2937 = vmatprep.subr.mxu0 %v1374
    %2938 = vmatpush1.msra.mxu0 %v1373
    %2939 = vmatprep.subr.mxu0 %v1370
    %2940 = vmatpush1.msra.mxu0 %v1369
    %2941 = vmatprep.subr.mxu0 %v1366
    %2942 = vmatpush1.msra.mxu0 %v1365
    %2943 = vmatprep.subr.mxu0 %v1362
    %2944 = vmatpush1.msra.mxu0 %v1361
    %2945 = vmatprep.subr.mxu0 %v1358
    %2946 = vmatpush1.msra.mxu0 %v1357
    %2947 = vmatprep.subr.mxu0 %v1354
    %2948 = vmatpush1.msra.mxu0 %v1353
    %2949 = vmatprep.subr.mxu0 %v1350
    %2950 = vmatpush1.msra.mxu0 %v1349
    %2951 = vmatprep.subr.mxu0 %v1346
    %2952 = vmatpush1.msra.mxu0 %v1345
    %2953 = vmatprep.subr.mxu0 %v1342
    %2954 = vmatpush1.msra.mxu0 %v1341
    %2955 = vmatprep.subr.mxu0 %v1338
    %2956 = vmatpush1.msra.mxu0 %v1337
    %2957 = vmatprep.subr.mxu0 %v1334
    %2958 = vmatpush1.msra.mxu0 %v1333
    %2959 = vmatprep.subr.mxu0 0.0
    %2960 = vmatpush2.msra.mxu0 0.0
    %2961 = vmatprep.subr.mxu0 0.0
    %2962 = vmatpush2.msra.mxu0 0.0
    %2963 = vmatprep.subr.mxu0 0.0
    %2964 = vmatpush2.msra.mxu0 0.0
    %2965 = vmatprep.subr.mxu0 0.0
    %2966 = vmatpush2.msra.mxu0 0.0
    %2967 = vmatprep.subr.mxu0 0.0
    %2968 = vmatpush2.msra.mxu0 0.0
    %2969 = vmatprep.subr.mxu0 0.0
    %2970 = vmatpush2.msra.mxu0 0.0
    %2971 = vmatprep.subr.mxu0 0.0
    %2972 = vmatpush2.msra.mxu0 0.0
    %2973 = vmatprep.subr.mxu0 0.0
    %2974 = vmatpush2.msra.mxu0 0.0
    %2975 = vmatprep.subr.mxu0 0.0
    %2976 = vmatpush2.msra.mxu0 0.0
    %2977 = vmatprep.subr.mxu0 0.0
    %2978 = vmatpush2.msra.mxu0 0.0
    %2979 = vmatprep.subr.mxu0 0.0
    %2980 = vmatpush2.msra.mxu0 0.0
    %2981 = vmatprep.subr.mxu0 0.0
    %2982 = vmatpush2.msra.mxu0 0.0
    %2983 = vmatprep.subr.mxu0 0.0
    %2984 = vmatpush2.msra.mxu0 0.0
    %2985 = vmatprep.subr.mxu0 0.0
    %2986 = vmatpush2.msra.mxu0 0.0
    %2987 = vmatprep.subr.mxu0 0.0
    %2988 = vmatpush2.msra.mxu0 0.0
    %2989 = vmatprep.subr.mxu0 0.0
    %2990 = vmatpush2.msra.mxu0 0.0
    %2991 = vmatprep.mubr.f32.mxu0 0.0
    %2992 = vmatmul.mubr.f32.gmra.mxu0 %v2586
    %v2993 = vpop.f32.mrf.mxu0
    %v2994 = vadd.f32 0.0, %v2993
    %v2995 = vpop.f32.mrf.mxu0
    %v2996 = vadd.f32 0.0, %v2995
    %2997 = vdwg.mxu0
    %2998 = vmatprep.subr.mxu0 %v1396
    %2999 = vmatpush1.msra.mxu0 %v1395
    %3000 = vmatprep.subr.mxu0 %v1392
    %3001 = vmatpush1.msra.mxu0 %v1391
    %3002 = vmatprep.subr.mxu0 %v1388
    %3003 = vmatpush1.msra.mxu0 %v1387
    %3004 = vmatprep.subr.mxu0 %v1384
    %3005 = vmatpush1.msra.mxu0 %v1383
    %3006 = vmatprep.subr.mxu0 %v1380
    %3007 = vmatpush1.msra.mxu0 %v1379
    %3008 = vmatprep.subr.mxu0 %v1376
    %3009 = vmatpush1.msra.mxu0 %v1375
    %3010 = vmatprep.subr.mxu0 %v1372
    %3011 = vmatpush1.msra.mxu0 %v1371
    %3012 = vmatprep.subr.mxu0 %v1368
    %3013 = vmatpush1.msra.mxu0 %v1367
    %3014 = vmatprep.subr.mxu0 %v1364
    %3015 = vmatpush1.msra.mxu0 %v1363
    %3016 = vmatprep.subr.mxu0 %v1360
    %3017 = vmatpush1.msra.mxu0 %v1359
    %3018 = vmatprep.subr.mxu0 %v1356
    %3019 = vmatpush1.msra.mxu0 %v1355
    %3020 = vmatprep.subr.mxu0 %v1352
    %3021 = vmatpush1.msra.mxu0 %v1351
    %3022 = vmatprep.subr.mxu0 %v1348
    %3023 = vmatpush1.msra.mxu0 %v1347
    %3024 = vmatprep.subr.mxu0 %v1344
    %3025 = vmatpush1.msra.mxu0 %v1343
    %3026 = vmatprep.subr.mxu0 %v1340
    %3027 = vmatpush1.msra.mxu0 %v1339
    %3028 = vmatprep.subr.mxu0 %v1336
    %3029 = vmatpush1.msra.mxu0 %v1335
    %3030 = vmatprep.subr.mxu0 0.0
    %3031 = vmatpush2.msra.mxu0 0.0
    %3032 = vmatprep.subr.mxu0 0.0
    %3033 = vmatpush2.msra.mxu0 0.0
    %3034 = vmatprep.subr.mxu0 0.0
    %3035 = vmatpush2.msra.mxu0 0.0
    %3036 = vmatprep.subr.mxu0 0.0
    %3037 = vmatpush2.msra.mxu0 0.0
    %3038 = vmatprep.subr.mxu0 0.0
    %3039 = vmatpush2.msra.mxu0 0.0
    %3040 = vmatprep.subr.mxu0 0.0
    %3041 = vmatpush2.msra.mxu0 0.0
    %3042 = vmatprep.subr.mxu0 0.0
    %3043 = vmatpush2.msra.mxu0 0.0
    %3044 = vmatprep.subr.mxu0 0.0
    %3045 = vmatpush2.msra.mxu0 0.0
    %3046 = vmatprep.subr.mxu0 0.0
    %3047 = vmatpush2.msra.mxu0 0.0
    %3048 = vmatprep.subr.mxu0 0.0
    %3049 = vmatpush2.msra.mxu0 0.0
    %3050 = vmatprep.subr.mxu0 0.0
    %3051 = vmatpush2.msra.mxu0 0.0
    %3052 = vmatprep.subr.mxu0 0.0
    %3053 = vmatpush2.msra.mxu0 0.0
    %3054 = vmatprep.subr.mxu0 0.0
    %3055 = vmatpush2.msra.mxu0 0.0
    %3056 = vmatprep.subr.mxu0 0.0
    %3057 = vmatpush2.msra.mxu0 0.0
    %3058 = vmatprep.subr.mxu0 0.0
    %3059 = vmatpush2.msra.mxu0 0.0
    %3060 = vmatprep.subr.mxu0 0.0
    %3061 = vmatpush2.msra.mxu0 0.0
    %3062 = vmatprep.mubr.f32.mxu0 0.0
    %3063 = vmatmul.mubr.f32.gmra.mxu0 %v2586
    %v3064 = vpop.f32.mrf.mxu0
    %v3065 = vadd.f32 0.0, %v3064
    %v3066 = vpop.f32.mrf.mxu0
    %v3067 = vadd.f32 0.0, %v3066
    %3068 = vdwg.mxu0
    %v3069 = vadd.f32 %v722, %v2994
    %v3070 = vadd.f32 %v724, %v2996
    %v3071 = vadd.f32 %v835, %v3065
    %v3072 = vadd.f32 %v837, %v3067
    %v3073 = vxor.u32 %v3069, 2147483648
    %v3074 = vmul.f32 %v3073, 1.442695
    %v3075 = vpow.pop %v3074
    %v3076 = vadd.f32 %v3075, 1.0
    %v3077 = vrcp.pop %v3076
    %v3078 = vmul.f32 1.0, %v3077
    %v3079 = vxor.u32 %v3070, 2147483648
    %v3080 = vmul.f32 %v3079, 1.442695
    %v3081 = vpow.pop %v3080
    %v3082 = vadd.f32 %v3081, 1.0
    %v3083 = vrcp.pop %v3082
    %v3084 = vmul.f32 1.0, %v3083
    %v3085 = vtanh.pop %v3071
    %v3086 = vxor.u32 %v3072, 2147483648
    %v3087 = vmul.f32 %v3086, 1.442695
    %v3088 = vpow.pop %v3087
    %v3089 = vadd.f32 %v3088, 1.0
    %v3090 = vrcp.pop %v3089
    %v3091 = vmul.f32 1.0, %v3090
    %v3092 = vmul.f32 %v3084, %v2584
    %v3093 = vmul.f32 %v3078, %v3085
    %v3094 = vadd.f32 %v3092, %v3093
    %v3095 = vtanh.pop %v3094
    %v3096 = vmul.f32 %v3091, %v3095
    %3097 = vmatprep.subr.mxu0 %v924
    %3098 = vmatpush1.msra.mxu0 %v923
    %3099 = vmatprep.subr.mxu0 %v920
    %3100 = vmatpush1.msra.mxu0 %v919
    %3101 = vmatprep.subr.mxu0 %v916
    %3102 = vmatpush1.msra.mxu0 %v915
    %3103 = vmatprep.subr.mxu0 %v912
    %3104 = vmatpush1.msra.mxu0 %v911
    %3105 = vmatprep.subr.mxu0 %v908
    %3106 = vmatpush1.msra.mxu0 %v907
    %3107 = vmatprep.subr.mxu0 %v904
    %3108 = vmatpush1.msra.mxu0 %v903
    %3109 = vmatprep.subr.mxu0 %v900
    %3110 = vmatpush1.msra.mxu0 %v899
    %3111 = vmatprep.subr.mxu0 %v896
    %3112 = vmatpush1.msra.mxu0 %v895
    %3113 = vmatprep.subr.mxu0 %v892
    %3114 = vmatpush1.msra.mxu0 %v891
    %3115 = vmatprep.subr.mxu0 %v888
    %3116 = vmatpush1.msra.mxu0 %v887
    %3117 = vmatprep.subr.mxu0 %v884
    %3118 = vmatpush1.msra.mxu0 %v883
    %3119 = vmatprep.subr.mxu0 %v880
    %3120 = vmatpush1.msra.mxu0 %v879
    %3121 = vmatprep.subr.mxu0 %v876
    %3122 = vmatpush1.msra.mxu0 %v875
    %3123 = vmatprep.subr.mxu0 %v872
    %3124 = vmatpush1.msra.mxu0 %v871
    %3125 = vmatprep.subr.mxu0 %v868
    %3126 = vmatpush1.msra.mxu0 %v867
    %3127 = vmatprep.subr.mxu0 %v864
    %3128 = vmatpush1.msra.mxu0 %v863
    %3129 = vmatprep.subr.mxu0 0.0
    %3130 = vmatpush2.msra.mxu0 0.0
    %3131 = vmatprep.subr.mxu0 0.0
    %3132 = vmatpush2.msra.mxu0 0.0
    %3133 = vmatprep.subr.mxu0 0.0
    %3134 = vmatpush2.msra.mxu0 0.0
    %3135 = vmatprep.subr.mxu0 0.0
    %3136 = vmatpush2.msra.mxu0 0.0
    %3137 = vmatprep.subr.mxu0 0.0
    %3138 = vmatpush2.msra.mxu0 0.0
    %3139 = vmatprep.subr.mxu0 0.0
    %3140 = vmatpush2.msra.mxu0 0.0
    %3141 = vmatprep.subr.mxu0 0.0
    %3142 = vmatpush2.msra.mxu0 0.0
    %3143 = vmatprep.subr.mxu0 0.0
    %3144 = vmatpush2.msra.mxu0 0.0
    %3145 = vmatprep.subr.mxu0 0.0
    %3146 = vmatpush2.msra.mxu0 0.0
    %3147 = vmatprep.subr.mxu0 0.0
    %3148 = vmatpush2.msra.mxu0 0.0
    %3149 = vmatprep.subr.mxu0 0.0
    %3150 = vmatpush2.msra.mxu0 0.0
    %3151 = vmatprep.subr.mxu0 0.0
    %3152 = vmatpush2.msra.mxu0 0.0
    %3153 = vmatprep.subr.mxu0 0.0
    %3154 = vmatpush2.msra.mxu0 0.0
    %3155 = vmatprep.subr.mxu0 0.0
    %3156 = vmatpush2.msra.mxu0 0.0
    %3157 = vmatprep.subr.mxu0 0.0
    %3158 = vmatpush2.msra.mxu0 0.0
    %3159 = vmatprep.subr.mxu0 0.0
    %3160 = vmatpush2.msra.mxu0 0.0
    %3161 = vmatprep.mubr.f32.mxu0 0.0
    %3162 = vmatmul.mubr.f32.gmra.mxu0 %v2756
    %v3163 = vpop.f32.mrf.mxu0
    %v3164 = vadd.f32 0.0, %v3163
    %v3165 = vpop.f32.mrf.mxu0
    %v3166 = vadd.f32 0.0, %v3165
    %3167 = vdwg.mxu0
    %3168 = vmatprep.subr.mxu0 %v926
    %3169 = vmatpush1.msra.mxu0 %v925
    %3170 = vmatprep.subr.mxu0 %v922
    %3171 = vmatpush1.msra.mxu0 %v921
    %3172 = vmatprep.subr.mxu0 %v918
    %3173 = vmatpush1.msra.mxu0 %v917
    %3174 = vmatprep.subr.mxu0 %v914
    %3175 = vmatpush1.msra.mxu0 %v913
    %3176 = vmatprep.subr.mxu0 %v910
    %3177 = vmatpush1.msra.mxu0 %v909
    %3178 = vmatprep.subr.mxu0 %v906
    %3179 = vmatpush1.msra.mxu0 %v905
    %3180 = vmatprep.subr.mxu0 %v902
    %3181 = vmatpush1.msra.mxu0 %v901
    %3182 = vmatprep.subr.mxu0 %v898
    %3183 = vmatpush1.msra.mxu0 %v897
    %3184 = vmatprep.subr.mxu0 %v894
    %3185 = vmatpush1.msra.mxu0 %v893
    %3186 = vmatprep.subr.mxu0 %v890
    %3187 = vmatpush1.msra.mxu0 %v889
    %3188 = vmatprep.subr.mxu0 %v886
    %3189 = vmatpush1.msra.mxu0 %v885
    %3190 = vmatprep.subr.mxu0 %v882
    %3191 = vmatpush1.msra.mxu0 %v881
    %3192 = vmatprep.subr.mxu0 %v878
    %3193 = vmatpush1.msra.mxu0 %v877
    %3194 = vmatprep.subr.mxu0 %v874
    %3195 = vmatpush1.msra.mxu0 %v873
    %3196 = vmatprep.subr.mxu0 %v870
    %3197 = vmatpush1.msra.mxu0 %v869
    %3198 = vmatprep.subr.mxu0 %v866
    %3199 = vmatpush1.msra.mxu0 %v865
    %3200 = vmatprep.subr.mxu0 0.0
    %3201 = vmatpush2.msra.mxu0 0.0
    %3202 = vmatprep.subr.mxu0 0.0
    %3203 = vmatpush2.msra.mxu0 0.0
    %3204 = vmatprep.subr.mxu0 0.0
    %3205 = vmatpush2.msra.mxu0 0.0
    %3206 = vmatprep.subr.mxu0 0.0
    %3207 = vmatpush2.msra.mxu0 0.0
    %3208 = vmatprep.subr.mxu0 0.0
    %3209 = vmatpush2.msra.mxu0 0.0
    %3210 = vmatprep.subr.mxu0 0.0
    %3211 = vmatpush2.msra.mxu0 0.0
    %3212 = vmatprep.subr.mxu0 0.0
    %3213 = vmatpush2.msra.mxu0 0.0
    %3214 = vmatprep.subr.mxu0 0.0
    %3215 = vmatpush2.msra.mxu0 0.0
    %3216 = vmatprep.subr.mxu0 0.0
    %3217 = vmatpush2.msra.mxu0 0.0
    %3218 = vmatprep.subr.mxu0 0.0
    %3219 = vmatpush2.msra.mxu0 0.0
    %3220 = vmatprep.subr.mxu0 0.0
    %3221 = vmatpush2.msra.mxu0 0.0
    %3222 = vmatprep.subr.mxu0 0.0
    %3223 = vmatpush2.msra.mxu0 0.0
    %3224 = vmatprep.subr.mxu0 0.0
    %3225 = vmatpush2.msra.mxu0 0.0
    %3226 = vmatprep.subr.mxu0 0.0
    %3227 = vmatpush2.msra.mxu0 0.0
    %3228 = vmatprep.subr.mxu0 0.0
    %3229 = vmatpush2.msra.mxu0 0.0
    %3230 = vmatprep.subr.mxu0 0.0
    %3231 = vmatpush2.msra.mxu0 0.0
    %3232 = vmatprep.mubr.f32.mxu0 0.0
    %3233 = vmatmul.mubr.f32.gmra.mxu0 %v2756
    %v3234 = vpop.f32.mrf.mxu0
    %v3235 = vadd.f32 0.0, %v3234
    %v3236 = vpop.f32.mrf.mxu0
    %v3237 = vadd.f32 0.0, %v3236
    %3238 = vdwg.mxu0
    %v3239 = vadd.f32 %v276, %v3164
    %v3240 = vadd.f32 %v278, %v3166
    %v3241 = vadd.f32 %v389, %v3235
    %v3242 = vadd.f32 %v391, %v3237
    %v3243 = vxor.u32 %v3239, 2147483648
    %v3244 = vmul.f32 %v3243, 1.442695
    %v3245 = vpow.pop %v3244
    %v3246 = vadd.f32 %v3245, 1.0
    %v3247 = vrcp.pop %v3246
    %v3248 = vmul.f32 1.0, %v3247
    %v3249 = vxor.u32 %v3240, 2147483648
    %v3250 = vmul.f32 %v3249, 1.442695
    %v3251 = vpow.pop %v3250
    %v3252 = vadd.f32 %v3251, 1.0
    %v3253 = vrcp.pop %v3252
    %v3254 = vmul.f32 1.0, %v3253
    %v3255 = vtanh.pop %v3241
    %v3256 = vxor.u32 %v3242, 2147483648
    %v3257 = vmul.f32 %v3256, 1.442695
    %v3258 = vpow.pop %v3257
    %v3259 = vadd.f32 %v3258, 1.0
    %v3260 = vrcp.pop %v3259
    %v3261 = vmul.f32 1.0, %v3260
    %v3262 = vmul.f32 %v3254, %v2754
    %v3263 = vmul.f32 %v3248, %v3255
    %v3264 = vadd.f32 %v3262, %v3263
    %v3265 = vtanh.pop %v3264
    %v3266 = vmul.f32 %v3261, %v3265
    %3267 = vmatprep.subr.mxu0 %v1159
    %3268 = vmatpush1.msra.mxu0 %v1158
    %3269 = vmatprep.subr.mxu0 %v1155
    %3270 = vmatpush1.msra.mxu0 %v1154
    %3271 = vmatprep.subr.mxu0 %v1151
    %3272 = vmatpush1.msra.mxu0 %v1150
    %3273 = vmatprep.subr.mxu0 %v1147
    %3274 = vmatpush1.msra.mxu0 %v1146
    %3275 = vmatprep.subr.mxu0 %v1143
    %3276 = vmatpush1.msra.mxu0 %v1142
    %3277 = vmatprep.subr.mxu0 %v1139
    %3278 = vmatpush1.msra.mxu0 %v1138
    %3279 = vmatprep.subr.mxu0 %v1135
    %3280 = vmatpush1.msra.mxu0 %v1134
    %3281 = vmatprep.subr.mxu0 %v1131
    %3282 = vmatpush1.msra.mxu0 %v1130
    %3283 = vmatprep.subr.mxu0 %v1127
    %3284 = vmatpush1.msra.mxu0 %v1126
    %3285 = vmatprep.subr.mxu0 %v1123
    %3286 = vmatpush1.msra.mxu0 %v1122
    %3287 = vmatprep.subr.mxu0 %v1119
    %3288 = vmatpush1.msra.mxu0 %v1118
    %3289 = vmatprep.subr.mxu0 %v1115
    %3290 = vmatpush1.msra.mxu0 %v1114
    %3291 = vmatprep.subr.mxu0 %v1111
    %3292 = vmatpush1.msra.mxu0 %v1110
    %3293 = vmatprep.subr.mxu0 %v1107
    %3294 = vmatpush1.msra.mxu0 %v1106
    %3295 = vmatprep.subr.mxu0 %v1103
    %3296 = vmatpush1.msra.mxu0 %v1102
    %3297 = vmatprep.subr.mxu0 %v1099
    %3298 = vmatpush1.msra.mxu0 %v1098
    %3299 = vmatprep.subr.mxu0 0.0
    %3300 = vmatpush2.msra.mxu0 0.0
    %3301 = vmatprep.subr.mxu0 0.0
    %3302 = vmatpush2.msra.mxu0 0.0
    %3303 = vmatprep.subr.mxu0 0.0
    %3304 = vmatpush2.msra.mxu0 0.0
    %3305 = vmatprep.subr.mxu0 0.0
    %3306 = vmatpush2.msra.mxu0 0.0
    %3307 = vmatprep.subr.mxu0 0.0
    %3308 = vmatpush2.msra.mxu0 0.0
    %3309 = vmatprep.subr.mxu0 0.0
    %3310 = vmatpush2.msra.mxu0 0.0
    %3311 = vmatprep.subr.mxu0 0.0
    %3312 = vmatpush2.msra.mxu0 0.0
    %3313 = vmatprep.subr.mxu0 0.0
    %3314 = vmatpush2.msra.mxu0 0.0
    %3315 = vmatprep.subr.mxu0 0.0
    %3316 = vmatpush2.msra.mxu0 0.0
    %3317 = vmatprep.subr.mxu0 0.0
    %3318 = vmatpush2.msra.mxu0 0.0
    %3319 = vmatprep.subr.mxu0 0.0
    %3320 = vmatpush2.msra.mxu0 0.0
    %3321 = vmatprep.subr.mxu0 0.0
    %3322 = vmatpush2.msra.mxu0 0.0
    %3323 = vmatprep.subr.mxu0 0.0
    %3324 = vmatpush2.msra.mxu0 0.0
    %3325 = vmatprep.subr.mxu0 0.0
    %3326 = vmatpush2.msra.mxu0 0.0
    %3327 = vmatprep.subr.mxu0 0.0
    %3328 = vmatpush2.msra.mxu0 0.0
    %3329 = vmatprep.subr.mxu0 0.0
    %3330 = vmatpush2.msra.mxu0 0.0
    %3331 = vmatprep.mubr.f32.mxu0 0.0
    %3332 = vmatmul.mubr.f32.gmra.mxu0 %v2926
    %v3333 = vpop.f32.mrf.mxu0
    %v3334 = vadd.f32 0.0, %v3333
    %v3335 = vpop.f32.mrf.mxu0
    %v3336 = vadd.f32 0.0, %v3335
    %3337 = vdwg.mxu0
    %3338 = vmatprep.subr.mxu0 %v1161
    %3339 = vmatpush1.msra.mxu0 %v1160
    %3340 = vmatprep.subr.mxu0 %v1157
    %3341 = vmatpush1.msra.mxu0 %v1156
    %3342 = vmatprep.subr.mxu0 %v1153
    %3343 = vmatpush1.msra.mxu0 %v1152
    %3344 = vmatprep.subr.mxu0 %v1149
    %3345 = vmatpush1.msra.mxu0 %v1148
    %3346 = vmatprep.subr.mxu0 %v1145
    %3347 = vmatpush1.msra.mxu0 %v1144
    %3348 = vmatprep.subr.mxu0 %v1141
    %3349 = vmatpush1.msra.mxu0 %v1140
    %3350 = vmatprep.subr.mxu0 %v1137
    %3351 = vmatpush1.msra.mxu0 %v1136
    %3352 = vmatprep.subr.mxu0 %v1133
    %3353 = vmatpush1.msra.mxu0 %v1132
    %3354 = vmatprep.subr.mxu0 %v1129
    %3355 = vmatpush1.msra.mxu0 %v1128
    %3356 = vmatprep.subr.mxu0 %v1125
    %3357 = vmatpush1.msra.mxu0 %v1124
    %3358 = vmatprep.subr.mxu0 %v1121
    %3359 = vmatpush1.msra.mxu0 %v1120
    %3360 = vmatprep.subr.mxu0 %v1117
    %3361 = vmatpush1.msra.mxu0 %v1116
    %3362 = vmatprep.subr.mxu0 %v1113
    %3363 = vmatpush1.msra.mxu0 %v1112
    %3364 = vmatprep.subr.mxu0 %v1109
    %3365 = vmatpush1.msra.mxu0 %v1108
    %3366 = vmatprep.subr.mxu0 %v1105
    %3367 = vmatpush1.msra.mxu0 %v1104
    %3368 = vmatprep.subr.mxu0 %v1101
    %3369 = vmatpush1.msra.mxu0 %v1100
    %3370 = vmatprep.subr.mxu0 0.0
    %3371 = vmatpush2.msra.mxu0 0.0
    %3372 = vmatprep.subr.mxu0 0.0
    %3373 = vmatpush2.msra.mxu0 0.0
    %3374 = vmatprep.subr.mxu0 0.0
    %3375 = vmatpush2.msra.mxu0 0.0
    %3376 = vmatprep.subr.mxu0 0.0
    %3377 = vmatpush2.msra.mxu0 0.0
    %3378 = vmatprep.subr.mxu0 0.0
    %3379 = vmatpush2.msra.mxu0 0.0
    %3380 = vmatprep.subr.mxu0 0.0
    %3381 = vmatpush2.msra.mxu0 0.0
    %3382 = vmatprep.subr.mxu0 0.0
    %3383 = vmatpush2.msra.mxu0 0.0
    %3384 = vmatprep.subr.mxu0 0.0
    %3385 = vmatpush2.msra.mxu0 0.0
    %3386 = vmatprep.subr.mxu0 0.0
    %3387 = vmatpush2.msra.mxu0 0.0
    %3388 = vmatprep.subr.mxu0 0.0
    %3389 = vmatpush2.msra.mxu0 0.0
    %3390 = vmatprep.subr.mxu0 0.0
    %3391 = vmatpush2.msra.mxu0 0.0
    %3392 = vmatprep.subr.mxu0 0.0
    %3393 = vmatpush2.msra.mxu0 0.0
    %3394 = vmatprep.subr.mxu0 0.0
    %3395 = vmatpush2.msra.mxu0 0.0
    %3396 = vmatprep.subr.mxu0 0.0
    %3397 = vmatpush2.msra.mxu0 0.0
    %3398 = vmatprep.subr.mxu0 0.0
    %3399 = vmatpush2.msra.mxu0 0.0
    %3400 = vmatprep.subr.mxu0 0.0
    %3401 = vmatpush2.msra.mxu0 0.0
    %3402 = vmatprep.mubr.f32.mxu0 0.0
    %3403 = vmatmul.mubr.f32.gmra.mxu0 %v2926
    %v3404 = vpop.f32.mrf.mxu0
    %v3405 = vadd.f32 0.0, %v3404
    %v3406 = vpop.f32.mrf.mxu0
    %v3407 = vadd.f32 0.0, %v3406
    %3408 = vdwg.mxu0
    %v3409 = vadd.f32 %v502, %v3334
    %v3410 = vadd.f32 %v504, %v3336
    %v3411 = vadd.f32 %v615, %v3405
    %v3412 = vadd.f32 %v617, %v3407
    %v3413 = vxor.u32 %v3409, 2147483648
    %v3414 = vmul.f32 %v3413, 1.442695
    %v3415 = vpow.pop %v3414
    %v3416 = vadd.f32 %v3415, 1.0
    %v3417 = vrcp.pop %v3416
    %v3418 = vmul.f32 1.0, %v3417
    %v3419 = vxor.u32 %v3410, 2147483648
    %v3420 = vmul.f32 %v3419, 1.442695
    %v3421 = vpow.pop %v3420
    %v3422 = vadd.f32 %v3421, 1.0
    %v3423 = vrcp.pop %v3422
    %v3424 = vmul.f32 1.0, %v3423
    %v3425 = vtanh.pop %v3411
    %v3426 = vxor.u32 %v3412, 2147483648
    %v3427 = vmul.f32 %v3426, 1.442695
    %v3428 = vpow.pop %v3427
    %v3429 = vadd.f32 %v3428, 1.0
    %v3430 = vrcp.pop %v3429
    %v3431 = vmul.f32 1.0, %v3430
    %v3432 = vmul.f32 %v3424, %v2924
    %v3433 = vmul.f32 %v3418, %v3425
    %v3434 = vadd.f32 %v3432, %v3433
    %v3435 = vtanh.pop %v3434
    %v3436 = vmul.f32 %v3431, %v3435
    %3437 = vmatprep.subr.mxu0 %v1394
    %3438 = vmatpush1.msra.mxu0 %v1393
    %3439 = vmatprep.subr.mxu0 %v1390
    %3440 = vmatpush1.msra.mxu0 %v1389
    %3441 = vmatprep.subr.mxu0 %v1386
    %3442 = vmatpush1.msra.mxu0 %v1385
    %3443 = vmatprep.subr.mxu0 %v1382
    %3444 = vmatpush1.msra.mxu0 %v1381
    %3445 = vmatprep.subr.mxu0 %v1378
    %3446 = vmatpush1.msra.mxu0 %v1377
    %3447 = vmatprep.subr.mxu0 %v1374
    %3448 = vmatpush1.msra.mxu0 %v1373
    %3449 = vmatprep.subr.mxu0 %v1370
    %3450 = vmatpush1.msra.mxu0 %v1369
    %3451 = vmatprep.subr.mxu0 %v1366
    %3452 = vmatpush1.msra.mxu0 %v1365
    %3453 = vmatprep.subr.mxu0 %v1362
    %3454 = vmatpush1.msra.mxu0 %v1361
    %3455 = vmatprep.subr.mxu0 %v1358
    %3456 = vmatpush1.msra.mxu0 %v1357
    %3457 = vmatprep.subr.mxu0 %v1354
    %3458 = vmatpush1.msra.mxu0 %v1353
    %3459 = vmatprep.subr.mxu0 %v1350
    %3460 = vmatpush1.msra.mxu0 %v1349
    %3461 = vmatprep.subr.mxu0 %v1346
    %3462 = vmatpush1.msra.mxu0 %v1345
    %3463 = vmatprep.subr.mxu0 %v1342
    %3464 = vmatpush1.msra.mxu0 %v1341
    %3465 = vmatprep.subr.mxu0 %v1338
    %3466 = vmatpush1.msra.mxu0 %v1337
    %3467 = vmatprep.subr.mxu0 %v1334
    %3468 = vmatpush1.msra.mxu0 %v1333
    %3469 = vmatprep.subr.mxu0 0.0
    %3470 = vmatpush2.msra.mxu0 0.0
    %3471 = vmatprep.subr.mxu0 0.0
    %3472 = vmatpush2.msra.mxu0 0.0
    %3473 = vmatprep.subr.mxu0 0.0
    %3474 = vmatpush2.msra.mxu0 0.0
    %3475 = vmatprep.subr.mxu0 0.0
    %3476 = vmatpush2.msra.mxu0 0.0
    %3477 = vmatprep.subr.mxu0 0.0
    %3478 = vmatpush2.msra.mxu0 0.0
    %3479 = vmatprep.subr.mxu0 0.0
    %3480 = vmatpush2.msra.mxu0 0.0
    %3481 = vmatprep.subr.mxu0 0.0
    %3482 = vmatpush2.msra.mxu0 0.0
    %3483 = vmatprep.subr.mxu0 0.0
    %3484 = vmatpush2.msra.mxu0 0.0
    %3485 = vmatprep.subr.mxu0 0.0
    %3486 = vmatpush2.msra.mxu0 0.0
    %3487 = vmatprep.subr.mxu0 0.0
    %3488 = vmatpush2.msra.mxu0 0.0
    %3489 = vmatprep.subr.mxu0 0.0
    %3490 = vmatpush2.msra.mxu0 0.0
    %3491 = vmatprep.subr.mxu0 0.0
    %3492 = vmatpush2.msra.mxu0 0.0
    %3493 = vmatprep.subr.mxu0 0.0
    %3494 = vmatpush2.msra.mxu0 0.0
    %3495 = vmatprep.subr.mxu0 0.0
    %3496 = vmatpush2.msra.mxu0 0.0
    %3497 = vmatprep.subr.mxu0 0.0
    %3498 = vmatpush2.msra.mxu0 0.0
    %3499 = vmatprep.subr.mxu0 0.0
    %3500 = vmatpush2.msra.mxu0 0.0
    %3501 = vmatprep.mubr.f32.mxu0 0.0
    %3502 = vmatmul.mubr.f32.gmra.mxu0 %v3096
    %v3503 = vpop.f32.mrf.mxu0
    %v3504 = vadd.f32 0.0, %v3503
    %v3505 = vpop.f32.mrf.mxu0
    %v3506 = vadd.f32 0.0, %v3505
    %3507 = vdwg.mxu0
    %3508 = vmatprep.subr.mxu0 %v1396
    %3509 = vmatpush1.msra.mxu0 %v1395
    %3510 = vmatprep.subr.mxu0 %v1392
    %3511 = vmatpush1.msra.mxu0 %v1391
    %3512 = vmatprep.subr.mxu0 %v1388
    %3513 = vmatpush1.msra.mxu0 %v1387
    %3514 = vmatprep.subr.mxu0 %v1384
    %3515 = vmatpush1.msra.mxu0 %v1383
    %3516 = vmatprep.subr.mxu0 %v1380
    %3517 = vmatpush1.msra.mxu0 %v1379
    %3518 = vmatprep.subr.mxu0 %v1376
    %3519 = vmatpush1.msra.mxu0 %v1375
    %3520 = vmatprep.subr.mxu0 %v1372
    %3521 = vmatpush1.msra.mxu0 %v1371
    %3522 = vmatprep.subr.mxu0 %v1368
    %3523 = vmatpush1.msra.mxu0 %v1367
    %3524 = vmatprep.subr.mxu0 %v1364
    %3525 = vmatpush1.msra.mxu0 %v1363
    %3526 = vmatprep.subr.mxu0 %v1360
    %3527 = vmatpush1.msra.mxu0 %v1359
    %3528 = vmatprep.subr.mxu0 %v1356
    %3529 = vmatpush1.msra.mxu0 %v1355
    %3530 = vmatprep.subr.mxu0 %v1352
    %3531 = vmatpush1.msra.mxu0 %v1351
    %3532 = vmatprep.subr.mxu0 %v1348
    %3533 = vmatpush1.msra.mxu0 %v1347
    %3534 = vmatprep.subr.mxu0 %v1344
    %3535 = vmatpush1.msra.mxu0 %v1343
    %3536 = vmatprep.subr.mxu0 %v1340
    %3537 = vmatpush1.msra.mxu0 %v1339
    %3538 = vmatprep.subr.mxu0 %v1336
    %3539 = vmatpush1.msra.mxu0 %v1335
    %3540 = vmatprep.subr.mxu0 0.0
    %3541 = vmatpush2.msra.mxu0 0.0
    %3542 = vmatprep.subr.mxu0 0.0
    %3543 = vmatpush2.msra.mxu0 0.0
    %3544 = vmatprep.subr.mxu0 0.0
    %3545 = vmatpush2.msra.mxu0 0.0
    %3546 = vmatprep.subr.mxu0 0.0
    %3547 = vmatpush2.msra.mxu0 0.0
    %3548 = vmatprep.subr.mxu0 0.0
    %3549 = vmatpush2.msra.mxu0 0.0
    %3550 = vmatprep.subr.mxu0 0.0
    %3551 = vmatpush2.msra.mxu0 0.0
    %3552 = vmatprep.subr.mxu0 0.0
    %3553 = vmatpush2.msra.mxu0 0.0
    %3554 = vmatprep.subr.mxu0 0.0
    %3555 = vmatpush2.msra.mxu0 0.0
    %3556 = vmatprep.subr.mxu0 0.0
    %3557 = vmatpush2.msra.mxu0 0.0
    %3558 = vmatprep.subr.mxu0 0.0
    %3559 = vmatpush2.msra.mxu0 0.0
    %3560 = vmatprep.subr.mxu0 0.0
    %3561 = vmatpush2.msra.mxu0 0.0
    %3562 = vmatprep.subr.mxu0 0.0
    %3563 = vmatpush2.msra.mxu0 0.0
    %3564 = vmatprep.subr.mxu0 0.0
    %3565 = vmatpush2.msra.mxu0 0.0
    %3566 = vmatprep.subr.mxu0 0.0
    %3567 = vmatpush2.msra.mxu0 0.0
    %3568 = vmatprep.subr.mxu0 0.0
    %3569 = vmatpush2.msra.mxu0 0.0
    %3570 = vmatprep.subr.mxu0 0.0
    %3571 = vmatpush2.msra.mxu0 0.0
    %3572 = vmatprep.mubr.f32.mxu0 0.0
    %3573 = vmatmul.mubr.f32.gmra.mxu0 %v3096
    %v3574 = vpop.f32.mrf.mxu0
    %v3575 = vadd.f32 0.0, %v3574
    %v3576 = vpop.f32.mrf.mxu0
    %v3577 = vadd.f32 0.0, %v3576
    %3578 = vdwg.mxu0
    %v3579 = vadd.f32 %v728, %v3504
    %v3580 = vadd.f32 %v730, %v3506
    %v3581 = vadd.f32 %v841, %v3575
    %v3582 = vadd.f32 %v843, %v3577
    %v3583 = vxor.u32 %v3579, 2147483648
    %v3584 = vmul.f32 %v3583, 1.442695
    %v3585 = vpow.pop %v3584
    %v3586 = vadd.f32 %v3585, 1.0
    %v3587 = vrcp.pop %v3586
    %v3588 = vmul.f32 1.0, %v3587
    %v3589 = vxor.u32 %v3580, 2147483648
    %v3590 = vmul.f32 %v3589, 1.442695
    %v3591 = vpow.pop %v3590
    %v3592 = vadd.f32 %v3591, 1.0
    %v3593 = vrcp.pop %v3592
    %v3594 = vmul.f32 1.0, %v3593
    %v3595 = vtanh.pop %v3581
    %v3596 = vxor.u32 %v3582, 2147483648
    %v3597 = vmul.f32 %v3596, 1.442695
    %v3598 = vpow.pop %v3597
    %v3599 = vadd.f32 %v3598, 1.0
    %v3600 = vrcp.pop %v3599
    %v3601 = vmul.f32 1.0, %v3600
    %v3602 = vmul.f32 %v3594, %v3094
    %v3603 = vmul.f32 %v3588, %v3595
    %v3604 = vadd.f32 %v3602, %v3603
    %v3605 = vtanh.pop %v3604
    %v3606 = vmul.f32 %v3601, %v3605
    %3607 = vmatprep.subr.mxu0 %v924
    %3608 = vmatpush1.msra.mxu0 %v923
    %3609 = vmatprep.subr.mxu0 %v920
    %3610 = vmatpush1.msra.mxu0 %v919
    %3611 = vmatprep.subr.mxu0 %v916
    %3612 = vmatpush1.msra.mxu0 %v915
    %3613 = vmatprep.subr.mxu0 %v912
    %3614 = vmatpush1.msra.mxu0 %v911
    %3615 = vmatprep.subr.mxu0 %v908
    %3616 = vmatpush1.msra.mxu0 %v907
    %3617 = vmatprep.subr.mxu0 %v904
    %3618 = vmatpush1.msra.mxu0 %v903
    %3619 = vmatprep.subr.mxu0 %v900
    %3620 = vmatpush1.msra.mxu0 %v899
    %3621 = vmatprep.subr.mxu0 %v896
    %3622 = vmatpush1.msra.mxu0 %v895
    %3623 = vmatprep.subr.mxu0 %v892
    %3624 = vmatpush1.msra.mxu0 %v891
    %3625 = vmatprep.subr.mxu0 %v888
    %3626 = vmatpush1.msra.mxu0 %v887
    %3627 = vmatprep.subr.mxu0 %v884
    %3628 = vmatpush1.msra.mxu0 %v883
    %3629 = vmatprep.subr.mxu0 %v880
    %3630 = vmatpush1.msra.mxu0 %v879
    %3631 = vmatprep.subr.mxu0 %v876
    %3632 = vmatpush1.msra.mxu0 %v875
    %3633 = vmatprep.subr.mxu0 %v872
    %3634 = vmatpush1.msra.mxu0 %v871
    %3635 = vmatprep.subr.mxu0 %v868
    %3636 = vmatpush1.msra.mxu0 %v867
    %3637 = vmatprep.subr.mxu0 %v864
    %3638 = vmatpush1.msra.mxu0 %v863
    %3639 = vmatprep.subr.mxu0 0.0
    %3640 = vmatpush2.msra.mxu0 0.0
    %3641 = vmatprep.subr.mxu0 0.0
    %3642 = vmatpush2.msra.mxu0 0.0
    %3643 = vmatprep.subr.mxu0 0.0
    %3644 = vmatpush2.msra.mxu0 0.0
    %3645 = vmatprep.subr.mxu0 0.0
    %3646 = vmatpush2.msra.mxu0 0.0
    %3647 = vmatprep.subr.mxu0 0.0
    %3648 = vmatpush2.msra.mxu0 0.0
    %3649 = vmatprep.subr.mxu0 0.0
    %3650 = vmatpush2.msra.mxu0 0.0
    %3651 = vmatprep.subr.mxu0 0.0
    %3652 = vmatpush2.msra.mxu0 0.0
    %3653 = vmatprep.subr.mxu0 0.0
    %3654 = vmatpush2.msra.mxu0 0.0
    %3655 = vmatprep.subr.mxu0 0.0
    %3656 = vmatpush2.msra.mxu0 0.0
    %3657 = vmatprep.subr.mxu0 0.0
    %3658 = vmatpush2.msra.mxu0 0.0
    %3659 = vmatprep.subr.mxu0 0.0
    %3660 = vmatpush2.msra.mxu0 0.0
    %3661 = vmatprep.subr.mxu0 0.0
    %3662 = vmatpush2.msra.mxu0 0.0
    %3663 = vmatprep.subr.mxu0 0.0
    %3664 = vmatpush2.msra.mxu0 0.0
    %3665 = vmatprep.subr.mxu0 0.0
    %3666 = vmatpush2.msra.mxu0 0.0
    %3667 = vmatprep.subr.mxu0 0.0
    %3668 = vmatpush2.msra.mxu0 0.0
    %3669 = vmatprep.subr.mxu0 0.0
    %3670 = vmatpush2.msra.mxu0 0.0
    %3671 = vmatprep.mubr.f32.mxu0 0.0
    %3672 = vmatmul.mubr.f32.gmra.mxu0 %v3266
    %v3673 = vpop.f32.mrf.mxu0
    %v3674 = vadd.f32 0.0, %v3673
    %v3675 = vpop.f32.mrf.mxu0
    %v3676 = vadd.f32 0.0, %v3675
    %3677 = vdwg.mxu0
    %3678 = vmatprep.subr.mxu0 %v926
    %3679 = vmatpush1.msra.mxu0 %v925
    %3680 = vmatprep.subr.mxu0 %v922
    %3681 = vmatpush1.msra.mxu0 %v921
    %3682 = vmatprep.subr.mxu0 %v918
    %3683 = vmatpush1.msra.mxu0 %v917
    %3684 = vmatprep.subr.mxu0 %v914
    %3685 = vmatpush1.msra.mxu0 %v913
    %3686 = vmatprep.subr.mxu0 %v910
    %3687 = vmatpush1.msra.mxu0 %v909
    %3688 = vmatprep.subr.mxu0 %v906
    %3689 = vmatpush1.msra.mxu0 %v905
    %3690 = vmatprep.subr.mxu0 %v902
    %3691 = vmatpush1.msra.mxu0 %v901
    %3692 = vmatprep.subr.mxu0 %v898
    %3693 = vmatpush1.msra.mxu0 %v897
    %3694 = vmatprep.subr.mxu0 %v894
    %3695 = vmatpush1.msra.mxu0 %v893
    %3696 = vmatprep.subr.mxu0 %v890
    %3697 = vmatpush1.msra.mxu0 %v889
    %3698 = vmatprep.subr.mxu0 %v886
    %3699 = vmatpush1.msra.mxu0 %v885
    %3700 = vmatprep.subr.mxu0 %v882
    %3701 = vmatpush1.msra.mxu0 %v881
    %3702 = vmatprep.subr.mxu0 %v878
    %3703 = vmatpush1.msra.mxu0 %v877
    %3704 = vmatprep.subr.mxu0 %v874
    %3705 = vmatpush1.msra.mxu0 %v873
    %3706 = vmatprep.subr.mxu0 %v870
    %3707 = vmatpush1.msra.mxu0 %v869
    %3708 = vmatprep.subr.mxu0 %v866
    %3709 = vmatpush1.msra.mxu0 %v865
    %3710 = vmatprep.subr.mxu0 0.0
    %3711 = vmatpush2.msra.mxu0 0.0
    %3712 = vmatprep.subr.mxu0 0.0
    %3713 = vmatpush2.msra.mxu0 0.0
    %3714 = vmatprep.subr.mxu0 0.0
    %3715 = vmatpush2.msra.mxu0 0.0
    %3716 = vmatprep.subr.mxu0 0.0
    %3717 = vmatpush2.msra.mxu0 0.0
    %3718 = vmatprep.subr.mxu0 0.0
    %3719 = vmatpush2.msra.mxu0 0.0
    %3720 = vmatprep.subr.mxu0 0.0
    %3721 = vmatpush2.msra.mxu0 0.0
    %3722 = vmatprep.subr.mxu0 0.0
    %3723 = vmatpush2.msra.mxu0 0.0
    %3724 = vmatprep.subr.mxu0 0.0
    %3725 = vmatpush2.msra.mxu0 0.0
    %3726 = vmatprep.subr.mxu0 0.0
    %3727 = vmatpush2.msra.mxu0 0.0
    %3728 = vmatprep.subr.mxu0 0.0
    %3729 = vmatpush2.msra.mxu0 0.0
    %3730 = vmatprep.subr.mxu0 0.0
    %3731 = vmatpush2.msra.mxu0 0.0
    %3732 = vmatprep.subr.mxu0 0.0
    %3733 = vmatpush2.msra.mxu0 0.0
    %3734 = vmatprep.subr.mxu0 0.0
    %3735 = vmatpush2.msra.mxu0 0.0
    %3736 = vmatprep.subr.mxu0 0.0
    %3737 = vmatpush2.msra.mxu0 0.0
    %3738 = vmatprep.subr.mxu0 0.0
    %3739 = vmatpush2.msra.mxu0 0.0
    %3740 = vmatprep.subr.mxu0 0.0
    %3741 = vmatpush2.msra.mxu0 0.0
    %3742 = vmatprep.mubr.f32.mxu0 0.0
    %3743 = vmatmul.mubr.f32.gmra.mxu0 %v3266
    %v3744 = vpop.f32.mrf.mxu0
    %v3745 = vadd.f32 0.0, %v3744
    %v3746 = vpop.f32.mrf.mxu0
    %v3747 = vadd.f32 0.0, %v3746
    %3748 = vdwg.mxu0
    %v3749 = vadd.f32 %v282, %v3674
    %v3750 = vadd.f32 %v284, %v3676
    %v3751 = vadd.f32 %v395, %v3745
    %v3752 = vadd.f32 %v397, %v3747
    %v3753 = vxor.u32 %v3749, 2147483648
    %v3754 = vmul.f32 %v3753, 1.442695
    %v3755 = vpow.pop %v3754
    %v3756 = vadd.f32 %v3755, 1.0
    %v3757 = vrcp.pop %v3756
    %v3758 = vmul.f32 1.0, %v3757
    %v3759 = vxor.u32 %v3750, 2147483648
    %v3760 = vmul.f32 %v3759, 1.442695
    %v3761 = vpow.pop %v3760
    %v3762 = vadd.f32 %v3761, 1.0
    %v3763 = vrcp.pop %v3762
    %v3764 = vmul.f32 1.0, %v3763
    %v3765 = vtanh.pop %v3751
    %v3766 = vxor.u32 %v3752, 2147483648
    %v3767 = vmul.f32 %v3766, 1.442695
    %v3768 = vpow.pop %v3767
    %v3769 = vadd.f32 %v3768, 1.0
    %v3770 = vrcp.pop %v3769
    %v3771 = vmul.f32 1.0, %v3770
    %v3772 = vmul.f32 %v3764, %v3264
    %v3773 = vmul.f32 %v3758, %v3765
    %v3774 = vadd.f32 %v3772, %v3773
    %v3775 = vtanh.pop %v3774
    %v3776 = vmul.f32 %v3771, %v3775
    %3777 = vmatprep.subr.mxu0 %v1159
    %3778 = vmatpush1.msra.mxu0 %v1158
    %3779 = vmatprep.subr.mxu0 %v1155
    %3780 = vmatpush1.msra.mxu0 %v1154
    %3781 = vmatprep.subr.mxu0 %v1151
    %3782 = vmatpush1.msra.mxu0 %v1150
    %3783 = vmatprep.subr.mxu0 %v1147
    %3784 = vmatpush1.msra.mxu0 %v1146
    %3785 = vmatprep.subr.mxu0 %v1143
    %3786 = vmatpush1.msra.mxu0 %v1142
    %3787 = vmatprep.subr.mxu0 %v1139
    %3788 = vmatpush1.msra.mxu0 %v1138
    %3789 = vmatprep.subr.mxu0 %v1135
    %3790 = vmatpush1.msra.mxu0 %v1134
    %3791 = vmatprep.subr.mxu0 %v1131
    %3792 = vmatpush1.msra.mxu0 %v1130
    %3793 = vmatprep.subr.mxu0 %v1127
    %3794 = vmatpush1.msra.mxu0 %v1126
    %3795 = vmatprep.subr.mxu0 %v1123
    %3796 = vmatpush1.msra.mxu0 %v1122
    %3797 = vmatprep.subr.mxu0 %v1119
    %3798 = vmatpush1.msra.mxu0 %v1118
    %3799 = vmatprep.subr.mxu0 %v1115
    %3800 = vmatpush1.msra.mxu0 %v1114
    %3801 = vmatprep.subr.mxu0 %v1111
    %3802 = vmatpush1.msra.mxu0 %v1110
    %3803 = vmatprep.subr.mxu0 %v1107
    %3804 = vmatpush1.msra.mxu0 %v1106
    %3805 = vmatprep.subr.mxu0 %v1103
    %3806 = vmatpush1.msra.mxu0 %v1102
    %3807 = vmatprep.subr.mxu0 %v1099
    %3808 = vmatpush1.msra.mxu0 %v1098
    %3809 = vmatprep.subr.mxu0 0.0
    %3810 = vmatpush2.msra.mxu0 0.0
    %3811 = vmatprep.subr.mxu0 0.0
    %3812 = vmatpush2.msra.mxu0 0.0
    %3813 = vmatprep.subr.mxu0 0.0
    %3814 = vmatpush2.msra.mxu0 0.0
    %3815 = vmatprep.subr.mxu0 0.0
    %3816 = vmatpush2.msra.mxu0 0.0
    %3817 = vmatprep.subr.mxu0 0.0
    %3818 = vmatpush2.msra.mxu0 0.0
    %3819 = vmatprep.subr.mxu0 0.0
    %3820 = vmatpush2.msra.mxu0 0.0
    %3821 = vmatprep.subr.mxu0 0.0
    %3822 = vmatpush2.msra.mxu0 0.0
    %3823 = vmatprep.subr.mxu0 0.0
    %3824 = vmatpush2.msra.mxu0 0.0
    %3825 = vmatprep.subr.mxu0 0.0
    %3826 = vmatpush2.msra.mxu0 0.0
    %3827 = vmatprep.subr.mxu0 0.0
    %3828 = vmatpush2.msra.mxu0 0.0
    %3829 = vmatprep.subr.mxu0 0.0
    %3830 = vmatpush2.msra.mxu0 0.0
    %3831 = vmatprep.subr.mxu0 0.0
    %3832 = vmatpush2.msra.mxu0 0.0
    %3833 = vmatprep.subr.mxu0 0.0
    %3834 = vmatpush2.msra.mxu0 0.0
    %3835 = vmatprep.subr.mxu0 0.0
    %3836 = vmatpush2.msra.mxu0 0.0
    %3837 = vmatprep.subr.mxu0 0.0
    %3838 = vmatpush2.msra.mxu0 0.0
    %3839 = vmatprep.subr.mxu0 0.0
    %3840 = vmatpush2.msra.mxu0 0.0
    %3841 = vmatprep.mubr.f32.mxu0 0.0
    %3842 = vmatmul.mubr.f32.gmra.mxu0 %v3436
    %v3843 = vpop.f32.mrf.mxu0
    %v3844 = vadd.f32 0.0, %v3843
    %v3845 = vpop.f32.mrf.mxu0
    %v3846 = vadd.f32 0.0, %v3845
    %3847 = vdwg.mxu0
    %3848 = vmatprep.subr.mxu0 %v1161
    %3849 = vmatpush1.msra.mxu0 %v1160
    %3850 = vmatprep.subr.mxu0 %v1157
    %3851 = vmatpush1.msra.mxu0 %v1156
    %3852 = vmatprep.subr.mxu0 %v1153
    %3853 = vmatpush1.msra.mxu0 %v1152
    %3854 = vmatprep.subr.mxu0 %v1149
    %3855 = vmatpush1.msra.mxu0 %v1148
    %3856 = vmatprep.subr.mxu0 %v1145
    %3857 = vmatpush1.msra.mxu0 %v1144
    %3858 = vmatprep.subr.mxu0 %v1141
    %3859 = vmatpush1.msra.mxu0 %v1140
    %3860 = vmatprep.subr.mxu0 %v1137
    %3861 = vmatpush1.msra.mxu0 %v1136
    %3862 = vmatprep.subr.mxu0 %v1133
    %3863 = vmatpush1.msra.mxu0 %v1132
    %3864 = vmatprep.subr.mxu0 %v1129
    %3865 = vmatpush1.msra.mxu0 %v1128
    %3866 = vmatprep.subr.mxu0 %v1125
    %3867 = vmatpush1.msra.mxu0 %v1124
    %3868 = vmatprep.subr.mxu0 %v1121
    %3869 = vmatpush1.msra.mxu0 %v1120
    %3870 = vmatprep.subr.mxu0 %v1117
    %3871 = vmatpush1.msra.mxu0 %v1116
    %3872 = vmatprep.subr.mxu0 %v1113
    %3873 = vmatpush1.msra.mxu0 %v1112
    %3874 = vmatprep.subr.mxu0 %v1109
    %3875 = vmatpush1.msra.mxu0 %v1108
    %3876 = vmatprep.subr.mxu0 %v1105
    %3877 = vmatpush1.msra.mxu0 %v1104
    %3878 = vmatprep.subr.mxu0 %v1101
    %3879 = vmatpush1.msra.mxu0 %v1100
    %3880 = vmatprep.subr.mxu0 0.0
    %3881 = vmatpush2.msra.mxu0 0.0
    %3882 = vmatprep.subr.mxu0 0.0
    %3883 = vmatpush2.msra.mxu0 0.0
    %3884 = vmatprep.subr.mxu0 0.0
    %3885 = vmatpush2.msra.mxu0 0.0
    %3886 = vmatprep.subr.mxu0 0.0
    %3887 = vmatpush2.msra.mxu0 0.0
    %3888 = vmatprep.subr.mxu0 0.0
    %3889 = vmatpush2.msra.mxu0 0.0
    %3890 = vmatprep.subr.mxu0 0.0
    %3891 = vmatpush2.msra.mxu0 0.0
    %3892 = vmatprep.subr.mxu0 0.0
    %3893 = vmatpush2.msra.mxu0 0.0
    %3894 = vmatprep.subr.mxu0 0.0
    %3895 = vmatpush2.msra.mxu0 0.0
    %3896 = vmatprep.subr.mxu0 0.0
    %3897 = vmatpush2.msra.mxu0 0.0
    %3898 = vmatprep.subr.mxu0 0.0
    %3899 = vmatpush2.msra.mxu0 0.0
    %3900 = vmatprep.subr.mxu0 0.0
    %3901 = vmatpush2.msra.mxu0 0.0
    %3902 = vmatprep.subr.mxu0 0.0
    %3903 = vmatpush2.msra.mxu0 0.0
    %3904 = vmatprep.subr.mxu0 0.0
    %3905 = vmatpush2.msra.mxu0 0.0
    %3906 = vmatprep.subr.mxu0 0.0
    %3907 = vmatpush2.msra.mxu0 0.0
    %3908 = vmatprep.subr.mxu0 0.0
    %3909 = vmatpush2.msra.mxu0 0.0
    %3910 = vmatprep.subr.mxu0 0.0
    %3911 = vmatpush2.msra.mxu0 0.0
    %3912 = vmatprep.mubr.f32.mxu0 0.0
    %3913 = vmatmul.mubr.f32.gmra.mxu0 %v3436
    %v3914 = vpop.f32.mrf.mxu0
    %v3915 = vadd.f32 0.0, %v3914
    %v3916 = vpop.f32.mrf.mxu0
    %v3917 = vadd.f32 0.0, %v3916
    %3918 = vdwg.mxu0
    %v3919 = vadd.f32 %v508, %v3844
    %v3920 = vadd.f32 %v510, %v3846
    %v3921 = vadd.f32 %v621, %v3915
    %v3922 = vadd.f32 %v623, %v3917
    %v3923 = vxor.u32 %v3919, 2147483648
    %v3924 = vmul.f32 %v3923, 1.442695
    %v3925 = vpow.pop %v3924
    %v3926 = vadd.f32 %v3925, 1.0
    %v3927 = vrcp.pop %v3926
    %v3928 = vmul.f32 1.0, %v3927
    %v3929 = vxor.u32 %v3920, 2147483648
    %v3930 = vmul.f32 %v3929, 1.442695
    %v3931 = vpow.pop %v3930
    %v3932 = vadd.f32 %v3931, 1.0
    %v3933 = vrcp.pop %v3932
    %v3934 = vmul.f32 1.0, %v3933
    %v3935 = vtanh.pop %v3921
    %v3936 = vxor.u32 %v3922, 2147483648
    %v3937 = vmul.f32 %v3936, 1.442695
    %v3938 = vpow.pop %v3937
    %v3939 = vadd.f32 %v3938, 1.0
    %v3940 = vrcp.pop %v3939
    %v3941 = vmul.f32 1.0, %v3940
    %v3942 = vmul.f32 %v3934, %v3434
    %v3943 = vmul.f32 %v3928, %v3935
    %v3944 = vadd.f32 %v3942, %v3943
    %v3945 = vtanh.pop %v3944
    %v3946 = vmul.f32 %v3941, %v3945
    %3947 = vmatprep.subr.mxu0 %v1394
    %3948 = vmatpush1.msra.mxu0 %v1393
    %3949 = vmatprep.subr.mxu0 %v1390
    %3950 = vmatpush1.msra.mxu0 %v1389
    %3951 = vmatprep.subr.mxu0 %v1386
    %3952 = vmatpush1.msra.mxu0 %v1385
    %3953 = vmatprep.subr.mxu0 %v1382
    %3954 = vmatpush1.msra.mxu0 %v1381
    %3955 = vmatprep.subr.mxu0 %v1378
    %3956 = vmatpush1.msra.mxu0 %v1377
    %3957 = vmatprep.subr.mxu0 %v1374
    %3958 = vmatpush1.msra.mxu0 %v1373
    %3959 = vmatprep.subr.mxu0 %v1370
    %3960 = vmatpush1.msra.mxu0 %v1369
    %3961 = vmatprep.subr.mxu0 %v1366
    %3962 = vmatpush1.msra.mxu0 %v1365
    %3963 = vmatprep.subr.mxu0 %v1362
    %3964 = vmatpush1.msra.mxu0 %v1361
    %3965 = vmatprep.subr.mxu0 %v1358
    %3966 = vmatpush1.msra.mxu0 %v1357
    %3967 = vmatprep.subr.mxu0 %v1354
    %3968 = vmatpush1.msra.mxu0 %v1353
    %3969 = vmatprep.subr.mxu0 %v1350
    %3970 = vmatpush1.msra.mxu0 %v1349
    %3971 = vmatprep.subr.mxu0 %v1346
    %3972 = vmatpush1.msra.mxu0 %v1345
    %3973 = vmatprep.subr.mxu0 %v1342
    %3974 = vmatpush1.msra.mxu0 %v1341
    %3975 = vmatprep.subr.mxu0 %v1338
    %3976 = vmatpush1.msra.mxu0 %v1337
    %3977 = vmatprep.subr.mxu0 %v1334
    %3978 = vmatpush1.msra.mxu0 %v1333
    %3979 = vmatprep.subr.mxu0 0.0
    %3980 = vmatpush2.msra.mxu0 0.0
    %3981 = vmatprep.subr.mxu0 0.0
    %3982 = vmatpush2.msra.mxu0 0.0
    %3983 = vmatprep.subr.mxu0 0.0
    %3984 = vmatpush2.msra.mxu0 0.0
    %3985 = vmatprep.subr.mxu0 0.0
    %3986 = vmatpush2.msra.mxu0 0.0
    %3987 = vmatprep.subr.mxu0 0.0
    %3988 = vmatpush2.msra.mxu0 0.0
    %3989 = vmatprep.subr.mxu0 0.0
    %3990 = vmatpush2.msra.mxu0 0.0
    %3991 = vmatprep.subr.mxu0 0.0
    %3992 = vmatpush2.msra.mxu0 0.0
    %3993 = vmatprep.subr.mxu0 0.0
    %3994 = vmatpush2.msra.mxu0 0.0
    %3995 = vmatprep.subr.mxu0 0.0
    %3996 = vmatpush2.msra.mxu0 0.0
    %3997 = vmatprep.subr.mxu0 0.0
    %3998 = vmatpush2.msra.mxu0 0.0
    %3999 = vmatprep.subr.mxu0 0.0
    %4000 = vmatpush2.msra.mxu0 0.0
    %4001 = vmatprep.subr.mxu0 0.0
    %4002 = vmatpush2.msra.mxu0 0.0
    %4003 = vmatprep.subr.mxu0 0.0
    %4004 = vmatpush2.msra.mxu0 0.0
    %4005 = vmatprep.subr.mxu0 0.0
    %4006 = vmatpush2.msra.mxu0 0.0
    %4007 = vmatprep.subr.mxu0 0.0
    %4008 = vmatpush2.msra.mxu0 0.0
    %4009 = vmatprep.subr.mxu0 0.0
    %4010 = vmatpush2.msra.mxu0 0.0
    %4011 = vmatprep.mubr.f32.mxu0 0.0
    %4012 = vmatmul.mubr.f32.gmra.mxu0 %v3606
    %v4013 = vpop.f32.mrf.mxu0
    %v4014 = vadd.f32 0.0, %v4013
    %v4015 = vpop.f32.mrf.mxu0
    %v4016 = vadd.f32 0.0, %v4015
    %4017 = vdwg.mxu0
    %4018 = vmatprep.subr.mxu0 %v1396
    %4019 = vmatpush1.msra.mxu0 %v1395
    %4020 = vmatprep.subr.mxu0 %v1392
    %4021 = vmatpush1.msra.mxu0 %v1391
    %4022 = vmatprep.subr.mxu0 %v1388
    %4023 = vmatpush1.msra.mxu0 %v1387
    %4024 = vmatprep.subr.mxu0 %v1384
    %4025 = vmatpush1.msra.mxu0 %v1383
    %4026 = vmatprep.subr.mxu0 %v1380
    %4027 = vmatpush1.msra.mxu0 %v1379
    %4028 = vmatprep.subr.mxu0 %v1376
    %4029 = vmatpush1.msra.mxu0 %v1375
    %4030 = vmatprep.subr.mxu0 %v1372
    %4031 = vmatpush1.msra.mxu0 %v1371
    %4032 = vmatprep.subr.mxu0 %v1368
    %4033 = vmatpush1.msra.mxu0 %v1367
    %4034 = vmatprep.subr.mxu0 %v1364
    %4035 = vmatpush1.msra.mxu0 %v1363
    %4036 = vmatprep.subr.mxu0 %v1360
    %4037 = vmatpush1.msra.mxu0 %v1359
    %4038 = vmatprep.subr.mxu0 %v1356
    %4039 = vmatpush1.msra.mxu0 %v1355
    %4040 = vmatprep.subr.mxu0 %v1352
    %4041 = vmatpush1.msra.mxu0 %v1351
    %4042 = vmatprep.subr.mxu0 %v1348
    %4043 = vmatpush1.msra.mxu0 %v1347
    %4044 = vmatprep.subr.mxu0 %v1344
    %4045 = vmatpush1.msra.mxu0 %v1343
    %4046 = vmatprep.subr.mxu0 %v1340
    %4047 = vmatpush1.msra.mxu0 %v1339
    %4048 = vmatprep.subr.mxu0 %v1336
    %4049 = vmatpush1.msra.mxu0 %v1335
    %4050 = vmatprep.subr.mxu0 0.0
    %4051 = vmatpush2.msra.mxu0 0.0
    %4052 = vmatprep.subr.mxu0 0.0
    %4053 = vmatpush2.msra.mxu0 0.0
    %4054 = vmatprep.subr.mxu0 0.0
    %4055 = vmatpush2.msra.mxu0 0.0
    %4056 = vmatprep.subr.mxu0 0.0
    %4057 = vmatpush2.msra.mxu0 0.0
    %4058 = vmatprep.subr.mxu0 0.0
    %4059 = vmatpush2.msra.mxu0 0.0
    %4060 = vmatprep.subr.mxu0 0.0
    %4061 = vmatpush2.msra.mxu0 0.0
    %4062 = vmatprep.subr.mxu0 0.0
    %4063 = vmatpush2.msra.mxu0 0.0
    %4064 = vmatprep.subr.mxu0 0.0
    %4065 = vmatpush2.msra.mxu0 0.0
    %4066 = vmatprep.subr.mxu0 0.0
    %4067 = vmatpush2.msra.mxu0 0.0
    %4068 = vmatprep.subr.mxu0 0.0
    %4069 = vmatpush2.msra.mxu0 0.0
    %4070 = vmatprep.subr.mxu0 0.0
    %4071 = vmatpush2.msra.mxu0 0.0
    %4072 = vmatprep.subr.mxu0 0.0
    %4073 = vmatpush2.msra.mxu0 0.0
    %4074 = vmatprep.subr.mxu0 0.0
    %4075 = vmatpush2.msra.mxu0 0.0
    %4076 = vmatprep.subr.mxu0 0.0
    %4077 = vmatpush2.msra.mxu0 0.0
    %4078 = vmatprep.subr.mxu0 0.0
    %4079 = vmatpush2.msra.mxu0 0.0
    %4080 = vmatprep.subr.mxu0 0.0
    %4081 = vmatpush2.msra.mxu0 0.0
    %4082 = vmatprep.mubr.f32.mxu0 0.0
    %4083 = vmatmul.mubr.f32.gmra.mxu0 %v3606
    %v4084 = vpop.f32.mrf.mxu0
    %v4085 = vadd.f32 0.0, %v4084
    %v4086 = vpop.f32.mrf.mxu0
    %v4087 = vadd.f32 0.0, %v4086
    %4088 = vdwg.mxu0
    %v4089 = vadd.f32 %v734, %v4014
    %v4090 = vadd.f32 %v736, %v4016
    %v4091 = vadd.f32 %v847, %v4085
    %v4092 = vadd.f32 %v849, %v4087
    %v4093 = vxor.u32 %v4089, 2147483648
    %v4094 = vmul.f32 %v4093, 1.442695
    %v4095 = vpow.pop %v4094
    %v4096 = vadd.f32 %v4095, 1.0
    %v4097 = vrcp.pop %v4096
    %v4098 = vmul.f32 1.0, %v4097
    %v4099 = vxor.u32 %v4090, 2147483648
    %v4100 = vmul.f32 %v4099, 1.442695
    %v4101 = vpow.pop %v4100
    %v4102 = vadd.f32 %v4101, 1.0
    %v4103 = vrcp.pop %v4102
    %v4104 = vmul.f32 1.0, %v4103
    %v4105 = vtanh.pop %v4091
    %v4106 = vxor.u32 %v4092, 2147483648
    %v4107 = vmul.f32 %v4106, 1.442695
    %v4108 = vpow.pop %v4107
    %v4109 = vadd.f32 %v4108, 1.0
    %v4110 = vrcp.pop %v4109
    %v4111 = vmul.f32 1.0, %v4110
    %v4112 = vmul.f32 %v4104, %v3604
    %v4113 = vmul.f32 %v4098, %v4105
    %v4114 = vadd.f32 %v4112, %v4113
    %v4115 = vtanh.pop %v4114
    %v4116 = vmul.f32 %v4111, %v4115
    %4117 = vmatprep.subr.mxu0 %v924
    %4118 = vmatpush1.msra.mxu0 %v923
    %4119 = vmatprep.subr.mxu0 %v920
    %4120 = vmatpush1.msra.mxu0 %v919
    %4121 = vmatprep.subr.mxu0 %v916
    %4122 = vmatpush1.msra.mxu0 %v915
    %4123 = vmatprep.subr.mxu0 %v912
    %4124 = vmatpush1.msra.mxu0 %v911
    %4125 = vmatprep.subr.mxu0 %v908
    %4126 = vmatpush1.msra.mxu0 %v907
    %4127 = vmatprep.subr.mxu0 %v904
    %4128 = vmatpush1.msra.mxu0 %v903
    %4129 = vmatprep.subr.mxu0 %v900
    %4130 = vmatpush1.msra.mxu0 %v899
    %4131 = vmatprep.subr.mxu0 %v896
    %4132 = vmatpush1.msra.mxu0 %v895
    %4133 = vmatprep.subr.mxu0 %v892
    %4134 = vmatpush1.msra.mxu0 %v891
    %4135 = vmatprep.subr.mxu0 %v888
    %4136 = vmatpush1.msra.mxu0 %v887
    %4137 = vmatprep.subr.mxu0 %v884
    %4138 = vmatpush1.msra.mxu0 %v883
    %4139 = vmatprep.subr.mxu0 %v880
    %4140 = vmatpush1.msra.mxu0 %v879
    %4141 = vmatprep.subr.mxu0 %v876
    %4142 = vmatpush1.msra.mxu0 %v875
    %4143 = vmatprep.subr.mxu0 %v872
    %4144 = vmatpush1.msra.mxu0 %v871
    %4145 = vmatprep.subr.mxu0 %v868
    %4146 = vmatpush1.msra.mxu0 %v867
    %4147 = vmatprep.subr.mxu0 %v864
    %4148 = vmatpush1.msra.mxu0 %v863
    %4149 = vmatprep.subr.mxu0 0.0
    %4150 = vmatpush2.msra.mxu0 0.0
    %4151 = vmatprep.subr.mxu0 0.0
    %4152 = vmatpush2.msra.mxu0 0.0
    %4153 = vmatprep.subr.mxu0 0.0
    %4154 = vmatpush2.msra.mxu0 0.0
    %4155 = vmatprep.subr.mxu0 0.0
    %4156 = vmatpush2.msra.mxu0 0.0
    %4157 = vmatprep.subr.mxu0 0.0
    %4158 = vmatpush2.msra.mxu0 0.0
    %4159 = vmatprep.subr.mxu0 0.0
    %4160 = vmatpush2.msra.mxu0 0.0
    %4161 = vmatprep.subr.mxu0 0.0
    %4162 = vmatpush2.msra.mxu0 0.0
    %4163 = vmatprep.subr.mxu0 0.0
    %4164 = vmatpush2.msra.mxu0 0.0
    %4165 = vmatprep.subr.mxu0 0.0
    %4166 = vmatpush2.msra.mxu0 0.0
    %4167 = vmatprep.subr.mxu0 0.0
    %4168 = vmatpush2.msra.mxu0 0.0
    %4169 = vmatprep.subr.mxu0 0.0
    %4170 = vmatpush2.msra.mxu0 0.0
    %4171 = vmatprep.subr.mxu0 0.0
    %4172 = vmatpush2.msra.mxu0 0.0
    %4173 = vmatprep.subr.mxu0 0.0
    %4174 = vmatpush2.msra.mxu0 0.0
    %4175 = vmatprep.subr.mxu0 0.0
    %4176 = vmatpush2.msra.mxu0 0.0
    %4177 = vmatprep.subr.mxu0 0.0
    %4178 = vmatpush2.msra.mxu0 0.0
    %4179 = vmatprep.subr.mxu0 0.0
    %4180 = vmatpush2.msra.mxu0 0.0
    %4181 = vmatprep.mubr.f32.mxu0 0.0
    %4182 = vmatmul.mubr.f32.gmra.mxu0 %v3776
    %v4183 = vpop.f32.mrf.mxu0
    %v4184 = vadd.f32 0.0, %v4183
    %v4185 = vpop.f32.mrf.mxu0
    %v4186 = vadd.f32 0.0, %v4185
    %4187 = vdwg.mxu0
    %4188 = vmatprep.subr.mxu0 %v926
    %4189 = vmatpush1.msra.mxu0 %v925
    %4190 = vmatprep.subr.mxu0 %v922
    %4191 = vmatpush1.msra.mxu0 %v921
    %4192 = vmatprep.subr.mxu0 %v918
    %4193 = vmatpush1.msra.mxu0 %v917
    %4194 = vmatprep.subr.mxu0 %v914
    %4195 = vmatpush1.msra.mxu0 %v913
    %4196 = vmatprep.subr.mxu0 %v910
    %4197 = vmatpush1.msra.mxu0 %v909
    %4198 = vmatprep.subr.mxu0 %v906
    %4199 = vmatpush1.msra.mxu0 %v905
    %4200 = vmatprep.subr.mxu0 %v902
    %4201 = vmatpush1.msra.mxu0 %v901
    %4202 = vmatprep.subr.mxu0 %v898
    %4203 = vmatpush1.msra.mxu0 %v897
    %4204 = vmatprep.subr.mxu0 %v894
    %4205 = vmatpush1.msra.mxu0 %v893
    %4206 = vmatprep.subr.mxu0 %v890
    %4207 = vmatpush1.msra.mxu0 %v889
    %4208 = vmatprep.subr.mxu0 %v886
    %4209 = vmatpush1.msra.mxu0 %v885
    %4210 = vmatprep.subr.mxu0 %v882
    %4211 = vmatpush1.msra.mxu0 %v881
    %4212 = vmatprep.subr.mxu0 %v878
    %4213 = vmatpush1.msra.mxu0 %v877
    %4214 = vmatprep.subr.mxu0 %v874
    %4215 = vmatpush1.msra.mxu0 %v873
    %4216 = vmatprep.subr.mxu0 %v870
    %4217 = vmatpush1.msra.mxu0 %v869
    %4218 = vmatprep.subr.mxu0 %v866
    %4219 = vmatpush1.msra.mxu0 %v865
    %4220 = vmatprep.subr.mxu0 0.0
    %4221 = vmatpush2.msra.mxu0 0.0
    %4222 = vmatprep.subr.mxu0 0.0
    %4223 = vmatpush2.msra.mxu0 0.0
    %4224 = vmatprep.subr.mxu0 0.0
    %4225 = vmatpush2.msra.mxu0 0.0
    %4226 = vmatprep.subr.mxu0 0.0
    %4227 = vmatpush2.msra.mxu0 0.0
    %4228 = vmatprep.subr.mxu0 0.0
    %4229 = vmatpush2.msra.mxu0 0.0
    %4230 = vmatprep.subr.mxu0 0.0
    %4231 = vmatpush2.msra.mxu0 0.0
    %4232 = vmatprep.subr.mxu0 0.0
    %4233 = vmatpush2.msra.mxu0 0.0
    %4234 = vmatprep.subr.mxu0 0.0
    %4235 = vmatpush2.msra.mxu0 0.0
    %4236 = vmatprep.subr.mxu0 0.0
    %4237 = vmatpush2.msra.mxu0 0.0
    %4238 = vmatprep.subr.mxu0 0.0
    %4239 = vmatpush2.msra.mxu0 0.0
    %4240 = vmatprep.subr.mxu0 0.0
    %4241 = vmatpush2.msra.mxu0 0.0
    %4242 = vmatprep.subr.mxu0 0.0
    %4243 = vmatpush2.msra.mxu0 0.0
    %4244 = vmatprep.subr.mxu0 0.0
    %4245 = vmatpush2.msra.mxu0 0.0
    %4246 = vmatprep.subr.mxu0 0.0
    %4247 = vmatpush2.msra.mxu0 0.0
    %4248 = vmatprep.subr.mxu0 0.0
    %4249 = vmatpush2.msra.mxu0 0.0
    %4250 = vmatprep.subr.mxu0 0.0
    %4251 = vmatpush2.msra.mxu0 0.0
    %4252 = vmatprep.mubr.f32.mxu0 0.0
    %4253 = vmatmul.mubr.f32.gmra.mxu0 %v3776
    %v4254 = vpop.f32.mrf.mxu0
    %v4255 = vadd.f32 0.0, %v4254
    %v4256 = vpop.f32.mrf.mxu0
    %v4257 = vadd.f32 0.0, %v4256
    %4258 = vdwg.mxu0
    %v4259 = vadd.f32 %v288, %v4184
    %v4260 = vadd.f32 %v290, %v4186
    %v4261 = vadd.f32 %v401, %v4255
    %v4262 = vadd.f32 %v403, %v4257
    %v4263 = vxor.u32 %v4259, 2147483648
    %v4264 = vmul.f32 %v4263, 1.442695
    %v4265 = vpow.pop %v4264
    %v4266 = vadd.f32 %v4265, 1.0
    %v4267 = vrcp.pop %v4266
    %v4268 = vmul.f32 1.0, %v4267
    %v4269 = vxor.u32 %v4260, 2147483648
    %v4270 = vmul.f32 %v4269, 1.442695
    %v4271 = vpow.pop %v4270
    %v4272 = vadd.f32 %v4271, 1.0
    %v4273 = vrcp.pop %v4272
    %v4274 = vmul.f32 1.0, %v4273
    %v4275 = vtanh.pop %v4261
    %v4276 = vxor.u32 %v4262, 2147483648
    %v4277 = vmul.f32 %v4276, 1.442695
    %v4278 = vpow.pop %v4277
    %v4279 = vadd.f32 %v4278, 1.0
    %v4280 = vrcp.pop %v4279
    %v4281 = vmul.f32 1.0, %v4280
    %v4282 = vmul.f32 %v4274, %v3774
    %v4283 = vmul.f32 %v4268, %v4275
    %v4284 = vadd.f32 %v4282, %v4283
    %v4285 = vtanh.pop %v4284
    %v4286 = vmul.f32 %v4281, %v4285
    %4287 = vmatprep.subr.mxu0 %v1159
    %4288 = vmatpush1.msra.mxu0 %v1158
    %4289 = vmatprep.subr.mxu0 %v1155
    %4290 = vmatpush1.msra.mxu0 %v1154
    %4291 = vmatprep.subr.mxu0 %v1151
    %4292 = vmatpush1.msra.mxu0 %v1150
    %4293 = vmatprep.subr.mxu0 %v1147
    %4294 = vmatpush1.msra.mxu0 %v1146
    %4295 = vmatprep.subr.mxu0 %v1143
    %4296 = vmatpush1.msra.mxu0 %v1142
    %4297 = vmatprep.subr.mxu0 %v1139
    %4298 = vmatpush1.msra.mxu0 %v1138
    %4299 = vmatprep.subr.mxu0 %v1135
    %4300 = vmatpush1.msra.mxu0 %v1134
    %4301 = vmatprep.subr.mxu0 %v1131
    %4302 = vmatpush1.msra.mxu0 %v1130
    %4303 = vmatprep.subr.mxu0 %v1127
    %4304 = vmatpush1.msra.mxu0 %v1126
    %4305 = vmatprep.subr.mxu0 %v1123
    %4306 = vmatpush1.msra.mxu0 %v1122
    %4307 = vmatprep.subr.mxu0 %v1119
    %4308 = vmatpush1.msra.mxu0 %v1118
    %4309 = vmatprep.subr.mxu0 %v1115
    %4310 = vmatpush1.msra.mxu0 %v1114
    %4311 = vmatprep.subr.mxu0 %v1111
    %4312 = vmatpush1.msra.mxu0 %v1110
    %4313 = vmatprep.subr.mxu0 %v1107
    %4314 = vmatpush1.msra.mxu0 %v1106
    %4315 = vmatprep.subr.mxu0 %v1103
    %4316 = vmatpush1.msra.mxu0 %v1102
    %4317 = vmatprep.subr.mxu0 %v1099
    %4318 = vmatpush1.msra.mxu0 %v1098
    %4319 = vmatprep.subr.mxu0 0.0
    %4320 = vmatpush2.msra.mxu0 0.0
    %4321 = vmatprep.subr.mxu0 0.0
    %4322 = vmatpush2.msra.mxu0 0.0
    %4323 = vmatprep.subr.mxu0 0.0
    %4324 = vmatpush2.msra.mxu0 0.0
    %4325 = vmatprep.subr.mxu0 0.0
    %4326 = vmatpush2.msra.mxu0 0.0
    %4327 = vmatprep.subr.mxu0 0.0
    %4328 = vmatpush2.msra.mxu0 0.0
    %4329 = vmatprep.subr.mxu0 0.0
    %4330 = vmatpush2.msra.mxu0 0.0
    %4331 = vmatprep.subr.mxu0 0.0
    %4332 = vmatpush2.msra.mxu0 0.0
    %4333 = vmatprep.subr.mxu0 0.0
    %4334 = vmatpush2.msra.mxu0 0.0
    %4335 = vmatprep.subr.mxu0 0.0
    %4336 = vmatpush2.msra.mxu0 0.0
    %4337 = vmatprep.subr.mxu0 0.0
    %4338 = vmatpush2.msra.mxu0 0.0
    %4339 = vmatprep.subr.mxu0 0.0
    %4340 = vmatpush2.msra.mxu0 0.0
    %4341 = vmatprep.subr.mxu0 0.0
    %4342 = vmatpush2.msra.mxu0 0.0
    %4343 = vmatprep.subr.mxu0 0.0
    %4344 = vmatpush2.msra.mxu0 0.0
    %4345 = vmatprep.subr.mxu0 0.0
    %4346 = vmatpush2.msra.mxu0 0.0
    %4347 = vmatprep.subr.mxu0 0.0
    %4348 = vmatpush2.msra.mxu0 0.0
    %4349 = vmatprep.subr.mxu0 0.0
    %4350 = vmatpush2.msra.mxu0 0.0
    %4351 = vmatprep.mubr.f32.mxu0 0.0
    %4352 = vmatmul.mubr.f32.gmra.mxu0 %v3946
    %v4353 = vpop.f32.mrf.mxu0
    %v4354 = vadd.f32 0.0, %v4353
    %v4355 = vpop.f32.mrf.mxu0
    %v4356 = vadd.f32 0.0, %v4355
    %4357 = vdwg.mxu0
    %4358 = vmatprep.subr.mxu0 %v1161
    %4359 = vmatpush1.msra.mxu0 %v1160
    %4360 = vmatprep.subr.mxu0 %v1157
    %4361 = vmatpush1.msra.mxu0 %v1156
    %4362 = vmatprep.subr.mxu0 %v1153
    %4363 = vmatpush1.msra.mxu0 %v1152
    %4364 = vmatprep.subr.mxu0 %v1149
    %4365 = vmatpush1.msra.mxu0 %v1148
    %4366 = vmatprep.subr.mxu0 %v1145
    %4367 = vmatpush1.msra.mxu0 %v1144
    %4368 = vmatprep.subr.mxu0 %v1141
    %4369 = vmatpush1.msra.mxu0 %v1140
    %4370 = vmatprep.subr.mxu0 %v1137
    %4371 = vmatpush1.msra.mxu0 %v1136
    %4372 = vmatprep.subr.mxu0 %v1133
    %4373 = vmatpush1.msra.mxu0 %v1132
    %4374 = vmatprep.subr.mxu0 %v1129
    %4375 = vmatpush1.msra.mxu0 %v1128
    %4376 = vmatprep.subr.mxu0 %v1125
    %4377 = vmatpush1.msra.mxu0 %v1124
    %4378 = vmatprep.subr.mxu0 %v1121
    %4379 = vmatpush1.msra.mxu0 %v1120
    %4380 = vmatprep.subr.mxu0 %v1117
    %4381 = vmatpush1.msra.mxu0 %v1116
    %4382 = vmatprep.subr.mxu0 %v1113
    %4383 = vmatpush1.msra.mxu0 %v1112
    %4384 = vmatprep.subr.mxu0 %v1109
    %4385 = vmatpush1.msra.mxu0 %v1108
    %4386 = vmatprep.subr.mxu0 %v1105
    %4387 = vmatpush1.msra.mxu0 %v1104
    %4388 = vmatprep.subr.mxu0 %v1101
    %4389 = vmatpush1.msra.mxu0 %v1100
    %4390 = vmatprep.subr.mxu0 0.0
    %4391 = vmatpush2.msra.mxu0 0.0
    %4392 = vmatprep.subr.mxu0 0.0
    %4393 = vmatpush2.msra.mxu0 0.0
    %4394 = vmatprep.subr.mxu0 0.0
    %4395 = vmatpush2.msra.mxu0 0.0
    %4396 = vmatprep.subr.mxu0 0.0
    %4397 = vmatpush2.msra.mxu0 0.0
    %4398 = vmatprep.subr.mxu0 0.0
    %4399 = vmatpush2.msra.mxu0 0.0
    %4400 = vmatprep.subr.mxu0 0.0
    %4401 = vmatpush2.msra.mxu0 0.0
    %4402 = vmatprep.subr.mxu0 0.0
    %4403 = vmatpush2.msra.mxu0 0.0
    %4404 = vmatprep.subr.mxu0 0.0
    %4405 = vmatpush2.msra.mxu0 0.0
    %4406 = vmatprep.subr.mxu0 0.0
    %4407 = vmatpush2.msra.mxu0 0.0
    %4408 = vmatprep.subr.mxu0 0.0
    %4409 = vmatpush2.msra.mxu0 0.0
    %4410 = vmatprep.subr.mxu0 0.0
    %4411 = vmatpush2.msra.mxu0 0.0
    %4412 = vmatprep.subr.mxu0 0.0
    %4413 = vmatpush2.msra.mxu0 0.0
    %4414 = vmatprep.subr.mxu0 0.0
    %4415 = vmatpush2.msra.mxu0 0.0
    %4416 = vmatprep.subr.mxu0 0.0
    %4417 = vmatpush2.msra.mxu0 0.0
    %4418 = vmatprep.subr.mxu0 0.0
    %4419 = vmatpush2.msra.mxu0 0.0
    %4420 = vmatprep.subr.mxu0 0.0
    %4421 = vmatpush2.msra.mxu0 0.0
    %4422 = vmatprep.mubr.f32.mxu0 0.0
    %4423 = vmatmul.mubr.f32.gmra.mxu0 %v3946
    %v4424 = vpop.f32.mrf.mxu0
    %v4425 = vadd.f32 0.0, %v4424
    %v4426 = vpop.f32.mrf.mxu0
    %v4427 = vadd.f32 0.0, %v4426
    %4428 = vdwg.mxu0
    %v4429 = vadd.f32 %v514, %v4354
    %v4430 = vadd.f32 %v516, %v4356
    %v4431 = vadd.f32 %v627, %v4425
    %v4432 = vadd.f32 %v629, %v4427
    %v4433 = vxor.u32 %v4429, 2147483648
    %v4434 = vmul.f32 %v4433, 1.442695
    %v4435 = vpow.pop %v4434
    %v4436 = vadd.f32 %v4435, 1.0
    %v4437 = vrcp.pop %v4436
    %v4438 = vmul.f32 1.0, %v4437
    %v4439 = vxor.u32 %v4430, 2147483648
    %v4440 = vmul.f32 %v4439, 1.442695
    %v4441 = vpow.pop %v4440
    %v4442 = vadd.f32 %v4441, 1.0
    %v4443 = vrcp.pop %v4442
    %v4444 = vmul.f32 1.0, %v4443
    %v4445 = vtanh.pop %v4431
    %v4446 = vxor.u32 %v4432, 2147483648
    %v4447 = vmul.f32 %v4446, 1.442695
    %v4448 = vpow.pop %v4447
    %v4449 = vadd.f32 %v4448, 1.0
    %v4450 = vrcp.pop %v4449
    %v4451 = vmul.f32 1.0, %v4450
    %v4452 = vmul.f32 %v4444, %v3944
    %v4453 = vmul.f32 %v4438, %v4445
    %v4454 = vadd.f32 %v4452, %v4453
    %v4455 = vtanh.pop %v4454
    %v4456 = vmul.f32 %v4451, %v4455
    %4457 = vmatprep.subr.mxu0 %v1394
    %4458 = vmatpush1.msra.mxu0 %v1393
    %4459 = vmatprep.subr.mxu0 %v1390
    %4460 = vmatpush1.msra.mxu0 %v1389
    %4461 = vmatprep.subr.mxu0 %v1386
    %4462 = vmatpush1.msra.mxu0 %v1385
    %4463 = vmatprep.subr.mxu0 %v1382
    %4464 = vmatpush1.msra.mxu0 %v1381
    %4465 = vmatprep.subr.mxu0 %v1378
    %4466 = vmatpush1.msra.mxu0 %v1377
    %4467 = vmatprep.subr.mxu0 %v1374
    %4468 = vmatpush1.msra.mxu0 %v1373
    %4469 = vmatprep.subr.mxu0 %v1370
    %4470 = vmatpush1.msra.mxu0 %v1369
    %4471 = vmatprep.subr.mxu0 %v1366
    %4472 = vmatpush1.msra.mxu0 %v1365
    %4473 = vmatprep.subr.mxu0 %v1362
    %4474 = vmatpush1.msra.mxu0 %v1361
    %4475 = vmatprep.subr.mxu0 %v1358
    %4476 = vmatpush1.msra.mxu0 %v1357
    %4477 = vmatprep.subr.mxu0 %v1354
    %4478 = vmatpush1.msra.mxu0 %v1353
    %4479 = vmatprep.subr.mxu0 %v1350
    %4480 = vmatpush1.msra.mxu0 %v1349
    %4481 = vmatprep.subr.mxu0 %v1346
    %4482 = vmatpush1.msra.mxu0 %v1345
    %4483 = vmatprep.subr.mxu0 %v1342
    %4484 = vmatpush1.msra.mxu0 %v1341
    %4485 = vmatprep.subr.mxu0 %v1338
    %4486 = vmatpush1.msra.mxu0 %v1337
    %4487 = vmatprep.subr.mxu0 %v1334
    %4488 = vmatpush1.msra.mxu0 %v1333
    %4489 = vmatprep.subr.mxu0 0.0
    %4490 = vmatpush2.msra.mxu0 0.0
    %4491 = vmatprep.subr.mxu0 0.0
    %4492 = vmatpush2.msra.mxu0 0.0
    %4493 = vmatprep.subr.mxu0 0.0
    %4494 = vmatpush2.msra.mxu0 0.0
    %4495 = vmatprep.subr.mxu0 0.0
    %4496 = vmatpush2.msra.mxu0 0.0
    %4497 = vmatprep.subr.mxu0 0.0
    %4498 = vmatpush2.msra.mxu0 0.0
    %4499 = vmatprep.subr.mxu0 0.0
    %4500 = vmatpush2.msra.mxu0 0.0
    %4501 = vmatprep.subr.mxu0 0.0
    %4502 = vmatpush2.msra.mxu0 0.0
    %4503 = vmatprep.subr.mxu0 0.0
    %4504 = vmatpush2.msra.mxu0 0.0
    %4505 = vmatprep.subr.mxu0 0.0
    %4506 = vmatpush2.msra.mxu0 0.0
    %4507 = vmatprep.subr.mxu0 0.0
    %4508 = vmatpush2.msra.mxu0 0.0
    %4509 = vmatprep.subr.mxu0 0.0
    %4510 = vmatpush2.msra.mxu0 0.0
    %4511 = vmatprep.subr.mxu0 0.0
    %4512 = vmatpush2.msra.mxu0 0.0
    %4513 = vmatprep.subr.mxu0 0.0
    %4514 = vmatpush2.msra.mxu0 0.0
    %4515 = vmatprep.subr.mxu0 0.0
    %4516 = vmatpush2.msra.mxu0 0.0
    %4517 = vmatprep.subr.mxu0 0.0
    %4518 = vmatpush2.msra.mxu0 0.0
    %4519 = vmatprep.subr.mxu0 0.0
    %4520 = vmatpush2.msra.mxu0 0.0
    %4521 = vmatprep.mubr.f32.mxu0 0.0
    %4522 = vmatmul.mubr.f32.gmra.mxu0 %v4116
    %v4523 = vpop.f32.mrf.mxu0
    %v4524 = vadd.f32 0.0, %v4523
    %v4525 = vpop.f32.mrf.mxu0
    %v4526 = vadd.f32 0.0, %v4525
    %4527 = vdwg.mxu0
    %4528 = vmatprep.subr.mxu0 %v1396
    %4529 = vmatpush1.msra.mxu0 %v1395
    %4530 = vmatprep.subr.mxu0 %v1392
    %4531 = vmatpush1.msra.mxu0 %v1391
    %4532 = vmatprep.subr.mxu0 %v1388
    %4533 = vmatpush1.msra.mxu0 %v1387
    %4534 = vmatprep.subr.mxu0 %v1384
    %4535 = vmatpush1.msra.mxu0 %v1383
    %4536 = vmatprep.subr.mxu0 %v1380
    %4537 = vmatpush1.msra.mxu0 %v1379
    %4538 = vmatprep.subr.mxu0 %v1376
    %4539 = vmatpush1.msra.mxu0 %v1375
    %4540 = vmatprep.subr.mxu0 %v1372
    %4541 = vmatpush1.msra.mxu0 %v1371
    %4542 = vmatprep.subr.mxu0 %v1368
    %4543 = vmatpush1.msra.mxu0 %v1367
    %4544 = vmatprep.subr.mxu0 %v1364
    %4545 = vmatpush1.msra.mxu0 %v1363
    %4546 = vmatprep.subr.mxu0 %v1360
    %4547 = vmatpush1.msra.mxu0 %v1359
    %4548 = vmatprep.subr.mxu0 %v1356
    %4549 = vmatpush1.msra.mxu0 %v1355
    %4550 = vmatprep.subr.mxu0 %v1352
    %4551 = vmatpush1.msra.mxu0 %v1351
    %4552 = vmatprep.subr.mxu0 %v1348
    %4553 = vmatpush1.msra.mxu0 %v1347
    %4554 = vmatprep.subr.mxu0 %v1344
    %4555 = vmatpush1.msra.mxu0 %v1343
    %4556 = vmatprep.subr.mxu0 %v1340
    %4557 = vmatpush1.msra.mxu0 %v1339
    %4558 = vmatprep.subr.mxu0 %v1336
    %4559 = vmatpush1.msra.mxu0 %v1335
    %4560 = vmatprep.subr.mxu0 0.0
    %4561 = vmatpush2.msra.mxu0 0.0
    %4562 = vmatprep.subr.mxu0 0.0
    %4563 = vmatpush2.msra.mxu0 0.0
    %4564 = vmatprep.subr.mxu0 0.0
    %4565 = vmatpush2.msra.mxu0 0.0
    %4566 = vmatprep.subr.mxu0 0.0
    %4567 = vmatpush2.msra.mxu0 0.0
    %4568 = vmatprep.subr.mxu0 0.0
    %4569 = vmatpush2.msra.mxu0 0.0
    %4570 = vmatprep.subr.mxu0 0.0
    %4571 = vmatpush2.msra.mxu0 0.0
    %4572 = vmatprep.subr.mxu0 0.0
    %4573 = vmatpush2.msra.mxu0 0.0
    %4574 = vmatprep.subr.mxu0 0.0
    %4575 = vmatpush2.msra.mxu0 0.0
    %4576 = vmatprep.subr.mxu0 0.0
    %4577 = vmatpush2.msra.mxu0 0.0
    %4578 = vmatprep.subr.mxu0 0.0
    %4579 = vmatpush2.msra.mxu0 0.0
    %4580 = vmatprep.subr.mxu0 0.0
    %4581 = vmatpush2.msra.mxu0 0.0
    %4582 = vmatprep.subr.mxu0 0.0
    %4583 = vmatpush2.msra.mxu0 0.0
    %4584 = vmatprep.subr.mxu0 0.0
    %4585 = vmatpush2.msra.mxu0 0.0
    %4586 = vmatprep.subr.mxu0 0.0
    %4587 = vmatpush2.msra.mxu0 0.0
    %4588 = vmatprep.subr.mxu0 0.0
    %4589 = vmatpush2.msra.mxu0 0.0
    %4590 = vmatprep.subr.mxu0 0.0
    %4591 = vmatpush2.msra.mxu0 0.0
    %4592 = vmatprep.mubr.f32.mxu0 0.0
    %4593 = vmatmul.mubr.f32.gmra.mxu0 %v4116
    %v4594 = vpop.f32.mrf.mxu0
    %v4595 = vadd.f32 0.0, %v4594
    %v4596 = vpop.f32.mrf.mxu0
    %v4597 = vadd.f32 0.0, %v4596
    %4598 = vdwg.mxu0
    %v4599 = vadd.f32 %v740, %v4524
    %v4600 = vadd.f32 %v742, %v4526
    %v4601 = vadd.f32 %v853, %v4595
    %v4602 = vadd.f32 %v855, %v4597
    %v4603 = vxor.u32 %v4599, 2147483648
    %v4604 = vmul.f32 %v4603, 1.442695
    %v4605 = vpow.pop %v4604
    %v4606 = vadd.f32 %v4605, 1.0
    %v4607 = vrcp.pop %v4606
    %v4608 = vmul.f32 1.0, %v4607
    %v4609 = vxor.u32 %v4600, 2147483648
    %v4610 = vmul.f32 %v4609, 1.442695
    %v4611 = vpow.pop %v4610
    %v4612 = vadd.f32 %v4611, 1.0
    %v4613 = vrcp.pop %v4612
    %v4614 = vmul.f32 1.0, %v4613
    %v4615 = vtanh.pop %v4601
    %v4616 = vxor.u32 %v4602, 2147483648
    %v4617 = vmul.f32 %v4616, 1.442695
    %v4618 = vpow.pop %v4617
    %v4619 = vadd.f32 %v4618, 1.0
    %v4620 = vrcp.pop %v4619
    %v4621 = vmul.f32 1.0, %v4620
    %v4622 = vmul.f32 %v4614, %v4114
    %v4623 = vmul.f32 %v4608, %v4615
    %v4624 = vadd.f32 %v4622, %v4623
    %v4625 = vtanh.pop %v4624
    %v4626 = vmul.f32 %v4621, %v4625
    %4627 = vmatprep.subr.mxu0 %v924
    %4628 = vmatpush1.msra.mxu0 %v923
    %4629 = vmatprep.subr.mxu0 %v920
    %4630 = vmatpush1.msra.mxu0 %v919
    %4631 = vmatprep.subr.mxu0 %v916
    %4632 = vmatpush1.msra.mxu0 %v915
    %4633 = vmatprep.subr.mxu0 %v912
    %4634 = vmatpush1.msra.mxu0 %v911
    %4635 = vmatprep.subr.mxu0 %v908
    %4636 = vmatpush1.msra.mxu0 %v907
    %4637 = vmatprep.subr.mxu0 %v904
    %4638 = vmatpush1.msra.mxu0 %v903
    %4639 = vmatprep.subr.mxu0 %v900
    %4640 = vmatpush1.msra.mxu0 %v899
    %4641 = vmatprep.subr.mxu0 %v896
    %4642 = vmatpush1.msra.mxu0 %v895
    %4643 = vmatprep.subr.mxu0 %v892
    %4644 = vmatpush1.msra.mxu0 %v891
    %4645 = vmatprep.subr.mxu0 %v888
    %4646 = vmatpush1.msra.mxu0 %v887
    %4647 = vmatprep.subr.mxu0 %v884
    %4648 = vmatpush1.msra.mxu0 %v883
    %4649 = vmatprep.subr.mxu0 %v880
    %4650 = vmatpush1.msra.mxu0 %v879
    %4651 = vmatprep.subr.mxu0 %v876
    %4652 = vmatpush1.msra.mxu0 %v875
    %4653 = vmatprep.subr.mxu0 %v872
    %4654 = vmatpush1.msra.mxu0 %v871
    %4655 = vmatprep.subr.mxu0 %v868
    %4656 = vmatpush1.msra.mxu0 %v867
    %4657 = vmatprep.subr.mxu0 %v864
    %4658 = vmatpush1.msra.mxu0 %v863
    %4659 = vmatprep.subr.mxu0 0.0
    %4660 = vmatpush2.msra.mxu0 0.0
    %4661 = vmatprep.subr.mxu0 0.0
    %4662 = vmatpush2.msra.mxu0 0.0
    %4663 = vmatprep.subr.mxu0 0.0
    %4664 = vmatpush2.msra.mxu0 0.0
    %4665 = vmatprep.subr.mxu0 0.0
    %4666 = vmatpush2.msra.mxu0 0.0
    %4667 = vmatprep.subr.mxu0 0.0
    %4668 = vmatpush2.msra.mxu0 0.0
    %4669 = vmatprep.subr.mxu0 0.0
    %4670 = vmatpush2.msra.mxu0 0.0
    %4671 = vmatprep.subr.mxu0 0.0
    %4672 = vmatpush2.msra.mxu0 0.0
    %4673 = vmatprep.subr.mxu0 0.0
    %4674 = vmatpush2.msra.mxu0 0.0
    %4675 = vmatprep.subr.mxu0 0.0
    %4676 = vmatpush2.msra.mxu0 0.0
    %4677 = vmatprep.subr.mxu0 0.0
    %4678 = vmatpush2.msra.mxu0 0.0
    %4679 = vmatprep.subr.mxu0 0.0
    %4680 = vmatpush2.msra.mxu0 0.0
    %4681 = vmatprep.subr.mxu0 0.0
    %4682 = vmatpush2.msra.mxu0 0.0
    %4683 = vmatprep.subr.mxu0 0.0
    %4684 = vmatpush2.msra.mxu0 0.0
    %4685 = vmatprep.subr.mxu0 0.0
    %4686 = vmatpush2.msra.mxu0 0.0
    %4687 = vmatprep.subr.mxu0 0.0
    %4688 = vmatpush2.msra.mxu0 0.0
    %4689 = vmatprep.subr.mxu0 0.0
    %4690 = vmatpush2.msra.mxu0 0.0
    %4691 = vmatprep.mubr.f32.mxu0 0.0
    %4692 = vmatmul.mubr.f32.gmra.mxu0 %v4286
    %v4693 = vpop.f32.mrf.mxu0
    %v4694 = vadd.f32 0.0, %v4693
    %v4695 = vpop.f32.mrf.mxu0
    %v4696 = vadd.f32 0.0, %v4695
    %4697 = vdwg.mxu0
    %4698 = vmatprep.subr.mxu0 %v926
    %4699 = vmatpush1.msra.mxu0 %v925
    %4700 = vmatprep.subr.mxu0 %v922
    %4701 = vmatpush1.msra.mxu0 %v921
    %4702 = vmatprep.subr.mxu0 %v918
    %4703 = vmatpush1.msra.mxu0 %v917
    %4704 = vmatprep.subr.mxu0 %v914
    %4705 = vmatpush1.msra.mxu0 %v913
    %4706 = vmatprep.subr.mxu0 %v910
    %4707 = vmatpush1.msra.mxu0 %v909
    %4708 = vmatprep.subr.mxu0 %v906
    %4709 = vmatpush1.msra.mxu0 %v905
    %4710 = vmatprep.subr.mxu0 %v902
    %4711 = vmatpush1.msra.mxu0 %v901
    %4712 = vmatprep.subr.mxu0 %v898
    %4713 = vmatpush1.msra.mxu0 %v897
    %4714 = vmatprep.subr.mxu0 %v894
    %4715 = vmatpush1.msra.mxu0 %v893
    %4716 = vmatprep.subr.mxu0 %v890
    %4717 = vmatpush1.msra.mxu0 %v889
    %4718 = vmatprep.subr.mxu0 %v886
    %4719 = vmatpush1.msra.mxu0 %v885
    %4720 = vmatprep.subr.mxu0 %v882
    %4721 = vmatpush1.msra.mxu0 %v881
    %4722 = vmatprep.subr.mxu0 %v878
    %4723 = vmatpush1.msra.mxu0 %v877
    %4724 = vmatprep.subr.mxu0 %v874
    %4725 = vmatpush1.msra.mxu0 %v873
    %4726 = vmatprep.subr.mxu0 %v870
    %4727 = vmatpush1.msra.mxu0 %v869
    %4728 = vmatprep.subr.mxu0 %v866
    %4729 = vmatpush1.msra.mxu0 %v865
    %4730 = vmatprep.subr.mxu0 0.0
    %4731 = vmatpush2.msra.mxu0 0.0
    %4732 = vmatprep.subr.mxu0 0.0
    %4733 = vmatpush2.msra.mxu0 0.0
    %4734 = vmatprep.subr.mxu0 0.0
    %4735 = vmatpush2.msra.mxu0 0.0
    %4736 = vmatprep.subr.mxu0 0.0
    %4737 = vmatpush2.msra.mxu0 0.0
    %4738 = vmatprep.subr.mxu0 0.0
    %4739 = vmatpush2.msra.mxu0 0.0
    %4740 = vmatprep.subr.mxu0 0.0
    %4741 = vmatpush2.msra.mxu0 0.0
    %4742 = vmatprep.subr.mxu0 0.0
    %4743 = vmatpush2.msra.mxu0 0.0
    %4744 = vmatprep.subr.mxu0 0.0
    %4745 = vmatpush2.msra.mxu0 0.0
    %4746 = vmatprep.subr.mxu0 0.0
    %4747 = vmatpush2.msra.mxu0 0.0
    %4748 = vmatprep.subr.mxu0 0.0
    %4749 = vmatpush2.msra.mxu0 0.0
    %4750 = vmatprep.subr.mxu0 0.0
    %4751 = vmatpush2.msra.mxu0 0.0
    %4752 = vmatprep.subr.mxu0 0.0
    %4753 = vmatpush2.msra.mxu0 0.0
    %4754 = vmatprep.subr.mxu0 0.0
    %4755 = vmatpush2.msra.mxu0 0.0
    %4756 = vmatprep.subr.mxu0 0.0
    %4757 = vmatpush2.msra.mxu0 0.0
    %4758 = vmatprep.subr.mxu0 0.0
    %4759 = vmatpush2.msra.mxu0 0.0
    %4760 = vmatprep.subr.mxu0 0.0
    %4761 = vmatpush2.msra.mxu0 0.0
    %4762 = vmatprep.mubr.f32.mxu0 0.0
    %4763 = vmatmul.mubr.f32.gmra.mxu0 %v4286
    %v4764 = vpop.f32.mrf.mxu0
    %v4765 = vadd.f32 0.0, %v4764
    %v4766 = vpop.f32.mrf.mxu0
    %v4767 = vadd.f32 0.0, %v4766
    %4768 = vdwg.mxu0
    %v4769 = vadd.f32 %v294, %v4694
    %v4770 = vadd.f32 %v296, %v4696
    %v4771 = vadd.f32 %v407, %v4765
    %v4772 = vadd.f32 %v409, %v4767
    %v4773 = vxor.u32 %v4769, 2147483648
    %v4774 = vmul.f32 %v4773, 1.442695
    %v4775 = vpow.pop %v4774
    %v4776 = vadd.f32 %v4775, 1.0
    %v4777 = vrcp.pop %v4776
    %v4778 = vmul.f32 1.0, %v4777
    %v4779 = vxor.u32 %v4770, 2147483648
    %v4780 = vmul.f32 %v4779, 1.442695
    %v4781 = vpow.pop %v4780
    %v4782 = vadd.f32 %v4781, 1.0
    %v4783 = vrcp.pop %v4782
    %v4784 = vmul.f32 1.0, %v4783
    %v4785 = vtanh.pop %v4771
    %v4786 = vxor.u32 %v4772, 2147483648
    %v4787 = vmul.f32 %v4786, 1.442695
    %v4788 = vpow.pop %v4787
    %v4789 = vadd.f32 %v4788, 1.0
    %v4790 = vrcp.pop %v4789
    %v4791 = vmul.f32 1.0, %v4790
    %v4792 = vmul.f32 %v4784, %v4284
    %v4793 = vmul.f32 %v4778, %v4785
    %v4794 = vadd.f32 %v4792, %v4793
    %v4795 = vtanh.pop %v4794
    %v4796 = vmul.f32 %v4791, %v4795
    %4797 = vmatprep.subr.mxu0 %v1159
    %4798 = vmatpush1.msra.mxu0 %v1158
    %4799 = vmatprep.subr.mxu0 %v1155
    %4800 = vmatpush1.msra.mxu0 %v1154
    %4801 = vmatprep.subr.mxu0 %v1151
    %4802 = vmatpush1.msra.mxu0 %v1150
    %4803 = vmatprep.subr.mxu0 %v1147
    %4804 = vmatpush1.msra.mxu0 %v1146
    %4805 = vmatprep.subr.mxu0 %v1143
    %4806 = vmatpush1.msra.mxu0 %v1142
    %4807 = vmatprep.subr.mxu0 %v1139
    %4808 = vmatpush1.msra.mxu0 %v1138
    %4809 = vmatprep.subr.mxu0 %v1135
    %4810 = vmatpush1.msra.mxu0 %v1134
    %4811 = vmatprep.subr.mxu0 %v1131
    %4812 = vmatpush1.msra.mxu0 %v1130
    %4813 = vmatprep.subr.mxu0 %v1127
    %4814 = vmatpush1.msra.mxu0 %v1126
    %4815 = vmatprep.subr.mxu0 %v1123
    %4816 = vmatpush1.msra.mxu0 %v1122
    %4817 = vmatprep.subr.mxu0 %v1119
    %4818 = vmatpush1.msra.mxu0 %v1118
    %4819 = vmatprep.subr.mxu0 %v1115
    %4820 = vmatpush1.msra.mxu0 %v1114
    %4821 = vmatprep.subr.mxu0 %v1111
    %4822 = vmatpush1.msra.mxu0 %v1110
    %4823 = vmatprep.subr.mxu0 %v1107
    %4824 = vmatpush1.msra.mxu0 %v1106
    %4825 = vmatprep.subr.mxu0 %v1103
    %4826 = vmatpush1.msra.mxu0 %v1102
    %4827 = vmatprep.subr.mxu0 %v1099
    %4828 = vmatpush1.msra.mxu0 %v1098
    %4829 = vmatprep.subr.mxu0 0.0
    %4830 = vmatpush2.msra.mxu0 0.0
    %4831 = vmatprep.subr.mxu0 0.0
    %4832 = vmatpush2.msra.mxu0 0.0
    %4833 = vmatprep.subr.mxu0 0.0
    %4834 = vmatpush2.msra.mxu0 0.0
    %4835 = vmatprep.subr.mxu0 0.0
    %4836 = vmatpush2.msra.mxu0 0.0
    %4837 = vmatprep.subr.mxu0 0.0
    %4838 = vmatpush2.msra.mxu0 0.0
    %4839 = vmatprep.subr.mxu0 0.0
    %4840 = vmatpush2.msra.mxu0 0.0
    %4841 = vmatprep.subr.mxu0 0.0
    %4842 = vmatpush2.msra.mxu0 0.0
    %4843 = vmatprep.subr.mxu0 0.0
    %4844 = vmatpush2.msra.mxu0 0.0
    %4845 = vmatprep.subr.mxu0 0.0
    %4846 = vmatpush2.msra.mxu0 0.0
    %4847 = vmatprep.subr.mxu0 0.0
    %4848 = vmatpush2.msra.mxu0 0.0
    %4849 = vmatprep.subr.mxu0 0.0
    %4850 = vmatpush2.msra.mxu0 0.0
    %4851 = vmatprep.subr.mxu0 0.0
    %4852 = vmatpush2.msra.mxu0 0.0
    %4853 = vmatprep.subr.mxu0 0.0
    %4854 = vmatpush2.msra.mxu0 0.0
    %4855 = vmatprep.subr.mxu0 0.0
    %4856 = vmatpush2.msra.mxu0 0.0
    %4857 = vmatprep.subr.mxu0 0.0
    %4858 = vmatpush2.msra.mxu0 0.0
    %4859 = vmatprep.subr.mxu0 0.0
    %4860 = vmatpush2.msra.mxu0 0.0
    %4861 = vmatprep.mubr.f32.mxu0 0.0
    %4862 = vmatmul.mubr.f32.gmra.mxu0 %v4456
    %v4863 = vpop.f32.mrf.mxu0
    %v4864 = vadd.f32 0.0, %v4863
    %v4865 = vpop.f32.mrf.mxu0
    %v4866 = vadd.f32 0.0, %v4865
    %4867 = vdwg.mxu0
    %4868 = vmatprep.subr.mxu0 %v1161
    %4869 = vmatpush1.msra.mxu0 %v1160
    %4870 = vmatprep.subr.mxu0 %v1157
    %4871 = vmatpush1.msra.mxu0 %v1156
    %4872 = vmatprep.subr.mxu0 %v1153
    %4873 = vmatpush1.msra.mxu0 %v1152
    %4874 = vmatprep.subr.mxu0 %v1149
    %4875 = vmatpush1.msra.mxu0 %v1148
    %4876 = vmatprep.subr.mxu0 %v1145
    %4877 = vmatpush1.msra.mxu0 %v1144
    %4878 = vmatprep.subr.mxu0 %v1141
    %4879 = vmatpush1.msra.mxu0 %v1140
    %4880 = vmatprep.subr.mxu0 %v1137
    %4881 = vmatpush1.msra.mxu0 %v1136
    %4882 = vmatprep.subr.mxu0 %v1133
    %4883 = vmatpush1.msra.mxu0 %v1132
    %4884 = vmatprep.subr.mxu0 %v1129
    %4885 = vmatpush1.msra.mxu0 %v1128
    %4886 = vmatprep.subr.mxu0 %v1125
    %4887 = vmatpush1.msra.mxu0 %v1124
    %4888 = vmatprep.subr.mxu0 %v1121
    %4889 = vmatpush1.msra.mxu0 %v1120
    %4890 = vmatprep.subr.mxu0 %v1117
    %4891 = vmatpush1.msra.mxu0 %v1116
    %4892 = vmatprep.subr.mxu0 %v1113
    %4893 = vmatpush1.msra.mxu0 %v1112
    %4894 = vmatprep.subr.mxu0 %v1109
    %4895 = vmatpush1.msra.mxu0 %v1108
    %4896 = vmatprep.subr.mxu0 %v1105
    %4897 = vmatpush1.msra.mxu0 %v1104
    %4898 = vmatprep.subr.mxu0 %v1101
    %4899 = vmatpush1.msra.mxu0 %v1100
    %4900 = vmatprep.subr.mxu0 0.0
    %4901 = vmatpush2.msra.mxu0 0.0
    %4902 = vmatprep.subr.mxu0 0.0
    %4903 = vmatpush2.msra.mxu0 0.0
    %4904 = vmatprep.subr.mxu0 0.0
    %4905 = vmatpush2.msra.mxu0 0.0
    %4906 = vmatprep.subr.mxu0 0.0
    %4907 = vmatpush2.msra.mxu0 0.0
    %4908 = vmatprep.subr.mxu0 0.0
    %4909 = vmatpush2.msra.mxu0 0.0
    %4910 = vmatprep.subr.mxu0 0.0
    %4911 = vmatpush2.msra.mxu0 0.0
    %4912 = vmatprep.subr.mxu0 0.0
    %4913 = vmatpush2.msra.mxu0 0.0
    %4914 = vmatprep.subr.mxu0 0.0
    %4915 = vmatpush2.msra.mxu0 0.0
    %4916 = vmatprep.subr.mxu0 0.0
    %4917 = vmatpush2.msra.mxu0 0.0
    %4918 = vmatprep.subr.mxu0 0.0
    %4919 = vmatpush2.msra.mxu0 0.0
    %4920 = vmatprep.subr.mxu0 0.0
    %4921 = vmatpush2.msra.mxu0 0.0
    %4922 = vmatprep.subr.mxu0 0.0
    %4923 = vmatpush2.msra.mxu0 0.0
    %4924 = vmatprep.subr.mxu0 0.0
    %4925 = vmatpush2.msra.mxu0 0.0
    %4926 = vmatprep.subr.mxu0 0.0
    %4927 = vmatpush2.msra.mxu0 0.0
    %4928 = vmatprep.subr.mxu0 0.0
    %4929 = vmatpush2.msra.mxu0 0.0
    %4930 = vmatprep.subr.mxu0 0.0
    %4931 = vmatpush2.msra.mxu0 0.0
    %4932 = vmatprep.mubr.f32.mxu0 0.0
    %4933 = vmatmul.mubr.f32.gmra.mxu0 %v4456
    %v4934 = vpop.f32.mrf.mxu0
    %v4935 = vadd.f32 0.0, %v4934
    %v4936 = vpop.f32.mrf.mxu0
    %v4937 = vadd.f32 0.0, %v4936
    %4938 = vdwg.mxu0
    %v4939 = vadd.f32 %v520, %v4864
    %v4940 = vadd.f32 %v522, %v4866
    %v4941 = vadd.f32 %v633, %v4935
    %v4942 = vadd.f32 %v635, %v4937
    %v4943 = vxor.u32 %v4939, 2147483648
    %v4944 = vmul.f32 %v4943, 1.442695
    %v4945 = vpow.pop %v4944
    %v4946 = vadd.f32 %v4945, 1.0
    %v4947 = vrcp.pop %v4946
    %v4948 = vmul.f32 1.0, %v4947
    %v4949 = vxor.u32 %v4940, 2147483648
    %v4950 = vmul.f32 %v4949, 1.442695
    %v4951 = vpow.pop %v4950
    %v4952 = vadd.f32 %v4951, 1.0
    %v4953 = vrcp.pop %v4952
    %v4954 = vmul.f32 1.0, %v4953
    %v4955 = vtanh.pop %v4941
    %v4956 = vxor.u32 %v4942, 2147483648
    %v4957 = vmul.f32 %v4956, 1.442695
    %v4958 = vpow.pop %v4957
    %v4959 = vadd.f32 %v4958, 1.0
    %v4960 = vrcp.pop %v4959
    %v4961 = vmul.f32 1.0, %v4960
    %v4962 = vmul.f32 %v4954, %v4454
    %v4963 = vmul.f32 %v4948, %v4955
    %v4964 = vadd.f32 %v4962, %v4963
    %v4965 = vtanh.pop %v4964
    %v4966 = vmul.f32 %v4961, %v4965
    %4967 = vmatprep.subr.mxu0 %v1394
    %4968 = vmatpush1.msra.mxu0 %v1393
    %4969 = vmatprep.subr.mxu0 %v1390
    %4970 = vmatpush1.msra.mxu0 %v1389
    %4971 = vmatprep.subr.mxu0 %v1386
    %4972 = vmatpush1.msra.mxu0 %v1385
    %4973 = vmatprep.subr.mxu0 %v1382
    %4974 = vmatpush1.msra.mxu0 %v1381
    %4975 = vmatprep.subr.mxu0 %v1378
    %4976 = vmatpush1.msra.mxu0 %v1377
    %4977 = vmatprep.subr.mxu0 %v1374
    %4978 = vmatpush1.msra.mxu0 %v1373
    %4979 = vmatprep.subr.mxu0 %v1370
    %4980 = vmatpush1.msra.mxu0 %v1369
    %4981 = vmatprep.subr.mxu0 %v1366
    %4982 = vmatpush1.msra.mxu0 %v1365
    %4983 = vmatprep.subr.mxu0 %v1362
    %4984 = vmatpush1.msra.mxu0 %v1361
    %4985 = vmatprep.subr.mxu0 %v1358
    %4986 = vmatpush1.msra.mxu0 %v1357
    %4987 = vmatprep.subr.mxu0 %v1354
    %4988 = vmatpush1.msra.mxu0 %v1353
    %4989 = vmatprep.subr.mxu0 %v1350
    %4990 = vmatpush1.msra.mxu0 %v1349
    %4991 = vmatprep.subr.mxu0 %v1346
    %4992 = vmatpush1.msra.mxu0 %v1345
    %4993 = vmatprep.subr.mxu0 %v1342
    %4994 = vmatpush1.msra.mxu0 %v1341
    %4995 = vmatprep.subr.mxu0 %v1338
    %4996 = vmatpush1.msra.mxu0 %v1337
    %4997 = vmatprep.subr.mxu0 %v1334
    %4998 = vmatpush1.msra.mxu0 %v1333
    %4999 = vmatprep.subr.mxu0 0.0
    %5000 = vmatpush2.msra.mxu0 0.0
    %5001 = vmatprep.subr.mxu0 0.0
    %5002 = vmatpush2.msra.mxu0 0.0
    %5003 = vmatprep.subr.mxu0 0.0
    %5004 = vmatpush2.msra.mxu0 0.0
    %5005 = vmatprep.subr.mxu0 0.0
    %5006 = vmatpush2.msra.mxu0 0.0
    %5007 = vmatprep.subr.mxu0 0.0
    %5008 = vmatpush2.msra.mxu0 0.0
    %5009 = vmatprep.subr.mxu0 0.0
    %5010 = vmatpush2.msra.mxu0 0.0
    %5011 = vmatprep.subr.mxu0 0.0
    %5012 = vmatpush2.msra.mxu0 0.0
    %5013 = vmatprep.subr.mxu0 0.0
    %5014 = vmatpush2.msra.mxu0 0.0
    %5015 = vmatprep.subr.mxu0 0.0
    %5016 = vmatpush2.msra.mxu0 0.0
    %5017 = vmatprep.subr.mxu0 0.0
    %5018 = vmatpush2.msra.mxu0 0.0
    %5019 = vmatprep.subr.mxu0 0.0
    %5020 = vmatpush2.msra.mxu0 0.0
    %5021 = vmatprep.subr.mxu0 0.0
    %5022 = vmatpush2.msra.mxu0 0.0
    %5023 = vmatprep.subr.mxu0 0.0
    %5024 = vmatpush2.msra.mxu0 0.0
    %5025 = vmatprep.subr.mxu0 0.0
    %5026 = vmatpush2.msra.mxu0 0.0
    %5027 = vmatprep.subr.mxu0 0.0
    %5028 = vmatpush2.msra.mxu0 0.0
    %5029 = vmatprep.subr.mxu0 0.0
    %5030 = vmatpush2.msra.mxu0 0.0
    %5031 = vmatprep.mubr.f32.mxu0 0.0
    %5032 = vmatmul.mubr.f32.gmra.mxu0 %v4626
    %v5033 = vpop.f32.mrf.mxu0
    %v5034 = vadd.f32 0.0, %v5033
    %v5035 = vpop.f32.mrf.mxu0
    %v5036 = vadd.f32 0.0, %v5035
    %5037 = vdwg.mxu0
    %5038 = vmatprep.subr.mxu0 %v1396
    %5039 = vmatpush1.msra.mxu0 %v1395
    %5040 = vmatprep.subr.mxu0 %v1392
    %5041 = vmatpush1.msra.mxu0 %v1391
    %5042 = vmatprep.subr.mxu0 %v1388
    %5043 = vmatpush1.msra.mxu0 %v1387
    %5044 = vmatprep.subr.mxu0 %v1384
    %5045 = vmatpush1.msra.mxu0 %v1383
    %5046 = vmatprep.subr.mxu0 %v1380
    %5047 = vmatpush1.msra.mxu0 %v1379
    %5048 = vmatprep.subr.mxu0 %v1376
    %5049 = vmatpush1.msra.mxu0 %v1375
    %5050 = vmatprep.subr.mxu0 %v1372
    %5051 = vmatpush1.msra.mxu0 %v1371
    %5052 = vmatprep.subr.mxu0 %v1368
    %5053 = vmatpush1.msra.mxu0 %v1367
    %5054 = vmatprep.subr.mxu0 %v1364
    %5055 = vmatpush1.msra.mxu0 %v1363
    %5056 = vmatprep.subr.mxu0 %v1360
    %5057 = vmatpush1.msra.mxu0 %v1359
    %5058 = vmatprep.subr.mxu0 %v1356
    %5059 = vmatpush1.msra.mxu0 %v1355
    %5060 = vmatprep.subr.mxu0 %v1352
    %5061 = vmatpush1.msra.mxu0 %v1351
    %5062 = vmatprep.subr.mxu0 %v1348
    %5063 = vmatpush1.msra.mxu0 %v1347
    %5064 = vmatprep.subr.mxu0 %v1344
    %5065 = vmatpush1.msra.mxu0 %v1343
    %5066 = vmatprep.subr.mxu0 %v1340
    %5067 = vmatpush1.msra.mxu0 %v1339
    %5068 = vmatprep.subr.mxu0 %v1336
    %5069 = vmatpush1.msra.mxu0 %v1335
    %5070 = vmatprep.subr.mxu0 0.0
    %5071 = vmatpush2.msra.mxu0 0.0
    %5072 = vmatprep.subr.mxu0 0.0
    %5073 = vmatpush2.msra.mxu0 0.0
    %5074 = vmatprep.subr.mxu0 0.0
    %5075 = vmatpush2.msra.mxu0 0.0
    %5076 = vmatprep.subr.mxu0 0.0
    %5077 = vmatpush2.msra.mxu0 0.0
    %5078 = vmatprep.subr.mxu0 0.0
    %5079 = vmatpush2.msra.mxu0 0.0
    %5080 = vmatprep.subr.mxu0 0.0
    %5081 = vmatpush2.msra.mxu0 0.0
    %5082 = vmatprep.subr.mxu0 0.0
    %5083 = vmatpush2.msra.mxu0 0.0
    %5084 = vmatprep.subr.mxu0 0.0
    %5085 = vmatpush2.msra.mxu0 0.0
    %5086 = vmatprep.subr.mxu0 0.0
    %5087 = vmatpush2.msra.mxu0 0.0
    %5088 = vmatprep.subr.mxu0 0.0
    %5089 = vmatpush2.msra.mxu0 0.0
    %5090 = vmatprep.subr.mxu0 0.0
    %5091 = vmatpush2.msra.mxu0 0.0
    %5092 = vmatprep.subr.mxu0 0.0
    %5093 = vmatpush2.msra.mxu0 0.0
    %5094 = vmatprep.subr.mxu0 0.0
    %5095 = vmatpush2.msra.mxu0 0.0
    %5096 = vmatprep.subr.mxu0 0.0
    %5097 = vmatpush2.msra.mxu0 0.0
    %5098 = vmatprep.subr.mxu0 0.0
    %5099 = vmatpush2.msra.mxu0 0.0
    %5100 = vmatprep.subr.mxu0 0.0
    %5101 = vmatpush2.msra.mxu0 0.0
    %5102 = vmatprep.mubr.f32.mxu0 0.0
    %5103 = vmatmul.mubr.f32.gmra.mxu0 %v4626
    %v5104 = vpop.f32.mrf.mxu0
    %v5105 = vadd.f32 0.0, %v5104
    %v5106 = vpop.f32.mrf.mxu0
    %v5107 = vadd.f32 0.0, %v5106
    %5108 = vdwg.mxu0
    %v5109 = vadd.f32 %v746, %v5034
    %v5110 = vadd.f32 %v748, %v5036
    %v5111 = vadd.f32 %v859, %v5105
    %v5112 = vadd.f32 %v861, %v5107
    %v5113 = vxor.u32 %v5109, 2147483648
    %v5114 = vmul.f32 %v5113, 1.442695
    %v5115 = vpow.pop %v5114
    %v5116 = vadd.f32 %v5115, 1.0
    %v5117 = vrcp.pop %v5116
    %v5118 = vmul.f32 1.0, %v5117
    %v5119 = vxor.u32 %v5110, 2147483648
    %v5120 = vmul.f32 %v5119, 1.442695
    %v5121 = vpow.pop %v5120
    %v5122 = vadd.f32 %v5121, 1.0
    %v5123 = vrcp.pop %v5122
    %v5124 = vmul.f32 1.0, %v5123
    %v5125 = vtanh.pop %v5111
    %v5126 = vxor.u32 %v5112, 2147483648
    %v5127 = vmul.f32 %v5126, 1.442695
    %v5128 = vpow.pop %v5127
    %v5129 = vadd.f32 %v5128, 1.0
    %v5130 = vrcp.pop %v5129
    %v5131 = vmul.f32 1.0, %v5130
    %v5132 = vmul.f32 %v5124, %v4624
    %v5133 = vmul.f32 %v5118, %v5125
    %v5134 = vadd.f32 %v5132, %v5133
    %v5135 = vtanh.pop %v5134
    %v5136 = vmul.f32 %v5131, %v5135
    %v5137 = vld [vmem:[#allocation6] sm:$0xff]
    %v5138 = vld [vmem:[#allocation6 + $0x8] sm:$0xff]
    %v5139 = vld [vmem:[#allocation6 + $0x10] sm:$0xff]
    %v5140 = vld [vmem:[#allocation6 + $0x18] sm:$0xff]
    %v5141 = vld [vmem:[#allocation6 + $0x20] sm:$0xff]
    %v5142 = vld [vmem:[#allocation6 + $0x28] sm:$0xff]
    %v5143 = vld [vmem:[#allocation6 + $0x30] sm:$0xff]
    %v5144 = vld [vmem:[#allocation6 + $0x38] sm:$0xff]
    %v5145 = vld [vmem:[#allocation6 + $0x40] sm:$0xff]
    %v5146 = vld [vmem:[#allocation6 + $0x48] sm:$0xff]
    %v5147 = vld [vmem:[#allocation6 + $0x50] sm:$0xff]
    %v5148 = vld [vmem:[#allocation6 + $0x58] sm:$0xff]
    %v5149 = vld [vmem:[#allocation6 + $0x60] sm:$0xff]
    %v5150 = vld [vmem:[#allocation6 + $0x68] sm:$0xff]
    %v5151 = vld [vmem:[#allocation6 + $0x70] sm:$0xff]
    %v5152 = vld [vmem:[#allocation6 + $0x78] sm:$0xff]
    %s5153 = scalar_lea.vmem [#allocation6], 128
    %v5154 = vld [vmem:[%s5153] sm:$0xff]
    %v5155 = vld [vmem:[%s5153 + $0x8] sm:$0xff]
    %v5156 = vld [vmem:[%s5153 + $0x10] sm:$0xff]
    %v5157 = vld [vmem:[%s5153 + $0x18] sm:$0xff]
    %v5158 = vld [vmem:[%s5153 + $0x20] sm:$0xff]
    %v5159 = vld [vmem:[%s5153 + $0x28] sm:$0xff]
    %v5160 = vld [vmem:[%s5153 + $0x30] sm:$0xff]
    %v5161 = vld [vmem:[%s5153 + $0x38] sm:$0xff]
    %v5162 = vld [vmem:[%s5153 + $0x40] sm:$0xff]
    %v5163 = vld [vmem:[%s5153 + $0x48] sm:$0xff]
    %v5164 = vld [vmem:[%s5153 + $0x50] sm:$0xff]
    %v5165 = vld [vmem:[%s5153 + $0x58] sm:$0xff]
    %v5166 = vld [vmem:[%s5153 + $0x60] sm:$0xff]
    %v5167 = vld [vmem:[%s5153 + $0x68] sm:$0xff]
    %v5168 = vld [vmem:[%s5153 + $0x70] sm:$0xff]
    %v5169 = vld [vmem:[%s5153 + $0x78] sm:$0xff]
    %5170 = vmatprep.subr.mxu0 0.0
    %5171 = vmatpush1.msra.mxu0 %v5169
    %5172 = vmatprep.subr.mxu0 0.0
    %5173 = vmatpush1.msra.mxu0 %v5168
    %5174 = vmatprep.subr.mxu0 0.0
    %5175 = vmatpush1.msra.mxu0 %v5167
    %5176 = vmatprep.subr.mxu0 0.0
    %5177 = vmatpush1.msra.mxu0 %v5166
    %5178 = vmatprep.subr.mxu0 0.0
    %5179 = vmatpush1.msra.mxu0 %v5165
    %5180 = vmatprep.subr.mxu0 0.0
    %5181 = vmatpush1.msra.mxu0 %v5164
    %5182 = vmatprep.subr.mxu0 0.0
    %5183 = vmatpush1.msra.mxu0 %v5163
    %5184 = vmatprep.subr.mxu0 0.0
    %5185 = vmatpush1.msra.mxu0 %v5162
    %5186 = vmatprep.subr.mxu0 0.0
    %5187 = vmatpush1.msra.mxu0 %v5161
    %5188 = vmatprep.subr.mxu0 0.0
    %5189 = vmatpush1.msra.mxu0 %v5160
    %5190 = vmatprep.subr.mxu0 0.0
    %5191 = vmatpush1.msra.mxu0 %v5159
    %5192 = vmatprep.subr.mxu0 0.0
    %5193 = vmatpush1.msra.mxu0 %v5158
    %5194 = vmatprep.subr.mxu0 0.0
    %5195 = vmatpush1.msra.mxu0 %v5157
    %5196 = vmatprep.subr.mxu0 0.0
    %5197 = vmatpush1.msra.mxu0 %v5156
    %5198 = vmatprep.subr.mxu0 0.0
    %5199 = vmatpush1.msra.mxu0 %v5155
    %5200 = vmatprep.subr.mxu0 0.0
    %5201 = vmatpush1.msra.mxu0 %v5154
    %5202 = vmatprep.subr.mxu0 0.0
    %5203 = vmatpush2.msra.mxu0 0.0
    %5204 = vmatprep.subr.mxu0 0.0
    %5205 = vmatpush2.msra.mxu0 0.0
    %5206 = vmatprep.subr.mxu0 0.0
    %5207 = vmatpush2.msra.mxu0 0.0
    %5208 = vmatprep.subr.mxu0 0.0
    %5209 = vmatpush2.msra.mxu0 0.0
    %5210 = vmatprep.subr.mxu0 0.0
    %5211 = vmatpush2.msra.mxu0 0.0
    %5212 = vmatprep.subr.mxu0 0.0
    %5213 = vmatpush2.msra.mxu0 0.0
    %5214 = vmatprep.subr.mxu0 0.0
    %5215 = vmatpush2.msra.mxu0 0.0
    %5216 = vmatprep.subr.mxu0 0.0
    %5217 = vmatpush2.msra.mxu0 0.0
    %5218 = vmatprep.subr.mxu0 0.0
    %5219 = vmatpush2.msra.mxu0 0.0
    %5220 = vmatprep.subr.mxu0 0.0
    %5221 = vmatpush2.msra.mxu0 0.0
    %5222 = vmatprep.subr.mxu0 0.0
    %5223 = vmatpush2.msra.mxu0 0.0
    %5224 = vmatprep.subr.mxu0 0.0
    %5225 = vmatpush2.msra.mxu0 0.0
    %5226 = vmatprep.subr.mxu0 0.0
    %5227 = vmatpush2.msra.mxu0 0.0
    %5228 = vmatprep.subr.mxu0 0.0
    %5229 = vmatpush2.msra.mxu0 0.0
    %5230 = vmatprep.subr.mxu0 0.0
    %5231 = vmatpush2.msra.mxu0 0.0
    %5232 = vmatprep.subr.mxu0 0.0
    %5233 = vmatpush2.msra.mxu0 0.0
    %5234 = vmatprep.mubr.f32.mxu0 0.0
    %5235 = vmatmul.mubr.f32.gmra.mxu0 %v4966
    %v5236 = vpop.f32.mrf.mxu0
    %v5237 = vadd.f32 0.0, %v5236
    %v5238 = vpop.f32.mrf.mxu0
    %5239 = vdwg.mxu0
    %5240 = vmatprep.subr.mxu0 0.0
    %5241 = vmatpush1.msra.mxu0 %v5152
    %5242 = vmatprep.subr.mxu0 0.0
    %5243 = vmatpush1.msra.mxu0 %v5151
    %5244 = vmatprep.subr.mxu0 0.0
    %5245 = vmatpush1.msra.mxu0 %v5150
    %5246 = vmatprep.subr.mxu0 0.0
    %5247 = vmatpush1.msra.mxu0 %v5149
    %5248 = vmatprep.subr.mxu0 0.0
    %5249 = vmatpush1.msra.mxu0 %v5148
    %5250 = vmatprep.subr.mxu0 0.0
    %5251 = vmatpush1.msra.mxu0 %v5147
    %5252 = vmatprep.subr.mxu0 0.0
    %5253 = vmatpush1.msra.mxu0 %v5146
    %5254 = vmatprep.subr.mxu0 0.0
    %5255 = vmatpush1.msra.mxu0 %v5145
    %5256 = vmatprep.subr.mxu0 0.0
    %5257 = vmatpush1.msra.mxu0 %v5144
    %5258 = vmatprep.subr.mxu0 0.0
    %5259 = vmatpush1.msra.mxu0 %v5143
    %5260 = vmatprep.subr.mxu0 0.0
    %5261 = vmatpush1.msra.mxu0 %v5142
    %5262 = vmatprep.subr.mxu0 0.0
    %5263 = vmatpush1.msra.mxu0 %v5141
    %5264 = vmatprep.subr.mxu0 0.0
    %5265 = vmatpush1.msra.mxu0 %v5140
    %5266 = vmatprep.subr.mxu0 0.0
    %5267 = vmatpush1.msra.mxu0 %v5139
    %5268 = vmatprep.subr.mxu0 0.0
    %5269 = vmatpush1.msra.mxu0 %v5138
    %5270 = vmatprep.subr.mxu0 0.0
    %5271 = vmatpush1.msra.mxu0 %v5137
    %5272 = vmatprep.subr.mxu0 0.0
    %5273 = vmatpush2.msra.mxu0 0.0
    %5274 = vmatprep.subr.mxu0 0.0
    %5275 = vmatpush2.msra.mxu0 0.0
    %5276 = vmatprep.subr.mxu0 0.0
    %5277 = vmatpush2.msra.mxu0 0.0
    %5278 = vmatprep.subr.mxu0 0.0
    %5279 = vmatpush2.msra.mxu0 0.0
    %5280 = vmatprep.subr.mxu0 0.0
    %5281 = vmatpush2.msra.mxu0 0.0
    %5282 = vmatprep.subr.mxu0 0.0
    %5283 = vmatpush2.msra.mxu0 0.0
    %5284 = vmatprep.subr.mxu0 0.0
    %5285 = vmatpush2.msra.mxu0 0.0
    %5286 = vmatprep.subr.mxu0 0.0
    %5287 = vmatpush2.msra.mxu0 0.0
    %5288 = vmatprep.subr.mxu0 0.0
    %5289 = vmatpush2.msra.mxu0 0.0
    %5290 = vmatprep.subr.mxu0 0.0
    %5291 = vmatpush2.msra.mxu0 0.0
    %5292 = vmatprep.subr.mxu0 0.0
    %5293 = vmatpush2.msra.mxu0 0.0
    %5294 = vmatprep.subr.mxu0 0.0
    %5295 = vmatpush2.msra.mxu0 0.0
    %5296 = vmatprep.subr.mxu0 0.0
    %5297 = vmatpush2.msra.mxu0 0.0
    %5298 = vmatprep.subr.mxu0 0.0
    %5299 = vmatpush2.msra.mxu0 0.0
    %5300 = vmatprep.subr.mxu0 0.0
    %5301 = vmatpush2.msra.mxu0 0.0
    %5302 = vmatprep.subr.mxu0 0.0
    %5303 = vmatpush2.msra.mxu0 0.0
    %5304 = vmatprep.mubr.f32.mxu0 0.0
    %5305 = vmatmul.mubr.f32.gmra.mxu0 %v4796
    %v5306 = vpop.f32.mrf.mxu0
    %v5307 = vadd.f32 %v5237, %v5306
    %v5308 = vpop.f32.mrf.mxu0
    %5309 = vdwg.mxu0
    %s5310 = scalar_lea.vmem [#allocation6], 256
    %v5311 = vld [vmem:[%s5310] sm:$0xff]
    %v5312 = vld [vmem:[%s5310 + $0x8] sm:$0xff]
    %v5313 = vld [vmem:[%s5310 + $0x10] sm:$0xff]
    %v5314 = vld [vmem:[%s5310 + $0x18] sm:$0xff]
    %v5315 = vld [vmem:[%s5310 + $0x20] sm:$0xff]
    %v5316 = vld [vmem:[%s5310 + $0x28] sm:$0xff]
    %v5317 = vld [vmem:[%s5310 + $0x30] sm:$0xff]
    %v5318 = vld [vmem:[%s5310 + $0x38] sm:$0xff]
    %v5319 = vld [vmem:[%s5310 + $0x40] sm:$0xff]
    %v5320 = vld [vmem:[%s5310 + $0x48] sm:$0xff]
    %v5321 = vld [vmem:[%s5310 + $0x50] sm:$0xff]
    %v5322 = vld [vmem:[%s5310 + $0x58] sm:$0xff]
    %v5323 = vld [vmem:[%s5310 + $0x60] sm:$0xff]
    %v5324 = vld [vmem:[%s5310 + $0x68] sm:$0xff]
    %v5325 = vld [vmem:[%s5310 + $0x70] sm:$0xff]
    %v5326 = vld [vmem:[%s5310 + $0x78] sm:$0xff]
    %5327 = vmatprep.subr.mxu0 0.0
    %5328 = vmatpush1.msra.mxu0 %v5326
    %5329 = vmatprep.subr.mxu0 0.0
    %5330 = vmatpush1.msra.mxu0 %v5325
    %5331 = vmatprep.subr.mxu0 0.0
    %5332 = vmatpush1.msra.mxu0 %v5324
    %5333 = vmatprep.subr.mxu0 0.0
    %5334 = vmatpush1.msra.mxu0 %v5323
    %5335 = vmatprep.subr.mxu0 0.0
    %5336 = vmatpush1.msra.mxu0 %v5322
    %5337 = vmatprep.subr.mxu0 0.0
    %5338 = vmatpush1.msra.mxu0 %v5321
    %5339 = vmatprep.subr.mxu0 0.0
    %5340 = vmatpush1.msra.mxu0 %v5320
    %5341 = vmatprep.subr.mxu0 0.0
    %5342 = vmatpush1.msra.mxu0 %v5319
    %5343 = vmatprep.subr.mxu0 0.0
    %5344 = vmatpush1.msra.mxu0 %v5318
    %5345 = vmatprep.subr.mxu0 0.0
    %5346 = vmatpush1.msra.mxu0 %v5317
    %5347 = vmatprep.subr.mxu0 0.0
    %5348 = vmatpush1.msra.mxu0 %v5316
    %5349 = vmatprep.subr.mxu0 0.0
    %5350 = vmatpush1.msra.mxu0 %v5315
    %5351 = vmatprep.subr.mxu0 0.0
    %5352 = vmatpush1.msra.mxu0 %v5314
    %5353 = vmatprep.subr.mxu0 0.0
    %5354 = vmatpush1.msra.mxu0 %v5313
    %5355 = vmatprep.subr.mxu0 0.0
    %5356 = vmatpush1.msra.mxu0 %v5312
    %5357 = vmatprep.subr.mxu0 0.0
    %5358 = vmatpush1.msra.mxu0 %v5311
    %5359 = vmatprep.subr.mxu0 0.0
    %5360 = vmatpush2.msra.mxu0 0.0
    %5361 = vmatprep.subr.mxu0 0.0
    %5362 = vmatpush2.msra.mxu0 0.0
    %5363 = vmatprep.subr.mxu0 0.0
    %5364 = vmatpush2.msra.mxu0 0.0
    %5365 = vmatprep.subr.mxu0 0.0
    %5366 = vmatpush2.msra.mxu0 0.0
    %5367 = vmatprep.subr.mxu0 0.0
    %5368 = vmatpush2.msra.mxu0 0.0
    %5369 = vmatprep.subr.mxu0 0.0
    %5370 = vmatpush2.msra.mxu0 0.0
    %5371 = vmatprep.subr.mxu0 0.0
    %5372 = vmatpush2.msra.mxu0 0.0
    %5373 = vmatprep.subr.mxu0 0.0
    %5374 = vmatpush2.msra.mxu0 0.0
    %5375 = vmatprep.subr.mxu0 0.0
    %5376 = vmatpush2.msra.mxu0 0.0
    %5377 = vmatprep.subr.mxu0 0.0
    %5378 = vmatpush2.msra.mxu0 0.0
    %5379 = vmatprep.subr.mxu0 0.0
    %5380 = vmatpush2.msra.mxu0 0.0
    %5381 = vmatprep.subr.mxu0 0.0
    %5382 = vmatpush2.msra.mxu0 0.0
    %5383 = vmatprep.subr.mxu0 0.0
    %5384 = vmatpush2.msra.mxu0 0.0
    %5385 = vmatprep.subr.mxu0 0.0
    %5386 = vmatpush2.msra.mxu0 0.0
    %5387 = vmatprep.subr.mxu0 0.0
    %5388 = vmatpush2.msra.mxu0 0.0
    %5389 = vmatprep.subr.mxu0 0.0
    %5390 = vmatpush2.msra.mxu0 0.0
    %5391 = vmatprep.mubr.f32.mxu0 0.0
    %5392 = vmatmul.mubr.f32.gmra.mxu0 %v5136
    %v5393 = vpop.f32.mrf.mxu0
    %v5394 = vadd.f32 0.0, %v5393
    %v5395 = vpop.f32.mrf.mxu0
    %5396 = vdwg.mxu0
    %v5397 = vadd.f32 %v5307, %v5394
    %v5398 = vld [vmem:[%s5] sm:$0x1]
    %v5400 = vlaneseq
    %v5401 = vshrl.u32 %v5400, 7
    %v5402 = vsub.s32 0, %v5401
    %v5403 = vrot.slane %v5398, %v5402
    %v5405 = vadd.f32 %v5397, %v5403
    %5406 = vst [vmem:[%s6] sm:$0xff] %v5405
    // Predicated region
    $region38: #{xlstm_branch_forward.1} parent=1 // pred_check
      _
    $region39: #{xlstm_branch_forward.1} parent=1 // pred_check_branch
      %5408 = sbr.rel (0) target = $region41
    $region40: #{xlstm_branch_forward.1} parent=1 // pred_region
      _
    $region41: #{xlstm_branch_forward.1} parent=1 // pred_fallthru
      _
    // Predicated region
    $region42: #{xlstm_branch_forward.1} parent=1 // pred_check
      _
    $region43: #{xlstm_branch_forward.1} parent=1 // pred_check_branch
      %5410 = sbr.rel (0) target = $region45
    $region44: #{xlstm_branch_forward.1} parent=1 // pred_region
      _
    $region45: #{xlstm_branch_forward.1} parent=1 // pred_fallthru
      _
    %5411 = vsyncpa [#allocation3], 1
    %5412 = vsyncpa [#allocation5], 1

</llo_original>
